<compile_context>
chip_gen: v7x
topology: tpu7x:2x2x1
jax: 0.10.0
libtpu: 0.0.40
codegen_flags: <defaults>
</compile_context>

<pallas_src>
import jax
import jax.numpy as jnp
from jax.experimental import pallas as pl
from jax.experimental.pallas import tpu as pltpu


# ----------------------------- Pallas kernels -----------------------------

def encoder_birnn_kernel(gxf_ref, gxb_ref, whf_ref, whb_ref, bhnf_ref, bhnb_ref,
                         weof_ref, weob_ref, wevf_ref, wevb_ref,
                         proj_ref, hfin_ref, encvec_ref):
    """Bidirectional GRU encoder, fwd+bwd interleaved in a single recurrence loop.

    gx*_ref : (S, 3, B, H) f32  -- hoisted x @ W_i{r,z,n} with b_ih (and b_hh for r,z)
                                   folded in; gate-major so per-step access is a free
                                   leading-axis index.
    wh*_ref : (3, H, H)   bf16  -- per-gate recurrent weights, already transposed.
    Outputs: per-direction enc_proj contributions (2, S, B, E), final hiddens (2, B, H),
             encoder_vector (B, E).
    """
    S = gxf_ref.shape[0]
    B, H = gxf_ref.shape[2], gxf_ref.shape[3]
    f32, bf16 = jnp.float32, jnp.bfloat16

    whf, whb = whf_ref[...], whb_ref[...]
    bhnf, bhnb = bhnf_ref[...], bhnb_ref[...]      # (1, H) b_hh_n per direction
    weof, weob = weof_ref[...], weob_ref[...]      # (H, E) encoder_output_layer halves

    def gru_step(h, gx, wh, bhn):
        # gx: (3, B, H) = [Wir x + b_ir + b_hr,  Wiz x + b_iz + b_hz,  Win x + b_in]
        h16 = h.astype(bf16)
        r = jax.nn.sigmoid(gx[0] + jnp.dot(h16, wh[0], preferred_element_type=f32))
        z = jax.nn.sigmoid(gx[1] + jnp.dot(h16, wh[1], preferred_element_type=f32))
        n = jnp.tanh(gx[2] + r * (jnp.dot(h16, wh[2], preferred_element_type=f32) + bhn))
        return (1.0 - z) * n + z * h

    def step(t, carry):
        h_f, h_b = carry
        tb = S - 1 - t
        h_f = gru_step(h_f, gxf_ref[t], whf, bhnf)     # fwd chain, position t
        h_b = gru_step(h_b, gxb_ref[tb], whb, bhnb)    # bwd chain, position S-1-t
        # fused encoder_output_layer: off the critical h-chain, rides the idle MXU
        proj_ref[0, t] = jnp.dot(h_f.astype(bf16), weof, preferred_element_type=f32)
        proj_ref[1, tb] = jnp.dot(h_b.astype(bf16), weob, preferred_element_type=f32)
        return (h_f, h_b)

    h_init = jnp.zeros((B, H), f32)
    h_f, h_b = jax.lax.fori_loop(0, S, step, (h_init, h_init), unroll=True)
    # TODO(synk): at production S, sweep unroll in {False, 2, 4} (full unroll is only
    # right for short sequences).

    hfin_ref[0] = h_f
    hfin_ref[1] = h_b
    # fused encoder_vector_layer(concat(h_f, h_b))
    encvec_ref[...] = (jnp.dot(h_f.astype(bf16), wevf_ref[...], preferred_element_type=f32)
                       + jnp.dot(h_b.astype(bf16), wevb_ref[...], preferred_element_type=f32))


def decoder_luong_kernel(encp_ref, h0_ref, emb_ref, wdi_ref, wdh_ref, bd_ref,
                         wdo_ref, wavc_ref, wavd_ref, out_ref, att_ref):
    """Greedy GRU decoder with Luong attention and tied output projection."""
    B, S, E = encp_ref.shape
    V = emb_ref.shape[0]
    T = out_ref.shape[0]
    f32, bf16 = jnp.float32, jnp.bfloat16

    emb = emb_ref[...]                       # (V, E) bf16 -- single tied copy
    enc16 = encp_ref[...]                    # (B, S, E) bf16, Luong memory (context matmul)
    enc32 = enc16.astype(f32)                # hoisted once for the VPU score multiply
    wdi, wdh = wdi_ref[...], wdh_ref[...]    # (3, E, H2), (3, H2, H2) bf16 per-gate weights
    b_r, b_z, b_in, b_hn = bd_ref[0], bd_ref[1], bd_ref[2], bd_ref[3]   # (1, H2)
    wdo = wdo_ref[...]                       # (H2, E)
    wavc, wavd = wavc_ref[...], wavd_ref[...]

    iota_v = jax.lax.broadcasted_iota(jnp.int32, (B, V), 1)
    x0 = jnp.broadcast_to(emb[0:1, :], (B, E))     # decoder_embedding(<go>=0), zero row
    h_init = h0_ref[...]

    def step(i, carry):
        h, x = carry                                # h: (B, H2) f32, x: (B, E) bf16
        h16 = h.astype(bf16)
        r = jax.nn.sigmoid(jnp.dot(x, wdi[0], preferred_element_type=f32)
                           + jnp.dot(h16, wdh[0], preferred_element_type=f32) + b_r)
        z = jax.nn.sigmoid(jnp.dot(x, wdi[1], preferred_element_type=f32)
                           + jnp.dot(h16, wdh[1], preferred_element_type=f32) + b_z)
        n = jnp.tanh(jnp.dot(x, wdi[2], preferred_element_type=f32) + b_in
                     + r * (jnp.dot(h16, wdh[2], preferred_element_type=f32) + b_hn))
        h = (1.0 - z) * n + z * h

        dec_out = jnp.dot(h.astype(bf16), wdo, preferred_element_type=f32)     # (B, E)

        # Luong attention: score on the VPU (broadcast multiply + lane reduce over E),
        # softmax over S with an exact divide, context back on the MXU.
        score = jnp.sum(dec_out[:, None, :] * enc32, axis=-1)                  # (B, S)
        score = score - jnp.max(score, axis=-1, keepdims=True)
        ex = jnp.exp(score)
        att_w = ex / jnp.sum(ex, axis=-1, keepdims=True)
        context = jnp.einsum('bqs,bse->bqe', att_w[:, None, :].astype(bf16), enc16,
                             preferred_element_type=f32)[:, 0, :]              # (B, E)
        av = jnp.tanh(jnp.dot(context.astype(bf16), wavc, preferred_element_type=f32)
                      + jnp.dot(dec_out.astype(bf16), wavd, preferred_element_type=f32))

        # output_layer (three-way tied weight): logits = av @ emb.T
        logits = jax.lax.dot_general(av.astype(bf16), emb, (((1,), (1,)), ((), ())),
                                     preferred_element_type=f32)               # (B, V)
        out_ref[i] = logits
        att_ref[i] = att_w

        # greedy argmax -> one-hot -> next input embedding (small V: matmul gather)
        mx = jnp.max(logits, axis=-1, keepdims=True)
        idx = jnp.min(jnp.where(logits == mx, iota_v, V), axis=-1, keepdims=True)
        onehot = (iota_v == idx).astype(bf16)
        x_next = jnp.dot(onehot, emb, preferred_element_type=f32).astype(bf16)
        return (h, x_next)

    jax.lax.fori_loop(0, T, step, (h_init, x0), unroll=True)
    # TODO(synk): teacher forcing (host RNG) and the all-EOS early break are host-side
    # control flow in the reference; the kernel always runs T greedy steps.
    # TODO(synk): at realistic vocab, keep emb in HBM (memory_space=pl.ANY), tile the V
    # dimension of the tied logits matmul with a double-buffered DMA + running argmax,
    # stream each step's logits tile out, and replace the one-hot gather with a
    # scalar-indexed row gather of emb[idx].
    # TODO(synk): pad B to 8 sublanes / round V,H to 128-lane multiples for unmasked
    # stores at production shapes (kept unpadded here to match the reference shapes).


# ------------------------------ JAX wrapper ------------------------------

def seq2seq_forward(params, seq, *, max_tgt_len):
    """seq: [S, B] int32 token ids (time-major).  Returns (out_seq, att_seq, enc_vec)."""
    S, B = seq.shape
    bf16 = jnp.bfloat16
    emb = params['emb'].astype(jnp.float32)          # [V, E] three-way tied embedding
    V, E = emb.shape
    H = params['w_hh_f'].shape[-1]                   # per-direction encoder hidden
    H2 = 2 * H
    T = max_tgt_len

    # encoder embedding lookup (encoder_dropout == identity at inference)
    x_emb = emb[seq]                                 # (S, B, E)

    # Hoisted, gate-major input projections: one big MXU matmul per direction in XLA,
    # laid out (S, 3, B, H) so the kernel's per-step access is a free leading index.
    # b_ih (all gates) and b_hh (r, z gates) are folded in; b_hh_n stays separate.
    gate_mask = jnp.array([1.0, 1.0, 0.0], jnp.float32)[:, None]

    def gate_proj(w_ih, b_ih, b_hh):
        wi3 = w_ih.reshape(3, H, E).astype(bf16)                       # gates r, z, n
        gx = jnp.einsum('sbe,ghe->sgbh', x_emb.astype(bf16), wi3,
                        preferred_element_type=jnp.float32)            # (S, 3, B, H)
        bias = b_ih.reshape(3, H) + gate_mask * b_hh.reshape(3, H)
        return gx + bias[None, :, None, :]

    gx_f = gate_proj(params['w_ih_f'], params['b_ih_f'], params['b_hh_f'])
    gx_b = gate_proj(params['w_ih_b'], params['b_ih_b'], params['b_hh_b'])

    wh_f = jnp.transpose(params['w_hh_f'].reshape(3, H, H), (0, 2, 1)).astype(bf16)
    wh_b = jnp.transpose(params['w_hh_b'].reshape(3, H, H), (0, 2, 1)).astype(bf16)
    bhn_f = params['b_hh_f'].reshape(3, H)[2:3]                        # (1, H)
    bhn_b = params['b_hh_b'].reshape(3, H)[2:3]

    w_eo, w_ev = params['w_eo'], params['w_ev']                        # (E, 2H) each
    weo_f, weo_b = w_eo[:, :H].T.astype(bf16), w_eo[:, H:].T.astype(bf16)
    wev_f, wev_b = w_ev[:, :H].T.astype(bf16), w_ev[:, H:].T.astype(bf16)

    vmem = pl.BlockSpec(memory_space=pltpu.MemorySpace.VMEM)
    proj, h_fin, enc_vec = pl.pallas_call(
        encoder_birnn_kernel,
        out_shape=(jax.ShapeDtypeStruct((2, S, B, E), jnp.float32),    # per-dir enc_proj
                   jax.ShapeDtypeStruct((2, B, H), jnp.float32),       # final hiddens
                   jax.ShapeDtypeStruct((B, E), jnp.float32)),         # encoder_vector
        in_specs=[vmem] * 10,
        out_specs=(vmem, vmem, vmem),
        compiler_params=pltpu.CompilerParams(vmem_limit_bytes=32 * 1024 * 1024),
    )(gx_f, gx_b, wh_f, wh_b, bhn_f, bhn_b, weo_f, weo_b, wev_f, wev_b)

    # _cat_directions on the final hidden state; Luong memory made batch-major for the
    # decoder (tiny XLA transpose, keeps all per-step decoder reductions lane-axis).
    h0 = jnp.concatenate([h_fin[0], h_fin[1]], axis=-1)                # (B, 2H)
    enc_proj = jnp.transpose(proj[0] + proj[1], (1, 0, 2)).astype(bf16)  # (B, S, E)

    # decoder weights: per-gate stacks (tile-aligned leading-axis gate indexing)
    wdi = jnp.transpose(params['w_ih_d'].reshape(3, H2, E), (0, 2, 1)).astype(bf16)
    wdh = jnp.transpose(params['w_hh_d'].reshape(3, H2, H2), (0, 2, 1)).astype(bf16)
    bi3 = params['b_ih_d'].reshape(3, H2)
    bh3 = params['b_hh_d'].reshape(3, H2)
    bd = jnp.stack([bi3[0] + bh3[0], bi3[1] + bh3[1], bi3[2], bh3[2]])[:, None, :]

    w_av = params['w_av']                                              # (E, 2E)
    wavc, wavd = w_av[:, :E].T.astype(bf16), w_av[:, E:].T.astype(bf16)
    wdo = params['w_do'].T.astype(bf16)                                # (H2, E)
    emb16 = emb.astype(bf16)

    out_seq, att_seq = pl.pallas_call(
        decoder_luong_kernel,
        out_shape=(jax.ShapeDtypeStruct((T, B, V), jnp.float32),
                   jax.ShapeDtypeStruct((T, B, S), jnp.float32)),
        in_specs=[vmem] * 9,
        out_specs=(vmem, vmem),
        compiler_params=pltpu.CompilerParams(vmem_limit_bytes=32 * 1024 * 1024),
    )(enc_proj, h0, emb16, wdi, wdh, bd, wdo, wavc, wavd)

    return out_seq, att_seq, enc_vec


def init_params(key, vocab, embz, enc_h, padding_idx=0):
    """Deterministic synthetic parameters (shapes follow Seq2SeqRNN.__init__)."""
    H, H2 = enc_h, 2 * enc_h
    ks = jax.random.split(key, 17)
    u = lambda k, shape: jax.random.uniform(k, shape, jnp.float32, -0.1, 0.1)
    emb = u(ks[0], (vocab, embz)).at[padding_idx].set(0.0)   # shared 3-way tied embedding
    return dict(
        emb=emb,
        # encoder bidirectional GRU (per-direction hidden H)
        w_ih_f=u(ks[1], (3 * H, embz)), w_hh_f=u(ks[2], (3 * H, H)),
        b_ih_f=u(ks[3], (3 * H,)),      b_hh_f=u(ks[4], (3 * H,)),
        w_ih_b=u(ks[5], (3 * H, embz)), w_hh_b=u(ks[6], (3 * H, H)),
        b_ih_b=u(ks[7], (3 * H,)),      b_hh_b=u(ks[8], (3 * H,)),
        # decoder GRU (hidden H2 = 2H)
        w_ih_d=u(ks[9], (3 * H2, embz)), w_hh_d=u(ks[10], (3 * H2, H2)),
        b_ih_d=u(ks[11], (3 * H2,)),     b_hh_d=u(ks[12], (3 * H2,)),
        # bias-free Linear layers
        w_do=u(ks[13], (embz, H2)),        # decoder_output_layer
        w_eo=u(ks[14], (embz, H2)),        # encoder_output_layer
        w_av=u(ks[15], (embz, 2 * embz)),  # att_vector_layer
        w_ev=u(ks[16], (embz, H2)),        # encoder_vector_layer
    )


if __name__ == "__main__":
    VOCAB, EMBZ, HIDDEN, BATCH, SRC_LEN, MAX_TGT, PAD = 32, 16, 32, 2, 8, 6, 0
    ENC_H = HIDDEN // 2                      # PyTorch module halves hidden_size per direction

    key = jax.random.PRNGKey(0)
    kp, ks = jax.random.split(key)
    params = init_params(kp, VOCAB, EMBZ, ENC_H, PAD)
    seq = jax.random.randint(ks, (SRC_LEN, BATCH), 2, VOCAB, dtype=jnp.int32)  # [S, B]

    fwd = jax.jit(seq2seq_forward, static_argnames=('max_tgt_len',))
    out_seq, att_seq, enc_vec = fwd(params, seq, max_tgt_len=MAX_TGT)
    jax.block_until_ready((out_seq, att_seq, enc_vec))

    assert out_seq.shape == (MAX_TGT, BATCH, VOCAB)
    assert att_seq.shape == (MAX_TGT, BATCH, SRC_LEN)
    assert enc_vec.shape == (BATCH, EMBZ)
    assert bool(jnp.all(jnp.isfinite(out_seq)))
    assert bool(jnp.all(jnp.isfinite(att_seq))) and bool(jnp.all(jnp.isfinite(enc_vec)))
    print("KERNEL_OK")
</pallas_src>

<mosaic_0001>
module attributes {stable_mosaic.version = 11 : i64} {
  func.func @encoder_birnn_kernel(%arg0: memref<8x3x2x16xf32, #tpu.memory_space<vmem>>, %arg1: memref<8x3x2x16xf32, #tpu.memory_space<vmem>>, %arg2: memref<3x16x16xbf16, #tpu.memory_space<vmem>>, %arg3: memref<3x16x16xbf16, #tpu.memory_space<vmem>>, %arg4: memref<1x16xf32, #tpu.memory_space<vmem>>, %arg5: memref<1x16xf32, #tpu.memory_space<vmem>>, %arg6: memref<16x16xbf16, #tpu.memory_space<vmem>>, %arg7: memref<16x16xbf16, #tpu.memory_space<vmem>>, %arg8: memref<16x16xbf16, #tpu.memory_space<vmem>>, %arg9: memref<16x16xbf16, #tpu.memory_space<vmem>>, %arg10: memref<2x8x2x16xf32, #tpu.memory_space<vmem>>, %arg11: memref<2x2x16xf32, #tpu.memory_space<vmem>>, %arg12: memref<2x16xf32, #tpu.memory_space<vmem>>) attributes {dimension_semantics = [], scalar_prefetch = 0 : i64, scratch_operands = 0 : i64, tpu.core_type = #tpu.core_type<tc>} {
    %c0 = arith.constant 0 : index
    %c0_0 = arith.constant 0 : index
    %c0_1 = arith.constant 0 : index
    %0 = vector.load %arg2[%c0, %c0_0, %c0_1] : memref<3x16x16xbf16, #tpu.memory_space<vmem>>, vector<3x16x16xbf16>
    %c0_2 = arith.constant 0 : index
    %c0_3 = arith.constant 0 : index
    %c0_4 = arith.constant 0 : index
    %1 = vector.load %arg3[%c0_2, %c0_3, %c0_4] : memref<3x16x16xbf16, #tpu.memory_space<vmem>>, vector<3x16x16xbf16>
    %c0_5 = arith.constant 0 : index
    %c0_6 = arith.constant 0 : index
    %2 = vector.load %arg4[%c0_5, %c0_6] : memref<1x16xf32, #tpu.memory_space<vmem>>, vector<1x16xf32>
    %c0_7 = arith.constant 0 : index
    %c0_8 = arith.constant 0 : index
    %3 = vector.load %arg5[%c0_7, %c0_8] : memref<1x16xf32, #tpu.memory_space<vmem>>, vector<1x16xf32>
    %c0_9 = arith.constant 0 : index
    %c0_10 = arith.constant 0 : index
    %4 = vector.load %arg6[%c0_9, %c0_10] : memref<16x16xbf16, #tpu.memory_space<vmem>>, vector<16x16xbf16>
    %c0_11 = arith.constant 0 : index
    %c0_12 = arith.constant 0 : index
    %5 = vector.load %arg7[%c0_11, %c0_12] : memref<16x16xbf16, #tpu.memory_space<vmem>>, vector<16x16xbf16>
    %cst = arith.constant 0.000000e+00 : f32
    %6 = vector.broadcast %cst : f32 to vector<2x16xf32>
    %c0_i32 = arith.constant 0 : i32
    %c7_i32 = arith.constant 7 : i32
    %7 = arith.subi %c7_i32, %c0_i32 : i32
    %8 = arith.index_cast %c0_i32 : i32 to index
    %c0_13 = arith.constant 0 : index
    %c0_14 = arith.constant 0 : index
    %c0_15 = arith.constant 0 : index
    %9 = vector.load %arg0[%8, %c0_13, %c0_14, %c0_15] : memref<8x3x2x16xf32, #tpu.memory_space<vmem>>, vector<1x3x2x16xf32>
    %10 = vector.shape_cast %9 : vector<1x3x2x16xf32> to vector<3x2x16xf32>
    %11 = arith.truncf %6 : vector<2x16xf32> to vector<2x16xbf16>
    %12 = vector.extract_strided_slice %10 {offsets = [0, 0, 0], sizes = [1, 2, 16], strides = [1, 1, 1]} : vector<3x2x16xf32> to vector<1x2x16xf32>
    %13 = vector.shape_cast %12 : vector<1x2x16xf32> to vector<2x16xf32>
    %14 = vector.extract_strided_slice %0 {offsets = [0, 0, 0], sizes = [1, 16, 16], strides = [1, 1, 1]} : vector<3x16x16xbf16> to vector<1x16x16xbf16>
    %15 = vector.shape_cast %14 : vector<1x16x16xbf16> to vector<16x16xbf16>
    %cst_16 = arith.constant dense<0.000000e+00> : vector<2x16xf32>
    %16 = tpu.matmul %11, %15, %cst_16 {dimension_numbers = #tpu.dot_dimension_numbers<[1], [0], [0], [1], [0, 0, 1, 1], [], []>} : vector<2x16xbf16>, vector<16x16xbf16>, vector<2x16xf32> -> vector<2x16xf32>
    %17 = arith.addf %13, %16 : vector<2x16xf32>
    %18 = arith.negf %17 : vector<2x16xf32>
    %19 = math.exp %18 : vector<2x16xf32>
    %cst_17 = arith.constant 1.000000e+00 : f32
    %20 = vector.broadcast %cst_17 : f32 to vector<2x16xf32>
    %21 = arith.addf %20, %19 : vector<2x16xf32>
    %22 = arith.divf %20, %21 : vector<2x16xf32>
    %23 = vector.extract_strided_slice %10 {offsets = [1, 0, 0], sizes = [1, 2, 16], strides = [1, 1, 1]} : vector<3x2x16xf32> to vector<1x2x16xf32>
    %24 = vector.shape_cast %23 : vector<1x2x16xf32> to vector<2x16xf32>
    %25 = vector.extract_strided_slice %0 {offsets = [1, 0, 0], sizes = [1, 16, 16], strides = [1, 1, 1]} : vector<3x16x16xbf16> to vector<1x16x16xbf16>
    %26 = vector.shape_cast %25 : vector<1x16x16xbf16> to vector<16x16xbf16>
    %cst_18 = arith.constant dense<0.000000e+00> : vector<2x16xf32>
    %27 = tpu.matmul %11, %26, %cst_18 {dimension_numbers = #tpu.dot_dimension_numbers<[1], [0], [0], [1], [0, 0, 1, 1], [], []>} : vector<2x16xbf16>, vector<16x16xbf16>, vector<2x16xf32> -> vector<2x16xf32>
    %28 = arith.addf %24, %27 : vector<2x16xf32>
    %29 = arith.negf %28 : vector<2x16xf32>
    %30 = math.exp %29 : vector<2x16xf32>
    %cst_19 = arith.constant 1.000000e+00 : f32
    %31 = vector.broadcast %cst_19 : f32 to vector<2x16xf32>
    %32 = arith.addf %31, %30 : vector<2x16xf32>
    %33 = arith.divf %31, %32 : vector<2x16xf32>
    %34 = vector.extract_strided_slice %10 {offsets = [2, 0, 0], sizes = [1, 2, 16], strides = [1, 1, 1]} : vector<3x2x16xf32> to vector<1x2x16xf32>
    %35 = vector.shape_cast %34 : vector<1x2x16xf32> to vector<2x16xf32>
    %36 = vector.extract_strided_slice %0 {offsets = [2, 0, 0], sizes = [1, 16, 16], strides = [1, 1, 1]} : vector<3x16x16xbf16> to vector<1x16x16xbf16>
    %37 = vector.shape_cast %36 : vector<1x16x16xbf16> to vector<16x16xbf16>
    %cst_20 = arith.constant dense<0.000000e+00> : vector<2x16xf32>
    %38 = tpu.matmul %11, %37, %cst_20 {dimension_numbers = #tpu.dot_dimension_numbers<[1], [0], [0], [1], [0, 0, 1, 1], [], []>} : vector<2x16xbf16>, vector<16x16xbf16>, vector<2x16xf32> -> vector<2x16xf32>
    %39 = vector.broadcast %2 : vector<1x16xf32> to vector<2x16xf32>
    %40 = arith.addf %38, %39 : vector<2x16xf32>
    %41 = arith.mulf %22, %40 : vector<2x16xf32>
    %42 = arith.addf %35, %41 : vector<2x16xf32>
    %43 = math.tanh %42 : vector<2x16xf32>
    %cst_21 = arith.constant 1.000000e+00 : f32
    %44 = vector.broadcast %cst_21 : f32 to vector<2x16xf32>
    %45 = arith.subf %44, %33 : vector<2x16xf32>
    %46 = arith.mulf %45, %43 : vector<2x16xf32>
    %47 = arith.mulf %33, %6 : vector<2x16xf32>
    %48 = arith.addf %46, %47 : vector<2x16xf32>
    %49 = arith.index_cast %7 : i32 to index
    %c0_22 = arith.constant 0 : index
    %c0_23 = arith.constant 0 : index
    %c0_24 = arith.constant 0 : index
    %50 = vector.load %arg1[%49, %c0_22, %c0_23, %c0_24] : memref<8x3x2x16xf32, #tpu.memory_space<vmem>>, vector<1x3x2x16xf32>
    %51 = vector.shape_cast %50 : vector<1x3x2x16xf32> to vector<3x2x16xf32>
    %52 = arith.truncf %6 : vector<2x16xf32> to vector<2x16xbf16>
    %53 = vector.extract_strided_slice %51 {offsets = [0, 0, 0], sizes = [1, 2, 16], strides = [1, 1, 1]} : vector<3x2x16xf32> to vector<1x2x16xf32>
    %54 = vector.shape_cast %53 : vector<1x2x16xf32> to vector<2x16xf32>
    %55 = vector.extract_strided_slice %1 {offsets = [0, 0, 0], sizes = [1, 16, 16], strides = [1, 1, 1]} : vector<3x16x16xbf16> to vector<1x16x16xbf16>
    %56 = vector.shape_cast %55 : vector<1x16x16xbf16> to vector<16x16xbf16>
    %cst_25 = arith.constant dense<0.000000e+00> : vector<2x16xf32>
    %57 = tpu.matmul %52, %56, %cst_25 {dimension_numbers = #tpu.dot_dimension_numbers<[1], [0], [0], [1], [0, 0, 1, 1], [], []>} : vector<2x16xbf16>, vector<16x16xbf16>, vector<2x16xf32> -> vector<2x16xf32>
    %58 = arith.addf %54, %57 : vector<2x16xf32>
    %59 = arith.negf %58 : vector<2x16xf32>
    %60 = math.exp %59 : vector<2x16xf32>
    %cst_26 = arith.constant 1.000000e+00 : f32
    %61 = vector.broadcast %cst_26 : f32 to vector<2x16xf32>
    %62 = arith.addf %61, %60 : vector<2x16xf32>
    %63 = arith.divf %61, %62 : vector<2x16xf32>
    %64 = vector.extract_strided_slice %51 {offsets = [1, 0, 0], sizes = [1, 2, 16], strides = [1, 1, 1]} : vector<3x2x16xf32> to vector<1x2x16xf32>
    %65 = vector.shape_cast %64 : vector<1x2x16xf32> to vector<2x16xf32>
    %66 = vector.extract_strided_slice %1 {offsets = [1, 0, 0], sizes = [1, 16, 16], strides = [1, 1, 1]} : vector<3x16x16xbf16> to vector<1x16x16xbf16>
    %67 = vector.shape_cast %66 : vector<1x16x16xbf16> to vector<16x16xbf16>
    %cst_27 = arith.constant dense<0.000000e+00> : vector<2x16xf32>
    %68 = tpu.matmul %52, %67, %cst_27 {dimension_numbers = #tpu.dot_dimension_numbers<[1], [0], [0], [1], [0, 0, 1, 1], [], []>} : vector<2x16xbf16>, vector<16x16xbf16>, vector<2x16xf32> -> vector<2x16xf32>
    %69 = arith.addf %65, %68 : vector<2x16xf32>
    %70 = arith.negf %69 : vector<2x16xf32>
    %71 = math.exp %70 : vector<2x16xf32>
    %cst_28 = arith.constant 1.000000e+00 : f32
    %72 = vector.broadcast %cst_28 : f32 to vector<2x16xf32>
    %73 = arith.addf %72, %71 : vector<2x16xf32>
    %74 = arith.divf %72, %73 : vector<2x16xf32>
    %75 = vector.extract_strided_slice %51 {offsets = [2, 0, 0], sizes = [1, 2, 16], strides = [1, 1, 1]} : vector<3x2x16xf32> to vector<1x2x16xf32>
    %76 = vector.shape_cast %75 : vector<1x2x16xf32> to vector<2x16xf32>
    %77 = vector.extract_strided_slice %1 {offsets = [2, 0, 0], sizes = [1, 16, 16], strides = [1, 1, 1]} : vector<3x16x16xbf16> to vector<1x16x16xbf16>
    %78 = vector.shape_cast %77 : vector<1x16x16xbf16> to vector<16x16xbf16>
    %cst_29 = arith.constant dense<0.000000e+00> : vector<2x16xf32>
    %79 = tpu.matmul %52, %78, %cst_29 {dimension_numbers = #tpu.dot_dimension_numbers<[1], [0], [0], [1], [0, 0, 1, 1], [], []>} : vector<2x16xbf16>, vector<16x16xbf16>, vector<2x16xf32> -> vector<2x16xf32>
    %80 = vector.broadcast %3 : vector<1x16xf32> to vector<2x16xf32>
    %81 = arith.addf %79, %80 : vector<2x16xf32>
    %82 = arith.mulf %63, %81 : vector<2x16xf32>
    %83 = arith.addf %76, %82 : vector<2x16xf32>
    %84 = math.tanh %83 : vector<2x16xf32>
    %cst_30 = arith.constant 1.000000e+00 : f32
    %85 = vector.broadcast %cst_30 : f32 to vector<2x16xf32>
    %86 = arith.subf %85, %74 : vector<2x16xf32>
    %87 = arith.mulf %86, %84 : vector<2x16xf32>
    %88 = arith.mulf %74, %6 : vector<2x16xf32>
    %89 = arith.addf %87, %88 : vector<2x16xf32>
    %90 = arith.truncf %48 : vector<2x16xf32> to vector<2x16xbf16>
    %cst_31 = arith.constant dense<0.000000e+00> : vector<2x16xf32>
    %91 = tpu.matmul %90, %4, %cst_31 {dimension_numbers = #tpu.dot_dimension_numbers<[1], [0], [0], [1], [0, 0, 1, 1], [], []>} : vector<2x16xbf16>, vector<16x16xbf16>, vector<2x16xf32> -> vector<2x16xf32>
    %c0_32 = arith.constant 0 : index
    %92 = arith.index_cast %c0_i32 : i32 to index
    %c0_33 = arith.constant 0 : index
    %c0_34 = arith.constant 0 : index
    %93 = vector.load %arg10[%c0_32, %92, %c0_33, %c0_34] : memref<2x8x2x16xf32, #tpu.memory_space<vmem>>, vector<1x1x2x16xf32>
    %94 = vector.shape_cast %93 : vector<1x1x2x16xf32> to vector<2x16xf32>
    %95 = vector.shape_cast %91 : vector<2x16xf32> to vector<1x1x2x16xf32>
    tpu.vector_store %arg10[%c0_32, %92, %c0_33, %c0_34], %95 {strides = array<i32>} : memref<2x8x2x16xf32, #tpu.memory_space<vmem>>, vector<1x1x2x16xf32>,
    %96 = arith.truncf %89 : vector<2x16xf32> to vector<2x16xbf16>
    %cst_35 = arith.constant dense<0.000000e+00> : vector<2x16xf32>
    %97 = tpu.matmul %96, %5, %cst_35 {dimension_numbers = #tpu.dot_dimension_numbers<[1], [0], [0], [1], [0, 0, 1, 1], [], []>} : vector<2x16xbf16>, vector<16x16xbf16>, vector<2x16xf32> -> vector<2x16xf32>
    %c1 = arith.constant 1 : index
    %98 = arith.index_cast %7 : i32 to index
    %c0_36 = arith.constant 0 : index
    %c0_37 = arith.constant 0 : index
    %99 = vector.load %arg10[%c1, %98, %c0_36, %c0_37] : memref<2x8x2x16xf32, #tpu.memory_space<vmem>>, vector<1x1x2x16xf32>
    %100 = vector.shape_cast %99 : vector<1x1x2x16xf32> to vector<2x16xf32>
    %101 = vector.shape_cast %97 : vector<2x16xf32> to vector<1x1x2x16xf32>
    tpu.vector_store %arg10[%c1, %98, %c0_36, %c0_37], %101 {strides = array<i32>} : memref<2x8x2x16xf32, #tpu.memory_space<vmem>>, vector<1x1x2x16xf32>,
    %c1_i32 = arith.constant 1 : i32
    %c7_i32_38 = arith.constant 7 : i32
    %102 = arith.subi %c7_i32_38, %c1_i32 : i32
    %103 = arith.index_cast %c1_i32 : i32 to index
    %c0_39 = arith.constant 0 : index
    %c0_40 = arith.constant 0 : index
    %c0_41 = arith.constant 0 : index
    %104 = vector.load %arg0[%103, %c0_39, %c0_40, %c0_41] : memref<8x3x2x16xf32, #tpu.memory_space<vmem>>, vector<1x3x2x16xf32>
    %105 = vector.shape_cast %104 : vector<1x3x2x16xf32> to vector<3x2x16xf32>
    %106 = arith.truncf %48 : vector<2x16xf32> to vector<2x16xbf16>
    %107 = vector.extract_strided_slice %105 {offsets = [0, 0, 0], sizes = [1, 2, 16], strides = [1, 1, 1]} : vector<3x2x16xf32> to vector<1x2x16xf32>
    %108 = vector.shape_cast %107 : vector<1x2x16xf32> to vector<2x16xf32>
    %109 = vector.extract_strided_slice %0 {offsets = [0, 0, 0], sizes = [1, 16, 16], strides = [1, 1, 1]} : vector<3x16x16xbf16> to vector<1x16x16xbf16>
    %110 = vector.shape_cast %109 : vector<1x16x16xbf16> to vector<16x16xbf16>
    %cst_42 = arith.constant dense<0.000000e+00> : vector<2x16xf32>
    %111 = tpu.matmul %106, %110, %cst_42 {dimension_numbers = #tpu.dot_dimension_numbers<[1], [0], [0], [1], [0, 0, 1, 1], [], []>} : vector<2x16xbf16>, vector<16x16xbf16>, vector<2x16xf32> -> vector<2x16xf32>
    %112 = arith.addf %108, %111 : vector<2x16xf32>
    %113 = arith.negf %112 : vector<2x16xf32>
    %114 = math.exp %113 : vector<2x16xf32>
    %cst_43 = arith.constant 1.000000e+00 : f32
    %115 = vector.broadcast %cst_43 : f32 to vector<2x16xf32>
    %116 = arith.addf %115, %114 : vector<2x16xf32>
    %117 = arith.divf %115, %116 : vector<2x16xf32>
    %118 = vector.extract_strided_slice %105 {offsets = [1, 0, 0], sizes = [1, 2, 16], strides = [1, 1, 1]} : vector<3x2x16xf32> to vector<1x2x16xf32>
    %119 = vector.shape_cast %118 : vector<1x2x16xf32> to vector<2x16xf32>
    %120 = vector.extract_strided_slice %0 {offsets = [1, 0, 0], sizes = [1, 16, 16], strides = [1, 1, 1]} : vector<3x16x16xbf16> to vector<1x16x16xbf16>
    %121 = vector.shape_cast %120 : vector<1x16x16xbf16> to vector<16x16xbf16>
    %cst_44 = arith.constant dense<0.000000e+00> : vector<2x16xf32>
    %122 = tpu.matmul %106, %121, %cst_44 {dimension_numbers = #tpu.dot_dimension_numbers<[1], [0], [0], [1], [0, 0, 1, 1], [], []>} : vector<2x16xbf16>, vector<16x16xbf16>, vector<2x16xf32> -> vector<2x16xf32>
    %123 = arith.addf %119, %122 : vector<2x16xf32>
    %124 = arith.negf %123 : vector<2x16xf32>
    %125 = math.exp %124 : vector<2x16xf32>
    %cst_45 = arith.constant 1.000000e+00 : f32
    %126 = vector.broadcast %cst_45 : f32 to vector<2x16xf32>
    %127 = arith.addf %126, %125 : vector<2x16xf32>
    %128 = arith.divf %126, %127 : vector<2x16xf32>
    %129 = vector.extract_strided_slice %105 {offsets = [2, 0, 0], sizes = [1, 2, 16], strides = [1, 1, 1]} : vector<3x2x16xf32> to vector<1x2x16xf32>
    %130 = vector.shape_cast %129 : vector<1x2x16xf32> to vector<2x16xf32>
    %131 = vector.extract_strided_slice %0 {offsets = [2, 0, 0], sizes = [1, 16, 16], strides = [1, 1, 1]} : vector<3x16x16xbf16> to vector<1x16x16xbf16>
    %132 = vector.shape_cast %131 : vector<1x16x16xbf16> to vector<16x16xbf16>
    %cst_46 = arith.constant dense<0.000000e+00> : vector<2x16xf32>
    %133 = tpu.matmul %106, %132, %cst_46 {dimension_numbers = #tpu.dot_dimension_numbers<[1], [0], [0], [1], [0, 0, 1, 1], [], []>} : vector<2x16xbf16>, vector<16x16xbf16>, vector<2x16xf32> -> vector<2x16xf32>
    %134 = vector.broadcast %2 : vector<1x16xf32> to vector<2x16xf32>
    %135 = arith.addf %133, %134 : vector<2x16xf32>
    %136 = arith.mulf %117, %135 : vector<2x16xf32>
    %137 = arith.addf %130, %136 : vector<2x16xf32>
    %138 = math.tanh %137 : vector<2x16xf32>
    %cst_47 = arith.constant 1.000000e+00 : f32
    %139 = vector.broadcast %cst_47 : f32 to vector<2x16xf32>
    %140 = arith.subf %139, %128 : vector<2x16xf32>
    %141 = arith.mulf %140, %138 : vector<2x16xf32>
    %142 = arith.mulf %128, %48 : vector<2x16xf32>
    %143 = arith.addf %141, %142 : vector<2x16xf32>
    %144 = arith.index_cast %102 : i32 to index
    %c0_48 = arith.constant 0 : index
    %c0_49 = arith.constant 0 : index
    %c0_50 = arith.constant 0 : index
    %145 = vector.load %arg1[%144, %c0_48, %c0_49, %c0_50] : memref<8x3x2x16xf32, #tpu.memory_space<vmem>>, vector<1x3x2x16xf32>
    %146 = vector.shape_cast %145 : vector<1x3x2x16xf32> to vector<3x2x16xf32>
    %147 = arith.truncf %89 : vector<2x16xf32> to vector<2x16xbf16>
    %148 = vector.extract_strided_slice %146 {offsets = [0, 0, 0], sizes = [1, 2, 16], strides = [1, 1, 1]} : vector<3x2x16xf32> to vector<1x2x16xf32>
    %149 = vector.shape_cast %148 : vector<1x2x16xf32> to vector<2x16xf32>
    %150 = vector.extract_strided_slice %1 {offsets = [0, 0, 0], sizes = [1, 16, 16], strides = [1, 1, 1]} : vector<3x16x16xbf16> to vector<1x16x16xbf16>
    %151 = vector.shape_cast %150 : vector<1x16x16xbf16> to vector<16x16xbf16>
    %cst_51 = arith.constant dense<0.000000e+00> : vector<2x16xf32>
    %152 = tpu.matmul %147, %151, %cst_51 {dimension_numbers = #tpu.dot_dimension_numbers<[1], [0], [0], [1], [0, 0, 1, 1], [], []>} : vector<2x16xbf16>, vector<16x16xbf16>, vector<2x16xf32> -> vector<2x16xf32>
    %153 = arith.addf %149, %152 : vector<2x16xf32>
    %154 = arith.negf %153 : vector<2x16xf32>
    %155 = math.exp %154 : vector<2x16xf32>
    %cst_52 = arith.constant 1.000000e+00 : f32
    %156 = vector.broadcast %cst_52 : f32 to vector<2x16xf32>
    %157 = arith.addf %156, %155 : vector<2x16xf32>
    %158 = arith.divf %156, %157 : vector<2x16xf32>
    %159 = vector.extract_strided_slice %146 {offsets = [1, 0, 0], sizes = [1, 2, 16], strides = [1, 1, 1]} : vector<3x2x16xf32> to vector<1x2x16xf32>
    %160 = vector.shape_cast %159 : vector<1x2x16xf32> to vector<2x16xf32>
    %161 = vector.extract_strided_slice %1 {offsets = [1, 0, 0], sizes = [1, 16, 16], strides = [1, 1, 1]} : vector<3x16x16xbf16> to vector<1x16x16xbf16>
    %162 = vector.shape_cast %161 : vector<1x16x16xbf16> to vector<16x16xbf16>
    %cst_53 = arith.constant dense<0.000000e+00> : vector<2x16xf32>
    %163 = tpu.matmul %147, %162, %cst_53 {dimension_numbers = #tpu.dot_dimension_numbers<[1], [0], [0], [1], [0, 0, 1, 1], [], []>} : vector<2x16xbf16>, vector<16x16xbf16>, vector<2x16xf32> -> vector<2x16xf32>
    %164 = arith.addf %160, %163 : vector<2x16xf32>
    %165 = arith.negf %164 : vector<2x16xf32>
    %166 = math.exp %165 : vector<2x16xf32>
    %cst_54 = arith.constant 1.000000e+00 : f32
    %167 = vector.broadcast %cst_54 : f32 to vector<2x16xf32>
    %168 = arith.addf %167, %166 : vector<2x16xf32>
    %169 = arith.divf %167, %168 : vector<2x16xf32>
    %170 = vector.extract_strided_slice %146 {offsets = [2, 0, 0], sizes = [1, 2, 16], strides = [1, 1, 1]} : vector<3x2x16xf32> to vector<1x2x16xf32>
    %171 = vector.shape_cast %170 : vector<1x2x16xf32> to vector<2x16xf32>
    %172 = vector.extract_strided_slice %1 {offsets = [2, 0, 0], sizes = [1, 16, 16], strides = [1, 1, 1]} : vector<3x16x16xbf16> to vector<1x16x16xbf16>
    %173 = vector.shape_cast %172 : vector<1x16x16xbf16> to vector<16x16xbf16>
    %cst_55 = arith.constant dense<0.000000e+00> : vector<2x16xf32>
    %174 = tpu.matmul %147, %173, %cst_55 {dimension_numbers = #tpu.dot_dimension_numbers<[1], [0], [0], [1], [0, 0, 1, 1], [], []>} : vector<2x16xbf16>, vector<16x16xbf16>, vector<2x16xf32> -> vector<2x16xf32>
    %175 = vector.broadcast %3 : vector<1x16xf32> to vector<2x16xf32>
    %176 = arith.addf %174, %175 : vector<2x16xf32>
    %177 = arith.mulf %158, %176 : vector<2x16xf32>
    %178 = arith.addf %171, %177 : vector<2x16xf32>
    %179 = math.tanh %178 : vector<2x16xf32>
    %cst_56 = arith.constant 1.000000e+00 : f32
    %180 = vector.broadcast %cst_56 : f32 to vector<2x16xf32>
    %181 = arith.subf %180, %169 : vector<2x16xf32>
    %182 = arith.mulf %181, %179 : vector<2x16xf32>
    %183 = arith.mulf %169, %89 : vector<2x16xf32>
    %184 = arith.addf %182, %183 : vector<2x16xf32>
    %185 = arith.truncf %143 : vector<2x16xf32> to vector<2x16xbf16>
    %cst_57 = arith.constant dense<0.000000e+00> : vector<2x16xf32>
    %186 = tpu.matmul %185, %4, %cst_57 {dimension_numbers = #tpu.dot_dimension_numbers<[1], [0], [0], [1], [0, 0, 1, 1], [], []>} : vector<2x16xbf16>, vector<16x16xbf16>, vector<2x16xf32> -> vector<2x16xf32>
    %c0_58 = arith.constant 0 : index
    %187 = arith.index_cast %c1_i32 : i32 to index
    %c0_59 = arith.constant 0 : index
    %c0_60 = arith.constant 0 : index
    %188 = vector.load %arg10[%c0_58, %187, %c0_59, %c0_60] : memref<2x8x2x16xf32, #tpu.memory_space<vmem>>, vector<1x1x2x16xf32>
    %189 = vector.shape_cast %188 : vector<1x1x2x16xf32> to vector<2x16xf32>
    %190 = vector.shape_cast %186 : vector<2x16xf32> to vector<1x1x2x16xf32>
    tpu.vector_store %arg10[%c0_58, %187, %c0_59, %c0_60], %190 {strides = array<i32>} : memref<2x8x2x16xf32, #tpu.memory_space<vmem>>, vector<1x1x2x16xf32>,
    %191 = arith.truncf %184 : vector<2x16xf32> to vector<2x16xbf16>
    %cst_61 = arith.constant dense<0.000000e+00> : vector<2x16xf32>
    %192 = tpu.matmul %191, %5, %cst_61 {dimension_numbers = #tpu.dot_dimension_numbers<[1], [0], [0], [1], [0, 0, 1, 1], [], []>} : vector<2x16xbf16>, vector<16x16xbf16>, vector<2x16xf32> -> vector<2x16xf32>
    %c1_62 = arith.constant 1 : index
    %193 = arith.index_cast %102 : i32 to index
    %c0_63 = arith.constant 0 : index
    %c0_64 = arith.constant 0 : index
    %194 = vector.load %arg10[%c1_62, %193, %c0_63, %c0_64] : memref<2x8x2x16xf32, #tpu.memory_space<vmem>>, vector<1x1x2x16xf32>
    %195 = vector.shape_cast %194 : vector<1x1x2x16xf32> to vector<2x16xf32>
    %196 = vector.shape_cast %192 : vector<2x16xf32> to vector<1x1x2x16xf32>
    tpu.vector_store %arg10[%c1_62, %193, %c0_63, %c0_64], %196 {strides = array<i32>} : memref<2x8x2x16xf32, #tpu.memory_space<vmem>>, vector<1x1x2x16xf32>,
    %c2_i32 = arith.constant 2 : i32
    %c7_i32_65 = arith.constant 7 : i32
    %197 = arith.subi %c7_i32_65, %c2_i32 : i32
    %198 = arith.index_cast %c2_i32 : i32 to index
    %c0_66 = arith.constant 0 : index
    %c0_67 = arith.constant 0 : index
    %c0_68 = arith.constant 0 : index
    %199 = vector.load %arg0[%198, %c0_66, %c0_67, %c0_68] : memref<8x3x2x16xf32, #tpu.memory_space<vmem>>, vector<1x3x2x16xf32>
    %200 = vector.shape_cast %199 : vector<1x3x2x16xf32> to vector<3x2x16xf32>
    %201 = arith.truncf %143 : vector<2x16xf32> to vector<2x16xbf16>
    %202 = vector.extract_strided_slice %200 {offsets = [0, 0, 0], sizes = [1, 2, 16], strides = [1, 1, 1]} : vector<3x2x16xf32> to vector<1x2x16xf32>
    %203 = vector.shape_cast %202 : vector<1x2x16xf32> to vector<2x16xf32>
    %204 = vector.extract_strided_slice %0 {offsets = [0, 0, 0], sizes = [1, 16, 16], strides = [1, 1, 1]} : vector<3x16x16xbf16> to vector<1x16x16xbf16>
    %205 = vector.shape_cast %204 : vector<1x16x16xbf16> to vector<16x16xbf16>
    %cst_69 = arith.constant dense<0.000000e+00> : vector<2x16xf32>
    %206 = tpu.matmul %201, %205, %cst_69 {dimension_numbers = #tpu.dot_dimension_numbers<[1], [0], [0], [1], [0, 0, 1, 1], [], []>} : vector<2x16xbf16>, vector<16x16xbf16>, vector<2x16xf32> -> vector<2x16xf32>
    %207 = arith.addf %203, %206 : vector<2x16xf32>
    %208 = arith.negf %207 : vector<2x16xf32>
    %209 = math.exp %208 : vector<2x16xf32>
    %cst_70 = arith.constant 1.000000e+00 : f32
    %210 = vector.broadcast %cst_70 : f32 to vector<2x16xf32>
    %211 = arith.addf %210, %209 : vector<2x16xf32>
    %212 = arith.divf %210, %211 : vector<2x16xf32>
    %213 = vector.extract_strided_slice %200 {offsets = [1, 0, 0], sizes = [1, 2, 16], strides = [1, 1, 1]} : vector<3x2x16xf32> to vector<1x2x16xf32>
    %214 = vector.shape_cast %213 : vector<1x2x16xf32> to vector<2x16xf32>
    %215 = vector.extract_strided_slice %0 {offsets = [1, 0, 0], sizes = [1, 16, 16], strides = [1, 1, 1]} : vector<3x16x16xbf16> to vector<1x16x16xbf16>
    %216 = vector.shape_cast %215 : vector<1x16x16xbf16> to vector<16x16xbf16>
    %cst_71 = arith.constant dense<0.000000e+00> : vector<2x16xf32>
    %217 = tpu.matmul %201, %216, %cst_71 {dimension_numbers = #tpu.dot_dimension_numbers<[1], [0], [0], [1], [0, 0, 1, 1], [], []>} : vector<2x16xbf16>, vector<16x16xbf16>, vector<2x16xf32> -> vector<2x16xf32>
    %218 = arith.addf %214, %217 : vector<2x16xf32>
    %219 = arith.negf %218 : vector<2x16xf32>
    %220 = math.exp %219 : vector<2x16xf32>
    %cst_72 = arith.constant 1.000000e+00 : f32
    %221 = vector.broadcast %cst_72 : f32 to vector<2x16xf32>
    %222 = arith.addf %221, %220 : vector<2x16xf32>
    %223 = arith.divf %221, %222 : vector<2x16xf32>
    %224 = vector.extract_strided_slice %200 {offsets = [2, 0, 0], sizes = [1, 2, 16], strides = [1, 1, 1]} : vector<3x2x16xf32> to vector<1x2x16xf32>
    %225 = vector.shape_cast %224 : vector<1x2x16xf32> to vector<2x16xf32>
    %226 = vector.extract_strided_slice %0 {offsets = [2, 0, 0], sizes = [1, 16, 16], strides = [1, 1, 1]} : vector<3x16x16xbf16> to vector<1x16x16xbf16>
    %227 = vector.shape_cast %226 : vector<1x16x16xbf16> to vector<16x16xbf16>
    %cst_73 = arith.constant dense<0.000000e+00> : vector<2x16xf32>
    %228 = tpu.matmul %201, %227, %cst_73 {dimension_numbers = #tpu.dot_dimension_numbers<[1], [0], [0], [1], [0, 0, 1, 1], [], []>} : vector<2x16xbf16>, vector<16x16xbf16>, vector<2x16xf32> -> vector<2x16xf32>
    %229 = vector.broadcast %2 : vector<1x16xf32> to vector<2x16xf32>
    %230 = arith.addf %228, %229 : vector<2x16xf32>
    %231 = arith.mulf %212, %230 : vector<2x16xf32>
    %232 = arith.addf %225, %231 : vector<2x16xf32>
    %233 = math.tanh %232 : vector<2x16xf32>
    %cst_74 = arith.constant 1.000000e+00 : f32
    %234 = vector.broadcast %cst_74 : f32 to vector<2x16xf32>
    %235 = arith.subf %234, %223 : vector<2x16xf32>
    %236 = arith.mulf %235, %233 : vector<2x16xf32>
    %237 = arith.mulf %223, %143 : vector<2x16xf32>
    %238 = arith.addf %236, %237 : vector<2x16xf32>
    %239 = arith.index_cast %197 : i32 to index
    %c0_75 = arith.constant 0 : index
    %c0_76 = arith.constant 0 : index
    %c0_77 = arith.constant 0 : index
    %240 = vector.load %arg1[%239, %c0_75, %c0_76, %c0_77] : memref<8x3x2x16xf32, #tpu.memory_space<vmem>>, vector<1x3x2x16xf32>
    %241 = vector.shape_cast %240 : vector<1x3x2x16xf32> to vector<3x2x16xf32>
    %242 = arith.truncf %184 : vector<2x16xf32> to vector<2x16xbf16>
    %243 = vector.extract_strided_slice %241 {offsets = [0, 0, 0], sizes = [1, 2, 16], strides = [1, 1, 1]} : vector<3x2x16xf32> to vector<1x2x16xf32>
    %244 = vector.shape_cast %243 : vector<1x2x16xf32> to vector<2x16xf32>
    %245 = vector.extract_strided_slice %1 {offsets = [0, 0, 0], sizes = [1, 16, 16], strides = [1, 1, 1]} : vector<3x16x16xbf16> to vector<1x16x16xbf16>
    %246 = vector.shape_cast %245 : vector<1x16x16xbf16> to vector<16x16xbf16>
    %cst_78 = arith.constant dense<0.000000e+00> : vector<2x16xf32>
    %247 = tpu.matmul %242, %246, %cst_78 {dimension_numbers = #tpu.dot_dimension_numbers<[1], [0], [0], [1], [0, 0, 1, 1], [], []>} : vector<2x16xbf16>, vector<16x16xbf16>, vector<2x16xf32> -> vector<2x16xf32>
    %248 = arith.addf %244, %247 : vector<2x16xf32>
    %249 = arith.negf %248 : vector<2x16xf32>
    %250 = math.exp %249 : vector<2x16xf32>
    %cst_79 = arith.constant 1.000000e+00 : f32
    %251 = vector.broadcast %cst_79 : f32 to vector<2x16xf32>
    %252 = arith.addf %251, %250 : vector<2x16xf32>
    %253 = arith.divf %251, %252 : vector<2x16xf32>
    %254 = vector.extract_strided_slice %241 {offsets = [1, 0, 0], sizes = [1, 2, 16], strides = [1, 1, 1]} : vector<3x2x16xf32> to vector<1x2x16xf32>
    %255 = vector.shape_cast %254 : vector<1x2x16xf32> to vector<2x16xf32>
    %256 = vector.extract_strided_slice %1 {offsets = [1, 0, 0], sizes = [1, 16, 16], strides = [1, 1, 1]} : vector<3x16x16xbf16> to vector<1x16x16xbf16>
    %257 = vector.shape_cast %256 : vector<1x16x16xbf16> to vector<16x16xbf16>
    %cst_80 = arith.constant dense<0.000000e+00> : vector<2x16xf32>
    %258 = tpu.matmul %242, %257, %cst_80 {dimension_numbers = #tpu.dot_dimension_numbers<[1], [0], [0], [1], [0, 0, 1, 1], [], []>} : vector<2x16xbf16>, vector<16x16xbf16>, vector<2x16xf32> -> vector<2x16xf32>
    %259 = arith.addf %255, %258 : vector<2x16xf32>
    %260 = arith.negf %259 : vector<2x16xf32>
    %261 = math.exp %260 : vector<2x16xf32>
    %cst_81 = arith.constant 1.000000e+00 : f32
    %262 = vector.broadcast %cst_81 : f32 to vector<2x16xf32>
    %263 = arith.addf %262, %261 : vector<2x16xf32>
    %264 = arith.divf %262, %263 : vector<2x16xf32>
    %265 = vector.extract_strided_slice %241 {offsets = [2, 0, 0], sizes = [1, 2, 16], strides = [1, 1, 1]} : vector<3x2x16xf32> to vector<1x2x16xf32>
    %266 = vector.shape_cast %265 : vector<1x2x16xf32> to vector<2x16xf32>
    %267 = vector.extract_strided_slice %1 {offsets = [2, 0, 0], sizes = [1, 16, 16], strides = [1, 1, 1]} : vector<3x16x16xbf16> to vector<1x16x16xbf16>
    %268 = vector.shape_cast %267 : vector<1x16x16xbf16> to vector<16x16xbf16>
    %cst_82 = arith.constant dense<0.000000e+00> : vector<2x16xf32>
    %269 = tpu.matmul %242, %268, %cst_82 {dimension_numbers = #tpu.dot_dimension_numbers<[1], [0], [0], [1], [0, 0, 1, 1], [], []>} : vector<2x16xbf16>, vector<16x16xbf16>, vector<2x16xf32> -> vector<2x16xf32>
    %270 = vector.broadcast %3 : vector<1x16xf32> to vector<2x16xf32>
    %271 = arith.addf %269, %270 : vector<2x16xf32>
    %272 = arith.mulf %253, %271 : vector<2x16xf32>
    %273 = arith.addf %266, %272 : vector<2x16xf32>
    %274 = math.tanh %273 : vector<2x16xf32>
    %cst_83 = arith.constant 1.000000e+00 : f32
    %275 = vector.broadcast %cst_83 : f32 to vector<2x16xf32>
    %276 = arith.subf %275, %264 : vector<2x16xf32>
    %277 = arith.mulf %276, %274 : vector<2x16xf32>
    %278 = arith.mulf %264, %184 : vector<2x16xf32>
    %279 = arith.addf %277, %278 : vector<2x16xf32>
    %280 = arith.truncf %238 : vector<2x16xf32> to vector<2x16xbf16>
    %cst_84 = arith.constant dense<0.000000e+00> : vector<2x16xf32>
    %281 = tpu.matmul %280, %4, %cst_84 {dimension_numbers = #tpu.dot_dimension_numbers<[1], [0], [0], [1], [0, 0, 1, 1], [], []>} : vector<2x16xbf16>, vector<16x16xbf16>, vector<2x16xf32> -> vector<2x16xf32>
    %c0_85 = arith.constant 0 : index
    %282 = arith.index_cast %c2_i32 : i32 to index
    %c0_86 = arith.constant 0 : index
    %c0_87 = arith.constant 0 : index
    %283 = vector.load %arg10[%c0_85, %282, %c0_86, %c0_87] : memref<2x8x2x16xf32, #tpu.memory_space<vmem>>, vector<1x1x2x16xf32>
    %284 = vector.shape_cast %283 : vector<1x1x2x16xf32> to vector<2x16xf32>
    %285 = vector.shape_cast %281 : vector<2x16xf32> to vector<1x1x2x16xf32>
    tpu.vector_store %arg10[%c0_85, %282, %c0_86, %c0_87], %285 {strides = array<i32>} : memref<2x8x2x16xf32, #tpu.memory_space<vmem>>, vector<1x1x2x16xf32>,
    %286 = arith.truncf %279 : vector<2x16xf32> to vector<2x16xbf16>
    %cst_88 = arith.constant dense<0.000000e+00> : vector<2x16xf32>
    %287 = tpu.matmul %286, %5, %cst_88 {dimension_numbers = #tpu.dot_dimension_numbers<[1], [0], [0], [1], [0, 0, 1, 1], [], []>} : vector<2x16xbf16>, vector<16x16xbf16>, vector<2x16xf32> -> vector<2x16xf32>
    %c1_89 = arith.constant 1 : index
    %288 = arith.index_cast %197 : i32 to index
    %c0_90 = arith.constant 0 : index
    %c0_91 = arith.constant 0 : index
    %289 = vector.load %arg10[%c1_89, %288, %c0_90, %c0_91] : memref<2x8x2x16xf32, #tpu.memory_space<vmem>>, vector<1x1x2x16xf32>
    %290 = vector.shape_cast %289 : vector<1x1x2x16xf32> to vector<2x16xf32>
    %291 = vector.shape_cast %287 : vector<2x16xf32> to vector<1x1x2x16xf32>
    tpu.vector_store %arg10[%c1_89, %288, %c0_90, %c0_91], %291 {strides = array<i32>} : memref<2x8x2x16xf32, #tpu.memory_space<vmem>>, vector<1x1x2x16xf32>,
    %c3_i32 = arith.constant 3 : i32
    %c7_i32_92 = arith.constant 7 : i32
    %292 = arith.subi %c7_i32_92, %c3_i32 : i32
    %293 = arith.index_cast %c3_i32 : i32 to index
    %c0_93 = arith.constant 0 : index
    %c0_94 = arith.constant 0 : index
    %c0_95 = arith.constant 0 : index
    %294 = vector.load %arg0[%293, %c0_93, %c0_94, %c0_95] : memref<8x3x2x16xf32, #tpu.memory_space<vmem>>, vector<1x3x2x16xf32>
    %295 = vector.shape_cast %294 : vector<1x3x2x16xf32> to vector<3x2x16xf32>
    %296 = arith.truncf %238 : vector<2x16xf32> to vector<2x16xbf16>
    %297 = vector.extract_strided_slice %295 {offsets = [0, 0, 0], sizes = [1, 2, 16], strides = [1, 1, 1]} : vector<3x2x16xf32> to vector<1x2x16xf32>
    %298 = vector.shape_cast %297 : vector<1x2x16xf32> to vector<2x16xf32>
    %299 = vector.extract_strided_slice %0 {offsets = [0, 0, 0], sizes = [1, 16, 16], strides = [1, 1, 1]} : vector<3x16x16xbf16> to vector<1x16x16xbf16>
    %300 = vector.shape_cast %299 : vector<1x16x16xbf16> to vector<16x16xbf16>
    %cst_96 = arith.constant dense<0.000000e+00> : vector<2x16xf32>
    %301 = tpu.matmul %296, %300, %cst_96 {dimension_numbers = #tpu.dot_dimension_numbers<[1], [0], [0], [1], [0, 0, 1, 1], [], []>} : vector<2x16xbf16>, vector<16x16xbf16>, vector<2x16xf32> -> vector<2x16xf32>
    %302 = arith.addf %298, %301 : vector<2x16xf32>
    %303 = arith.negf %302 : vector<2x16xf32>
    %304 = math.exp %303 : vector<2x16xf32>
    %cst_97 = arith.constant 1.000000e+00 : f32
    %305 = vector.broadcast %cst_97 : f32 to vector<2x16xf32>
    %306 = arith.addf %305, %304 : vector<2x16xf32>
    %307 = arith.divf %305, %306 : vector<2x16xf32>
    %308 = vector.extract_strided_slice %295 {offsets = [1, 0, 0], sizes = [1, 2, 16], strides = [1, 1, 1]} : vector<3x2x16xf32> to vector<1x2x16xf32>
    %309 = vector.shape_cast %308 : vector<1x2x16xf32> to vector<2x16xf32>
    %310 = vector.extract_strided_slice %0 {offsets = [1, 0, 0], sizes = [1, 16, 16], strides = [1, 1, 1]} : vector<3x16x16xbf16> to vector<1x16x16xbf16>
    %311 = vector.shape_cast %310 : vector<1x16x16xbf16> to vector<16x16xbf16>
    %cst_98 = arith.constant dense<0.000000e+00> : vector<2x16xf32>
    %312 = tpu.matmul %296, %311, %cst_98 {dimension_numbers = #tpu.dot_dimension_numbers<[1], [0], [0], [1], [0, 0, 1, 1], [], []>} : vector<2x16xbf16>, vector<16x16xbf16>, vector<2x16xf32> -> vector<2x16xf32>
    %313 = arith.addf %309, %312 : vector<2x16xf32>
    %314 = arith.negf %313 : vector<2x16xf32>
    %315 = math.exp %314 : vector<2x16xf32>
    %cst_99 = arith.constant 1.000000e+00 : f32
    %316 = vector.broadcast %cst_99 : f32 to vector<2x16xf32>
    %317 = arith.addf %316, %315 : vector<2x16xf32>
    %318 = arith.divf %316, %317 : vector<2x16xf32>
    %319 = vector.extract_strided_slice %295 {offsets = [2, 0, 0], sizes = [1, 2, 16], strides = [1, 1, 1]} : vector<3x2x16xf32> to vector<1x2x16xf32>
    %320 = vector.shape_cast %319 : vector<1x2x16xf32> to vector<2x16xf32>
    %321 = vector.extract_strided_slice %0 {offsets = [2, 0, 0], sizes = [1, 16, 16], strides = [1, 1, 1]} : vector<3x16x16xbf16> to vector<1x16x16xbf16>
    %322 = vector.shape_cast %321 : vector<1x16x16xbf16> to vector<16x16xbf16>
    %cst_100 = arith.constant dense<0.000000e+00> : vector<2x16xf32>
    %323 = tpu.matmul %296, %322, %cst_100 {dimension_numbers = #tpu.dot_dimension_numbers<[1], [0], [0], [1], [0, 0, 1, 1], [], []>} : vector<2x16xbf16>, vector<16x16xbf16>, vector<2x16xf32> -> vector<2x16xf32>
    %324 = vector.broadcast %2 : vector<1x16xf32> to vector<2x16xf32>
    %325 = arith.addf %323, %324 : vector<2x16xf32>
    %326 = arith.mulf %307, %325 : vector<2x16xf32>
    %327 = arith.addf %320, %326 : vector<2x16xf32>
    %328 = math.tanh %327 : vector<2x16xf32>
    %cst_101 = arith.constant 1.000000e+00 : f32
    %329 = vector.broadcast %cst_101 : f32 to vector<2x16xf32>
    %330 = arith.subf %329, %318 : vector<2x16xf32>
    %331 = arith.mulf %330, %328 : vector<2x16xf32>
    %332 = arith.mulf %318, %238 : vector<2x16xf32>
    %333 = arith.addf %331, %332 : vector<2x16xf32>
    %334 = arith.index_cast %292 : i32 to index
    %c0_102 = arith.constant 0 : index
    %c0_103 = arith.constant 0 : index
    %c0_104 = arith.constant 0 : index
    %335 = vector.load %arg1[%334, %c0_102, %c0_103, %c0_104] : memref<8x3x2x16xf32, #tpu.memory_space<vmem>>, vector<1x3x2x16xf32>
    %336 = vector.shape_cast %335 : vector<1x3x2x16xf32> to vector<3x2x16xf32>
    %337 = arith.truncf %279 : vector<2x16xf32> to vector<2x16xbf16>
    %338 = vector.extract_strided_slice %336 {offsets = [0, 0, 0], sizes = [1, 2, 16], strides = [1, 1, 1]} : vector<3x2x16xf32> to vector<1x2x16xf32>
    %339 = vector.shape_cast %338 : vector<1x2x16xf32> to vector<2x16xf32>
    %340 = vector.extract_strided_slice %1 {offsets = [0, 0, 0], sizes = [1, 16, 16], strides = [1, 1, 1]} : vector<3x16x16xbf16> to vector<1x16x16xbf16>
    %341 = vector.shape_cast %340 : vector<1x16x16xbf16> to vector<16x16xbf16>
    %cst_105 = arith.constant dense<0.000000e+00> : vector<2x16xf32>
    %342 = tpu.matmul %337, %341, %cst_105 {dimension_numbers = #tpu.dot_dimension_numbers<[1], [0], [0], [1], [0, 0, 1, 1], [], []>} : vector<2x16xbf16>, vector<16x16xbf16>, vector<2x16xf32> -> vector<2x16xf32>
    %343 = arith.addf %339, %342 : vector<2x16xf32>
    %344 = arith.negf %343 : vector<2x16xf32>
    %345 = math.exp %344 : vector<2x16xf32>
    %cst_106 = arith.constant 1.000000e+00 : f32
    %346 = vector.broadcast %cst_106 : f32 to vector<2x16xf32>
    %347 = arith.addf %346, %345 : vector<2x16xf32>
    %348 = arith.divf %346, %347 : vector<2x16xf32>
    %349 = vector.extract_strided_slice %336 {offsets = [1, 0, 0], sizes = [1, 2, 16], strides = [1, 1, 1]} : vector<3x2x16xf32> to vector<1x2x16xf32>
    %350 = vector.shape_cast %349 : vector<1x2x16xf32> to vector<2x16xf32>
    %351 = vector.extract_strided_slice %1 {offsets = [1, 0, 0], sizes = [1, 16, 16], strides = [1, 1, 1]} : vector<3x16x16xbf16> to vector<1x16x16xbf16>
    %352 = vector.shape_cast %351 : vector<1x16x16xbf16> to vector<16x16xbf16>
    %cst_107 = arith.constant dense<0.000000e+00> : vector<2x16xf32>
    %353 = tpu.matmul %337, %352, %cst_107 {dimension_numbers = #tpu.dot_dimension_numbers<[1], [0], [0], [1], [0, 0, 1, 1], [], []>} : vector<2x16xbf16>, vector<16x16xbf16>, vector<2x16xf32> -> vector<2x16xf32>
    %354 = arith.addf %350, %353 : vector<2x16xf32>
    %355 = arith.negf %354 : vector<2x16xf32>
    %356 = math.exp %355 : vector<2x16xf32>
    %cst_108 = arith.constant 1.000000e+00 : f32
    %357 = vector.broadcast %cst_108 : f32 to vector<2x16xf32>
    %358 = arith.addf %357, %356 : vector<2x16xf32>
    %359 = arith.divf %357, %358 : vector<2x16xf32>
    %360 = vector.extract_strided_slice %336 {offsets = [2, 0, 0], sizes = [1, 2, 16], strides = [1, 1, 1]} : vector<3x2x16xf32> to vector<1x2x16xf32>
    %361 = vector.shape_cast %360 : vector<1x2x16xf32> to vector<2x16xf32>
    %362 = vector.extract_strided_slice %1 {offsets = [2, 0, 0], sizes = [1, 16, 16], strides = [1, 1, 1]} : vector<3x16x16xbf16> to vector<1x16x16xbf16>
    %363 = vector.shape_cast %362 : vector<1x16x16xbf16> to vector<16x16xbf16>
    %cst_109 = arith.constant dense<0.000000e+00> : vector<2x16xf32>
    %364 = tpu.matmul %337, %363, %cst_109 {dimension_numbers = #tpu.dot_dimension_numbers<[1], [0], [0], [1], [0, 0, 1, 1], [], []>} : vector<2x16xbf16>, vector<16x16xbf16>, vector<2x16xf32> -> vector<2x16xf32>
    %365 = vector.broadcast %3 : vector<1x16xf32> to vector<2x16xf32>
    %366 = arith.addf %364, %365 : vector<2x16xf32>
    %367 = arith.mulf %348, %366 : vector<2x16xf32>
    %368 = arith.addf %361, %367 : vector<2x16xf32>
    %369 = math.tanh %368 : vector<2x16xf32>
    %cst_110 = arith.constant 1.000000e+00 : f32
    %370 = vector.broadcast %cst_110 : f32 to vector<2x16xf32>
    %371 = arith.subf %370, %359 : vector<2x16xf32>
    %372 = arith.mulf %371, %369 : vector<2x16xf32>
    %373 = arith.mulf %359, %279 : vector<2x16xf32>
    %374 = arith.addf %372, %373 : vector<2x16xf32>
    %375 = arith.truncf %333 : vector<2x16xf32> to vector<2x16xbf16>
    %cst_111 = arith.constant dense<0.000000e+00> : vector<2x16xf32>
    %376 = tpu.matmul %375, %4, %cst_111 {dimension_numbers = #tpu.dot_dimension_numbers<[1], [0], [0], [1], [0, 0, 1, 1], [], []>} : vector<2x16xbf16>, vector<16x16xbf16>, vector<2x16xf32> -> vector<2x16xf32>
    %c0_112 = arith.constant 0 : index
    %377 = arith.index_cast %c3_i32 : i32 to index
    %c0_113 = arith.constant 0 : index
    %c0_114 = arith.constant 0 : index
    %378 = vector.load %arg10[%c0_112, %377, %c0_113, %c0_114] : memref<2x8x2x16xf32, #tpu.memory_space<vmem>>, vector<1x1x2x16xf32>
    %379 = vector.shape_cast %378 : vector<1x1x2x16xf32> to vector<2x16xf32>
    %380 = vector.shape_cast %376 : vector<2x16xf32> to vector<1x1x2x16xf32>
    tpu.vector_store %arg10[%c0_112, %377, %c0_113, %c0_114], %380 {strides = array<i32>} : memref<2x8x2x16xf32, #tpu.memory_space<vmem>>, vector<1x1x2x16xf32>,
    %381 = arith.truncf %374 : vector<2x16xf32> to vector<2x16xbf16>
    %cst_115 = arith.constant dense<0.000000e+00> : vector<2x16xf32>
    %382 = tpu.matmul %381, %5, %cst_115 {dimension_numbers = #tpu.dot_dimension_numbers<[1], [0], [0], [1], [0, 0, 1, 1], [], []>} : vector<2x16xbf16>, vector<16x16xbf16>, vector<2x16xf32> -> vector<2x16xf32>
    %c1_116 = arith.constant 1 : index
    %383 = arith.index_cast %292 : i32 to index
    %c0_117 = arith.constant 0 : index
    %c0_118 = arith.constant 0 : index
    %384 = vector.load %arg10[%c1_116, %383, %c0_117, %c0_118] : memref<2x8x2x16xf32, #tpu.memory_space<vmem>>, vector<1x1x2x16xf32>
    %385 = vector.shape_cast %384 : vector<1x1x2x16xf32> to vector<2x16xf32>
    %386 = vector.shape_cast %382 : vector<2x16xf32> to vector<1x1x2x16xf32>
    tpu.vector_store %arg10[%c1_116, %383, %c0_117, %c0_118], %386 {strides = array<i32>} : memref<2x8x2x16xf32, #tpu.memory_space<vmem>>, vector<1x1x2x16xf32>,
    %c4_i32 = arith.constant 4 : i32
    %c7_i32_119 = arith.constant 7 : i32
    %387 = arith.subi %c7_i32_119, %c4_i32 : i32
    %388 = arith.index_cast %c4_i32 : i32 to index
    %c0_120 = arith.constant 0 : index
    %c0_121 = arith.constant 0 : index
    %c0_122 = arith.constant 0 : index
    %389 = vector.load %arg0[%388, %c0_120, %c0_121, %c0_122] : memref<8x3x2x16xf32, #tpu.memory_space<vmem>>, vector<1x3x2x16xf32>
    %390 = vector.shape_cast %389 : vector<1x3x2x16xf32> to vector<3x2x16xf32>
    %391 = arith.truncf %333 : vector<2x16xf32> to vector<2x16xbf16>
    %392 = vector.extract_strided_slice %390 {offsets = [0, 0, 0], sizes = [1, 2, 16], strides = [1, 1, 1]} : vector<3x2x16xf32> to vector<1x2x16xf32>
    %393 = vector.shape_cast %392 : vector<1x2x16xf32> to vector<2x16xf32>
    %394 = vector.extract_strided_slice %0 {offsets = [0, 0, 0], sizes = [1, 16, 16], strides = [1, 1, 1]} : vector<3x16x16xbf16> to vector<1x16x16xbf16>
    %395 = vector.shape_cast %394 : vector<1x16x16xbf16> to vector<16x16xbf16>
    %cst_123 = arith.constant dense<0.000000e+00> : vector<2x16xf32>
    %396 = tpu.matmul %391, %395, %cst_123 {dimension_numbers = #tpu.dot_dimension_numbers<[1], [0], [0], [1], [0, 0, 1, 1], [], []>} : vector<2x16xbf16>, vector<16x16xbf16>, vector<2x16xf32> -> vector<2x16xf32>
    %397 = arith.addf %393, %396 : vector<2x16xf32>
    %398 = arith.negf %397 : vector<2x16xf32>
    %399 = math.exp %398 : vector<2x16xf32>
    %cst_124 = arith.constant 1.000000e+00 : f32
    %400 = vector.broadcast %cst_124 : f32 to vector<2x16xf32>
    %401 = arith.addf %400, %399 : vector<2x16xf32>
    %402 = arith.divf %400, %401 : vector<2x16xf32>
    %403 = vector.extract_strided_slice %390 {offsets = [1, 0, 0], sizes = [1, 2, 16], strides = [1, 1, 1]} : vector<3x2x16xf32> to vector<1x2x16xf32>
    %404 = vector.shape_cast %403 : vector<1x2x16xf32> to vector<2x16xf32>
    %405 = vector.extract_strided_slice %0 {offsets = [1, 0, 0], sizes = [1, 16, 16], strides = [1, 1, 1]} : vector<3x16x16xbf16> to vector<1x16x16xbf16>
    %406 = vector.shape_cast %405 : vector<1x16x16xbf16> to vector<16x16xbf16>
    %cst_125 = arith.constant dense<0.000000e+00> : vector<2x16xf32>
    %407 = tpu.matmul %391, %406, %cst_125 {dimension_numbers = #tpu.dot_dimension_numbers<[1], [0], [0], [1], [0, 0, 1, 1], [], []>} : vector<2x16xbf16>, vector<16x16xbf16>, vector<2x16xf32> -> vector<2x16xf32>
    %408 = arith.addf %404, %407 : vector<2x16xf32>
    %409 = arith.negf %408 : vector<2x16xf32>
    %410 = math.exp %409 : vector<2x16xf32>
    %cst_126 = arith.constant 1.000000e+00 : f32
    %411 = vector.broadcast %cst_126 : f32 to vector<2x16xf32>
    %412 = arith.addf %411, %410 : vector<2x16xf32>
    %413 = arith.divf %411, %412 : vector<2x16xf32>
    %414 = vector.extract_strided_slice %390 {offsets = [2, 0, 0], sizes = [1, 2, 16], strides = [1, 1, 1]} : vector<3x2x16xf32> to vector<1x2x16xf32>
    %415 = vector.shape_cast %414 : vector<1x2x16xf32> to vector<2x16xf32>
    %416 = vector.extract_strided_slice %0 {offsets = [2, 0, 0], sizes = [1, 16, 16], strides = [1, 1, 1]} : vector<3x16x16xbf16> to vector<1x16x16xbf16>
    %417 = vector.shape_cast %416 : vector<1x16x16xbf16> to vector<16x16xbf16>
    %cst_127 = arith.constant dense<0.000000e+00> : vector<2x16xf32>
    %418 = tpu.matmul %391, %417, %cst_127 {dimension_numbers = #tpu.dot_dimension_numbers<[1], [0], [0], [1], [0, 0, 1, 1], [], []>} : vector<2x16xbf16>, vector<16x16xbf16>, vector<2x16xf32> -> vector<2x16xf32>
    %419 = vector.broadcast %2 : vector<1x16xf32> to vector<2x16xf32>
    %420 = arith.addf %418, %419 : vector<2x16xf32>
    %421 = arith.mulf %402, %420 : vector<2x16xf32>
    %422 = arith.addf %415, %421 : vector<2x16xf32>
    %423 = math.tanh %422 : vector<2x16xf32>
    %cst_128 = arith.constant 1.000000e+00 : f32
    %424 = vector.broadcast %cst_128 : f32 to vector<2x16xf32>
    %425 = arith.subf %424, %413 : vector<2x16xf32>
    %426 = arith.mulf %425, %423 : vector<2x16xf32>
    %427 = arith.mulf %413, %333 : vector<2x16xf32>
    %428 = arith.addf %426, %427 : vector<2x16xf32>
    %429 = arith.index_cast %387 : i32 to index
    %c0_129 = arith.constant 0 : index
    %c0_130 = arith.constant 0 : index
    %c0_131 = arith.constant 0 : index
    %430 = vector.load %arg1[%429, %c0_129, %c0_130, %c0_131] : memref<8x3x2x16xf32, #tpu.memory_space<vmem>>, vector<1x3x2x16xf32>
    %431 = vector.shape_cast %430 : vector<1x3x2x16xf32> to vector<3x2x16xf32>
    %432 = arith.truncf %374 : vector<2x16xf32> to vector<2x16xbf16>
    %433 = vector.extract_strided_slice %431 {offsets = [0, 0, 0], sizes = [1, 2, 16], strides = [1, 1, 1]} : vector<3x2x16xf32> to vector<1x2x16xf32>
    %434 = vector.shape_cast %433 : vector<1x2x16xf32> to vector<2x16xf32>
    %435 = vector.extract_strided_slice %1 {offsets = [0, 0, 0], sizes = [1, 16, 16], strides = [1, 1, 1]} : vector<3x16x16xbf16> to vector<1x16x16xbf16>
    %436 = vector.shape_cast %435 : vector<1x16x16xbf16> to vector<16x16xbf16>
    %cst_132 = arith.constant dense<0.000000e+00> : vector<2x16xf32>
    %437 = tpu.matmul %432, %436, %cst_132 {dimension_numbers = #tpu.dot_dimension_numbers<[1], [0], [0], [1], [0, 0, 1, 1], [], []>} : vector<2x16xbf16>, vector<16x16xbf16>, vector<2x16xf32> -> vector<2x16xf32>
    %438 = arith.addf %434, %437 : vector<2x16xf32>
    %439 = arith.negf %438 : vector<2x16xf32>
    %440 = math.exp %439 : vector<2x16xf32>
    %cst_133 = arith.constant 1.000000e+00 : f32
    %441 = vector.broadcast %cst_133 : f32 to vector<2x16xf32>
    %442 = arith.addf %441, %440 : vector<2x16xf32>
    %443 = arith.divf %441, %442 : vector<2x16xf32>
    %444 = vector.extract_strided_slice %431 {offsets = [1, 0, 0], sizes = [1, 2, 16], strides = [1, 1, 1]} : vector<3x2x16xf32> to vector<1x2x16xf32>
    %445 = vector.shape_cast %444 : vector<1x2x16xf32> to vector<2x16xf32>
    %446 = vector.extract_strided_slice %1 {offsets = [1, 0, 0], sizes = [1, 16, 16], strides = [1, 1, 1]} : vector<3x16x16xbf16> to vector<1x16x16xbf16>
    %447 = vector.shape_cast %446 : vector<1x16x16xbf16> to vector<16x16xbf16>
    %cst_134 = arith.constant dense<0.000000e+00> : vector<2x16xf32>
    %448 = tpu.matmul %432, %447, %cst_134 {dimension_numbers = #tpu.dot_dimension_numbers<[1], [0], [0], [1], [0, 0, 1, 1], [], []>} : vector<2x16xbf16>, vector<16x16xbf16>, vector<2x16xf32> -> vector<2x16xf32>
    %449 = arith.addf %445, %448 : vector<2x16xf32>
    %450 = arith.negf %449 : vector<2x16xf32>
    %451 = math.exp %450 : vector<2x16xf32>
    %cst_135 = arith.constant 1.000000e+00 : f32
    %452 = vector.broadcast %cst_135 : f32 to vector<2x16xf32>
    %453 = arith.addf %452, %451 : vector<2x16xf32>
    %454 = arith.divf %452, %453 : vector<2x16xf32>
    %455 = vector.extract_strided_slice %431 {offsets = [2, 0, 0], sizes = [1, 2, 16], strides = [1, 1, 1]} : vector<3x2x16xf32> to vector<1x2x16xf32>
    %456 = vector.shape_cast %455 : vector<1x2x16xf32> to vector<2x16xf32>
    %457 = vector.extract_strided_slice %1 {offsets = [2, 0, 0], sizes = [1, 16, 16], strides = [1, 1, 1]} : vector<3x16x16xbf16> to vector<1x16x16xbf16>
    %458 = vector.shape_cast %457 : vector<1x16x16xbf16> to vector<16x16xbf16>
    %cst_136 = arith.constant dense<0.000000e+00> : vector<2x16xf32>
    %459 = tpu.matmul %432, %458, %cst_136 {dimension_numbers = #tpu.dot_dimension_numbers<[1], [0], [0], [1], [0, 0, 1, 1], [], []>} : vector<2x16xbf16>, vector<16x16xbf16>, vector<2x16xf32> -> vector<2x16xf32>
    %460 = vector.broadcast %3 : vector<1x16xf32> to vector<2x16xf32>
    %461 = arith.addf %459, %460 : vector<2x16xf32>
    %462 = arith.mulf %443, %461 : vector<2x16xf32>
    %463 = arith.addf %456, %462 : vector<2x16xf32>
    %464 = math.tanh %463 : vector<2x16xf32>
    %cst_137 = arith.constant 1.000000e+00 : f32
    %465 = vector.broadcast %cst_137 : f32 to vector<2x16xf32>
    %466 = arith.subf %465, %454 : vector<2x16xf32>
    %467 = arith.mulf %466, %464 : vector<2x16xf32>
    %468 = arith.mulf %454, %374 : vector<2x16xf32>
    %469 = arith.addf %467, %468 : vector<2x16xf32>
    %470 = arith.truncf %428 : vector<2x16xf32> to vector<2x16xbf16>
    %cst_138 = arith.constant dense<0.000000e+00> : vector<2x16xf32>
    %471 = tpu.matmul %470, %4, %cst_138 {dimension_numbers = #tpu.dot_dimension_numbers<[1], [0], [0], [1], [0, 0, 1, 1], [], []>} : vector<2x16xbf16>, vector<16x16xbf16>, vector<2x16xf32> -> vector<2x16xf32>
    %c0_139 = arith.constant 0 : index
    %472 = arith.index_cast %c4_i32 : i32 to index
    %c0_140 = arith.constant 0 : index
    %c0_141 = arith.constant 0 : index
    %473 = vector.load %arg10[%c0_139, %472, %c0_140, %c0_141] : memref<2x8x2x16xf32, #tpu.memory_space<vmem>>, vector<1x1x2x16xf32>
    %474 = vector.shape_cast %473 : vector<1x1x2x16xf32> to vector<2x16xf32>
    %475 = vector.shape_cast %471 : vector<2x16xf32> to vector<1x1x2x16xf32>
    tpu.vector_store %arg10[%c0_139, %472, %c0_140, %c0_141], %475 {strides = array<i32>} : memref<2x8x2x16xf32, #tpu.memory_space<vmem>>, vector<1x1x2x16xf32>,
    %476 = arith.truncf %469 : vector<2x16xf32> to vector<2x16xbf16>
    %cst_142 = arith.constant dense<0.000000e+00> : vector<2x16xf32>
    %477 = tpu.matmul %476, %5, %cst_142 {dimension_numbers = #tpu.dot_dimension_numbers<[1], [0], [0], [1], [0, 0, 1, 1], [], []>} : vector<2x16xbf16>, vector<16x16xbf16>, vector<2x16xf32> -> vector<2x16xf32>
    %c1_143 = arith.constant 1 : index
    %478 = arith.index_cast %387 : i32 to index
    %c0_144 = arith.constant 0 : index
    %c0_145 = arith.constant 0 : index
    %479 = vector.load %arg10[%c1_143, %478, %c0_144, %c0_145] : memref<2x8x2x16xf32, #tpu.memory_space<vmem>>, vector<1x1x2x16xf32>
    %480 = vector.shape_cast %479 : vector<1x1x2x16xf32> to vector<2x16xf32>
    %481 = vector.shape_cast %477 : vector<2x16xf32> to vector<1x1x2x16xf32>
    tpu.vector_store %arg10[%c1_143, %478, %c0_144, %c0_145], %481 {strides = array<i32>} : memref<2x8x2x16xf32, #tpu.memory_space<vmem>>, vector<1x1x2x16xf32>,
    %c5_i32 = arith.constant 5 : i32
    %c7_i32_146 = arith.constant 7 : i32
    %482 = arith.subi %c7_i32_146, %c5_i32 : i32
    %483 = arith.index_cast %c5_i32 : i32 to index
    %c0_147 = arith.constant 0 : index
    %c0_148 = arith.constant 0 : index
    %c0_149 = arith.constant 0 : index
    %484 = vector.load %arg0[%483, %c0_147, %c0_148, %c0_149] : memref<8x3x2x16xf32, #tpu.memory_space<vmem>>, vector<1x3x2x16xf32>
    %485 = vector.shape_cast %484 : vector<1x3x2x16xf32> to vector<3x2x16xf32>
    %486 = arith.truncf %428 : vector<2x16xf32> to vector<2x16xbf16>
    %487 = vector.extract_strided_slice %485 {offsets = [0, 0, 0], sizes = [1, 2, 16], strides = [1, 1, 1]} : vector<3x2x16xf32> to vector<1x2x16xf32>
    %488 = vector.shape_cast %487 : vector<1x2x16xf32> to vector<2x16xf32>
    %489 = vector.extract_strided_slice %0 {offsets = [0, 0, 0], sizes = [1, 16, 16], strides = [1, 1, 1]} : vector<3x16x16xbf16> to vector<1x16x16xbf16>
    %490 = vector.shape_cast %489 : vector<1x16x16xbf16> to vector<16x16xbf16>
    %cst_150 = arith.constant dense<0.000000e+00> : vector<2x16xf32>
    %491 = tpu.matmul %486, %490, %cst_150 {dimension_numbers = #tpu.dot_dimension_numbers<[1], [0], [0], [1], [0, 0, 1, 1], [], []>} : vector<2x16xbf16>, vector<16x16xbf16>, vector<2x16xf32> -> vector<2x16xf32>
    %492 = arith.addf %488, %491 : vector<2x16xf32>
    %493 = arith.negf %492 : vector<2x16xf32>
    %494 = math.exp %493 : vector<2x16xf32>
    %cst_151 = arith.constant 1.000000e+00 : f32
    %495 = vector.broadcast %cst_151 : f32 to vector<2x16xf32>
    %496 = arith.addf %495, %494 : vector<2x16xf32>
    %497 = arith.divf %495, %496 : vector<2x16xf32>
    %498 = vector.extract_strided_slice %485 {offsets = [1, 0, 0], sizes = [1, 2, 16], strides = [1, 1, 1]} : vector<3x2x16xf32> to vector<1x2x16xf32>
    %499 = vector.shape_cast %498 : vector<1x2x16xf32> to vector<2x16xf32>
    %500 = vector.extract_strided_slice %0 {offsets = [1, 0, 0], sizes = [1, 16, 16], strides = [1, 1, 1]} : vector<3x16x16xbf16> to vector<1x16x16xbf16>
    %501 = vector.shape_cast %500 : vector<1x16x16xbf16> to vector<16x16xbf16>
    %cst_152 = arith.constant dense<0.000000e+00> : vector<2x16xf32>
    %502 = tpu.matmul %486, %501, %cst_152 {dimension_numbers = #tpu.dot_dimension_numbers<[1], [0], [0], [1], [0, 0, 1, 1], [], []>} : vector<2x16xbf16>, vector<16x16xbf16>, vector<2x16xf32> -> vector<2x16xf32>
    %503 = arith.addf %499, %502 : vector<2x16xf32>
    %504 = arith.negf %503 : vector<2x16xf32>
    %505 = math.exp %504 : vector<2x16xf32>
    %cst_153 = arith.constant 1.000000e+00 : f32
    %506 = vector.broadcast %cst_153 : f32 to vector<2x16xf32>
    %507 = arith.addf %506, %505 : vector<2x16xf32>
    %508 = arith.divf %506, %507 : vector<2x16xf32>
    %509 = vector.extract_strided_slice %485 {offsets = [2, 0, 0], sizes = [1, 2, 16], strides = [1, 1, 1]} : vector<3x2x16xf32> to vector<1x2x16xf32>
    %510 = vector.shape_cast %509 : vector<1x2x16xf32> to vector<2x16xf32>
    %511 = vector.extract_strided_slice %0 {offsets = [2, 0, 0], sizes = [1, 16, 16], strides = [1, 1, 1]} : vector<3x16x16xbf16> to vector<1x16x16xbf16>
    %512 = vector.shape_cast %511 : vector<1x16x16xbf16> to vector<16x16xbf16>
    %cst_154 = arith.constant dense<0.000000e+00> : vector<2x16xf32>
    %513 = tpu.matmul %486, %512, %cst_154 {dimension_numbers = #tpu.dot_dimension_numbers<[1], [0], [0], [1], [0, 0, 1, 1], [], []>} : vector<2x16xbf16>, vector<16x16xbf16>, vector<2x16xf32> -> vector<2x16xf32>
    %514 = vector.broadcast %2 : vector<1x16xf32> to vector<2x16xf32>
    %515 = arith.addf %513, %514 : vector<2x16xf32>
    %516 = arith.mulf %497, %515 : vector<2x16xf32>
    %517 = arith.addf %510, %516 : vector<2x16xf32>
    %518 = math.tanh %517 : vector<2x16xf32>
    %cst_155 = arith.constant 1.000000e+00 : f32
    %519 = vector.broadcast %cst_155 : f32 to vector<2x16xf32>
    %520 = arith.subf %519, %508 : vector<2x16xf32>
    %521 = arith.mulf %520, %518 : vector<2x16xf32>
    %522 = arith.mulf %508, %428 : vector<2x16xf32>
    %523 = arith.addf %521, %522 : vector<2x16xf32>
    %524 = arith.index_cast %482 : i32 to index
    %c0_156 = arith.constant 0 : index
    %c0_157 = arith.constant 0 : index
    %c0_158 = arith.constant 0 : index
    %525 = vector.load %arg1[%524, %c0_156, %c0_157, %c0_158] : memref<8x3x2x16xf32, #tpu.memory_space<vmem>>, vector<1x3x2x16xf32>
    %526 = vector.shape_cast %525 : vector<1x3x2x16xf32> to vector<3x2x16xf32>
    %527 = arith.truncf %469 : vector<2x16xf32> to vector<2x16xbf16>
    %528 = vector.extract_strided_slice %526 {offsets = [0, 0, 0], sizes = [1, 2, 16], strides = [1, 1, 1]} : vector<3x2x16xf32> to vector<1x2x16xf32>
    %529 = vector.shape_cast %528 : vector<1x2x16xf32> to vector<2x16xf32>
    %530 = vector.extract_strided_slice %1 {offsets = [0, 0, 0], sizes = [1, 16, 16], strides = [1, 1, 1]} : vector<3x16x16xbf16> to vector<1x16x16xbf16>
    %531 = vector.shape_cast %530 : vector<1x16x16xbf16> to vector<16x16xbf16>
    %cst_159 = arith.constant dense<0.000000e+00> : vector<2x16xf32>
    %532 = tpu.matmul %527, %531, %cst_159 {dimension_numbers = #tpu.dot_dimension_numbers<[1], [0], [0], [1], [0, 0, 1, 1], [], []>} : vector<2x16xbf16>, vector<16x16xbf16>, vector<2x16xf32> -> vector<2x16xf32>
    %533 = arith.addf %529, %532 : vector<2x16xf32>
    %534 = arith.negf %533 : vector<2x16xf32>
    %535 = math.exp %534 : vector<2x16xf32>
    %cst_160 = arith.constant 1.000000e+00 : f32
    %536 = vector.broadcast %cst_160 : f32 to vector<2x16xf32>
    %537 = arith.addf %536, %535 : vector<2x16xf32>
    %538 = arith.divf %536, %537 : vector<2x16xf32>
    %539 = vector.extract_strided_slice %526 {offsets = [1, 0, 0], sizes = [1, 2, 16], strides = [1, 1, 1]} : vector<3x2x16xf32> to vector<1x2x16xf32>
    %540 = vector.shape_cast %539 : vector<1x2x16xf32> to vector<2x16xf32>
    %541 = vector.extract_strided_slice %1 {offsets = [1, 0, 0], sizes = [1, 16, 16], strides = [1, 1, 1]} : vector<3x16x16xbf16> to vector<1x16x16xbf16>
    %542 = vector.shape_cast %541 : vector<1x16x16xbf16> to vector<16x16xbf16>
    %cst_161 = arith.constant dense<0.000000e+00> : vector<2x16xf32>
    %543 = tpu.matmul %527, %542, %cst_161 {dimension_numbers = #tpu.dot_dimension_numbers<[1], [0], [0], [1], [0, 0, 1, 1], [], []>} : vector<2x16xbf16>, vector<16x16xbf16>, vector<2x16xf32> -> vector<2x16xf32>
    %544 = arith.addf %540, %543 : vector<2x16xf32>
    %545 = arith.negf %544 : vector<2x16xf32>
    %546 = math.exp %545 : vector<2x16xf32>
    %cst_162 = arith.constant 1.000000e+00 : f32
    %547 = vector.broadcast %cst_162 : f32 to vector<2x16xf32>
    %548 = arith.addf %547, %546 : vector<2x16xf32>
    %549 = arith.divf %547, %548 : vector<2x16xf32>
    %550 = vector.extract_strided_slice %526 {offsets = [2, 0, 0], sizes = [1, 2, 16], strides = [1, 1, 1]} : vector<3x2x16xf32> to vector<1x2x16xf32>
    %551 = vector.shape_cast %550 : vector<1x2x16xf32> to vector<2x16xf32>
    %552 = vector.extract_strided_slice %1 {offsets = [2, 0, 0], sizes = [1, 16, 16], strides = [1, 1, 1]} : vector<3x16x16xbf16> to vector<1x16x16xbf16>
    %553 = vector.shape_cast %552 : vector<1x16x16xbf16> to vector<16x16xbf16>
    %cst_163 = arith.constant dense<0.000000e+00> : vector<2x16xf32>
    %554 = tpu.matmul %527, %553, %cst_163 {dimension_numbers = #tpu.dot_dimension_numbers<[1], [0], [0], [1], [0, 0, 1, 1], [], []>} : vector<2x16xbf16>, vector<16x16xbf16>, vector<2x16xf32> -> vector<2x16xf32>
    %555 = vector.broadcast %3 : vector<1x16xf32> to vector<2x16xf32>
    %556 = arith.addf %554, %555 : vector<2x16xf32>
    %557 = arith.mulf %538, %556 : vector<2x16xf32>
    %558 = arith.addf %551, %557 : vector<2x16xf32>
    %559 = math.tanh %558 : vector<2x16xf32>
    %cst_164 = arith.constant 1.000000e+00 : f32
    %560 = vector.broadcast %cst_164 : f32 to vector<2x16xf32>
    %561 = arith.subf %560, %549 : vector<2x16xf32>
    %562 = arith.mulf %561, %559 : vector<2x16xf32>
    %563 = arith.mulf %549, %469 : vector<2x16xf32>
    %564 = arith.addf %562, %563 : vector<2x16xf32>
    %565 = arith.truncf %523 : vector<2x16xf32> to vector<2x16xbf16>
    %cst_165 = arith.constant dense<0.000000e+00> : vector<2x16xf32>
    %566 = tpu.matmul %565, %4, %cst_165 {dimension_numbers = #tpu.dot_dimension_numbers<[1], [0], [0], [1], [0, 0, 1, 1], [], []>} : vector<2x16xbf16>, vector<16x16xbf16>, vector<2x16xf32> -> vector<2x16xf32>
    %c0_166 = arith.constant 0 : index
    %567 = arith.index_cast %c5_i32 : i32 to index
    %c0_167 = arith.constant 0 : index
    %c0_168 = arith.constant 0 : index
    %568 = vector.load %arg10[%c0_166, %567, %c0_167, %c0_168] : memref<2x8x2x16xf32, #tpu.memory_space<vmem>>, vector<1x1x2x16xf32>
    %569 = vector.shape_cast %568 : vector<1x1x2x16xf32> to vector<2x16xf32>
    %570 = vector.shape_cast %566 : vector<2x16xf32> to vector<1x1x2x16xf32>
    tpu.vector_store %arg10[%c0_166, %567, %c0_167, %c0_168], %570 {strides = array<i32>} : memref<2x8x2x16xf32, #tpu.memory_space<vmem>>, vector<1x1x2x16xf32>,
    %571 = arith.truncf %564 : vector<2x16xf32> to vector<2x16xbf16>
    %cst_169 = arith.constant dense<0.000000e+00> : vector<2x16xf32>
    %572 = tpu.matmul %571, %5, %cst_169 {dimension_numbers = #tpu.dot_dimension_numbers<[1], [0], [0], [1], [0, 0, 1, 1], [], []>} : vector<2x16xbf16>, vector<16x16xbf16>, vector<2x16xf32> -> vector<2x16xf32>
    %c1_170 = arith.constant 1 : index
    %573 = arith.index_cast %482 : i32 to index
    %c0_171 = arith.constant 0 : index
    %c0_172 = arith.constant 0 : index
    %574 = vector.load %arg10[%c1_170, %573, %c0_171, %c0_172] : memref<2x8x2x16xf32, #tpu.memory_space<vmem>>, vector<1x1x2x16xf32>
    %575 = vector.shape_cast %574 : vector<1x1x2x16xf32> to vector<2x16xf32>
    %576 = vector.shape_cast %572 : vector<2x16xf32> to vector<1x1x2x16xf32>
    tpu.vector_store %arg10[%c1_170, %573, %c0_171, %c0_172], %576 {strides = array<i32>} : memref<2x8x2x16xf32, #tpu.memory_space<vmem>>, vector<1x1x2x16xf32>,
    %c6_i32 = arith.constant 6 : i32
    %c7_i32_173 = arith.constant 7 : i32
    %577 = arith.subi %c7_i32_173, %c6_i32 : i32
    %578 = arith.index_cast %c6_i32 : i32 to index
    %c0_174 = arith.constant 0 : index
    %c0_175 = arith.constant 0 : index
    %c0_176 = arith.constant 0 : index
    %579 = vector.load %arg0[%578, %c0_174, %c0_175, %c0_176] : memref<8x3x2x16xf32, #tpu.memory_space<vmem>>, vector<1x3x2x16xf32>
    %580 = vector.shape_cast %579 : vector<1x3x2x16xf32> to vector<3x2x16xf32>
    %581 = arith.truncf %523 : vector<2x16xf32> to vector<2x16xbf16>
    %582 = vector.extract_strided_slice %580 {offsets = [0, 0, 0], sizes = [1, 2, 16], strides = [1, 1, 1]} : vector<3x2x16xf32> to vector<1x2x16xf32>
    %583 = vector.shape_cast %582 : vector<1x2x16xf32> to vector<2x16xf32>
    %584 = vector.extract_strided_slice %0 {offsets = [0, 0, 0], sizes = [1, 16, 16], strides = [1, 1, 1]} : vector<3x16x16xbf16> to vector<1x16x16xbf16>
    %585 = vector.shape_cast %584 : vector<1x16x16xbf16> to vector<16x16xbf16>
    %cst_177 = arith.constant dense<0.000000e+00> : vector<2x16xf32>
    %586 = tpu.matmul %581, %585, %cst_177 {dimension_numbers = #tpu.dot_dimension_numbers<[1], [0], [0], [1], [0, 0, 1, 1], [], []>} : vector<2x16xbf16>, vector<16x16xbf16>, vector<2x16xf32> -> vector<2x16xf32>
    %587 = arith.addf %583, %586 : vector<2x16xf32>
    %588 = arith.negf %587 : vector<2x16xf32>
    %589 = math.exp %588 : vector<2x16xf32>
    %cst_178 = arith.constant 1.000000e+00 : f32
    %590 = vector.broadcast %cst_178 : f32 to vector<2x16xf32>
    %591 = arith.addf %590, %589 : vector<2x16xf32>
    %592 = arith.divf %590, %591 : vector<2x16xf32>
    %593 = vector.extract_strided_slice %580 {offsets = [1, 0, 0], sizes = [1, 2, 16], strides = [1, 1, 1]} : vector<3x2x16xf32> to vector<1x2x16xf32>
    %594 = vector.shape_cast %593 : vector<1x2x16xf32> to vector<2x16xf32>
    %595 = vector.extract_strided_slice %0 {offsets = [1, 0, 0], sizes = [1, 16, 16], strides = [1, 1, 1]} : vector<3x16x16xbf16> to vector<1x16x16xbf16>
    %596 = vector.shape_cast %595 : vector<1x16x16xbf16> to vector<16x16xbf16>
    %cst_179 = arith.constant dense<0.000000e+00> : vector<2x16xf32>
    %597 = tpu.matmul %581, %596, %cst_179 {dimension_numbers = #tpu.dot_dimension_numbers<[1], [0], [0], [1], [0, 0, 1, 1], [], []>} : vector<2x16xbf16>, vector<16x16xbf16>, vector<2x16xf32> -> vector<2x16xf32>
    %598 = arith.addf %594, %597 : vector<2x16xf32>
    %599 = arith.negf %598 : vector<2x16xf32>
    %600 = math.exp %599 : vector<2x16xf32>
    %cst_180 = arith.constant 1.000000e+00 : f32
    %601 = vector.broadcast %cst_180 : f32 to vector<2x16xf32>
    %602 = arith.addf %601, %600 : vector<2x16xf32>
    %603 = arith.divf %601, %602 : vector<2x16xf32>
    %604 = vector.extract_strided_slice %580 {offsets = [2, 0, 0], sizes = [1, 2, 16], strides = [1, 1, 1]} : vector<3x2x16xf32> to vector<1x2x16xf32>
    %605 = vector.shape_cast %604 : vector<1x2x16xf32> to vector<2x16xf32>
    %606 = vector.extract_strided_slice %0 {offsets = [2, 0, 0], sizes = [1, 16, 16], strides = [1, 1, 1]} : vector<3x16x16xbf16> to vector<1x16x16xbf16>
    %607 = vector.shape_cast %606 : vector<1x16x16xbf16> to vector<16x16xbf16>
    %cst_181 = arith.constant dense<0.000000e+00> : vector<2x16xf32>
    %608 = tpu.matmul %581, %607, %cst_181 {dimension_numbers = #tpu.dot_dimension_numbers<[1], [0], [0], [1], [0, 0, 1, 1], [], []>} : vector<2x16xbf16>, vector<16x16xbf16>, vector<2x16xf32> -> vector<2x16xf32>
    %609 = vector.broadcast %2 : vector<1x16xf32> to vector<2x16xf32>
    %610 = arith.addf %608, %609 : vector<2x16xf32>
    %611 = arith.mulf %592, %610 : vector<2x16xf32>
    %612 = arith.addf %605, %611 : vector<2x16xf32>
    %613 = math.tanh %612 : vector<2x16xf32>
    %cst_182 = arith.constant 1.000000e+00 : f32
    %614 = vector.broadcast %cst_182 : f32 to vector<2x16xf32>
    %615 = arith.subf %614, %603 : vector<2x16xf32>
    %616 = arith.mulf %615, %613 : vector<2x16xf32>
    %617 = arith.mulf %603, %523 : vector<2x16xf32>
    %618 = arith.addf %616, %617 : vector<2x16xf32>
    %619 = arith.index_cast %577 : i32 to index
    %c0_183 = arith.constant 0 : index
    %c0_184 = arith.constant 0 : index
    %c0_185 = arith.constant 0 : index
    %620 = vector.load %arg1[%619, %c0_183, %c0_184, %c0_185] : memref<8x3x2x16xf32, #tpu.memory_space<vmem>>, vector<1x3x2x16xf32>
    %621 = vector.shape_cast %620 : vector<1x3x2x16xf32> to vector<3x2x16xf32>
    %622 = arith.truncf %564 : vector<2x16xf32> to vector<2x16xbf16>
    %623 = vector.extract_strided_slice %621 {offsets = [0, 0, 0], sizes = [1, 2, 16], strides = [1, 1, 1]} : vector<3x2x16xf32> to vector<1x2x16xf32>
    %624 = vector.shape_cast %623 : vector<1x2x16xf32> to vector<2x16xf32>
    %625 = vector.extract_strided_slice %1 {offsets = [0, 0, 0], sizes = [1, 16, 16], strides = [1, 1, 1]} : vector<3x16x16xbf16> to vector<1x16x16xbf16>
    %626 = vector.shape_cast %625 : vector<1x16x16xbf16> to vector<16x16xbf16>
    %cst_186 = arith.constant dense<0.000000e+00> : vector<2x16xf32>
    %627 = tpu.matmul %622, %626, %cst_186 {dimension_numbers = #tpu.dot_dimension_numbers<[1], [0], [0], [1], [0, 0, 1, 1], [], []>} : vector<2x16xbf16>, vector<16x16xbf16>, vector<2x16xf32> -> vector<2x16xf32>
    %628 = arith.addf %624, %627 : vector<2x16xf32>
    %629 = arith.negf %628 : vector<2x16xf32>
    %630 = math.exp %629 : vector<2x16xf32>
    %cst_187 = arith.constant 1.000000e+00 : f32
    %631 = vector.broadcast %cst_187 : f32 to vector<2x16xf32>
    %632 = arith.addf %631, %630 : vector<2x16xf32>
    %633 = arith.divf %631, %632 : vector<2x16xf32>
    %634 = vector.extract_strided_slice %621 {offsets = [1, 0, 0], sizes = [1, 2, 16], strides = [1, 1, 1]} : vector<3x2x16xf32> to vector<1x2x16xf32>
    %635 = vector.shape_cast %634 : vector<1x2x16xf32> to vector<2x16xf32>
    %636 = vector.extract_strided_slice %1 {offsets = [1, 0, 0], sizes = [1, 16, 16], strides = [1, 1, 1]} : vector<3x16x16xbf16> to vector<1x16x16xbf16>
    %637 = vector.shape_cast %636 : vector<1x16x16xbf16> to vector<16x16xbf16>
    %cst_188 = arith.constant dense<0.000000e+00> : vector<2x16xf32>
    %638 = tpu.matmul %622, %637, %cst_188 {dimension_numbers = #tpu.dot_dimension_numbers<[1], [0], [0], [1], [0, 0, 1, 1], [], []>} : vector<2x16xbf16>, vector<16x16xbf16>, vector<2x16xf32> -> vector<2x16xf32>
    %639 = arith.addf %635, %638 : vector<2x16xf32>
    %640 = arith.negf %639 : vector<2x16xf32>
    %641 = math.exp %640 : vector<2x16xf32>
    %cst_189 = arith.constant 1.000000e+00 : f32
    %642 = vector.broadcast %cst_189 : f32 to vector<2x16xf32>
    %643 = arith.addf %642, %641 : vector<2x16xf32>
    %644 = arith.divf %642, %643 : vector<2x16xf32>
    %645 = vector.extract_strided_slice %621 {offsets = [2, 0, 0], sizes = [1, 2, 16], strides = [1, 1, 1]} : vector<3x2x16xf32> to vector<1x2x16xf32>
    %646 = vector.shape_cast %645 : vector<1x2x16xf32> to vector<2x16xf32>
    %647 = vector.extract_strided_slice %1 {offsets = [2, 0, 0], sizes = [1, 16, 16], strides = [1, 1, 1]} : vector<3x16x16xbf16> to vector<1x16x16xbf16>
    %648 = vector.shape_cast %647 : vector<1x16x16xbf16> to vector<16x16xbf16>
    %cst_190 = arith.constant dense<0.000000e+00> : vector<2x16xf32>
    %649 = tpu.matmul %622, %648, %cst_190 {dimension_numbers = #tpu.dot_dimension_numbers<[1], [0], [0], [1], [0, 0, 1, 1], [], []>} : vector<2x16xbf16>, vector<16x16xbf16>, vector<2x16xf32> -> vector<2x16xf32>
    %650 = vector.broadcast %3 : vector<1x16xf32> to vector<2x16xf32>
    %651 = arith.addf %649, %650 : vector<2x16xf32>
    %652 = arith.mulf %633, %651 : vector<2x16xf32>
    %653 = arith.addf %646, %652 : vector<2x16xf32>
    %654 = math.tanh %653 : vector<2x16xf32>
    %cst_191 = arith.constant 1.000000e+00 : f32
    %655 = vector.broadcast %cst_191 : f32 to vector<2x16xf32>
    %656 = arith.subf %655, %644 : vector<2x16xf32>
    %657 = arith.mulf %656, %654 : vector<2x16xf32>
    %658 = arith.mulf %644, %564 : vector<2x16xf32>
    %659 = arith.addf %657, %658 : vector<2x16xf32>
    %660 = arith.truncf %618 : vector<2x16xf32> to vector<2x16xbf16>
    %cst_192 = arith.constant dense<0.000000e+00> : vector<2x16xf32>
    %661 = tpu.matmul %660, %4, %cst_192 {dimension_numbers = #tpu.dot_dimension_numbers<[1], [0], [0], [1], [0, 0, 1, 1], [], []>} : vector<2x16xbf16>, vector<16x16xbf16>, vector<2x16xf32> -> vector<2x16xf32>
    %c0_193 = arith.constant 0 : index
    %662 = arith.index_cast %c6_i32 : i32 to index
    %c0_194 = arith.constant 0 : index
    %c0_195 = arith.constant 0 : index
    %663 = vector.load %arg10[%c0_193, %662, %c0_194, %c0_195] : memref<2x8x2x16xf32, #tpu.memory_space<vmem>>, vector<1x1x2x16xf32>
    %664 = vector.shape_cast %663 : vector<1x1x2x16xf32> to vector<2x16xf32>
    %665 = vector.shape_cast %661 : vector<2x16xf32> to vector<1x1x2x16xf32>
    tpu.vector_store %arg10[%c0_193, %662, %c0_194, %c0_195], %665 {strides = array<i32>} : memref<2x8x2x16xf32, #tpu.memory_space<vmem>>, vector<1x1x2x16xf32>,
    %666 = arith.truncf %659 : vector<2x16xf32> to vector<2x16xbf16>
    %cst_196 = arith.constant dense<0.000000e+00> : vector<2x16xf32>
    %667 = tpu.matmul %666, %5, %cst_196 {dimension_numbers = #tpu.dot_dimension_numbers<[1], [0], [0], [1], [0, 0, 1, 1], [], []>} : vector<2x16xbf16>, vector<16x16xbf16>, vector<2x16xf32> -> vector<2x16xf32>
    %c1_197 = arith.constant 1 : index
    %668 = arith.index_cast %577 : i32 to index
    %c0_198 = arith.constant 0 : index
    %c0_199 = arith.constant 0 : index
    %669 = vector.load %arg10[%c1_197, %668, %c0_198, %c0_199] : memref<2x8x2x16xf32, #tpu.memory_space<vmem>>, vector<1x1x2x16xf32>
    %670 = vector.shape_cast %669 : vector<1x1x2x16xf32> to vector<2x16xf32>
    %671 = vector.shape_cast %667 : vector<2x16xf32> to vector<1x1x2x16xf32>
    tpu.vector_store %arg10[%c1_197, %668, %c0_198, %c0_199], %671 {strides = array<i32>} : memref<2x8x2x16xf32, #tpu.memory_space<vmem>>, vector<1x1x2x16xf32>,
    %c7_i32_200 = arith.constant 7 : i32
    %c7_i32_201 = arith.constant 7 : i32
    %672 = arith.subi %c7_i32_201, %c7_i32_200 : i32
    %673 = arith.index_cast %c7_i32_200 : i32 to index
    %c0_202 = arith.constant 0 : index
    %c0_203 = arith.constant 0 : index
    %c0_204 = arith.constant 0 : index
    %674 = vector.load %arg0[%673, %c0_202, %c0_203, %c0_204] : memref<8x3x2x16xf32, #tpu.memory_space<vmem>>, vector<1x3x2x16xf32>
    %675 = vector.shape_cast %674 : vector<1x3x2x16xf32> to vector<3x2x16xf32>
    %676 = arith.truncf %618 : vector<2x16xf32> to vector<2x16xbf16>
    %677 = vector.extract_strided_slice %675 {offsets = [0, 0, 0], sizes = [1, 2, 16], strides = [1, 1, 1]} : vector<3x2x16xf32> to vector<1x2x16xf32>
    %678 = vector.shape_cast %677 : vector<1x2x16xf32> to vector<2x16xf32>
    %679 = vector.extract_strided_slice %0 {offsets = [0, 0, 0], sizes = [1, 16, 16], strides = [1, 1, 1]} : vector<3x16x16xbf16> to vector<1x16x16xbf16>
    %680 = vector.shape_cast %679 : vector<1x16x16xbf16> to vector<16x16xbf16>
    %cst_205 = arith.constant dense<0.000000e+00> : vector<2x16xf32>
    %681 = tpu.matmul %676, %680, %cst_205 {dimension_numbers = #tpu.dot_dimension_numbers<[1], [0], [0], [1], [0, 0, 1, 1], [], []>} : vector<2x16xbf16>, vector<16x16xbf16>, vector<2x16xf32> -> vector<2x16xf32>
    %682 = arith.addf %678, %681 : vector<2x16xf32>
    %683 = arith.negf %682 : vector<2x16xf32>
    %684 = math.exp %683 : vector<2x16xf32>
    %cst_206 = arith.constant 1.000000e+00 : f32
    %685 = vector.broadcast %cst_206 : f32 to vector<2x16xf32>
    %686 = arith.addf %685, %684 : vector<2x16xf32>
    %687 = arith.divf %685, %686 : vector<2x16xf32>
    %688 = vector.extract_strided_slice %675 {offsets = [1, 0, 0], sizes = [1, 2, 16], strides = [1, 1, 1]} : vector<3x2x16xf32> to vector<1x2x16xf32>
    %689 = vector.shape_cast %688 : vector<1x2x16xf32> to vector<2x16xf32>
    %690 = vector.extract_strided_slice %0 {offsets = [1, 0, 0], sizes = [1, 16, 16], strides = [1, 1, 1]} : vector<3x16x16xbf16> to vector<1x16x16xbf16>
    %691 = vector.shape_cast %690 : vector<1x16x16xbf16> to vector<16x16xbf16>
    %cst_207 = arith.constant dense<0.000000e+00> : vector<2x16xf32>
    %692 = tpu.matmul %676, %691, %cst_207 {dimension_numbers = #tpu.dot_dimension_numbers<[1], [0], [0], [1], [0, 0, 1, 1], [], []>} : vector<2x16xbf16>, vector<16x16xbf16>, vector<2x16xf32> -> vector<2x16xf32>
    %693 = arith.addf %689, %692 : vector<2x16xf32>
    %694 = arith.negf %693 : vector<2x16xf32>
    %695 = math.exp %694 : vector<2x16xf32>
    %cst_208 = arith.constant 1.000000e+00 : f32
    %696 = vector.broadcast %cst_208 : f32 to vector<2x16xf32>
    %697 = arith.addf %696, %695 : vector<2x16xf32>
    %698 = arith.divf %696, %697 : vector<2x16xf32>
    %699 = vector.extract_strided_slice %675 {offsets = [2, 0, 0], sizes = [1, 2, 16], strides = [1, 1, 1]} : vector<3x2x16xf32> to vector<1x2x16xf32>
    %700 = vector.shape_cast %699 : vector<1x2x16xf32> to vector<2x16xf32>
    %701 = vector.extract_strided_slice %0 {offsets = [2, 0, 0], sizes = [1, 16, 16], strides = [1, 1, 1]} : vector<3x16x16xbf16> to vector<1x16x16xbf16>
    %702 = vector.shape_cast %701 : vector<1x16x16xbf16> to vector<16x16xbf16>
    %cst_209 = arith.constant dense<0.000000e+00> : vector<2x16xf32>
    %703 = tpu.matmul %676, %702, %cst_209 {dimension_numbers = #tpu.dot_dimension_numbers<[1], [0], [0], [1], [0, 0, 1, 1], [], []>} : vector<2x16xbf16>, vector<16x16xbf16>, vector<2x16xf32> -> vector<2x16xf32>
    %704 = vector.broadcast %2 : vector<1x16xf32> to vector<2x16xf32>
    %705 = arith.addf %703, %704 : vector<2x16xf32>
    %706 = arith.mulf %687, %705 : vector<2x16xf32>
    %707 = arith.addf %700, %706 : vector<2x16xf32>
    %708 = math.tanh %707 : vector<2x16xf32>
    %cst_210 = arith.constant 1.000000e+00 : f32
    %709 = vector.broadcast %cst_210 : f32 to vector<2x16xf32>
    %710 = arith.subf %709, %698 : vector<2x16xf32>
    %711 = arith.mulf %710, %708 : vector<2x16xf32>
    %712 = arith.mulf %698, %618 : vector<2x16xf32>
    %713 = arith.addf %711, %712 : vector<2x16xf32>
    %714 = arith.index_cast %672 : i32 to index
    %c0_211 = arith.constant 0 : index
    %c0_212 = arith.constant 0 : index
    %c0_213 = arith.constant 0 : index
    %715 = vector.load %arg1[%714, %c0_211, %c0_212, %c0_213] : memref<8x3x2x16xf32, #tpu.memory_space<vmem>>, vector<1x3x2x16xf32>
    %716 = vector.shape_cast %715 : vector<1x3x2x16xf32> to vector<3x2x16xf32>
    %717 = arith.truncf %659 : vector<2x16xf32> to vector<2x16xbf16>
    %718 = vector.extract_strided_slice %716 {offsets = [0, 0, 0], sizes = [1, 2, 16], strides = [1, 1, 1]} : vector<3x2x16xf32> to vector<1x2x16xf32>
    %719 = vector.shape_cast %718 : vector<1x2x16xf32> to vector<2x16xf32>
    %720 = vector.extract_strided_slice %1 {offsets = [0, 0, 0], sizes = [1, 16, 16], strides = [1, 1, 1]} : vector<3x16x16xbf16> to vector<1x16x16xbf16>
    %721 = vector.shape_cast %720 : vector<1x16x16xbf16> to vector<16x16xbf16>
    %cst_214 = arith.constant dense<0.000000e+00> : vector<2x16xf32>
    %722 = tpu.matmul %717, %721, %cst_214 {dimension_numbers = #tpu.dot_dimension_numbers<[1], [0], [0], [1], [0, 0, 1, 1], [], []>} : vector<2x16xbf16>, vector<16x16xbf16>, vector<2x16xf32> -> vector<2x16xf32>
    %723 = arith.addf %719, %722 : vector<2x16xf32>
    %724 = arith.negf %723 : vector<2x16xf32>
    %725 = math.exp %724 : vector<2x16xf32>
    %cst_215 = arith.constant 1.000000e+00 : f32
    %726 = vector.broadcast %cst_215 : f32 to vector<2x16xf32>
    %727 = arith.addf %726, %725 : vector<2x16xf32>
    %728 = arith.divf %726, %727 : vector<2x16xf32>
    %729 = vector.extract_strided_slice %716 {offsets = [1, 0, 0], sizes = [1, 2, 16], strides = [1, 1, 1]} : vector<3x2x16xf32> to vector<1x2x16xf32>
    %730 = vector.shape_cast %729 : vector<1x2x16xf32> to vector<2x16xf32>
    %731 = vector.extract_strided_slice %1 {offsets = [1, 0, 0], sizes = [1, 16, 16], strides = [1, 1, 1]} : vector<3x16x16xbf16> to vector<1x16x16xbf16>
    %732 = vector.shape_cast %731 : vector<1x16x16xbf16> to vector<16x16xbf16>
    %cst_216 = arith.constant dense<0.000000e+00> : vector<2x16xf32>
    %733 = tpu.matmul %717, %732, %cst_216 {dimension_numbers = #tpu.dot_dimension_numbers<[1], [0], [0], [1], [0, 0, 1, 1], [], []>} : vector<2x16xbf16>, vector<16x16xbf16>, vector<2x16xf32> -> vector<2x16xf32>
    %734 = arith.addf %730, %733 : vector<2x16xf32>
    %735 = arith.negf %734 : vector<2x16xf32>
    %736 = math.exp %735 : vector<2x16xf32>
    %cst_217 = arith.constant 1.000000e+00 : f32
    %737 = vector.broadcast %cst_217 : f32 to vector<2x16xf32>
    %738 = arith.addf %737, %736 : vector<2x16xf32>
    %739 = arith.divf %737, %738 : vector<2x16xf32>
    %740 = vector.extract_strided_slice %716 {offsets = [2, 0, 0], sizes = [1, 2, 16], strides = [1, 1, 1]} : vector<3x2x16xf32> to vector<1x2x16xf32>
    %741 = vector.shape_cast %740 : vector<1x2x16xf32> to vector<2x16xf32>
    %742 = vector.extract_strided_slice %1 {offsets = [2, 0, 0], sizes = [1, 16, 16], strides = [1, 1, 1]} : vector<3x16x16xbf16> to vector<1x16x16xbf16>
    %743 = vector.shape_cast %742 : vector<1x16x16xbf16> to vector<16x16xbf16>
    %cst_218 = arith.constant dense<0.000000e+00> : vector<2x16xf32>
    %744 = tpu.matmul %717, %743, %cst_218 {dimension_numbers = #tpu.dot_dimension_numbers<[1], [0], [0], [1], [0, 0, 1, 1], [], []>} : vector<2x16xbf16>, vector<16x16xbf16>, vector<2x16xf32> -> vector<2x16xf32>
    %745 = vector.broadcast %3 : vector<1x16xf32> to vector<2x16xf32>
    %746 = arith.addf %744, %745 : vector<2x16xf32>
    %747 = arith.mulf %728, %746 : vector<2x16xf32>
    %748 = arith.addf %741, %747 : vector<2x16xf32>
    %749 = math.tanh %748 : vector<2x16xf32>
    %cst_219 = arith.constant 1.000000e+00 : f32
    %750 = vector.broadcast %cst_219 : f32 to vector<2x16xf32>
    %751 = arith.subf %750, %739 : vector<2x16xf32>
    %752 = arith.mulf %751, %749 : vector<2x16xf32>
    %753 = arith.mulf %739, %659 : vector<2x16xf32>
    %754 = arith.addf %752, %753 : vector<2x16xf32>
    %755 = arith.truncf %713 : vector<2x16xf32> to vector<2x16xbf16>
    %cst_220 = arith.constant dense<0.000000e+00> : vector<2x16xf32>
    %756 = tpu.matmul %755, %4, %cst_220 {dimension_numbers = #tpu.dot_dimension_numbers<[1], [0], [0], [1], [0, 0, 1, 1], [], []>} : vector<2x16xbf16>, vector<16x16xbf16>, vector<2x16xf32> -> vector<2x16xf32>
    %c0_221 = arith.constant 0 : index
    %757 = arith.index_cast %c7_i32_200 : i32 to index
    %c0_222 = arith.constant 0 : index
    %c0_223 = arith.constant 0 : index
    %758 = vector.load %arg10[%c0_221, %757, %c0_222, %c0_223] : memref<2x8x2x16xf32, #tpu.memory_space<vmem>>, vector<1x1x2x16xf32>
    %759 = vector.shape_cast %758 : vector<1x1x2x16xf32> to vector<2x16xf32>
    %760 = vector.shape_cast %756 : vector<2x16xf32> to vector<1x1x2x16xf32>
    tpu.vector_store %arg10[%c0_221, %757, %c0_222, %c0_223], %760 {strides = array<i32>} : memref<2x8x2x16xf32, #tpu.memory_space<vmem>>, vector<1x1x2x16xf32>,
    %761 = arith.truncf %754 : vector<2x16xf32> to vector<2x16xbf16>
    %cst_224 = arith.constant dense<0.000000e+00> : vector<2x16xf32>
    %762 = tpu.matmul %761, %5, %cst_224 {dimension_numbers = #tpu.dot_dimension_numbers<[1], [0], [0], [1], [0, 0, 1, 1], [], []>} : vector<2x16xbf16>, vector<16x16xbf16>, vector<2x16xf32> -> vector<2x16xf32>
    %c1_225 = arith.constant 1 : index
    %763 = arith.index_cast %672 : i32 to index
    %c0_226 = arith.constant 0 : index
    %c0_227 = arith.constant 0 : index
    %764 = vector.load %arg10[%c1_225, %763, %c0_226, %c0_227] : memref<2x8x2x16xf32, #tpu.memory_space<vmem>>, vector<1x1x2x16xf32>
    %765 = vector.shape_cast %764 : vector<1x1x2x16xf32> to vector<2x16xf32>
    %766 = vector.shape_cast %762 : vector<2x16xf32> to vector<1x1x2x16xf32>
    tpu.vector_store %arg10[%c1_225, %763, %c0_226, %c0_227], %766 {strides = array<i32>} : memref<2x8x2x16xf32, #tpu.memory_space<vmem>>, vector<1x1x2x16xf32>,
    %c8_i32 = arith.constant 8 : i32
    %c0_228 = arith.constant 0 : index
    %c0_229 = arith.constant 0 : index
    %c0_230 = arith.constant 0 : index
    %767 = vector.load %arg11[%c0_228, %c0_229, %c0_230] : memref<2x2x16xf32, #tpu.memory_space<vmem>>, vector<1x2x16xf32>
    %768 = vector.shape_cast %767 : vector<1x2x16xf32> to vector<2x16xf32>
    %769 = vector.shape_cast %713 : vector<2x16xf32> to vector<1x2x16xf32>
    tpu.vector_store %arg11[%c0_228, %c0_229, %c0_230], %769 {strides = array<i32>} : memref<2x2x16xf32, #tpu.memory_space<vmem>>, vector<1x2x16xf32>,
    %c1_231 = arith.constant 1 : index
    %c0_232 = arith.constant 0 : index
    %c0_233 = arith.constant 0 : index
    %770 = vector.load %arg11[%c1_231, %c0_232, %c0_233] : memref<2x2x16xf32, #tpu.memory_space<vmem>>, vector<1x2x16xf32>
    %771 = vector.shape_cast %770 : vector<1x2x16xf32> to vector<2x16xf32>
    %772 = vector.shape_cast %754 : vector<2x16xf32> to vector<1x2x16xf32>
    tpu.vector_store %arg11[%c1_231, %c0_232, %c0_233], %772 {strides = array<i32>} : memref<2x2x16xf32, #tpu.memory_space<vmem>>, vector<1x2x16xf32>,
    %773 = arith.truncf %713 : vector<2x16xf32> to vector<2x16xbf16>
    %c0_234 = arith.constant 0 : index
    %c0_235 = arith.constant 0 : index
    %774 = vector.load %arg8[%c0_234, %c0_235] : memref<16x16xbf16, #tpu.memory_space<vmem>>, vector<16x16xbf16>
    %cst_236 = arith.constant dense<0.000000e+00> : vector<2x16xf32>
    %775 = tpu.matmul %773, %774, %cst_236 {dimension_numbers = #tpu.dot_dimension_numbers<[1], [0], [0], [1], [0, 0, 1, 1], [], []>} : vector<2x16xbf16>, vector<16x16xbf16>, vector<2x16xf32> -> vector<2x16xf32>
    %776 = arith.truncf %754 : vector<2x16xf32> to vector<2x16xbf16>
    %c0_237 = arith.constant 0 : index
    %c0_238 = arith.constant 0 : index
    %777 = vector.load %arg9[%c0_237, %c0_238] : memref<16x16xbf16, #tpu.memory_space<vmem>>, vector<16x16xbf16>
    %cst_239 = arith.constant dense<0.000000e+00> : vector<2x16xf32>
    %778 = tpu.matmul %776, %777, %cst_239 {dimension_numbers = #tpu.dot_dimension_numbers<[1], [0], [0], [1], [0, 0, 1, 1], [], []>} : vector<2x16xbf16>, vector<16x16xbf16>, vector<2x16xf32> -> vector<2x16xf32>
    %779 = arith.addf %775, %778 : vector<2x16xf32>
    %c0_240 = arith.constant 0 : index
    %c0_241 = arith.constant 0 : index
    %780 = vector.load %arg12[%c0_240, %c0_241] : memref<2x16xf32, #tpu.memory_space<vmem>>, vector<2x16xf32>
    tpu.vector_store %arg12[%c0_240, %c0_241], %779 {strides = array<i32>} : memref<2x16xf32, #tpu.memory_space<vmem>>, vector<2x16xf32>,
    return
  }
}

module attributes {stable_mosaic.version = 11 : i64} {
  func.func @decoder_luong_kernel(%arg0: memref<2x8x16xbf16, #tpu.memory_space<vmem>>, %arg1: memref<2x32xf32, #tpu.memory_space<vmem>>, %arg2: memref<32x16xbf16, #tpu.memory_space<vmem>>, %arg3: memref<3x16x32xbf16, #tpu.memory_space<vmem>>, %arg4: memref<3x32x32xbf16, #tpu.memory_space<vmem>>, %arg5: memref<4x1x32xf32, #tpu.memory_space<vmem>>, %arg6: memref<32x16xbf16, #tpu.memory_space<vmem>>, %arg7: memref<16x16xbf16, #tpu.memory_space<vmem>>, %arg8: memref<16x16xbf16, #tpu.memory_space<vmem>>, %arg9: memref<6x2x32xf32, #tpu.memory_space<vmem>>, %arg10: memref<6x2x8xf32, #tpu.memory_space<vmem>>) attributes {dimension_semantics = [], scalar_prefetch = 0 : i64, scratch_operands = 0 : i64, tpu.core_type = #tpu.core_type<tc>} {
    %c0 = arith.constant 0 : index
    %c0_0 = arith.constant 0 : index
    %0 = vector.load %arg2[%c0, %c0_0] : memref<32x16xbf16, #tpu.memory_space<vmem>>, vector<32x16xbf16>
    %c0_1 = arith.constant 0 : index
    %c0_2 = arith.constant 0 : index
    %c0_3 = arith.constant 0 : index
    %1 = vector.load %arg0[%c0_1, %c0_2, %c0_3] : memref<2x8x16xbf16, #tpu.memory_space<vmem>>, vector<2x8x16xbf16>
    %2 = arith.extf %1 : vector<2x8x16xbf16> to vector<2x8x16xf32>
    %c0_4 = arith.constant 0 : index
    %c0_5 = arith.constant 0 : index
    %c0_6 = arith.constant 0 : index
    %3 = vector.load %arg3[%c0_4, %c0_5, %c0_6] : memref<3x16x32xbf16, #tpu.memory_space<vmem>>, vector<3x16x32xbf16>
    %c0_7 = arith.constant 0 : index
    %c0_8 = arith.constant 0 : index
    %c0_9 = arith.constant 0 : index
    %4 = vector.load %arg4[%c0_7, %c0_8, %c0_9] : memref<3x32x32xbf16, #tpu.memory_space<vmem>>, vector<3x32x32xbf16>
    %c0_10 = arith.constant 0 : index
    %c0_11 = arith.constant 0 : index
    %c0_12 = arith.constant 0 : index
    %5 = vector.load %arg5[%c0_10, %c0_11, %c0_12] : memref<4x1x32xf32, #tpu.memory_space<vmem>>, vector<1x1x32xf32>
    %6 = vector.shape_cast %5 : vector<1x1x32xf32> to vector<1x32xf32>
    %c1 = arith.constant 1 : index
    %c0_13 = arith.constant 0 : index
    %c0_14 = arith.constant 0 : index
    %7 = vector.load %arg5[%c1, %c0_13, %c0_14] : memref<4x1x32xf32, #tpu.memory_space<vmem>>, vector<1x1x32xf32>
    %8 = vector.shape_cast %7 : vector<1x1x32xf32> to vector<1x32xf32>
    %c2 = arith.constant 2 : index
    %c0_15 = arith.constant 0 : index
    %c0_16 = arith.constant 0 : index
    %9 = vector.load %arg5[%c2, %c0_15, %c0_16] : memref<4x1x32xf32, #tpu.memory_space<vmem>>, vector<1x1x32xf32>
    %10 = vector.shape_cast %9 : vector<1x1x32xf32> to vector<1x32xf32>
    %c3 = arith.constant 3 : index
    %c0_17 = arith.constant 0 : index
    %c0_18 = arith.constant 0 : index
    %11 = vector.load %arg5[%c3, %c0_17, %c0_18] : memref<4x1x32xf32, #tpu.memory_space<vmem>>, vector<1x1x32xf32>
    %12 = vector.shape_cast %11 : vector<1x1x32xf32> to vector<1x32xf32>
    %c0_19 = arith.constant 0 : index
    %c0_20 = arith.constant 0 : index
    %13 = vector.load %arg6[%c0_19, %c0_20] : memref<32x16xbf16, #tpu.memory_space<vmem>>, vector<32x16xbf16>
    %c0_21 = arith.constant 0 : index
    %c0_22 = arith.constant 0 : index
    %14 = vector.load %arg7[%c0_21, %c0_22] : memref<16x16xbf16, #tpu.memory_space<vmem>>, vector<16x16xbf16>
    %c0_23 = arith.constant 0 : index
    %c0_24 = arith.constant 0 : index
    %15 = vector.load %arg8[%c0_23, %c0_24] : memref<16x16xbf16, #tpu.memory_space<vmem>>, vector<16x16xbf16>
    %16 = tpu.iota {dimensions = array<i32: 1>} : vector<2x32xi32>
    %17 = vector.extract_strided_slice %0 {offsets = [0, 0], sizes = [1, 16], strides = [1, 1]} : vector<32x16xbf16> to vector<1x16xbf16>
    %18 = vector.shape_cast %17 : vector<1x16xbf16> to vector<1x16xbf16>
    %19 = vector.broadcast %18 : vector<1x16xbf16> to vector<2x16xbf16>
    %c0_25 = arith.constant 0 : index
    %c0_26 = arith.constant 0 : index
    %20 = vector.load %arg1[%c0_25, %c0_26] : memref<2x32xf32, #tpu.memory_space<vmem>>, vector<2x32xf32>
    %c0_i32 = arith.constant 0 : i32
    %21 = arith.truncf %20 : vector<2x32xf32> to vector<2x32xbf16>
    %22 = vector.extract_strided_slice %3 {offsets = [0, 0, 0], sizes = [1, 16, 32], strides = [1, 1, 1]} : vector<3x16x32xbf16> to vector<1x16x32xbf16>
    %23 = vector.shape_cast %22 : vector<1x16x32xbf16> to vector<16x32xbf16>
    %cst = arith.constant dense<0.000000e+00> : vector<2x32xf32>
    %24 = tpu.matmul %19, %23, %cst {dimension_numbers = #tpu.dot_dimension_numbers<[1], [0], [0], [1], [0, 0, 1, 1], [], []>} : vector<2x16xbf16>, vector<16x32xbf16>, vector<2x32xf32> -> vector<2x32xf32>
    %25 = vector.extract_strided_slice %4 {offsets = [0, 0, 0], sizes = [1, 32, 32], strides = [1, 1, 1]} : vector<3x32x32xbf16> to vector<1x32x32xbf16>
    %26 = vector.shape_cast %25 : vector<1x32x32xbf16> to vector<32x32xbf16>
    %cst_27 = arith.constant dense<0.000000e+00> : vector<2x32xf32>
    %27 = tpu.matmul %21, %26, %cst_27 {dimension_numbers = #tpu.dot_dimension_numbers<[1], [0], [0], [1], [0, 0, 1, 1], [], []>} : vector<2x32xbf16>, vector<32x32xbf16>, vector<2x32xf32> -> vector<2x32xf32>
    %28 = arith.addf %24, %27 : vector<2x32xf32>
    %29 = vector.broadcast %6 : vector<1x32xf32> to vector<2x32xf32>
    %30 = arith.addf %28, %29 : vector<2x32xf32>
    %31 = arith.negf %30 : vector<2x32xf32>
    %32 = math.exp %31 : vector<2x32xf32>
    %cst_28 = arith.constant 1.000000e+00 : f32
    %33 = vector.broadcast %cst_28 : f32 to vector<2x32xf32>
    %34 = arith.addf %33, %32 : vector<2x32xf32>
    %35 = arith.divf %33, %34 : vector<2x32xf32>
    %36 = vector.extract_strided_slice %3 {offsets = [1, 0, 0], sizes = [1, 16, 32], strides = [1, 1, 1]} : vector<3x16x32xbf16> to vector<1x16x32xbf16>
    %37 = vector.shape_cast %36 : vector<1x16x32xbf16> to vector<16x32xbf16>
    %cst_29 = arith.constant dense<0.000000e+00> : vector<2x32xf32>
    %38 = tpu.matmul %19, %37, %cst_29 {dimension_numbers = #tpu.dot_dimension_numbers<[1], [0], [0], [1], [0, 0, 1, 1], [], []>} : vector<2x16xbf16>, vector<16x32xbf16>, vector<2x32xf32> -> vector<2x32xf32>
    %39 = vector.extract_strided_slice %4 {offsets = [1, 0, 0], sizes = [1, 32, 32], strides = [1, 1, 1]} : vector<3x32x32xbf16> to vector<1x32x32xbf16>
    %40 = vector.shape_cast %39 : vector<1x32x32xbf16> to vector<32x32xbf16>
    %cst_30 = arith.constant dense<0.000000e+00> : vector<2x32xf32>
    %41 = tpu.matmul %21, %40, %cst_30 {dimension_numbers = #tpu.dot_dimension_numbers<[1], [0], [0], [1], [0, 0, 1, 1], [], []>} : vector<2x32xbf16>, vector<32x32xbf16>, vector<2x32xf32> -> vector<2x32xf32>
    %42 = arith.addf %38, %41 : vector<2x32xf32>
    %43 = vector.broadcast %8 : vector<1x32xf32> to vector<2x32xf32>
    %44 = arith.addf %42, %43 : vector<2x32xf32>
    %45 = arith.negf %44 : vector<2x32xf32>
    %46 = math.exp %45 : vector<2x32xf32>
    %cst_31 = arith.constant 1.000000e+00 : f32
    %47 = vector.broadcast %cst_31 : f32 to vector<2x32xf32>
    %48 = arith.addf %47, %46 : vector<2x32xf32>
    %49 = arith.divf %47, %48 : vector<2x32xf32>
    %50 = vector.extract_strided_slice %3 {offsets = [2, 0, 0], sizes = [1, 16, 32], strides = [1, 1, 1]} : vector<3x16x32xbf16> to vector<1x16x32xbf16>
    %51 = vector.shape_cast %50 : vector<1x16x32xbf16> to vector<16x32xbf16>
    %cst_32 = arith.constant dense<0.000000e+00> : vector<2x32xf32>
    %52 = tpu.matmul %19, %51, %cst_32 {dimension_numbers = #tpu.dot_dimension_numbers<[1], [0], [0], [1], [0, 0, 1, 1], [], []>} : vector<2x16xbf16>, vector<16x32xbf16>, vector<2x32xf32> -> vector<2x32xf32>
    %53 = vector.broadcast %10 : vector<1x32xf32> to vector<2x32xf32>
    %54 = arith.addf %52, %53 : vector<2x32xf32>
    %55 = vector.extract_strided_slice %4 {offsets = [2, 0, 0], sizes = [1, 32, 32], strides = [1, 1, 1]} : vector<3x32x32xbf16> to vector<1x32x32xbf16>
    %56 = vector.shape_cast %55 : vector<1x32x32xbf16> to vector<32x32xbf16>
    %cst_33 = arith.constant dense<0.000000e+00> : vector<2x32xf32>
    %57 = tpu.matmul %21, %56, %cst_33 {dimension_numbers = #tpu.dot_dimension_numbers<[1], [0], [0], [1], [0, 0, 1, 1], [], []>} : vector<2x32xbf16>, vector<32x32xbf16>, vector<2x32xf32> -> vector<2x32xf32>
    %58 = vector.broadcast %12 : vector<1x32xf32> to vector<2x32xf32>
    %59 = arith.addf %57, %58 : vector<2x32xf32>
    %60 = arith.mulf %35, %59 : vector<2x32xf32>
    %61 = arith.addf %54, %60 : vector<2x32xf32>
    %62 = math.tanh %61 : vector<2x32xf32>
    %cst_34 = arith.constant 1.000000e+00 : f32
    %63 = vector.broadcast %cst_34 : f32 to vector<2x32xf32>
    %64 = arith.subf %63, %49 : vector<2x32xf32>
    %65 = arith.mulf %64, %62 : vector<2x32xf32>
    %66 = arith.mulf %49, %20 : vector<2x32xf32>
    %67 = arith.addf %65, %66 : vector<2x32xf32>
    %68 = arith.truncf %67 : vector<2x32xf32> to vector<2x32xbf16>
    %cst_35 = arith.constant dense<0.000000e+00> : vector<2x16xf32>
    %69 = tpu.matmul %68, %13, %cst_35 {dimension_numbers = #tpu.dot_dimension_numbers<[1], [0], [0], [1], [0, 0, 1, 1], [], []>} : vector<2x32xbf16>, vector<32x16xbf16>, vector<2x16xf32> -> vector<2x16xf32>
    %70 = vector.shape_cast %69 : vector<2x16xf32> to vector<2x1x16xf32>
    %71 = vector.broadcast %70 : vector<2x1x16xf32> to vector<2x8x16xf32>
    %72 = arith.mulf %71, %2 : vector<2x8x16xf32>
    %cst_36 = arith.constant dense<0.000000e+00> : vector<2x8xf32>
    %73 = vector.multi_reduction <add>, %72, %cst_36 [2] : vector<2x8x16xf32> to vector<2x8xf32>
    %cst_37 = arith.constant dense<0xFF800000> : vector<2xf32>
    %74 = vector.multi_reduction <maximumf>, %73, %cst_37 [1] : vector<2x8xf32> to vector<2xf32>
    %75 = vector.shape_cast %74 : vector<2xf32> to vector<2x1xf32>
    %76 = vector.broadcast %75 : vector<2x1xf32> to vector<2x8xf32>
    %77 = arith.subf %73, %76 : vector<2x8xf32>
    %78 = math.exp %77 : vector<2x8xf32>
    %cst_38 = arith.constant dense<0.000000e+00> : vector<2xf32>
    %79 = vector.multi_reduction <add>, %78, %cst_38 [1] : vector<2x8xf32> to vector<2xf32>
    %80 = vector.shape_cast %79 : vector<2xf32> to vector<2x1xf32>
    %81 = vector.broadcast %80 : vector<2x1xf32> to vector<2x8xf32>
    %82 = arith.divf %78, %81 : vector<2x8xf32>
    %83 = vector.shape_cast %82 : vector<2x8xf32> to vector<2x1x8xf32>
    %84 = arith.truncf %83 : vector<2x1x8xf32> to vector<2x1x8xbf16>
    "tpu.trace_start"() <{level = 10 : i32, message = "bqs,bse->bqe"}> : () -> ()
    %cst_39 = arith.constant dense<0.000000e+00> : vector<2x1x16xf32>
    %85 = tpu.matmul %84, %1, %cst_39 {dimension_numbers = #tpu.dot_dimension_numbers<[2], [1], [1], [2], [0, 0, 0, 1, 1, 2], [0], [0]>} : vector<2x1x8xbf16>, vector<2x8x16xbf16>, vector<2x1x16xf32> -> vector<2x1x16xf32>
    "tpu.trace_stop"() : () -> ()
    %86 = vector.shape_cast %85 : vector<2x1x16xf32> to vector<2x16xf32>
    %87 = arith.truncf %86 : vector<2x16xf32> to vector<2x16xbf16>
    %cst_40 = arith.constant dense<0.000000e+00> : vector<2x16xf32>
    %88 = tpu.matmul %87, %14, %cst_40 {dimension_numbers = #tpu.dot_dimension_numbers<[1], [0], [0], [1], [0, 0, 1, 1], [], []>} : vector<2x16xbf16>, vector<16x16xbf16>, vector<2x16xf32> -> vector<2x16xf32>
    %89 = arith.truncf %69 : vector<2x16xf32> to vector<2x16xbf16>
    %cst_41 = arith.constant dense<0.000000e+00> : vector<2x16xf32>
    %90 = tpu.matmul %89, %15, %cst_41 {dimension_numbers = #tpu.dot_dimension_numbers<[1], [0], [0], [1], [0, 0, 1, 1], [], []>} : vector<2x16xbf16>, vector<16x16xbf16>, vector<2x16xf32> -> vector<2x16xf32>
    %91 = arith.addf %88, %90 : vector<2x16xf32>
    %92 = math.tanh %91 : vector<2x16xf32>
    %93 = arith.truncf %92 : vector<2x16xf32> to vector<2x16xbf16>
    %cst_42 = arith.constant dense<0.000000e+00> : vector<2x32xf32>
    %94 = tpu.matmul %93, %0, %cst_42 {dimension_numbers = #tpu.dot_dimension_numbers<[1], [1], [0], [0], [0, 0, 1, 0], [], []>} : vector<2x16xbf16>, vector<32x16xbf16>, vector<2x32xf32> -> vector<2x32xf32>
    %95 = arith.index_cast %c0_i32 : i32 to index
    %c0_43 = arith.constant 0 : index
    %c0_44 = arith.constant 0 : index
    %96 = vector.load %arg9[%95, %c0_43, %c0_44] : memref<6x2x32xf32, #tpu.memory_space<vmem>>, vector<1x2x32xf32>
    %97 = vector.shape_cast %96 : vector<1x2x32xf32> to vector<2x32xf32>
    %98 = vector.shape_cast %94 : vector<2x32xf32> to vector<1x2x32xf32>
    tpu.vector_store %arg9[%95, %c0_43, %c0_44], %98 {strides = array<i32>} : memref<6x2x32xf32, #tpu.memory_space<vmem>>, vector<1x2x32xf32>,
    %99 = arith.index_cast %c0_i32 : i32 to index
    %c0_45 = arith.constant 0 : index
    %c0_46 = arith.constant 0 : index
    %100 = vector.load %arg10[%99, %c0_45, %c0_46] : memref<6x2x8xf32, #tpu.memory_space<vmem>>, vector<1x2x8xf32>
    %101 = vector.shape_cast %100 : vector<1x2x8xf32> to vector<2x8xf32>
    %102 = vector.shape_cast %82 : vector<2x8xf32> to vector<1x2x8xf32>
    tpu.vector_store %arg10[%99, %c0_45, %c0_46], %102 {strides = array<i32>} : memref<6x2x8xf32, #tpu.memory_space<vmem>>, vector<1x2x8xf32>,
    %cst_47 = arith.constant dense<0xFF800000> : vector<2xf32>
    %103 = vector.multi_reduction <maximumf>, %94, %cst_47 [1] : vector<2x32xf32> to vector<2xf32>
    %104 = vector.shape_cast %103 : vector<2xf32> to vector<2x1xf32>
    %105 = vector.broadcast %104 : vector<2x1xf32> to vector<2x32xf32>
    %106 = arith.cmpf oeq, %94, %105 : vector<2x32xf32>
    %c32_i32 = arith.constant 32 : i32
    %107 = vector.broadcast %c32_i32 : i32 to vector<2x32xi32>
    %108 = arith.select %106, %16, %107 : vector<2x32xi1>, vector<2x32xi32>
    %cst_48 = arith.constant dense<2147483647> : vector<2xi32>
    %109 = vector.multi_reduction <minsi>, %108, %cst_48 [1] : vector<2x32xi32> to vector<2xi32>
    %110 = vector.shape_cast %109 : vector<2xi32> to vector<2x1xi32>
    %111 = vector.broadcast %110 : vector<2x1xi32> to vector<2x32xi32>
    %112 = arith.cmpi eq, %16, %111 : vector<2x32xi32>
    %113 = arith.extui %112 : vector<2x32xi1> to vector<2x32xi32>
    %114 = arith.sitofp %113 : vector<2x32xi32> to vector<2x32xf32>
    %115 = arith.truncf %114 : vector<2x32xf32> to vector<2x32xbf16>
    %cst_49 = arith.constant dense<0.000000e+00> : vector<2x16xf32>
    %116 = tpu.matmul %115, %0, %cst_49 {dimension_numbers = #tpu.dot_dimension_numbers<[1], [0], [0], [1], [0, 0, 1, 1], [], []>} : vector<2x32xbf16>, vector<32x16xbf16>, vector<2x16xf32> -> vector<2x16xf32>
    %117 = arith.truncf %116 : vector<2x16xf32> to vector<2x16xbf16>
    %c1_i32 = arith.constant 1 : i32
    %118 = arith.truncf %67 : vector<2x32xf32> to vector<2x32xbf16>
    %119 = vector.extract_strided_slice %3 {offsets = [0, 0, 0], sizes = [1, 16, 32], strides = [1, 1, 1]} : vector<3x16x32xbf16> to vector<1x16x32xbf16>
    %120 = vector.shape_cast %119 : vector<1x16x32xbf16> to vector<16x32xbf16>
    %cst_50 = arith.constant dense<0.000000e+00> : vector<2x32xf32>
    %121 = tpu.matmul %117, %120, %cst_50 {dimension_numbers = #tpu.dot_dimension_numbers<[1], [0], [0], [1], [0, 0, 1, 1], [], []>} : vector<2x16xbf16>, vector<16x32xbf16>, vector<2x32xf32> -> vector<2x32xf32>
    %122 = vector.extract_strided_slice %4 {offsets = [0, 0, 0], sizes = [1, 32, 32], strides = [1, 1, 1]} : vector<3x32x32xbf16> to vector<1x32x32xbf16>
    %123 = vector.shape_cast %122 : vector<1x32x32xbf16> to vector<32x32xbf16>
    %cst_51 = arith.constant dense<0.000000e+00> : vector<2x32xf32>
    %124 = tpu.matmul %118, %123, %cst_51 {dimension_numbers = #tpu.dot_dimension_numbers<[1], [0], [0], [1], [0, 0, 1, 1], [], []>} : vector<2x32xbf16>, vector<32x32xbf16>, vector<2x32xf32> -> vector<2x32xf32>
    %125 = arith.addf %121, %124 : vector<2x32xf32>
    %126 = vector.broadcast %6 : vector<1x32xf32> to vector<2x32xf32>
    %127 = arith.addf %125, %126 : vector<2x32xf32>
    %128 = arith.negf %127 : vector<2x32xf32>
    %129 = math.exp %128 : vector<2x32xf32>
    %cst_52 = arith.constant 1.000000e+00 : f32
    %130 = vector.broadcast %cst_52 : f32 to vector<2x32xf32>
    %131 = arith.addf %130, %129 : vector<2x32xf32>
    %132 = arith.divf %130, %131 : vector<2x32xf32>
    %133 = vector.extract_strided_slice %3 {offsets = [1, 0, 0], sizes = [1, 16, 32], strides = [1, 1, 1]} : vector<3x16x32xbf16> to vector<1x16x32xbf16>
    %134 = vector.shape_cast %133 : vector<1x16x32xbf16> to vector<16x32xbf16>
    %cst_53 = arith.constant dense<0.000000e+00> : vector<2x32xf32>
    %135 = tpu.matmul %117, %134, %cst_53 {dimension_numbers = #tpu.dot_dimension_numbers<[1], [0], [0], [1], [0, 0, 1, 1], [], []>} : vector<2x16xbf16>, vector<16x32xbf16>, vector<2x32xf32> -> vector<2x32xf32>
    %136 = vector.extract_strided_slice %4 {offsets = [1, 0, 0], sizes = [1, 32, 32], strides = [1, 1, 1]} : vector<3x32x32xbf16> to vector<1x32x32xbf16>
    %137 = vector.shape_cast %136 : vector<1x32x32xbf16> to vector<32x32xbf16>
    %cst_54 = arith.constant dense<0.000000e+00> : vector<2x32xf32>
    %138 = tpu.matmul %118, %137, %cst_54 {dimension_numbers = #tpu.dot_dimension_numbers<[1], [0], [0], [1], [0, 0, 1, 1], [], []>} : vector<2x32xbf16>, vector<32x32xbf16>, vector<2x32xf32> -> vector<2x32xf32>
    %139 = arith.addf %135, %138 : vector<2x32xf32>
    %140 = vector.broadcast %8 : vector<1x32xf32> to vector<2x32xf32>
    %141 = arith.addf %139, %140 : vector<2x32xf32>
    %142 = arith.negf %141 : vector<2x32xf32>
    %143 = math.exp %142 : vector<2x32xf32>
    %cst_55 = arith.constant 1.000000e+00 : f32
    %144 = vector.broadcast %cst_55 : f32 to vector<2x32xf32>
    %145 = arith.addf %144, %143 : vector<2x32xf32>
    %146 = arith.divf %144, %145 : vector<2x32xf32>
    %147 = vector.extract_strided_slice %3 {offsets = [2, 0, 0], sizes = [1, 16, 32], strides = [1, 1, 1]} : vector<3x16x32xbf16> to vector<1x16x32xbf16>
    %148 = vector.shape_cast %147 : vector<1x16x32xbf16> to vector<16x32xbf16>
    %cst_56 = arith.constant dense<0.000000e+00> : vector<2x32xf32>
    %149 = tpu.matmul %117, %148, %cst_56 {dimension_numbers = #tpu.dot_dimension_numbers<[1], [0], [0], [1], [0, 0, 1, 1], [], []>} : vector<2x16xbf16>, vector<16x32xbf16>, vector<2x32xf32> -> vector<2x32xf32>
    %150 = vector.broadcast %10 : vector<1x32xf32> to vector<2x32xf32>
    %151 = arith.addf %149, %150 : vector<2x32xf32>
    %152 = vector.extract_strided_slice %4 {offsets = [2, 0, 0], sizes = [1, 32, 32], strides = [1, 1, 1]} : vector<3x32x32xbf16> to vector<1x32x32xbf16>
    %153 = vector.shape_cast %152 : vector<1x32x32xbf16> to vector<32x32xbf16>
    %cst_57 = arith.constant dense<0.000000e+00> : vector<2x32xf32>
    %154 = tpu.matmul %118, %153, %cst_57 {dimension_numbers = #tpu.dot_dimension_numbers<[1], [0], [0], [1], [0, 0, 1, 1], [], []>} : vector<2x32xbf16>, vector<32x32xbf16>, vector<2x32xf32> -> vector<2x32xf32>
    %155 = vector.broadcast %12 : vector<1x32xf32> to vector<2x32xf32>
    %156 = arith.addf %154, %155 : vector<2x32xf32>
    %157 = arith.mulf %132, %156 : vector<2x32xf32>
    %158 = arith.addf %151, %157 : vector<2x32xf32>
    %159 = math.tanh %158 : vector<2x32xf32>
    %cst_58 = arith.constant 1.000000e+00 : f32
    %160 = vector.broadcast %cst_58 : f32 to vector<2x32xf32>
    %161 = arith.subf %160, %146 : vector<2x32xf32>
    %162 = arith.mulf %161, %159 : vector<2x32xf32>
    %163 = arith.mulf %146, %67 : vector<2x32xf32>
    %164 = arith.addf %162, %163 : vector<2x32xf32>
    %165 = arith.truncf %164 : vector<2x32xf32> to vector<2x32xbf16>
    %cst_59 = arith.constant dense<0.000000e+00> : vector<2x16xf32>
    %166 = tpu.matmul %165, %13, %cst_59 {dimension_numbers = #tpu.dot_dimension_numbers<[1], [0], [0], [1], [0, 0, 1, 1], [], []>} : vector<2x32xbf16>, vector<32x16xbf16>, vector<2x16xf32> -> vector<2x16xf32>
    %167 = vector.shape_cast %166 : vector<2x16xf32> to vector<2x1x16xf32>
    %168 = vector.broadcast %167 : vector<2x1x16xf32> to vector<2x8x16xf32>
    %169 = arith.mulf %168, %2 : vector<2x8x16xf32>
    %cst_60 = arith.constant dense<0.000000e+00> : vector<2x8xf32>
    %170 = vector.multi_reduction <add>, %169, %cst_60 [2] : vector<2x8x16xf32> to vector<2x8xf32>
    %cst_61 = arith.constant dense<0xFF800000> : vector<2xf32>
    %171 = vector.multi_reduction <maximumf>, %170, %cst_61 [1] : vector<2x8xf32> to vector<2xf32>
    %172 = vector.shape_cast %171 : vector<2xf32> to vector<2x1xf32>
    %173 = vector.broadcast %172 : vector<2x1xf32> to vector<2x8xf32>
    %174 = arith.subf %170, %173 : vector<2x8xf32>
    %175 = math.exp %174 : vector<2x8xf32>
    %cst_62 = arith.constant dense<0.000000e+00> : vector<2xf32>
    %176 = vector.multi_reduction <add>, %175, %cst_62 [1] : vector<2x8xf32> to vector<2xf32>
    %177 = vector.shape_cast %176 : vector<2xf32> to vector<2x1xf32>
    %178 = vector.broadcast %177 : vector<2x1xf32> to vector<2x8xf32>
    %179 = arith.divf %175, %178 : vector<2x8xf32>
    %180 = vector.shape_cast %179 : vector<2x8xf32> to vector<2x1x8xf32>
    %181 = arith.truncf %180 : vector<2x1x8xf32> to vector<2x1x8xbf16>
    "tpu.trace_start"() <{level = 10 : i32, message = "bqs,bse->bqe"}> : () -> ()
    %cst_63 = arith.constant dense<0.000000e+00> : vector<2x1x16xf32>
    %182 = tpu.matmul %181, %1, %cst_63 {dimension_numbers = #tpu.dot_dimension_numbers<[2], [1], [1], [2], [0, 0, 0, 1, 1, 2], [0], [0]>} : vector<2x1x8xbf16>, vector<2x8x16xbf16>, vector<2x1x16xf32> -> vector<2x1x16xf32>
    "tpu.trace_stop"() : () -> ()
    %183 = vector.shape_cast %182 : vector<2x1x16xf32> to vector<2x16xf32>
    %184 = arith.truncf %183 : vector<2x16xf32> to vector<2x16xbf16>
    %cst_64 = arith.constant dense<0.000000e+00> : vector<2x16xf32>
    %185 = tpu.matmul %184, %14, %cst_64 {dimension_numbers = #tpu.dot_dimension_numbers<[1], [0], [0], [1], [0, 0, 1, 1], [], []>} : vector<2x16xbf16>, vector<16x16xbf16>, vector<2x16xf32> -> vector<2x16xf32>
    %186 = arith.truncf %166 : vector<2x16xf32> to vector<2x16xbf16>
    %cst_65 = arith.constant dense<0.000000e+00> : vector<2x16xf32>
    %187 = tpu.matmul %186, %15, %cst_65 {dimension_numbers = #tpu.dot_dimension_numbers<[1], [0], [0], [1], [0, 0, 1, 1], [], []>} : vector<2x16xbf16>, vector<16x16xbf16>, vector<2x16xf32> -> vector<2x16xf32>
    %188 = arith.addf %185, %187 : vector<2x16xf32>
    %189 = math.tanh %188 : vector<2x16xf32>
    %190 = arith.truncf %189 : vector<2x16xf32> to vector<2x16xbf16>
    %cst_66 = arith.constant dense<0.000000e+00> : vector<2x32xf32>
    %191 = tpu.matmul %190, %0, %cst_66 {dimension_numbers = #tpu.dot_dimension_numbers<[1], [1], [0], [0], [0, 0, 1, 0], [], []>} : vector<2x16xbf16>, vector<32x16xbf16>, vector<2x32xf32> -> vector<2x32xf32>
    %192 = arith.index_cast %c1_i32 : i32 to index
    %c0_67 = arith.constant 0 : index
    %c0_68 = arith.constant 0 : index
    %193 = vector.load %arg9[%192, %c0_67, %c0_68] : memref<6x2x32xf32, #tpu.memory_space<vmem>>, vector<1x2x32xf32>
    %194 = vector.shape_cast %193 : vector<1x2x32xf32> to vector<2x32xf32>
    %195 = vector.shape_cast %191 : vector<2x32xf32> to vector<1x2x32xf32>
    tpu.vector_store %arg9[%192, %c0_67, %c0_68], %195 {strides = array<i32>} : memref<6x2x32xf32, #tpu.memory_space<vmem>>, vector<1x2x32xf32>,
    %196 = arith.index_cast %c1_i32 : i32 to index
    %c0_69 = arith.constant 0 : index
    %c0_70 = arith.constant 0 : index
    %197 = vector.load %arg10[%196, %c0_69, %c0_70] : memref<6x2x8xf32, #tpu.memory_space<vmem>>, vector<1x2x8xf32>
    %198 = vector.shape_cast %197 : vector<1x2x8xf32> to vector<2x8xf32>
    %199 = vector.shape_cast %179 : vector<2x8xf32> to vector<1x2x8xf32>
    tpu.vector_store %arg10[%196, %c0_69, %c0_70], %199 {strides = array<i32>} : memref<6x2x8xf32, #tpu.memory_space<vmem>>, vector<1x2x8xf32>,
    %cst_71 = arith.constant dense<0xFF800000> : vector<2xf32>
    %200 = vector.multi_reduction <maximumf>, %191, %cst_71 [1] : vector<2x32xf32> to vector<2xf32>
    %201 = vector.shape_cast %200 : vector<2xf32> to vector<2x1xf32>
    %202 = vector.broadcast %201 : vector<2x1xf32> to vector<2x32xf32>
    %203 = arith.cmpf oeq, %191, %202 : vector<2x32xf32>
    %c32_i32_72 = arith.constant 32 : i32
    %204 = vector.broadcast %c32_i32_72 : i32 to vector<2x32xi32>
    %205 = arith.select %203, %16, %204 : vector<2x32xi1>, vector<2x32xi32>
    %cst_73 = arith.constant dense<2147483647> : vector<2xi32>
    %206 = vector.multi_reduction <minsi>, %205, %cst_73 [1] : vector<2x32xi32> to vector<2xi32>
    %207 = vector.shape_cast %206 : vector<2xi32> to vector<2x1xi32>
    %208 = vector.broadcast %207 : vector<2x1xi32> to vector<2x32xi32>
    %209 = arith.cmpi eq, %16, %208 : vector<2x32xi32>
    %210 = arith.extui %209 : vector<2x32xi1> to vector<2x32xi32>
    %211 = arith.sitofp %210 : vector<2x32xi32> to vector<2x32xf32>
    %212 = arith.truncf %211 : vector<2x32xf32> to vector<2x32xbf16>
    %cst_74 = arith.constant dense<0.000000e+00> : vector<2x16xf32>
    %213 = tpu.matmul %212, %0, %cst_74 {dimension_numbers = #tpu.dot_dimension_numbers<[1], [0], [0], [1], [0, 0, 1, 1], [], []>} : vector<2x32xbf16>, vector<32x16xbf16>, vector<2x16xf32> -> vector<2x16xf32>
    %214 = arith.truncf %213 : vector<2x16xf32> to vector<2x16xbf16>
    %c2_i32 = arith.constant 2 : i32
    %215 = arith.truncf %164 : vector<2x32xf32> to vector<2x32xbf16>
    %216 = vector.extract_strided_slice %3 {offsets = [0, 0, 0], sizes = [1, 16, 32], strides = [1, 1, 1]} : vector<3x16x32xbf16> to vector<1x16x32xbf16>
    %217 = vector.shape_cast %216 : vector<1x16x32xbf16> to vector<16x32xbf16>
    %cst_75 = arith.constant dense<0.000000e+00> : vector<2x32xf32>
    %218 = tpu.matmul %214, %217, %cst_75 {dimension_numbers = #tpu.dot_dimension_numbers<[1], [0], [0], [1], [0, 0, 1, 1], [], []>} : vector<2x16xbf16>, vector<16x32xbf16>, vector<2x32xf32> -> vector<2x32xf32>
    %219 = vector.extract_strided_slice %4 {offsets = [0, 0, 0], sizes = [1, 32, 32], strides = [1, 1, 1]} : vector<3x32x32xbf16> to vector<1x32x32xbf16>
    %220 = vector.shape_cast %219 : vector<1x32x32xbf16> to vector<32x32xbf16>
    %cst_76 = arith.constant dense<0.000000e+00> : vector<2x32xf32>
    %221 = tpu.matmul %215, %220, %cst_76 {dimension_numbers = #tpu.dot_dimension_numbers<[1], [0], [0], [1], [0, 0, 1, 1], [], []>} : vector<2x32xbf16>, vector<32x32xbf16>, vector<2x32xf32> -> vector<2x32xf32>
    %222 = arith.addf %218, %221 : vector<2x32xf32>
    %223 = vector.broadcast %6 : vector<1x32xf32> to vector<2x32xf32>
    %224 = arith.addf %222, %223 : vector<2x32xf32>
    %225 = arith.negf %224 : vector<2x32xf32>
    %226 = math.exp %225 : vector<2x32xf32>
    %cst_77 = arith.constant 1.000000e+00 : f32
    %227 = vector.broadcast %cst_77 : f32 to vector<2x32xf32>
    %228 = arith.addf %227, %226 : vector<2x32xf32>
    %229 = arith.divf %227, %228 : vector<2x32xf32>
    %230 = vector.extract_strided_slice %3 {offsets = [1, 0, 0], sizes = [1, 16, 32], strides = [1, 1, 1]} : vector<3x16x32xbf16> to vector<1x16x32xbf16>
    %231 = vector.shape_cast %230 : vector<1x16x32xbf16> to vector<16x32xbf16>
    %cst_78 = arith.constant dense<0.000000e+00> : vector<2x32xf32>
    %232 = tpu.matmul %214, %231, %cst_78 {dimension_numbers = #tpu.dot_dimension_numbers<[1], [0], [0], [1], [0, 0, 1, 1], [], []>} : vector<2x16xbf16>, vector<16x32xbf16>, vector<2x32xf32> -> vector<2x32xf32>
    %233 = vector.extract_strided_slice %4 {offsets = [1, 0, 0], sizes = [1, 32, 32], strides = [1, 1, 1]} : vector<3x32x32xbf16> to vector<1x32x32xbf16>
    %234 = vector.shape_cast %233 : vector<1x32x32xbf16> to vector<32x32xbf16>
    %cst_79 = arith.constant dense<0.000000e+00> : vector<2x32xf32>
    %235 = tpu.matmul %215, %234, %cst_79 {dimension_numbers = #tpu.dot_dimension_numbers<[1], [0], [0], [1], [0, 0, 1, 1], [], []>} : vector<2x32xbf16>, vector<32x32xbf16>, vector<2x32xf32> -> vector<2x32xf32>
    %236 = arith.addf %232, %235 : vector<2x32xf32>
    %237 = vector.broadcast %8 : vector<1x32xf32> to vector<2x32xf32>
    %238 = arith.addf %236, %237 : vector<2x32xf32>
    %239 = arith.negf %238 : vector<2x32xf32>
    %240 = math.exp %239 : vector<2x32xf32>
    %cst_80 = arith.constant 1.000000e+00 : f32
    %241 = vector.broadcast %cst_80 : f32 to vector<2x32xf32>
    %242 = arith.addf %241, %240 : vector<2x32xf32>
    %243 = arith.divf %241, %242 : vector<2x32xf32>
    %244 = vector.extract_strided_slice %3 {offsets = [2, 0, 0], sizes = [1, 16, 32], strides = [1, 1, 1]} : vector<3x16x32xbf16> to vector<1x16x32xbf16>
    %245 = vector.shape_cast %244 : vector<1x16x32xbf16> to vector<16x32xbf16>
    %cst_81 = arith.constant dense<0.000000e+00> : vector<2x32xf32>
    %246 = tpu.matmul %214, %245, %cst_81 {dimension_numbers = #tpu.dot_dimension_numbers<[1], [0], [0], [1], [0, 0, 1, 1], [], []>} : vector<2x16xbf16>, vector<16x32xbf16>, vector<2x32xf32> -> vector<2x32xf32>
    %247 = vector.broadcast %10 : vector<1x32xf32> to vector<2x32xf32>
    %248 = arith.addf %246, %247 : vector<2x32xf32>
    %249 = vector.extract_strided_slice %4 {offsets = [2, 0, 0], sizes = [1, 32, 32], strides = [1, 1, 1]} : vector<3x32x32xbf16> to vector<1x32x32xbf16>
    %250 = vector.shape_cast %249 : vector<1x32x32xbf16> to vector<32x32xbf16>
    %cst_82 = arith.constant dense<0.000000e+00> : vector<2x32xf32>
    %251 = tpu.matmul %215, %250, %cst_82 {dimension_numbers = #tpu.dot_dimension_numbers<[1], [0], [0], [1], [0, 0, 1, 1], [], []>} : vector<2x32xbf16>, vector<32x32xbf16>, vector<2x32xf32> -> vector<2x32xf32>
    %252 = vector.broadcast %12 : vector<1x32xf32> to vector<2x32xf32>
    %253 = arith.addf %251, %252 : vector<2x32xf32>
    %254 = arith.mulf %229, %253 : vector<2x32xf32>
    %255 = arith.addf %248, %254 : vector<2x32xf32>
    %256 = math.tanh %255 : vector<2x32xf32>
    %cst_83 = arith.constant 1.000000e+00 : f32
    %257 = vector.broadcast %cst_83 : f32 to vector<2x32xf32>
    %258 = arith.subf %257, %243 : vector<2x32xf32>
    %259 = arith.mulf %258, %256 : vector<2x32xf32>
    %260 = arith.mulf %243, %164 : vector<2x32xf32>
    %261 = arith.addf %259, %260 : vector<2x32xf32>
    %262 = arith.truncf %261 : vector<2x32xf32> to vector<2x32xbf16>
    %cst_84 = arith.constant dense<0.000000e+00> : vector<2x16xf32>
    %263 = tpu.matmul %262, %13, %cst_84 {dimension_numbers = #tpu.dot_dimension_numbers<[1], [0], [0], [1], [0, 0, 1, 1], [], []>} : vector<2x32xbf16>, vector<32x16xbf16>, vector<2x16xf32> -> vector<2x16xf32>
    %264 = vector.shape_cast %263 : vector<2x16xf32> to vector<2x1x16xf32>
    %265 = vector.broadcast %264 : vector<2x1x16xf32> to vector<2x8x16xf32>
    %266 = arith.mulf %265, %2 : vector<2x8x16xf32>
    %cst_85 = arith.constant dense<0.000000e+00> : vector<2x8xf32>
    %267 = vector.multi_reduction <add>, %266, %cst_85 [2] : vector<2x8x16xf32> to vector<2x8xf32>
    %cst_86 = arith.constant dense<0xFF800000> : vector<2xf32>
    %268 = vector.multi_reduction <maximumf>, %267, %cst_86 [1] : vector<2x8xf32> to vector<2xf32>
    %269 = vector.shape_cast %268 : vector<2xf32> to vector<2x1xf32>
    %270 = vector.broadcast %269 : vector<2x1xf32> to vector<2x8xf32>
    %271 = arith.subf %267, %270 : vector<2x8xf32>
    %272 = math.exp %271 : vector<2x8xf32>
    %cst_87 = arith.constant dense<0.000000e+00> : vector<2xf32>
    %273 = vector.multi_reduction <add>, %272, %cst_87 [1] : vector<2x8xf32> to vector<2xf32>
    %274 = vector.shape_cast %273 : vector<2xf32> to vector<2x1xf32>
    %275 = vector.broadcast %274 : vector<2x1xf32> to vector<2x8xf32>
    %276 = arith.divf %272, %275 : vector<2x8xf32>
    %277 = vector.shape_cast %276 : vector<2x8xf32> to vector<2x1x8xf32>
    %278 = arith.truncf %277 : vector<2x1x8xf32> to vector<2x1x8xbf16>
    "tpu.trace_start"() <{level = 10 : i32, message = "bqs,bse->bqe"}> : () -> ()
    %cst_88 = arith.constant dense<0.000000e+00> : vector<2x1x16xf32>
    %279 = tpu.matmul %278, %1, %cst_88 {dimension_numbers = #tpu.dot_dimension_numbers<[2], [1], [1], [2], [0, 0, 0, 1, 1, 2], [0], [0]>} : vector<2x1x8xbf16>, vector<2x8x16xbf16>, vector<2x1x16xf32> -> vector<2x1x16xf32>
    "tpu.trace_stop"() : () -> ()
    %280 = vector.shape_cast %279 : vector<2x1x16xf32> to vector<2x16xf32>
    %281 = arith.truncf %280 : vector<2x16xf32> to vector<2x16xbf16>
    %cst_89 = arith.constant dense<0.000000e+00> : vector<2x16xf32>
    %282 = tpu.matmul %281, %14, %cst_89 {dimension_numbers = #tpu.dot_dimension_numbers<[1], [0], [0], [1], [0, 0, 1, 1], [], []>} : vector<2x16xbf16>, vector<16x16xbf16>, vector<2x16xf32> -> vector<2x16xf32>
    %283 = arith.truncf %263 : vector<2x16xf32> to vector<2x16xbf16>
    %cst_90 = arith.constant dense<0.000000e+00> : vector<2x16xf32>
    %284 = tpu.matmul %283, %15, %cst_90 {dimension_numbers = #tpu.dot_dimension_numbers<[1], [0], [0], [1], [0, 0, 1, 1], [], []>} : vector<2x16xbf16>, vector<16x16xbf16>, vector<2x16xf32> -> vector<2x16xf32>
    %285 = arith.addf %282, %284 : vector<2x16xf32>
    %286 = math.tanh %285 : vector<2x16xf32>
    %287 = arith.truncf %286 : vector<2x16xf32> to vector<2x16xbf16>
    %cst_91 = arith.constant dense<0.000000e+00> : vector<2x32xf32>
    %288 = tpu.matmul %287, %0, %cst_91 {dimension_numbers = #tpu.dot_dimension_numbers<[1], [1], [0], [0], [0, 0, 1, 0], [], []>} : vector<2x16xbf16>, vector<32x16xbf16>, vector<2x32xf32> -> vector<2x32xf32>
    %289 = arith.index_cast %c2_i32 : i32 to index
    %c0_92 = arith.constant 0 : index
    %c0_93 = arith.constant 0 : index
    %290 = vector.load %arg9[%289, %c0_92, %c0_93] : memref<6x2x32xf32, #tpu.memory_space<vmem>>, vector<1x2x32xf32>
    %291 = vector.shape_cast %290 : vector<1x2x32xf32> to vector<2x32xf32>
    %292 = vector.shape_cast %288 : vector<2x32xf32> to vector<1x2x32xf32>
    tpu.vector_store %arg9[%289, %c0_92, %c0_93], %292 {strides = array<i32>} : memref<6x2x32xf32, #tpu.memory_space<vmem>>, vector<1x2x32xf32>,
    %293 = arith.index_cast %c2_i32 : i32 to index
    %c0_94 = arith.constant 0 : index
    %c0_95 = arith.constant 0 : index
    %294 = vector.load %arg10[%293, %c0_94, %c0_95] : memref<6x2x8xf32, #tpu.memory_space<vmem>>, vector<1x2x8xf32>
    %295 = vector.shape_cast %294 : vector<1x2x8xf32> to vector<2x8xf32>
    %296 = vector.shape_cast %276 : vector<2x8xf32> to vector<1x2x8xf32>
    tpu.vector_store %arg10[%293, %c0_94, %c0_95], %296 {strides = array<i32>} : memref<6x2x8xf32, #tpu.memory_space<vmem>>, vector<1x2x8xf32>,
    %cst_96 = arith.constant dense<0xFF800000> : vector<2xf32>
    %297 = vector.multi_reduction <maximumf>, %288, %cst_96 [1] : vector<2x32xf32> to vector<2xf32>
    %298 = vector.shape_cast %297 : vector<2xf32> to vector<2x1xf32>
    %299 = vector.broadcast %298 : vector<2x1xf32> to vector<2x32xf32>
    %300 = arith.cmpf oeq, %288, %299 : vector<2x32xf32>
    %c32_i32_97 = arith.constant 32 : i32
    %301 = vector.broadcast %c32_i32_97 : i32 to vector<2x32xi32>
    %302 = arith.select %300, %16, %301 : vector<2x32xi1>, vector<2x32xi32>
    %cst_98 = arith.constant dense<2147483647> : vector<2xi32>
    %303 = vector.multi_reduction <minsi>, %302, %cst_98 [1] : vector<2x32xi32> to vector<2xi32>
    %304 = vector.shape_cast %303 : vector<2xi32> to vector<2x1xi32>
    %305 = vector.broadcast %304 : vector<2x1xi32> to vector<2x32xi32>
    %306 = arith.cmpi eq, %16, %305 : vector<2x32xi32>
    %307 = arith.extui %306 : vector<2x32xi1> to vector<2x32xi32>
    %308 = arith.sitofp %307 : vector<2x32xi32> to vector<2x32xf32>
    %309 = arith.truncf %308 : vector<2x32xf32> to vector<2x32xbf16>
    %cst_99 = arith.constant dense<0.000000e+00> : vector<2x16xf32>
    %310 = tpu.matmul %309, %0, %cst_99 {dimension_numbers = #tpu.dot_dimension_numbers<[1], [0], [0], [1], [0, 0, 1, 1], [], []>} : vector<2x32xbf16>, vector<32x16xbf16>, vector<2x16xf32> -> vector<2x16xf32>
    %311 = arith.truncf %310 : vector<2x16xf32> to vector<2x16xbf16>
    %c3_i32 = arith.constant 3 : i32
    %312 = arith.truncf %261 : vector<2x32xf32> to vector<2x32xbf16>
    %313 = vector.extract_strided_slice %3 {offsets = [0, 0, 0], sizes = [1, 16, 32], strides = [1, 1, 1]} : vector<3x16x32xbf16> to vector<1x16x32xbf16>
    %314 = vector.shape_cast %313 : vector<1x16x32xbf16> to vector<16x32xbf16>
    %cst_100 = arith.constant dense<0.000000e+00> : vector<2x32xf32>
    %315 = tpu.matmul %311, %314, %cst_100 {dimension_numbers = #tpu.dot_dimension_numbers<[1], [0], [0], [1], [0, 0, 1, 1], [], []>} : vector<2x16xbf16>, vector<16x32xbf16>, vector<2x32xf32> -> vector<2x32xf32>
    %316 = vector.extract_strided_slice %4 {offsets = [0, 0, 0], sizes = [1, 32, 32], strides = [1, 1, 1]} : vector<3x32x32xbf16> to vector<1x32x32xbf16>
    %317 = vector.shape_cast %316 : vector<1x32x32xbf16> to vector<32x32xbf16>
    %cst_101 = arith.constant dense<0.000000e+00> : vector<2x32xf32>
    %318 = tpu.matmul %312, %317, %cst_101 {dimension_numbers = #tpu.dot_dimension_numbers<[1], [0], [0], [1], [0, 0, 1, 1], [], []>} : vector<2x32xbf16>, vector<32x32xbf16>, vector<2x32xf32> -> vector<2x32xf32>
    %319 = arith.addf %315, %318 : vector<2x32xf32>
    %320 = vector.broadcast %6 : vector<1x32xf32> to vector<2x32xf32>
    %321 = arith.addf %319, %320 : vector<2x32xf32>
    %322 = arith.negf %321 : vector<2x32xf32>
    %323 = math.exp %322 : vector<2x32xf32>
    %cst_102 = arith.constant 1.000000e+00 : f32
    %324 = vector.broadcast %cst_102 : f32 to vector<2x32xf32>
    %325 = arith.addf %324, %323 : vector<2x32xf32>
    %326 = arith.divf %324, %325 : vector<2x32xf32>
    %327 = vector.extract_strided_slice %3 {offsets = [1, 0, 0], sizes = [1, 16, 32], strides = [1, 1, 1]} : vector<3x16x32xbf16> to vector<1x16x32xbf16>
    %328 = vector.shape_cast %327 : vector<1x16x32xbf16> to vector<16x32xbf16>
    %cst_103 = arith.constant dense<0.000000e+00> : vector<2x32xf32>
    %329 = tpu.matmul %311, %328, %cst_103 {dimension_numbers = #tpu.dot_dimension_numbers<[1], [0], [0], [1], [0, 0, 1, 1], [], []>} : vector<2x16xbf16>, vector<16x32xbf16>, vector<2x32xf32> -> vector<2x32xf32>
    %330 = vector.extract_strided_slice %4 {offsets = [1, 0, 0], sizes = [1, 32, 32], strides = [1, 1, 1]} : vector<3x32x32xbf16> to vector<1x32x32xbf16>
    %331 = vector.shape_cast %330 : vector<1x32x32xbf16> to vector<32x32xbf16>
    %cst_104 = arith.constant dense<0.000000e+00> : vector<2x32xf32>
    %332 = tpu.matmul %312, %331, %cst_104 {dimension_numbers = #tpu.dot_dimension_numbers<[1], [0], [0], [1], [0, 0, 1, 1], [], []>} : vector<2x32xbf16>, vector<32x32xbf16>, vector<2x32xf32> -> vector<2x32xf32>
    %333 = arith.addf %329, %332 : vector<2x32xf32>
    %334 = vector.broadcast %8 : vector<1x32xf32> to vector<2x32xf32>
    %335 = arith.addf %333, %334 : vector<2x32xf32>
    %336 = arith.negf %335 : vector<2x32xf32>
    %337 = math.exp %336 : vector<2x32xf32>
    %cst_105 = arith.constant 1.000000e+00 : f32
    %338 = vector.broadcast %cst_105 : f32 to vector<2x32xf32>
    %339 = arith.addf %338, %337 : vector<2x32xf32>
    %340 = arith.divf %338, %339 : vector<2x32xf32>
    %341 = vector.extract_strided_slice %3 {offsets = [2, 0, 0], sizes = [1, 16, 32], strides = [1, 1, 1]} : vector<3x16x32xbf16> to vector<1x16x32xbf16>
    %342 = vector.shape_cast %341 : vector<1x16x32xbf16> to vector<16x32xbf16>
    %cst_106 = arith.constant dense<0.000000e+00> : vector<2x32xf32>
    %343 = tpu.matmul %311, %342, %cst_106 {dimension_numbers = #tpu.dot_dimension_numbers<[1], [0], [0], [1], [0, 0, 1, 1], [], []>} : vector<2x16xbf16>, vector<16x32xbf16>, vector<2x32xf32> -> vector<2x32xf32>
    %344 = vector.broadcast %10 : vector<1x32xf32> to vector<2x32xf32>
    %345 = arith.addf %343, %344 : vector<2x32xf32>
    %346 = vector.extract_strided_slice %4 {offsets = [2, 0, 0], sizes = [1, 32, 32], strides = [1, 1, 1]} : vector<3x32x32xbf16> to vector<1x32x32xbf16>
    %347 = vector.shape_cast %346 : vector<1x32x32xbf16> to vector<32x32xbf16>
    %cst_107 = arith.constant dense<0.000000e+00> : vector<2x32xf32>
    %348 = tpu.matmul %312, %347, %cst_107 {dimension_numbers = #tpu.dot_dimension_numbers<[1], [0], [0], [1], [0, 0, 1, 1], [], []>} : vector<2x32xbf16>, vector<32x32xbf16>, vector<2x32xf32> -> vector<2x32xf32>
    %349 = vector.broadcast %12 : vector<1x32xf32> to vector<2x32xf32>
    %350 = arith.addf %348, %349 : vector<2x32xf32>
    %351 = arith.mulf %326, %350 : vector<2x32xf32>
    %352 = arith.addf %345, %351 : vector<2x32xf32>
    %353 = math.tanh %352 : vector<2x32xf32>
    %cst_108 = arith.constant 1.000000e+00 : f32
    %354 = vector.broadcast %cst_108 : f32 to vector<2x32xf32>
    %355 = arith.subf %354, %340 : vector<2x32xf32>
    %356 = arith.mulf %355, %353 : vector<2x32xf32>
    %357 = arith.mulf %340, %261 : vector<2x32xf32>
    %358 = arith.addf %356, %357 : vector<2x32xf32>
    %359 = arith.truncf %358 : vector<2x32xf32> to vector<2x32xbf16>
    %cst_109 = arith.constant dense<0.000000e+00> : vector<2x16xf32>
    %360 = tpu.matmul %359, %13, %cst_109 {dimension_numbers = #tpu.dot_dimension_numbers<[1], [0], [0], [1], [0, 0, 1, 1], [], []>} : vector<2x32xbf16>, vector<32x16xbf16>, vector<2x16xf32> -> vector<2x16xf32>
    %361 = vector.shape_cast %360 : vector<2x16xf32> to vector<2x1x16xf32>
    %362 = vector.broadcast %361 : vector<2x1x16xf32> to vector<2x8x16xf32>
    %363 = arith.mulf %362, %2 : vector<2x8x16xf32>
    %cst_110 = arith.constant dense<0.000000e+00> : vector<2x8xf32>
    %364 = vector.multi_reduction <add>, %363, %cst_110 [2] : vector<2x8x16xf32> to vector<2x8xf32>
    %cst_111 = arith.constant dense<0xFF800000> : vector<2xf32>
    %365 = vector.multi_reduction <maximumf>, %364, %cst_111 [1] : vector<2x8xf32> to vector<2xf32>
    %366 = vector.shape_cast %365 : vector<2xf32> to vector<2x1xf32>
    %367 = vector.broadcast %366 : vector<2x1xf32> to vector<2x8xf32>
    %368 = arith.subf %364, %367 : vector<2x8xf32>
    %369 = math.exp %368 : vector<2x8xf32>
    %cst_112 = arith.constant dense<0.000000e+00> : vector<2xf32>
    %370 = vector.multi_reduction <add>, %369, %cst_112 [1] : vector<2x8xf32> to vector<2xf32>
    %371 = vector.shape_cast %370 : vector<2xf32> to vector<2x1xf32>
    %372 = vector.broadcast %371 : vector<2x1xf32> to vector<2x8xf32>
    %373 = arith.divf %369, %372 : vector<2x8xf32>
    %374 = vector.shape_cast %373 : vector<2x8xf32> to vector<2x1x8xf32>
    %375 = arith.truncf %374 : vector<2x1x8xf32> to vector<2x1x8xbf16>
    "tpu.trace_start"() <{level = 10 : i32, message = "bqs,bse->bqe"}> : () -> ()
    %cst_113 = arith.constant dense<0.000000e+00> : vector<2x1x16xf32>
    %376 = tpu.matmul %375, %1, %cst_113 {dimension_numbers = #tpu.dot_dimension_numbers<[2], [1], [1], [2], [0, 0, 0, 1, 1, 2], [0], [0]>} : vector<2x1x8xbf16>, vector<2x8x16xbf16>, vector<2x1x16xf32> -> vector<2x1x16xf32>
    "tpu.trace_stop"() : () -> ()
    %377 = vector.shape_cast %376 : vector<2x1x16xf32> to vector<2x16xf32>
    %378 = arith.truncf %377 : vector<2x16xf32> to vector<2x16xbf16>
    %cst_114 = arith.constant dense<0.000000e+00> : vector<2x16xf32>
    %379 = tpu.matmul %378, %14, %cst_114 {dimension_numbers = #tpu.dot_dimension_numbers<[1], [0], [0], [1], [0, 0, 1, 1], [], []>} : vector<2x16xbf16>, vector<16x16xbf16>, vector<2x16xf32> -> vector<2x16xf32>
    %380 = arith.truncf %360 : vector<2x16xf32> to vector<2x16xbf16>
    %cst_115 = arith.constant dense<0.000000e+00> : vector<2x16xf32>
    %381 = tpu.matmul %380, %15, %cst_115 {dimension_numbers = #tpu.dot_dimension_numbers<[1], [0], [0], [1], [0, 0, 1, 1], [], []>} : vector<2x16xbf16>, vector<16x16xbf16>, vector<2x16xf32> -> vector<2x16xf32>
    %382 = arith.addf %379, %381 : vector<2x16xf32>
    %383 = math.tanh %382 : vector<2x16xf32>
    %384 = arith.truncf %383 : vector<2x16xf32> to vector<2x16xbf16>
    %cst_116 = arith.constant dense<0.000000e+00> : vector<2x32xf32>
    %385 = tpu.matmul %384, %0, %cst_116 {dimension_numbers = #tpu.dot_dimension_numbers<[1], [1], [0], [0], [0, 0, 1, 0], [], []>} : vector<2x16xbf16>, vector<32x16xbf16>, vector<2x32xf32> -> vector<2x32xf32>
    %386 = arith.index_cast %c3_i32 : i32 to index
    %c0_117 = arith.constant 0 : index
    %c0_118 = arith.constant 0 : index
    %387 = vector.load %arg9[%386, %c0_117, %c0_118] : memref<6x2x32xf32, #tpu.memory_space<vmem>>, vector<1x2x32xf32>
    %388 = vector.shape_cast %387 : vector<1x2x32xf32> to vector<2x32xf32>
    %389 = vector.shape_cast %385 : vector<2x32xf32> to vector<1x2x32xf32>
    tpu.vector_store %arg9[%386, %c0_117, %c0_118], %389 {strides = array<i32>} : memref<6x2x32xf32, #tpu.memory_space<vmem>>, vector<1x2x32xf32>,
    %390 = arith.index_cast %c3_i32 : i32 to index
    %c0_119 = arith.constant 0 : index
    %c0_120 = arith.constant 0 : index
    %391 = vector.load %arg10[%390, %c0_119, %c0_120] : memref<6x2x8xf32, #tpu.memory_space<vmem>>, vector<1x2x8xf32>
    %392 = vector.shape_cast %391 : vector<1x2x8xf32> to vector<2x8xf32>
    %393 = vector.shape_cast %373 : vector<2x8xf32> to vector<1x2x8xf32>
    tpu.vector_store %arg10[%390, %c0_119, %c0_120], %393 {strides = array<i32>} : memref<6x2x8xf32, #tpu.memory_space<vmem>>, vector<1x2x8xf32>,
    %cst_121 = arith.constant dense<0xFF800000> : vector<2xf32>
    %394 = vector.multi_reduction <maximumf>, %385, %cst_121 [1] : vector<2x32xf32> to vector<2xf32>
    %395 = vector.shape_cast %394 : vector<2xf32> to vector<2x1xf32>
    %396 = vector.broadcast %395 : vector<2x1xf32> to vector<2x32xf32>
    %397 = arith.cmpf oeq, %385, %396 : vector<2x32xf32>
    %c32_i32_122 = arith.constant 32 : i32
    %398 = vector.broadcast %c32_i32_122 : i32 to vector<2x32xi32>
    %399 = arith.select %397, %16, %398 : vector<2x32xi1>, vector<2x32xi32>
    %cst_123 = arith.constant dense<2147483647> : vector<2xi32>
    %400 = vector.multi_reduction <minsi>, %399, %cst_123 [1] : vector<2x32xi32> to vector<2xi32>
    %401 = vector.shape_cast %400 : vector<2xi32> to vector<2x1xi32>
    %402 = vector.broadcast %401 : vector<2x1xi32> to vector<2x32xi32>
    %403 = arith.cmpi eq, %16, %402 : vector<2x32xi32>
    %404 = arith.extui %403 : vector<2x32xi1> to vector<2x32xi32>
    %405 = arith.sitofp %404 : vector<2x32xi32> to vector<2x32xf32>
    %406 = arith.truncf %405 : vector<2x32xf32> to vector<2x32xbf16>
    %cst_124 = arith.constant dense<0.000000e+00> : vector<2x16xf32>
    %407 = tpu.matmul %406, %0, %cst_124 {dimension_numbers = #tpu.dot_dimension_numbers<[1], [0], [0], [1], [0, 0, 1, 1], [], []>} : vector<2x32xbf16>, vector<32x16xbf16>, vector<2x16xf32> -> vector<2x16xf32>
    %408 = arith.truncf %407 : vector<2x16xf32> to vector<2x16xbf16>
    %c4_i32 = arith.constant 4 : i32
    %409 = arith.truncf %358 : vector<2x32xf32> to vector<2x32xbf16>
    %410 = vector.extract_strided_slice %3 {offsets = [0, 0, 0], sizes = [1, 16, 32], strides = [1, 1, 1]} : vector<3x16x32xbf16> to vector<1x16x32xbf16>
    %411 = vector.shape_cast %410 : vector<1x16x32xbf16> to vector<16x32xbf16>
    %cst_125 = arith.constant dense<0.000000e+00> : vector<2x32xf32>
    %412 = tpu.matmul %408, %411, %cst_125 {dimension_numbers = #tpu.dot_dimension_numbers<[1], [0], [0], [1], [0, 0, 1, 1], [], []>} : vector<2x16xbf16>, vector<16x32xbf16>, vector<2x32xf32> -> vector<2x32xf32>
    %413 = vector.extract_strided_slice %4 {offsets = [0, 0, 0], sizes = [1, 32, 32], strides = [1, 1, 1]} : vector<3x32x32xbf16> to vector<1x32x32xbf16>
    %414 = vector.shape_cast %413 : vector<1x32x32xbf16> to vector<32x32xbf16>
    %cst_126 = arith.constant dense<0.000000e+00> : vector<2x32xf32>
    %415 = tpu.matmul %409, %414, %cst_126 {dimension_numbers = #tpu.dot_dimension_numbers<[1], [0], [0], [1], [0, 0, 1, 1], [], []>} : vector<2x32xbf16>, vector<32x32xbf16>, vector<2x32xf32> -> vector<2x32xf32>
    %416 = arith.addf %412, %415 : vector<2x32xf32>
    %417 = vector.broadcast %6 : vector<1x32xf32> to vector<2x32xf32>
    %418 = arith.addf %416, %417 : vector<2x32xf32>
    %419 = arith.negf %418 : vector<2x32xf32>
    %420 = math.exp %419 : vector<2x32xf32>
    %cst_127 = arith.constant 1.000000e+00 : f32
    %421 = vector.broadcast %cst_127 : f32 to vector<2x32xf32>
    %422 = arith.addf %421, %420 : vector<2x32xf32>
    %423 = arith.divf %421, %422 : vector<2x32xf32>
    %424 = vector.extract_strided_slice %3 {offsets = [1, 0, 0], sizes = [1, 16, 32], strides = [1, 1, 1]} : vector<3x16x32xbf16> to vector<1x16x32xbf16>
    %425 = vector.shape_cast %424 : vector<1x16x32xbf16> to vector<16x32xbf16>
    %cst_128 = arith.constant dense<0.000000e+00> : vector<2x32xf32>
    %426 = tpu.matmul %408, %425, %cst_128 {dimension_numbers = #tpu.dot_dimension_numbers<[1], [0], [0], [1], [0, 0, 1, 1], [], []>} : vector<2x16xbf16>, vector<16x32xbf16>, vector<2x32xf32> -> vector<2x32xf32>
    %427 = vector.extract_strided_slice %4 {offsets = [1, 0, 0], sizes = [1, 32, 32], strides = [1, 1, 1]} : vector<3x32x32xbf16> to vector<1x32x32xbf16>
    %428 = vector.shape_cast %427 : vector<1x32x32xbf16> to vector<32x32xbf16>
    %cst_129 = arith.constant dense<0.000000e+00> : vector<2x32xf32>
    %429 = tpu.matmul %409, %428, %cst_129 {dimension_numbers = #tpu.dot_dimension_numbers<[1], [0], [0], [1], [0, 0, 1, 1], [], []>} : vector<2x32xbf16>, vector<32x32xbf16>, vector<2x32xf32> -> vector<2x32xf32>
    %430 = arith.addf %426, %429 : vector<2x32xf32>
    %431 = vector.broadcast %8 : vector<1x32xf32> to vector<2x32xf32>
    %432 = arith.addf %430, %431 : vector<2x32xf32>
    %433 = arith.negf %432 : vector<2x32xf32>
    %434 = math.exp %433 : vector<2x32xf32>
    %cst_130 = arith.constant 1.000000e+00 : f32
    %435 = vector.broadcast %cst_130 : f32 to vector<2x32xf32>
    %436 = arith.addf %435, %434 : vector<2x32xf32>
    %437 = arith.divf %435, %436 : vector<2x32xf32>
    %438 = vector.extract_strided_slice %3 {offsets = [2, 0, 0], sizes = [1, 16, 32], strides = [1, 1, 1]} : vector<3x16x32xbf16> to vector<1x16x32xbf16>
    %439 = vector.shape_cast %438 : vector<1x16x32xbf16> to vector<16x32xbf16>
    %cst_131 = arith.constant dense<0.000000e+00> : vector<2x32xf32>
    %440 = tpu.matmul %408, %439, %cst_131 {dimension_numbers = #tpu.dot_dimension_numbers<[1], [0], [0], [1], [0, 0, 1, 1], [], []>} : vector<2x16xbf16>, vector<16x32xbf16>, vector<2x32xf32> -> vector<2x32xf32>
    %441 = vector.broadcast %10 : vector<1x32xf32> to vector<2x32xf32>
    %442 = arith.addf %440, %441 : vector<2x32xf32>
    %443 = vector.extract_strided_slice %4 {offsets = [2, 0, 0], sizes = [1, 32, 32], strides = [1, 1, 1]} : vector<3x32x32xbf16> to vector<1x32x32xbf16>
    %444 = vector.shape_cast %443 : vector<1x32x32xbf16> to vector<32x32xbf16>
    %cst_132 = arith.constant dense<0.000000e+00> : vector<2x32xf32>
    %445 = tpu.matmul %409, %444, %cst_132 {dimension_numbers = #tpu.dot_dimension_numbers<[1], [0], [0], [1], [0, 0, 1, 1], [], []>} : vector<2x32xbf16>, vector<32x32xbf16>, vector<2x32xf32> -> vector<2x32xf32>
    %446 = vector.broadcast %12 : vector<1x32xf32> to vector<2x32xf32>
    %447 = arith.addf %445, %446 : vector<2x32xf32>
    %448 = arith.mulf %423, %447 : vector<2x32xf32>
    %449 = arith.addf %442, %448 : vector<2x32xf32>
    %450 = math.tanh %449 : vector<2x32xf32>
    %cst_133 = arith.constant 1.000000e+00 : f32
    %451 = vector.broadcast %cst_133 : f32 to vector<2x32xf32>
    %452 = arith.subf %451, %437 : vector<2x32xf32>
    %453 = arith.mulf %452, %450 : vector<2x32xf32>
    %454 = arith.mulf %437, %358 : vector<2x32xf32>
    %455 = arith.addf %453, %454 : vector<2x32xf32>
    %456 = arith.truncf %455 : vector<2x32xf32> to vector<2x32xbf16>
    %cst_134 = arith.constant dense<0.000000e+00> : vector<2x16xf32>
    %457 = tpu.matmul %456, %13, %cst_134 {dimension_numbers = #tpu.dot_dimension_numbers<[1], [0], [0], [1], [0, 0, 1, 1], [], []>} : vector<2x32xbf16>, vector<32x16xbf16>, vector<2x16xf32> -> vector<2x16xf32>
    %458 = vector.shape_cast %457 : vector<2x16xf32> to vector<2x1x16xf32>
    %459 = vector.broadcast %458 : vector<2x1x16xf32> to vector<2x8x16xf32>
    %460 = arith.mulf %459, %2 : vector<2x8x16xf32>
    %cst_135 = arith.constant dense<0.000000e+00> : vector<2x8xf32>
    %461 = vector.multi_reduction <add>, %460, %cst_135 [2] : vector<2x8x16xf32> to vector<2x8xf32>
    %cst_136 = arith.constant dense<0xFF800000> : vector<2xf32>
    %462 = vector.multi_reduction <maximumf>, %461, %cst_136 [1] : vector<2x8xf32> to vector<2xf32>
    %463 = vector.shape_cast %462 : vector<2xf32> to vector<2x1xf32>
    %464 = vector.broadcast %463 : vector<2x1xf32> to vector<2x8xf32>
    %465 = arith.subf %461, %464 : vector<2x8xf32>
    %466 = math.exp %465 : vector<2x8xf32>
    %cst_137 = arith.constant dense<0.000000e+00> : vector<2xf32>
    %467 = vector.multi_reduction <add>, %466, %cst_137 [1] : vector<2x8xf32> to vector<2xf32>
    %468 = vector.shape_cast %467 : vector<2xf32> to vector<2x1xf32>
    %469 = vector.broadcast %468 : vector<2x1xf32> to vector<2x8xf32>
    %470 = arith.divf %466, %469 : vector<2x8xf32>
    %471 = vector.shape_cast %470 : vector<2x8xf32> to vector<2x1x8xf32>
    %472 = arith.truncf %471 : vector<2x1x8xf32> to vector<2x1x8xbf16>
    "tpu.trace_start"() <{level = 10 : i32, message = "bqs,bse->bqe"}> : () -> ()
    %cst_138 = arith.constant dense<0.000000e+00> : vector<2x1x16xf32>
    %473 = tpu.matmul %472, %1, %cst_138 {dimension_numbers = #tpu.dot_dimension_numbers<[2], [1], [1], [2], [0, 0, 0, 1, 1, 2], [0], [0]>} : vector<2x1x8xbf16>, vector<2x8x16xbf16>, vector<2x1x16xf32> -> vector<2x1x16xf32>
    "tpu.trace_stop"() : () -> ()
    %474 = vector.shape_cast %473 : vector<2x1x16xf32> to vector<2x16xf32>
    %475 = arith.truncf %474 : vector<2x16xf32> to vector<2x16xbf16>
    %cst_139 = arith.constant dense<0.000000e+00> : vector<2x16xf32>
    %476 = tpu.matmul %475, %14, %cst_139 {dimension_numbers = #tpu.dot_dimension_numbers<[1], [0], [0], [1], [0, 0, 1, 1], [], []>} : vector<2x16xbf16>, vector<16x16xbf16>, vector<2x16xf32> -> vector<2x16xf32>
    %477 = arith.truncf %457 : vector<2x16xf32> to vector<2x16xbf16>
    %cst_140 = arith.constant dense<0.000000e+00> : vector<2x16xf32>
    %478 = tpu.matmul %477, %15, %cst_140 {dimension_numbers = #tpu.dot_dimension_numbers<[1], [0], [0], [1], [0, 0, 1, 1], [], []>} : vector<2x16xbf16>, vector<16x16xbf16>, vector<2x16xf32> -> vector<2x16xf32>
    %479 = arith.addf %476, %478 : vector<2x16xf32>
    %480 = math.tanh %479 : vector<2x16xf32>
    %481 = arith.truncf %480 : vector<2x16xf32> to vector<2x16xbf16>
    %cst_141 = arith.constant dense<0.000000e+00> : vector<2x32xf32>
    %482 = tpu.matmul %481, %0, %cst_141 {dimension_numbers = #tpu.dot_dimension_numbers<[1], [1], [0], [0], [0, 0, 1, 0], [], []>} : vector<2x16xbf16>, vector<32x16xbf16>, vector<2x32xf32> -> vector<2x32xf32>
    %483 = arith.index_cast %c4_i32 : i32 to index
    %c0_142 = arith.constant 0 : index
    %c0_143 = arith.constant 0 : index
    %484 = vector.load %arg9[%483, %c0_142, %c0_143] : memref<6x2x32xf32, #tpu.memory_space<vmem>>, vector<1x2x32xf32>
    %485 = vector.shape_cast %484 : vector<1x2x32xf32> to vector<2x32xf32>
    %486 = vector.shape_cast %482 : vector<2x32xf32> to vector<1x2x32xf32>
    tpu.vector_store %arg9[%483, %c0_142, %c0_143], %486 {strides = array<i32>} : memref<6x2x32xf32, #tpu.memory_space<vmem>>, vector<1x2x32xf32>,
    %487 = arith.index_cast %c4_i32 : i32 to index
    %c0_144 = arith.constant 0 : index
    %c0_145 = arith.constant 0 : index
    %488 = vector.load %arg10[%487, %c0_144, %c0_145] : memref<6x2x8xf32, #tpu.memory_space<vmem>>, vector<1x2x8xf32>
    %489 = vector.shape_cast %488 : vector<1x2x8xf32> to vector<2x8xf32>
    %490 = vector.shape_cast %470 : vector<2x8xf32> to vector<1x2x8xf32>
    tpu.vector_store %arg10[%487, %c0_144, %c0_145], %490 {strides = array<i32>} : memref<6x2x8xf32, #tpu.memory_space<vmem>>, vector<1x2x8xf32>,
    %cst_146 = arith.constant dense<0xFF800000> : vector<2xf32>
    %491 = vector.multi_reduction <maximumf>, %482, %cst_146 [1] : vector<2x32xf32> to vector<2xf32>
    %492 = vector.shape_cast %491 : vector<2xf32> to vector<2x1xf32>
    %493 = vector.broadcast %492 : vector<2x1xf32> to vector<2x32xf32>
    %494 = arith.cmpf oeq, %482, %493 : vector<2x32xf32>
    %c32_i32_147 = arith.constant 32 : i32
    %495 = vector.broadcast %c32_i32_147 : i32 to vector<2x32xi32>
    %496 = arith.select %494, %16, %495 : vector<2x32xi1>, vector<2x32xi32>
    %cst_148 = arith.constant dense<2147483647> : vector<2xi32>
    %497 = vector.multi_reduction <minsi>, %496, %cst_148 [1] : vector<2x32xi32> to vector<2xi32>
    %498 = vector.shape_cast %497 : vector<2xi32> to vector<2x1xi32>
    %499 = vector.broadcast %498 : vector<2x1xi32> to vector<2x32xi32>
    %500 = arith.cmpi eq, %16, %499 : vector<2x32xi32>
    %501 = arith.extui %500 : vector<2x32xi1> to vector<2x32xi32>
    %502 = arith.sitofp %501 : vector<2x32xi32> to vector<2x32xf32>
    %503 = arith.truncf %502 : vector<2x32xf32> to vector<2x32xbf16>
    %cst_149 = arith.constant dense<0.000000e+00> : vector<2x16xf32>
    %504 = tpu.matmul %503, %0, %cst_149 {dimension_numbers = #tpu.dot_dimension_numbers<[1], [0], [0], [1], [0, 0, 1, 1], [], []>} : vector<2x32xbf16>, vector<32x16xbf16>, vector<2x16xf32> -> vector<2x16xf32>
    %505 = arith.truncf %504 : vector<2x16xf32> to vector<2x16xbf16>
    %c5_i32 = arith.constant 5 : i32
    %506 = arith.truncf %455 : vector<2x32xf32> to vector<2x32xbf16>
    %507 = vector.extract_strided_slice %3 {offsets = [0, 0, 0], sizes = [1, 16, 32], strides = [1, 1, 1]} : vector<3x16x32xbf16> to vector<1x16x32xbf16>
    %508 = vector.shape_cast %507 : vector<1x16x32xbf16> to vector<16x32xbf16>
    %cst_150 = arith.constant dense<0.000000e+00> : vector<2x32xf32>
    %509 = tpu.matmul %505, %508, %cst_150 {dimension_numbers = #tpu.dot_dimension_numbers<[1], [0], [0], [1], [0, 0, 1, 1], [], []>} : vector<2x16xbf16>, vector<16x32xbf16>, vector<2x32xf32> -> vector<2x32xf32>
    %510 = vector.extract_strided_slice %4 {offsets = [0, 0, 0], sizes = [1, 32, 32], strides = [1, 1, 1]} : vector<3x32x32xbf16> to vector<1x32x32xbf16>
    %511 = vector.shape_cast %510 : vector<1x32x32xbf16> to vector<32x32xbf16>
    %cst_151 = arith.constant dense<0.000000e+00> : vector<2x32xf32>
    %512 = tpu.matmul %506, %511, %cst_151 {dimension_numbers = #tpu.dot_dimension_numbers<[1], [0], [0], [1], [0, 0, 1, 1], [], []>} : vector<2x32xbf16>, vector<32x32xbf16>, vector<2x32xf32> -> vector<2x32xf32>
    %513 = arith.addf %509, %512 : vector<2x32xf32>
    %514 = vector.broadcast %6 : vector<1x32xf32> to vector<2x32xf32>
    %515 = arith.addf %513, %514 : vector<2x32xf32>
    %516 = arith.negf %515 : vector<2x32xf32>
    %517 = math.exp %516 : vector<2x32xf32>
    %cst_152 = arith.constant 1.000000e+00 : f32
    %518 = vector.broadcast %cst_152 : f32 to vector<2x32xf32>
    %519 = arith.addf %518, %517 : vector<2x32xf32>
    %520 = arith.divf %518, %519 : vector<2x32xf32>
    %521 = vector.extract_strided_slice %3 {offsets = [1, 0, 0], sizes = [1, 16, 32], strides = [1, 1, 1]} : vector<3x16x32xbf16> to vector<1x16x32xbf16>
    %522 = vector.shape_cast %521 : vector<1x16x32xbf16> to vector<16x32xbf16>
    %cst_153 = arith.constant dense<0.000000e+00> : vector<2x32xf32>
    %523 = tpu.matmul %505, %522, %cst_153 {dimension_numbers = #tpu.dot_dimension_numbers<[1], [0], [0], [1], [0, 0, 1, 1], [], []>} : vector<2x16xbf16>, vector<16x32xbf16>, vector<2x32xf32> -> vector<2x32xf32>
    %524 = vector.extract_strided_slice %4 {offsets = [1, 0, 0], sizes = [1, 32, 32], strides = [1, 1, 1]} : vector<3x32x32xbf16> to vector<1x32x32xbf16>
    %525 = vector.shape_cast %524 : vector<1x32x32xbf16> to vector<32x32xbf16>
    %cst_154 = arith.constant dense<0.000000e+00> : vector<2x32xf32>
    %526 = tpu.matmul %506, %525, %cst_154 {dimension_numbers = #tpu.dot_dimension_numbers<[1], [0], [0], [1], [0, 0, 1, 1], [], []>} : vector<2x32xbf16>, vector<32x32xbf16>, vector<2x32xf32> -> vector<2x32xf32>
    %527 = arith.addf %523, %526 : vector<2x32xf32>
    %528 = vector.broadcast %8 : vector<1x32xf32> to vector<2x32xf32>
    %529 = arith.addf %527, %528 : vector<2x32xf32>
    %530 = arith.negf %529 : vector<2x32xf32>
    %531 = math.exp %530 : vector<2x32xf32>
    %cst_155 = arith.constant 1.000000e+00 : f32
    %532 = vector.broadcast %cst_155 : f32 to vector<2x32xf32>
    %533 = arith.addf %532, %531 : vector<2x32xf32>
    %534 = arith.divf %532, %533 : vector<2x32xf32>
    %535 = vector.extract_strided_slice %3 {offsets = [2, 0, 0], sizes = [1, 16, 32], strides = [1, 1, 1]} : vector<3x16x32xbf16> to vector<1x16x32xbf16>
    %536 = vector.shape_cast %535 : vector<1x16x32xbf16> to vector<16x32xbf16>
    %cst_156 = arith.constant dense<0.000000e+00> : vector<2x32xf32>
    %537 = tpu.matmul %505, %536, %cst_156 {dimension_numbers = #tpu.dot_dimension_numbers<[1], [0], [0], [1], [0, 0, 1, 1], [], []>} : vector<2x16xbf16>, vector<16x32xbf16>, vector<2x32xf32> -> vector<2x32xf32>
    %538 = vector.broadcast %10 : vector<1x32xf32> to vector<2x32xf32>
    %539 = arith.addf %537, %538 : vector<2x32xf32>
    %540 = vector.extract_strided_slice %4 {offsets = [2, 0, 0], sizes = [1, 32, 32], strides = [1, 1, 1]} : vector<3x32x32xbf16> to vector<1x32x32xbf16>
    %541 = vector.shape_cast %540 : vector<1x32x32xbf16> to vector<32x32xbf16>
    %cst_157 = arith.constant dense<0.000000e+00> : vector<2x32xf32>
    %542 = tpu.matmul %506, %541, %cst_157 {dimension_numbers = #tpu.dot_dimension_numbers<[1], [0], [0], [1], [0, 0, 1, 1], [], []>} : vector<2x32xbf16>, vector<32x32xbf16>, vector<2x32xf32> -> vector<2x32xf32>
    %543 = vector.broadcast %12 : vector<1x32xf32> to vector<2x32xf32>
    %544 = arith.addf %542, %543 : vector<2x32xf32>
    %545 = arith.mulf %520, %544 : vector<2x32xf32>
    %546 = arith.addf %539, %545 : vector<2x32xf32>
    %547 = math.tanh %546 : vector<2x32xf32>
    %cst_158 = arith.constant 1.000000e+00 : f32
    %548 = vector.broadcast %cst_158 : f32 to vector<2x32xf32>
    %549 = arith.subf %548, %534 : vector<2x32xf32>
    %550 = arith.mulf %549, %547 : vector<2x32xf32>
    %551 = arith.mulf %534, %455 : vector<2x32xf32>
    %552 = arith.addf %550, %551 : vector<2x32xf32>
    %553 = arith.truncf %552 : vector<2x32xf32> to vector<2x32xbf16>
    %cst_159 = arith.constant dense<0.000000e+00> : vector<2x16xf32>
    %554 = tpu.matmul %553, %13, %cst_159 {dimension_numbers = #tpu.dot_dimension_numbers<[1], [0], [0], [1], [0, 0, 1, 1], [], []>} : vector<2x32xbf16>, vector<32x16xbf16>, vector<2x16xf32> -> vector<2x16xf32>
    %555 = vector.shape_cast %554 : vector<2x16xf32> to vector<2x1x16xf32>
    %556 = vector.broadcast %555 : vector<2x1x16xf32> to vector<2x8x16xf32>
    %557 = arith.mulf %556, %2 : vector<2x8x16xf32>
    %cst_160 = arith.constant dense<0.000000e+00> : vector<2x8xf32>
    %558 = vector.multi_reduction <add>, %557, %cst_160 [2] : vector<2x8x16xf32> to vector<2x8xf32>
    %cst_161 = arith.constant dense<0xFF800000> : vector<2xf32>
    %559 = vector.multi_reduction <maximumf>, %558, %cst_161 [1] : vector<2x8xf32> to vector<2xf32>
    %560 = vector.shape_cast %559 : vector<2xf32> to vector<2x1xf32>
    %561 = vector.broadcast %560 : vector<2x1xf32> to vector<2x8xf32>
    %562 = arith.subf %558, %561 : vector<2x8xf32>
    %563 = math.exp %562 : vector<2x8xf32>
    %cst_162 = arith.constant dense<0.000000e+00> : vector<2xf32>
    %564 = vector.multi_reduction <add>, %563, %cst_162 [1] : vector<2x8xf32> to vector<2xf32>
    %565 = vector.shape_cast %564 : vector<2xf32> to vector<2x1xf32>
    %566 = vector.broadcast %565 : vector<2x1xf32> to vector<2x8xf32>
    %567 = arith.divf %563, %566 : vector<2x8xf32>
    %568 = vector.shape_cast %567 : vector<2x8xf32> to vector<2x1x8xf32>
    %569 = arith.truncf %568 : vector<2x1x8xf32> to vector<2x1x8xbf16>
    "tpu.trace_start"() <{level = 10 : i32, message = "bqs,bse->bqe"}> : () -> ()
    %cst_163 = arith.constant dense<0.000000e+00> : vector<2x1x16xf32>
    %570 = tpu.matmul %569, %1, %cst_163 {dimension_numbers = #tpu.dot_dimension_numbers<[2], [1], [1], [2], [0, 0, 0, 1, 1, 2], [0], [0]>} : vector<2x1x8xbf16>, vector<2x8x16xbf16>, vector<2x1x16xf32> -> vector<2x1x16xf32>
    "tpu.trace_stop"() : () -> ()
    %571 = vector.shape_cast %570 : vector<2x1x16xf32> to vector<2x16xf32>
    %572 = arith.truncf %571 : vector<2x16xf32> to vector<2x16xbf16>
    %cst_164 = arith.constant dense<0.000000e+00> : vector<2x16xf32>
    %573 = tpu.matmul %572, %14, %cst_164 {dimension_numbers = #tpu.dot_dimension_numbers<[1], [0], [0], [1], [0, 0, 1, 1], [], []>} : vector<2x16xbf16>, vector<16x16xbf16>, vector<2x16xf32> -> vector<2x16xf32>
    %574 = arith.truncf %554 : vector<2x16xf32> to vector<2x16xbf16>
    %cst_165 = arith.constant dense<0.000000e+00> : vector<2x16xf32>
    %575 = tpu.matmul %574, %15, %cst_165 {dimension_numbers = #tpu.dot_dimension_numbers<[1], [0], [0], [1], [0, 0, 1, 1], [], []>} : vector<2x16xbf16>, vector<16x16xbf16>, vector<2x16xf32> -> vector<2x16xf32>
    %576 = arith.addf %573, %575 : vector<2x16xf32>
    %577 = math.tanh %576 : vector<2x16xf32>
    %578 = arith.truncf %577 : vector<2x16xf32> to vector<2x16xbf16>
    %cst_166 = arith.constant dense<0.000000e+00> : vector<2x32xf32>
    %579 = tpu.matmul %578, %0, %cst_166 {dimension_numbers = #tpu.dot_dimension_numbers<[1], [1], [0], [0], [0, 0, 1, 0], [], []>} : vector<2x16xbf16>, vector<32x16xbf16>, vector<2x32xf32> -> vector<2x32xf32>
    %580 = arith.index_cast %c5_i32 : i32 to index
    %c0_167 = arith.constant 0 : index
    %c0_168 = arith.constant 0 : index
    %581 = vector.load %arg9[%580, %c0_167, %c0_168] : memref<6x2x32xf32, #tpu.memory_space<vmem>>, vector<1x2x32xf32>
    %582 = vector.shape_cast %581 : vector<1x2x32xf32> to vector<2x32xf32>
    %583 = vector.shape_cast %579 : vector<2x32xf32> to vector<1x2x32xf32>
    tpu.vector_store %arg9[%580, %c0_167, %c0_168], %583 {strides = array<i32>} : memref<6x2x32xf32, #tpu.memory_space<vmem>>, vector<1x2x32xf32>,
    %584 = arith.index_cast %c5_i32 : i32 to index
    %c0_169 = arith.constant 0 : index
    %c0_170 = arith.constant 0 : index
    %585 = vector.load %arg10[%584, %c0_169, %c0_170] : memref<6x2x8xf32, #tpu.memory_space<vmem>>, vector<1x2x8xf32>
    %586 = vector.shape_cast %585 : vector<1x2x8xf32> to vector<2x8xf32>
    %587 = vector.shape_cast %567 : vector<2x8xf32> to vector<1x2x8xf32>
    tpu.vector_store %arg10[%584, %c0_169, %c0_170], %587 {strides = array<i32>} : memref<6x2x8xf32, #tpu.memory_space<vmem>>, vector<1x2x8xf32>,
    %cst_171 = arith.constant dense<0xFF800000> : vector<2xf32>
    %588 = vector.multi_reduction <maximumf>, %579, %cst_171 [1] : vector<2x32xf32> to vector<2xf32>
    %589 = vector.shape_cast %588 : vector<2xf32> to vector<2x1xf32>
    %590 = vector.broadcast %589 : vector<2x1xf32> to vector<2x32xf32>
    %591 = arith.cmpf oeq, %579, %590 : vector<2x32xf32>
    %c32_i32_172 = arith.constant 32 : i32
    %592 = vector.broadcast %c32_i32_172 : i32 to vector<2x32xi32>
    %593 = arith.select %591, %16, %592 : vector<2x32xi1>, vector<2x32xi32>
    %cst_173 = arith.constant dense<2147483647> : vector<2xi32>
    %594 = vector.multi_reduction <minsi>, %593, %cst_173 [1] : vector<2x32xi32> to vector<2xi32>
    %595 = vector.shape_cast %594 : vector<2xi32> to vector<2x1xi32>
    %596 = vector.broadcast %595 : vector<2x1xi32> to vector<2x32xi32>
    %597 = arith.cmpi eq, %16, %596 : vector<2x32xi32>
    %598 = arith.extui %597 : vector<2x32xi1> to vector<2x32xi32>
    %599 = arith.sitofp %598 : vector<2x32xi32> to vector<2x32xf32>
    %600 = arith.truncf %599 : vector<2x32xf32> to vector<2x32xbf16>
    %cst_174 = arith.constant dense<0.000000e+00> : vector<2x16xf32>
    %601 = tpu.matmul %600, %0, %cst_174 {dimension_numbers = #tpu.dot_dimension_numbers<[1], [0], [0], [1], [0, 0, 1, 1], [], []>} : vector<2x32xbf16>, vector<32x16xbf16>, vector<2x16xf32> -> vector<2x16xf32>
    %602 = arith.truncf %601 : vector<2x16xf32> to vector<2x16xbf16>
    %c6_i32 = arith.constant 6 : i32
    return
  }
}

</mosaic_0001>

<llo_original>
// kernel: seq2seq_forward.3
$region0: #{seq2seq_forward.3}
  #allocation0 [shape = 'u32[]', space=smem, size = 0x4, offset = 0x4, fixed_abs, tag = 'smem constant byte address 0x4 - core index']
  #allocation1 [shape = 'u32[144,128]{1,0:T(1,128)}', space=vmem, size = 0x12000, scoped, tag = 'internal scratch']
  %s0 = inlined_call_operand.vmem [shape: bf16[2,8,16], index: 0, kind: input, shape index: {}]
  %s1 = inlined_call_operand.vmem [shape: f32[2,32], index: 1, kind: input, shape index: {}]
  %s2 = inlined_call_operand.vmem [shape: bf16[32,16], index: 2, kind: input, shape index: {}]
  %s3 = inlined_call_operand.vmem [shape: bf16[3,16,32], index: 3, kind: input, shape index: {}]
  %s4 = inlined_call_operand.vmem [shape: bf16[3,32,32], index: 4, kind: input, shape index: {}]
  %s5 = inlined_call_operand.vmem [shape: f32[4,1,32], index: 5, kind: input, shape index: {}]
  %s6 = inlined_call_operand.vmem [shape: bf16[32,16], index: 6, kind: input, shape index: {}]
  %s7 = inlined_call_operand.vmem [shape: bf16[16,16], index: 7, kind: input, shape index: {}]
  %s8 = inlined_call_operand.vmem [shape: bf16[16,16], index: 8, kind: input, shape index: {}]
  %s9 = inlined_call_operand.hbm [shape: f32[6,2,32], index: 9, kind: output, shape index: {0}]
  %s10 = inlined_call_operand.hbm [shape: f32[6,2,8], index: 10, kind: output, shape index: {1}]
  %11 = xla_tuple %s9, %s10
  %s12 = sld [smem:[#allocation0]]
  $region54: #{seq2seq_forward.3} parent=0
    _
  %s14 = ssub.s32 1, %s12
  %s15 = scalar_select 0, %s14, %s12
  $region1: #{seq2seq_forward.3} parent=0
    #allocation2 [shape = 'u8[6144]{0}', space=vmem, size = 0x1800, scoped, tag = 'output window, operand 0, single buffered']
    #allocation3 [shape = 's32[1]{0}', space=sflag, size = 0x4, scoped, tag = 'scoped memory for seq2seq_forward.3']
    #allocation4 [shape = 'u8[6144]{0}', space=vmem, size = 0x1800, scoped, tag = 'output window, operand 1, single buffered']
    #allocation5 [shape = 's32[1]{0}', space=sflag, size = 0x4, scoped, tag = 'scoped memory for seq2seq_forward.3']
    %16 = vsyncpa [#allocation3], 0
    %17 = vsyncpa [#allocation5], 0
    // Predicated region
    $region2: #{seq2seq_forward.3} parent=1 // pred_check
      _
    $region3: #{seq2seq_forward.3} parent=1 // pred_check_branch
      %19 = sbr.rel (0) target = $region5
    $region4: #{seq2seq_forward.3} parent=1 // pred_region
      _
    $region5: #{seq2seq_forward.3} parent=1 // pred_fallthru
      _
    // Predicated region
    $region6: #{seq2seq_forward.3} parent=1 // pred_check
      _
    $region7: #{seq2seq_forward.3} parent=1 // pred_check_branch
      %21 = sbr.rel (0) target = $region9
    $region8: #{seq2seq_forward.3} parent=1 // pred_region
      _
    $region9: #{seq2seq_forward.3} parent=1 // pred_fallthru
      _
    // Predicated region
    $region10: #{seq2seq_forward.3} parent=1 // pred_check
      _
    $region11: #{seq2seq_forward.3} parent=1 // pred_check_branch
      %23 = sbr.rel (0) target = $region13
    $region12: #{seq2seq_forward.3} parent=1 // pred_region
      _
    $region13: #{seq2seq_forward.3} parent=1 // pred_fallthru
      _
    // Predicated region
    $region14: #{seq2seq_forward.3} parent=1 // pred_check
      _
    $region15: #{seq2seq_forward.3} parent=1 // pred_check_branch
      %25 = sbr.rel (0) target = $region17
    $region16: #{seq2seq_forward.3} parent=1 // pred_region
      _
    $region17: #{seq2seq_forward.3} parent=1 // pred_fallthru
      _
    // Predicated region
    $region18: #{seq2seq_forward.3} parent=1 // pred_check
      _
    $region19: #{seq2seq_forward.3} parent=1 // pred_check_branch
      %27 = sbr.rel (0) target = $region21
    $region20: #{seq2seq_forward.3} parent=1 // pred_region
      _
    $region21: #{seq2seq_forward.3} parent=1 // pred_fallthru
      _
    // Predicated region
    $region22: #{seq2seq_forward.3} parent=1 // pred_check
      _
    $region23: #{seq2seq_forward.3} parent=1 // pred_check_branch
      %29 = sbr.rel (0) target = $region25
    $region24: #{seq2seq_forward.3} parent=1 // pred_region
      _
    $region25: #{seq2seq_forward.3} parent=1 // pred_fallthru
      _
    // Predicated region
    $region26: #{seq2seq_forward.3} parent=1 // pred_check
      _
    $region27: #{seq2seq_forward.3} parent=1 // pred_check_branch
      %31 = sbr.rel (0) target = $region29
    $region28: #{seq2seq_forward.3} parent=1 // pred_region
      _
    $region29: #{seq2seq_forward.3} parent=1 // pred_fallthru
      _
    // Predicated region
    $region30: #{seq2seq_forward.3} parent=1 // pred_check
      _
    $region31: #{seq2seq_forward.3} parent=1 // pred_check_branch
      %33 = sbr.rel (0) target = $region33
    $region32: #{seq2seq_forward.3} parent=1 // pred_region
      _
    $region33: #{seq2seq_forward.3} parent=1 // pred_fallthru
      _
    // Predicated region
    $region34: #{seq2seq_forward.3} parent=1 // pred_check
      _
    $region35: #{seq2seq_forward.3} parent=1 // pred_check_branch
      %35 = sbr.rel (0) target = $region37
    $region36: #{seq2seq_forward.3} parent=1 // pred_region
      _
    $region37: #{seq2seq_forward.3} parent=1 // pred_fallthru
      _
    %v37 = vld [vmem:[%s2] sm:$0xf]
    %v38 = vld [vmem:[%s2 + $0x4] sm:$0xf]
    %v39 = vld [vmem:[%s2 + $0x8] sm:$0xf]
    %v40 = vld [vmem:[%s2 + $0xc] sm:$0xf]
    %v41 = vld [vmem:[%s0] sm:$0xf]
    %v42 = vld [vmem:[%s0 + $0x4] sm:$0xf]
    %v43 = vunpack.c.l.bf16 %v41
    %v44 = vunpack.c.l.bf16 %v42
    %v45 = vld [vmem:[%s3] sm:$0xf]
    %v46 = vld [vmem:[%s3 + $0x4] sm:$0xf]
    %v47 = vld [vmem:[%s3 + $0x8] sm:$0xf]
    %v48 = vld [vmem:[%s3 + $0xc] sm:$0xf]
    %v49 = vld [vmem:[%s3 + $0x10] sm:$0xf]
    %v50 = vld [vmem:[%s3 + $0x14] sm:$0xf]
    %v51 = vld [vmem:[%s4] sm:$0xf]
    %v52 = vld [vmem:[%s4 + $0x4] sm:$0xf]
    %v53 = vld [vmem:[%s4 + $0x8] sm:$0xf]
    %v54 = vld [vmem:[%s4 + $0xc] sm:$0xf]
    %v55 = vld [vmem:[%s4 + $0x10] sm:$0xf]
    %v56 = vld [vmem:[%s4 + $0x14] sm:$0xf]
    %v57 = vld [vmem:[%s4 + $0x18] sm:$0xf]
    %v58 = vld [vmem:[%s4 + $0x1c] sm:$0xf]
    %v59 = vld [vmem:[%s4 + $0x20] sm:$0xf]
    %v60 = vld [vmem:[%s4 + $0x24] sm:$0xf]
    %v61 = vld [vmem:[%s4 + $0x28] sm:$0xf]
    %v62 = vld [vmem:[%s4 + $0x2c] sm:$0xf]
    %v63 = vld [vmem:[%s5] sm:$0x1]
    %s64 = scalar_lea.vmem %s5, 1
    %v65 = vld [vmem:[%s64] sm:$0x1]
    %s66 = scalar_lea.vmem %s5, 2
    %v67 = vld [vmem:[%s66] sm:$0x1]
    %s68 = scalar_lea.vmem %s5, 3
    %v69 = vld [vmem:[%s68] sm:$0x1]
    %v70 = vld [vmem:[%s6] sm:$0xf]
    %v71 = vld [vmem:[%s6 + $0x4] sm:$0xf]
    %v72 = vld [vmem:[%s6 + $0x8] sm:$0xf]
    %v73 = vld [vmem:[%s6 + $0xc] sm:$0xf]
    %v74 = vld [vmem:[%s7] sm:$0xf]
    %v75 = vld [vmem:[%s7 + $0x4] sm:$0xf]
    %v76 = vld [vmem:[%s8] sm:$0xf]
    %v77 = vld [vmem:[%s8 + $0x4] sm:$0xf]
    %v78 = vlaneseq
    %v79 = vand.u32 %v78, 127
    %v81 = vpack.i.b16 %v37, %v37
    %v83 = vlaneseq
    %v84 = vshrl.u32 %v83, 7
    %v85 = vsub.s32 0, %v84
    %v86 = vrot.slane %v81, %v85
    %v87 = vld [vmem:[%s1] sm:$0x3]
    %v88 = vpack.c.bf16 %v87, %v87
    %v93 = vunpack.c.l.b16 %v51
    %v94 = vunpack.c.l.b16 %v52
    %v95 = vunpack.c.l.b16 %v53
    %v96 = vunpack.c.l.b16 %v54
    %v97 = vpack.c.b16 %v94, %v93
    %v98 = vpack.c.b16 %v96, %v95
    %vm101 = vcmask 261120
    %v103 = vsel %vm101, %v88, 0
    %105 = vmatprep.subr.bf16.mxu0 0
    %106 = vmatpush1.bf16.msra.mxu0 %v97
    %107 = vmatprep.subr.bf16.mxu0 0
    %108 = vmatpush1.bf16.msra.mxu0 %v98
    %109 = vmatprep.subr.bf16.mxu0 0
    %110 = vmatpush1.bf16.msra.mxu0 0
    %111 = vmatprep.subr.bf16.mxu0 0
    %112 = vmatpush1.bf16.msra.mxu0 0
    %113 = vmatprep.subr.bf16.mxu0 0
    %114 = vmatpush1.bf16.msra.mxu0 0
    %115 = vmatprep.subr.bf16.mxu0 0
    %116 = vmatpush1.bf16.msra.mxu0 0
    %117 = vmatprep.subr.bf16.mxu0 0
    %118 = vmatpush1.bf16.msra.mxu0 0
    %119 = vmatprep.subr.bf16.mxu0 0
    %120 = vmatpush1.bf16.msra.mxu0 0
    %121 = vmatprep.subr.bf16.mxu0 0
    %122 = vmatpush1.bf16.msra.mxu0 0
    %123 = vmatprep.subr.bf16.mxu0 0
    %124 = vmatpush1.bf16.msra.mxu0 0
    %125 = vmatprep.subr.bf16.mxu0 0
    %126 = vmatpush1.bf16.msra.mxu0 0
    %127 = vmatprep.subr.bf16.mxu0 0
    %128 = vmatpush1.bf16.msra.mxu0 0
    %129 = vmatprep.subr.bf16.mxu0 0
    %130 = vmatpush1.bf16.msra.mxu0 0
    %131 = vmatprep.subr.bf16.mxu0 0
    %132 = vmatpush1.bf16.msra.mxu0 0
    %133 = vmatprep.subr.bf16.mxu0 0
    %134 = vmatpush1.bf16.msra.mxu0 0
    %135 = vmatprep.subr.bf16.mxu0 0
    %136 = vmatpush1.bf16.msra.mxu0 0
    %137 = vmatprep.mubr.bf16.mxu0 0
    %138 = vmatmul.mubr.bf16.gmra.mrb[0].mxu0 %v103
    %v139 = vpop.f32.mrb[0].mxu0
    %v140 = vadd.f32 0.0, %v139
    %v141 = vpop.f32.mrb[0].mxu0
    %v142 = vpop.f32.mrb[0].mxu0
    %v143 = vpop.f32.mrb[0].mxu0
    %144 = vdwg.mxu0
    %v147 = vunpack.c.l.b16 %v45
    %v148 = vunpack.c.l.b16 %v46
    %v149 = vpack.c.b16 %v148, %v147
    %vm151 = vcmask 130048
    %v153 = vsel %vm151, %v86, 0
    %155 = vmatprep.subr.bf16.mxu0 0
    %156 = vmatpush1.bf16.msra.mxu0 %v149
    %157 = vmatprep.subr.bf16.mxu0 0
    %158 = vmatpush1.bf16.msra.mxu0 0
    %159 = vmatprep.subr.bf16.mxu0 0
    %160 = vmatpush1.bf16.msra.mxu0 0
    %161 = vmatprep.subr.bf16.mxu0 0
    %162 = vmatpush1.bf16.msra.mxu0 0
    %163 = vmatprep.subr.bf16.mxu0 0
    %164 = vmatpush1.bf16.msra.mxu0 0
    %165 = vmatprep.subr.bf16.mxu0 0
    %166 = vmatpush1.bf16.msra.mxu0 0
    %167 = vmatprep.subr.bf16.mxu0 0
    %168 = vmatpush1.bf16.msra.mxu0 0
    %169 = vmatprep.subr.bf16.mxu0 0
    %170 = vmatpush1.bf16.msra.mxu0 0
    %171 = vmatprep.subr.bf16.mxu0 0
    %172 = vmatpush1.bf16.msra.mxu0 0
    %173 = vmatprep.subr.bf16.mxu0 0
    %174 = vmatpush1.bf16.msra.mxu0 0
    %175 = vmatprep.subr.bf16.mxu0 0
    %176 = vmatpush1.bf16.msra.mxu0 0
    %177 = vmatprep.subr.bf16.mxu0 0
    %178 = vmatpush1.bf16.msra.mxu0 0
    %179 = vmatprep.subr.bf16.mxu0 0
    %180 = vmatpush1.bf16.msra.mxu0 0
    %181 = vmatprep.subr.bf16.mxu0 0
    %182 = vmatpush1.bf16.msra.mxu0 0
    %183 = vmatprep.subr.bf16.mxu0 0
    %184 = vmatpush1.bf16.msra.mxu0 0
    %185 = vmatprep.subr.bf16.mxu0 0
    %186 = vmatpush1.bf16.msra.mxu0 0
    %187 = vmatprep.mubr.bf16.mxu0 0
    %188 = vmatmul.mubr.bf16.gmra.mrb[0].mxu0 %v153
    %v189 = vpop.f32.mrb[0].mxu0
    %v190 = vadd.f32 %v140, %v189
    %v191 = vpop.f32.mrb[0].mxu0
    %v192 = vpop.f32.mrb[0].mxu0
    %v193 = vpop.f32.mrb[0].mxu0
    %194 = vdwg.mxu0
    %v196 = vlaneseq
    %v197 = vshrl.u32 %v196, 7
    %v198 = vsub.s32 0, %v197
    %v199 = vrot.slane %v63, %v198
    %v201 = vadd.f32 %v190, %v199
    %v202 = vxor.u32 %v201, 2147483648
    %v203 = vmul.f32 %v202, 1.442695
    %v204 = vpow.pop %v203
    %v205 = vadd.f32 %v204, 1.0
    %v206 = vrcp.pop %v205
    %v207 = vmul.f32 1.0, %v206
    %v212 = vunpack.c.l.b16 %v55
    %v213 = vunpack.c.l.b16 %v56
    %v214 = vunpack.c.l.b16 %v57
    %v215 = vunpack.c.l.b16 %v58
    %v216 = vpack.c.b16 %v213, %v212
    %v217 = vpack.c.b16 %v215, %v214
    %220 = vmatprep.subr.bf16.mxu0 0
    %221 = vmatpush1.bf16.msra.mxu0 %v216
    %222 = vmatprep.subr.bf16.mxu0 0
    %223 = vmatpush1.bf16.msra.mxu0 %v217
    %224 = vmatprep.subr.bf16.mxu0 0
    %225 = vmatpush1.bf16.msra.mxu0 0
    %226 = vmatprep.subr.bf16.mxu0 0
    %227 = vmatpush1.bf16.msra.mxu0 0
    %228 = vmatprep.subr.bf16.mxu0 0
    %229 = vmatpush1.bf16.msra.mxu0 0
    %230 = vmatprep.subr.bf16.mxu0 0
    %231 = vmatpush1.bf16.msra.mxu0 0
    %232 = vmatprep.subr.bf16.mxu0 0
    %233 = vmatpush1.bf16.msra.mxu0 0
    %234 = vmatprep.subr.bf16.mxu0 0
    %235 = vmatpush1.bf16.msra.mxu0 0
    %236 = vmatprep.subr.bf16.mxu0 0
    %237 = vmatpush1.bf16.msra.mxu0 0
    %238 = vmatprep.subr.bf16.mxu0 0
    %239 = vmatpush1.bf16.msra.mxu0 0
    %240 = vmatprep.subr.bf16.mxu0 0
    %241 = vmatpush1.bf16.msra.mxu0 0
    %242 = vmatprep.subr.bf16.mxu0 0
    %243 = vmatpush1.bf16.msra.mxu0 0
    %244 = vmatprep.subr.bf16.mxu0 0
    %245 = vmatpush1.bf16.msra.mxu0 0
    %246 = vmatprep.subr.bf16.mxu0 0
    %247 = vmatpush1.bf16.msra.mxu0 0
    %248 = vmatprep.subr.bf16.mxu0 0
    %249 = vmatpush1.bf16.msra.mxu0 0
    %250 = vmatprep.subr.bf16.mxu0 0
    %251 = vmatpush1.bf16.msra.mxu0 0
    %252 = vmatprep.mubr.bf16.mxu0 0
    %253 = vmatmul.mubr.bf16.gmra.mrb[0].mxu0 %v103
    %v254 = vpop.f32.mrb[0].mxu0
    %v255 = vadd.f32 0.0, %v254
    %v256 = vpop.f32.mrb[0].mxu0
    %v257 = vpop.f32.mrb[0].mxu0
    %v258 = vpop.f32.mrb[0].mxu0
    %259 = vdwg.mxu0
    %v262 = vunpack.c.l.b16 %v47
    %v263 = vunpack.c.l.b16 %v48
    %v264 = vpack.c.b16 %v263, %v262
    %266 = vmatprep.subr.bf16.mxu0 0
    %267 = vmatpush1.bf16.msra.mxu0 %v264
    %268 = vmatprep.subr.bf16.mxu0 0
    %269 = vmatpush1.bf16.msra.mxu0 0
    %270 = vmatprep.subr.bf16.mxu0 0
    %271 = vmatpush1.bf16.msra.mxu0 0
    %272 = vmatprep.subr.bf16.mxu0 0
    %273 = vmatpush1.bf16.msra.mxu0 0
    %274 = vmatprep.subr.bf16.mxu0 0
    %275 = vmatpush1.bf16.msra.mxu0 0
    %276 = vmatprep.subr.bf16.mxu0 0
    %277 = vmatpush1.bf16.msra.mxu0 0
    %278 = vmatprep.subr.bf16.mxu0 0
    %279 = vmatpush1.bf16.msra.mxu0 0
    %280 = vmatprep.subr.bf16.mxu0 0
    %281 = vmatpush1.bf16.msra.mxu0 0
    %282 = vmatprep.subr.bf16.mxu0 0
    %283 = vmatpush1.bf16.msra.mxu0 0
    %284 = vmatprep.subr.bf16.mxu0 0
    %285 = vmatpush1.bf16.msra.mxu0 0
    %286 = vmatprep.subr.bf16.mxu0 0
    %287 = vmatpush1.bf16.msra.mxu0 0
    %288 = vmatprep.subr.bf16.mxu0 0
    %289 = vmatpush1.bf16.msra.mxu0 0
    %290 = vmatprep.subr.bf16.mxu0 0
    %291 = vmatpush1.bf16.msra.mxu0 0
    %292 = vmatprep.subr.bf16.mxu0 0
    %293 = vmatpush1.bf16.msra.mxu0 0
    %294 = vmatprep.subr.bf16.mxu0 0
    %295 = vmatpush1.bf16.msra.mxu0 0
    %296 = vmatprep.subr.bf16.mxu0 0
    %297 = vmatpush1.bf16.msra.mxu0 0
    %298 = vmatprep.mubr.bf16.mxu0 0
    %299 = vmatmul.mubr.bf16.gmra.mrb[0].mxu0 %v153
    %v300 = vpop.f32.mrb[0].mxu0
    %v301 = vadd.f32 %v255, %v300
    %v302 = vpop.f32.mrb[0].mxu0
    %v303 = vpop.f32.mrb[0].mxu0
    %v304 = vpop.f32.mrb[0].mxu0
    %305 = vdwg.mxu0
    %v307 = vlaneseq
    %v308 = vshrl.u32 %v307, 7
    %v309 = vsub.s32 0, %v308
    %v310 = vrot.slane %v65, %v309
    %v312 = vadd.f32 %v301, %v310
    %v313 = vxor.u32 %v312, 2147483648
    %v314 = vmul.f32 %v313, 1.442695
    %v315 = vpow.pop %v314
    %v316 = vadd.f32 %v315, 1.0
    %v317 = vrcp.pop %v316
    %v318 = vmul.f32 1.0, %v317
    %v320 = vlaneseq
    %v321 = vshrl.u32 %v320, 7
    %v322 = vsub.s32 0, %v321
    %v323 = vrot.slane %v67, %v322
    %v327 = vunpack.c.l.b16 %v49
    %v328 = vunpack.c.l.b16 %v50
    %v329 = vpack.c.b16 %v328, %v327
    %331 = vmatprep.subr.bf16.mxu0 0
    %332 = vmatpush1.bf16.msra.mxu0 %v329
    %333 = vmatprep.subr.bf16.mxu0 0
    %334 = vmatpush1.bf16.msra.mxu0 0
    %335 = vmatprep.subr.bf16.mxu0 0
    %336 = vmatpush1.bf16.msra.mxu0 0
    %337 = vmatprep.subr.bf16.mxu0 0
    %338 = vmatpush1.bf16.msra.mxu0 0
    %339 = vmatprep.subr.bf16.mxu0 0
    %340 = vmatpush1.bf16.msra.mxu0 0
    %341 = vmatprep.subr.bf16.mxu0 0
    %342 = vmatpush1.bf16.msra.mxu0 0
    %343 = vmatprep.subr.bf16.mxu0 0
    %344 = vmatpush1.bf16.msra.mxu0 0
    %345 = vmatprep.subr.bf16.mxu0 0
    %346 = vmatpush1.bf16.msra.mxu0 0
    %347 = vmatprep.subr.bf16.mxu0 0
    %348 = vmatpush1.bf16.msra.mxu0 0
    %349 = vmatprep.subr.bf16.mxu0 0
    %350 = vmatpush1.bf16.msra.mxu0 0
    %351 = vmatprep.subr.bf16.mxu0 0
    %352 = vmatpush1.bf16.msra.mxu0 0
    %353 = vmatprep.subr.bf16.mxu0 0
    %354 = vmatpush1.bf16.msra.mxu0 0
    %355 = vmatprep.subr.bf16.mxu0 0
    %356 = vmatpush1.bf16.msra.mxu0 0
    %357 = vmatprep.subr.bf16.mxu0 0
    %358 = vmatpush1.bf16.msra.mxu0 0
    %359 = vmatprep.subr.bf16.mxu0 0
    %360 = vmatpush1.bf16.msra.mxu0 0
    %361 = vmatprep.subr.bf16.mxu0 0
    %362 = vmatpush1.bf16.msra.mxu0 0
    %363 = vmatprep.mubr.bf16.mxu0 0
    %364 = vmatmul.mubr.bf16.gmra.mrb[0].mxu0 %v153
    %v365 = vpop.f32.mrb[0].mxu0
    %v366 = vadd.f32 %v323, %v365
    %v367 = vpop.f32.mrb[0].mxu0
    %v368 = vpop.f32.mrb[0].mxu0
    %v369 = vpop.f32.mrb[0].mxu0
    %370 = vdwg.mxu0
    %v372 = vlaneseq
    %v373 = vshrl.u32 %v372, 7
    %v374 = vsub.s32 0, %v373
    %v375 = vrot.slane %v69, %v374
    %v381 = vunpack.c.l.b16 %v59
    %v382 = vunpack.c.l.b16 %v60
    %v383 = vunpack.c.l.b16 %v61
    %v384 = vunpack.c.l.b16 %v62
    %v385 = vpack.c.b16 %v382, %v381
    %v386 = vpack.c.b16 %v384, %v383
    %389 = vmatprep.subr.bf16.mxu0 0
    %390 = vmatpush1.bf16.msra.mxu0 %v385
    %391 = vmatprep.subr.bf16.mxu0 0
    %392 = vmatpush1.bf16.msra.mxu0 %v386
    %393 = vmatprep.subr.bf16.mxu0 0
    %394 = vmatpush1.bf16.msra.mxu0 0
    %395 = vmatprep.subr.bf16.mxu0 0
    %396 = vmatpush1.bf16.msra.mxu0 0
    %397 = vmatprep.subr.bf16.mxu0 0
    %398 = vmatpush1.bf16.msra.mxu0 0
    %399 = vmatprep.subr.bf16.mxu0 0
    %400 = vmatpush1.bf16.msra.mxu0 0
    %401 = vmatprep.subr.bf16.mxu0 0
    %402 = vmatpush1.bf16.msra.mxu0 0
    %403 = vmatprep.subr.bf16.mxu0 0
    %404 = vmatpush1.bf16.msra.mxu0 0
    %405 = vmatprep.subr.bf16.mxu0 0
    %406 = vmatpush1.bf16.msra.mxu0 0
    %407 = vmatprep.subr.bf16.mxu0 0
    %408 = vmatpush1.bf16.msra.mxu0 0
    %409 = vmatprep.subr.bf16.mxu0 0
    %410 = vmatpush1.bf16.msra.mxu0 0
    %411 = vmatprep.subr.bf16.mxu0 0
    %412 = vmatpush1.bf16.msra.mxu0 0
    %413 = vmatprep.subr.bf16.mxu0 0
    %414 = vmatpush1.bf16.msra.mxu0 0
    %415 = vmatprep.subr.bf16.mxu0 0
    %416 = vmatpush1.bf16.msra.mxu0 0
    %417 = vmatprep.subr.bf16.mxu0 0
    %418 = vmatpush1.bf16.msra.mxu0 0
    %419 = vmatprep.subr.bf16.mxu0 0
    %420 = vmatpush1.bf16.msra.mxu0 0
    %421 = vmatprep.mubr.bf16.mxu0 0
    %422 = vmatmul.mubr.bf16.gmra.mrb[0].mxu0 %v103
    %v423 = vpop.f32.mrb[0].mxu0
    %v424 = vadd.f32 %v375, %v423
    %v425 = vpop.f32.mrb[0].mxu0
    %v426 = vpop.f32.mrb[0].mxu0
    %v427 = vpop.f32.mrb[0].mxu0
    %428 = vdwg.mxu0
    %v429 = vmul.f32 %v207, %v424
    %v430 = vadd.f32 %v366, %v429
    %v431 = vtanh.pop %v430
    %v432 = vsub.f32 1.0, %v318
    %v433 = vmul.f32 %v432, %v431
    %v434 = vmul.f32 %v318, %v87
    %v435 = vadd.f32 %v433, %v434
    %v436 = vpack.c.bf16 %v435, %v435
    %v441 = vunpack.c.l.b16 %v70
    %v442 = vunpack.c.l.b16 %v71
    %v443 = vunpack.c.l.b16 %v72
    %v444 = vunpack.c.l.b16 %v73
    %v445 = vpack.c.b16 %v442, %v441
    %v446 = vpack.c.b16 %v444, %v443
    %v450 = vsel %vm101, %v436, 0
    %452 = vmatprep.subr.bf16.mxu0 0
    %453 = vmatpush1.bf16.msra.mxu0 %v445
    %454 = vmatprep.subr.bf16.mxu0 0
    %455 = vmatpush1.bf16.msra.mxu0 %v446
    %456 = vmatprep.subr.bf16.mxu0 0
    %457 = vmatpush1.bf16.msra.mxu0 0
    %458 = vmatprep.subr.bf16.mxu0 0
    %459 = vmatpush1.bf16.msra.mxu0 0
    %460 = vmatprep.subr.bf16.mxu0 0
    %461 = vmatpush1.bf16.msra.mxu0 0
    %462 = vmatprep.subr.bf16.mxu0 0
    %463 = vmatpush1.bf16.msra.mxu0 0
    %464 = vmatprep.subr.bf16.mxu0 0
    %465 = vmatpush1.bf16.msra.mxu0 0
    %466 = vmatprep.subr.bf16.mxu0 0
    %467 = vmatpush1.bf16.msra.mxu0 0
    %468 = vmatprep.subr.bf16.mxu0 0
    %469 = vmatpush1.bf16.msra.mxu0 0
    %470 = vmatprep.subr.bf16.mxu0 0
    %471 = vmatpush1.bf16.msra.mxu0 0
    %472 = vmatprep.subr.bf16.mxu0 0
    %473 = vmatpush1.bf16.msra.mxu0 0
    %474 = vmatprep.subr.bf16.mxu0 0
    %475 = vmatpush1.bf16.msra.mxu0 0
    %476 = vmatprep.subr.bf16.mxu0 0
    %477 = vmatpush1.bf16.msra.mxu0 0
    %478 = vmatprep.subr.bf16.mxu0 0
    %479 = vmatpush1.bf16.msra.mxu0 0
    %480 = vmatprep.subr.bf16.mxu0 0
    %481 = vmatpush1.bf16.msra.mxu0 0
    %482 = vmatprep.subr.bf16.mxu0 0
    %483 = vmatpush1.bf16.msra.mxu0 0
    %484 = vmatprep.mubr.bf16.mxu0 0
    %485 = vmatmul.mubr.bf16.gmra.mrb[0].mxu0 %v450
    %v486 = vpop.f32.mrb[0].mxu0
    %v487 = vadd.f32 0.0, %v486
    %v488 = vpop.f32.mrb[0].mxu0
    %v489 = vpop.f32.mrb[0].mxu0
    %v490 = vpop.f32.mrb[0].mxu0
    %491 = vdwg.mxu0
    %v494 = vunpack.c.l.s4 1966171168
    %v495 = vunpack.c.0.s8 %v494
    %v496 = vlaneseq
    %v497 = vshrl.u32 %v496, 7
    %v498 = vsub.s32 %v495, %v497
    %v499 = vrot.slane %v487, %v498
    %v500 = vcombine.high %v499, %v499
    %v502 = vunpack.c.l.s4 1966171168
    %v503 = vunpack.c.0.s8 %v502
    %v504 = vlaneseq
    %v505 = vshrl.u32 %v504, 7
    %v506 = vsub.s32 %v503, %v505
    %v507 = vrot.slane %v499, %v506
    %v509 = vunpack.c.l.s4 1966171168
    %v510 = vunpack.c.0.s8 %v509
    %v511 = vlaneseq
    %v512 = vshrl.u32 %v511, 7
    %v513 = vsub.s32 %v510, %v512
    %v514 = vrot.slane %v500, %v513
    %v515 = vlaneseq
    %v516 = vshrl.u32 %v515, 7
    %v517 = vsub.s32 0, %v516
    %v518 = vrot.slane %v507, %v517
    %v519 = vlaneseq
    %v520 = vshrl.u32 %v519, 7
    %v521 = vsub.s32 0, %v520
    %v522 = vrot.slane %v514, %v521
    %v525 = vmul.f32 %v518, %v43
    %v526 = vmul.f32 %v522, %v44
    %v527 = vsel %vm151, %v525, 0.0
    %528 = vadd.xlane.f32.xlu0 %v527
    %v529 = vpop.xlane.xlu0 %528
    %v530 = vsel %vm151, %v526, 0.0
    %531 = vadd.xlane.f32.xlu0 %v530
    %v532 = vpop.xlane.xlu0 %531
    %v535 = vlaneseq
    %v536 = vshrl.u32 %v535, 7
    %v537 = vsub.s32 %v79, %v536
    %v538 = vrot.slane %v529, %v537
    %v539 = vlaneseq
    %v540 = vshrl.u32 %v539, 7
    %v541 = vsub.s32 %v79, %v540
    %v542 = vrot.slane %v532, %v541
    %vm543 = vcmask 1041409
    %v544 = vsel %vm543, %v542, %v538
    %vm546 = vcmask 58368
    %v547 = vsel %vm546, %v544, -inf
    %548 = vmax.xlane.f32.xlu0 %v547
    %v549 = vpop.xlane.xlu0 %548
    %v551 = vlaneseq
    %v552 = vshrl.u32 %v551, 7
    %v553 = vsub.s32 0, %v552
    %v554 = vrot.slane %v549, %v553
    %v555 = vlaneseq
    %v556 = vshrl.u32 %v555, 7
    %v557 = vsub.s32 1, %v556
    %v558 = vrot.slane %v549, %v557
    %v561 = vsub.f32 %v529, %v554
    %v562 = vsub.f32 %v532, %v558
    %v563 = vmul.f32 %v561, 1.442695
    %v564 = vpow.pop %v563
    %v565 = vmul.f32 %v562, 1.442695
    %v566 = vpow.pop %v565
    %569 = vset.pattern.permute.xlu0 0
    %570 = vperm.xlu0 %569, %v564
    %v571 = vpop.permute.xlu0 %570
    %572 = vset.pattern.permute.xlu0 0
    %573 = vperm.xlu0 %572, %v566
    %v574 = vpop.permute.xlu0 %573
    %v575 = vlaneseq
    %v576 = vshrl.u32 %v575, 7
    %v577 = vsub.s32 %v79, %v576
    %v578 = vrot.slane %v571, %v577
    %v579 = vlaneseq
    %v580 = vshrl.u32 %v579, 7
    %v581 = vsub.s32 %v79, %v580
    %v582 = vrot.slane %v574, %v581
    %v583 = vsel %vm543, %v582, %v578
    %v585 = vsel %vm546, %v583, 0.0
    %586 = vadd.xlane.f32.xlu0 %v585
    %v587 = vpop.xlane.xlu0 %586
    %v589 = vlaneseq
    %v590 = vshrl.u32 %v589, 7
    %v591 = vsub.s32 0, %v590
    %v592 = vrot.slane %v587, %v591
    %v593 = vlaneseq
    %v594 = vshrl.u32 %v593, 7
    %v595 = vsub.s32 1, %v594
    %v596 = vrot.slane %v587, %v595
    %v599 = vrcp.pop %v592
    %v600 = vmul.f32 %v564, %v599
    %v601 = vrcp.pop %v596
    %v602 = vmul.f32 %v566, %v601
    %v603 = vpack.c.bf16 %v600, %v600
    %v604 = vpack.c.bf16 %v602, %v602
    %v606 = vunpack.c.l.b16 %v603
    %607 = vset.pattern.permute.xlu0 0
    %608 = vperm.xlu0 %607, %v606
    %v609 = vpop.permute.xlu0 %608
    %v610 = vlaneseq
    %v611 = vshrl.u32 %v610, 7
    %v612 = vsub.s32 %v79, %v611
    %v613 = vrot.slane %v609, %v612
    %v614 = vpack.c.b16 %v613, %v613
    %vm615 = vcmask 64512
    %v617 = vsel %vm615, %v614, 0
    %vm619 = vcmask 1043456
    %v621 = vsel %vm619, %v41, 0
    %623 = vmatprep.subr.bf16.mxu0 0
    %624 = vmatpush1.bf16.msra.mxu0 %v621
    %625 = vmatprep.subr.bf16.mxu0 0
    %626 = vmatpush1.bf16.msra.mxu0 0
    %627 = vmatprep.subr.bf16.mxu0 0
    %628 = vmatpush1.bf16.msra.mxu0 0
    %629 = vmatprep.subr.bf16.mxu0 0
    %630 = vmatpush1.bf16.msra.mxu0 0
    %631 = vmatprep.subr.bf16.mxu0 0
    %632 = vmatpush1.bf16.msra.mxu0 0
    %633 = vmatprep.subr.bf16.mxu0 0
    %634 = vmatpush1.bf16.msra.mxu0 0
    %635 = vmatprep.subr.bf16.mxu0 0
    %636 = vmatpush1.bf16.msra.mxu0 0
    %637 = vmatprep.subr.bf16.mxu0 0
    %638 = vmatpush1.bf16.msra.mxu0 0
    %639 = vmatprep.subr.bf16.mxu0 0
    %640 = vmatpush1.bf16.msra.mxu0 0
    %641 = vmatprep.subr.bf16.mxu0 0
    %642 = vmatpush1.bf16.msra.mxu0 0
    %643 = vmatprep.subr.bf16.mxu0 0
    %644 = vmatpush1.bf16.msra.mxu0 0
    %645 = vmatprep.subr.bf16.mxu0 0
    %646 = vmatpush1.bf16.msra.mxu0 0
    %647 = vmatprep.subr.bf16.mxu0 0
    %648 = vmatpush1.bf16.msra.mxu0 0
    %649 = vmatprep.subr.bf16.mxu0 0
    %650 = vmatpush1.bf16.msra.mxu0 0
    %651 = vmatprep.subr.bf16.mxu0 0
    %652 = vmatpush1.bf16.msra.mxu0 0
    %653 = vmatprep.subr.bf16.mxu0 0
    %654 = vmatpush1.bf16.msra.mxu0 0
    %655 = vmatprep.mubr.bf16.mxu0 0
    %656 = vmatmul.mubr.bf16.gmra.mrb[0].mxu0 %v617
    %v657 = vpop.f32.mrb[0].mxu0
    %v658 = vadd.f32 0.0, %v657
    %v659 = vpop.f32.mrb[0].mxu0
    %v660 = vpop.f32.mrb[0].mxu0
    %v661 = vpop.f32.mrb[0].mxu0
    %662 = vdwg.mxu0
    %v664 = vunpack.c.l.b16 %v604
    %665 = vset.pattern.permute.xlu0 0
    %666 = vperm.xlu0 %665, %v664
    %v667 = vpop.permute.xlu0 %666
    %v668 = vlaneseq
    %v669 = vshrl.u32 %v668, 7
    %v670 = vsub.s32 %v79, %v669
    %v671 = vrot.slane %v667, %v670
    %v672 = vpack.c.b16 %v671, %v671
    %v674 = vsel %vm615, %v672, 0
    %v677 = vsel %vm619, %v42, 0
    %679 = vmatprep.subr.bf16.mxu0 0
    %680 = vmatpush1.bf16.msra.mxu0 %v677
    %681 = vmatprep.subr.bf16.mxu0 0
    %682 = vmatpush1.bf16.msra.mxu0 0
    %683 = vmatprep.subr.bf16.mxu0 0
    %684 = vmatpush1.bf16.msra.mxu0 0
    %685 = vmatprep.subr.bf16.mxu0 0
    %686 = vmatpush1.bf16.msra.mxu0 0
    %687 = vmatprep.subr.bf16.mxu0 0
    %688 = vmatpush1.bf16.msra.mxu0 0
    %689 = vmatprep.subr.bf16.mxu0 0
    %690 = vmatpush1.bf16.msra.mxu0 0
    %691 = vmatprep.subr.bf16.mxu0 0
    %692 = vmatpush1.bf16.msra.mxu0 0
    %693 = vmatprep.subr.bf16.mxu0 0
    %694 = vmatpush1.bf16.msra.mxu0 0
    %695 = vmatprep.subr.bf16.mxu0 0
    %696 = vmatpush1.bf16.msra.mxu0 0
    %697 = vmatprep.subr.bf16.mxu0 0
    %698 = vmatpush1.bf16.msra.mxu0 0
    %699 = vmatprep.subr.bf16.mxu0 0
    %700 = vmatpush1.bf16.msra.mxu0 0
    %701 = vmatprep.subr.bf16.mxu0 0
    %702 = vmatpush1.bf16.msra.mxu0 0
    %703 = vmatprep.subr.bf16.mxu0 0
    %704 = vmatpush1.bf16.msra.mxu0 0
    %705 = vmatprep.subr.bf16.mxu0 0
    %706 = vmatpush1.bf16.msra.mxu0 0
    %707 = vmatprep.subr.bf16.mxu0 0
    %708 = vmatpush1.bf16.msra.mxu0 0
    %709 = vmatprep.subr.bf16.mxu0 0
    %710 = vmatpush1.bf16.msra.mxu0 0
    %711 = vmatprep.mubr.bf16.mxu0 0
    %712 = vmatmul.mubr.bf16.gmra.mrb[0].mxu0 %v674
    %v713 = vpop.f32.mrb[0].mxu0
    %v714 = vadd.f32 0.0, %v713
    %v715 = vpop.f32.mrb[0].mxu0
    %v716 = vpop.f32.mrb[0].mxu0
    %v717 = vpop.f32.mrb[0].mxu0
    %718 = vdwg.mxu0
    %v719 = vpack.c.bf16 %v658, %v658
    %v720 = vpack.c.bf16 %v714, %v714
    %v721 = vpack.c.bf16 %v487, %v487
    %v724 = vunpack.c.l.b16 %v76
    %v725 = vunpack.c.l.b16 %v77
    %v726 = vpack.c.b16 %v725, %v724
    %v729 = vsel %vm151, %v721, 0
    %731 = vmatprep.subr.bf16.mxu0 0
    %732 = vmatpush1.bf16.msra.mxu0 %v726
    %733 = vmatprep.subr.bf16.mxu0 0
    %734 = vmatpush1.bf16.msra.mxu0 0
    %735 = vmatprep.subr.bf16.mxu0 0
    %736 = vmatpush1.bf16.msra.mxu0 0
    %737 = vmatprep.subr.bf16.mxu0 0
    %738 = vmatpush1.bf16.msra.mxu0 0
    %739 = vmatprep.subr.bf16.mxu0 0
    %740 = vmatpush1.bf16.msra.mxu0 0
    %741 = vmatprep.subr.bf16.mxu0 0
    %742 = vmatpush1.bf16.msra.mxu0 0
    %743 = vmatprep.subr.bf16.mxu0 0
    %744 = vmatpush1.bf16.msra.mxu0 0
    %745 = vmatprep.subr.bf16.mxu0 0
    %746 = vmatpush1.bf16.msra.mxu0 0
    %747 = vmatprep.subr.bf16.mxu0 0
    %748 = vmatpush1.bf16.msra.mxu0 0
    %749 = vmatprep.subr.bf16.mxu0 0
    %750 = vmatpush1.bf16.msra.mxu0 0
    %751 = vmatprep.subr.bf16.mxu0 0
    %752 = vmatpush1.bf16.msra.mxu0 0
    %753 = vmatprep.subr.bf16.mxu0 0
    %754 = vmatpush1.bf16.msra.mxu0 0
    %755 = vmatprep.subr.bf16.mxu0 0
    %756 = vmatpush1.bf16.msra.mxu0 0
    %757 = vmatprep.subr.bf16.mxu0 0
    %758 = vmatpush1.bf16.msra.mxu0 0
    %759 = vmatprep.subr.bf16.mxu0 0
    %760 = vmatpush1.bf16.msra.mxu0 0
    %761 = vmatprep.subr.bf16.mxu0 0
    %762 = vmatpush1.bf16.msra.mxu0 0
    %763 = vmatprep.mubr.bf16.mxu0 0
    %764 = vmatmul.mubr.bf16.gmra.mrb[0].mxu0 %v729
    %v765 = vpop.f32.mrb[0].mxu0
    %v766 = vadd.f32 0.0, %v765
    %v767 = vpop.f32.mrb[0].mxu0
    %v768 = vpop.f32.mrb[0].mxu0
    %v769 = vpop.f32.mrb[0].mxu0
    %770 = vdwg.mxu0
    %v773 = vunpack.c.l.b16 %v719
    %v774 = vunpack.c.l.b16 %v720
    %v775 = vrot.slane %v774, 7
    %v776 = vsel %vm543, %v775, %v773
    %v777 = vpack.c.b16 %v776, %v776
    %v780 = vunpack.c.l.b16 %v74
    %v781 = vunpack.c.l.b16 %v75
    %v782 = vpack.c.b16 %v781, %v780
    %v785 = vsel %vm151, %v777, 0
    %787 = vmatprep.subr.bf16.mxu0 0
    %788 = vmatpush1.bf16.msra.mxu0 %v782
    %789 = vmatprep.subr.bf16.mxu0 0
    %790 = vmatpush1.bf16.msra.mxu0 0
    %791 = vmatprep.subr.bf16.mxu0 0
    %792 = vmatpush1.bf16.msra.mxu0 0
    %793 = vmatprep.subr.bf16.mxu0 0
    %794 = vmatpush1.bf16.msra.mxu0 0
    %795 = vmatprep.subr.bf16.mxu0 0
    %796 = vmatpush1.bf16.msra.mxu0 0
    %797 = vmatprep.subr.bf16.mxu0 0
    %798 = vmatpush1.bf16.msra.mxu0 0
    %799 = vmatprep.subr.bf16.mxu0 0
    %800 = vmatpush1.bf16.msra.mxu0 0
    %801 = vmatprep.subr.bf16.mxu0 0
    %802 = vmatpush1.bf16.msra.mxu0 0
    %803 = vmatprep.subr.bf16.mxu0 0
    %804 = vmatpush1.bf16.msra.mxu0 0
    %805 = vmatprep.subr.bf16.mxu0 0
    %806 = vmatpush1.bf16.msra.mxu0 0
    %807 = vmatprep.subr.bf16.mxu0 0
    %808 = vmatpush1.bf16.msra.mxu0 0
    %809 = vmatprep.subr.bf16.mxu0 0
    %810 = vmatpush1.bf16.msra.mxu0 0
    %811 = vmatprep.subr.bf16.mxu0 0
    %812 = vmatpush1.bf16.msra.mxu0 0
    %813 = vmatprep.subr.bf16.mxu0 0
    %814 = vmatpush1.bf16.msra.mxu0 0
    %815 = vmatprep.subr.bf16.mxu0 0
    %816 = vmatpush1.bf16.msra.mxu0 0
    %817 = vmatprep.subr.bf16.mxu0 0
    %818 = vmatpush1.bf16.msra.mxu0 0
    %819 = vmatprep.mubr.bf16.mxu0 0
    %820 = vmatmul.mubr.bf16.gmra.mrb[0].mxu0 %v785
    %v821 = vpop.f32.mrb[0].mxu0
    %v822 = vadd.f32 %v766, %v821
    %v823 = vpop.f32.mrb[0].mxu0
    %v824 = vpop.f32.mrb[0].mxu0
    %v825 = vpop.f32.mrb[0].mxu0
    %826 = vdwg.mxu0
    %v827 = vtanh.pop %v822
    %v828 = vpack.c.bf16 %v827, %v827
    %v833 = vunpack.c.l.b16 %v37
    %v834 = vunpack.c.l.b16 %v38
    %v835 = vunpack.c.l.b16 %v39
    %v836 = vunpack.c.l.b16 %v40
    %v837 = vpack.c.b16 %v834, %v833
    %v838 = vpack.c.b16 %v836, %v835
    %v840 = vsel %vm151, %v828, 0
    %v843 = vsel %vm151, %v837, 0
    %v846 = vsel %vm151, %v838, 0
    %848 = vmatprep.subr.bf16.mxu0 0
    %849 = vmatpush1.bf16.xpose.msra.mxu0 %v843
    %850 = vmatprep.subr.bf16.mxu0 0
    %851 = vmatpush1.bf16.xpose.msra.mxu0 %v846
    %852 = vmatprep.subr.bf16.mxu0 0
    %853 = vmatpush1.bf16.xpose.msra.mxu0 0
    %854 = vmatprep.subr.bf16.mxu0 0
    %855 = vmatpush1.bf16.xpose.msra.mxu0 0
    %856 = vmatprep.subr.bf16.mxu0 0
    %857 = vmatpush1.bf16.xpose.msra.mxu0 0
    %858 = vmatprep.subr.bf16.mxu0 0
    %859 = vmatpush1.bf16.xpose.msra.mxu0 0
    %860 = vmatprep.subr.bf16.mxu0 0
    %861 = vmatpush1.bf16.xpose.msra.mxu0 0
    %862 = vmatprep.subr.bf16.mxu0 0
    %863 = vmatpush1.bf16.xpose.msra.mxu0 0
    %864 = vmatprep.subr.bf16.mxu0 0
    %865 = vmatpush1.bf16.xpose.msra.mxu0 0
    %866 = vmatprep.subr.bf16.mxu0 0
    %867 = vmatpush1.bf16.xpose.msra.mxu0 0
    %868 = vmatprep.subr.bf16.mxu0 0
    %869 = vmatpush1.bf16.xpose.msra.mxu0 0
    %870 = vmatprep.subr.bf16.mxu0 0
    %871 = vmatpush1.bf16.xpose.msra.mxu0 0
    %872 = vmatprep.subr.bf16.mxu0 0
    %873 = vmatpush1.bf16.xpose.msra.mxu0 0
    %874 = vmatprep.subr.bf16.mxu0 0
    %875 = vmatpush1.bf16.xpose.msra.mxu0 0
    %876 = vmatprep.subr.bf16.mxu0 0
    %877 = vmatpush1.bf16.xpose.msra.mxu0 0
    %878 = vmatprep.subr.bf16.mxu0 0
    %879 = vmatpush1.bf16.xpose.msra.mxu0 0
    %880 = vmatprep.mubr.bf16.mxu0 0
    %881 = vmatmul.mubr.bf16.gmra.mrb[0].mxu0 %v840
    %v882 = vpop.f32.mrb[0].mxu0
    %v883 = vadd.f32 0.0, %v882
    %v884 = vpop.f32.mrb[0].mxu0
    %v885 = vpop.f32.mrb[0].mxu0
    %v886 = vpop.f32.mrb[0].mxu0
    %887 = vdwg.mxu0
    %vm888 = vcmask 254976
    %889 = vst.msk [vmem:[#allocation2] sm:$0x3] %vm888, %v883
    %892 = vset.pattern.permute.xlu0 0
    %893 = vperm.xlu0 %892, %v600
    %v894 = vpop.permute.xlu0 %893
    %895 = vset.pattern.permute.xlu0 0
    %896 = vperm.xlu0 %895, %v602
    %v897 = vpop.permute.xlu0 %896
    %v898 = vlaneseq
    %v899 = vshrl.u32 %v898, 7
    %v900 = vsub.s32 %v79, %v899
    %v901 = vrot.slane %v894, %v900
    %v902 = vlaneseq
    %v903 = vshrl.u32 %v902, 7
    %v904 = vsub.s32 %v79, %v903
    %v905 = vrot.slane %v897, %v904
    %v906 = vsel %vm543, %v905, %v901
    %908 = vst.msk [vmem:[#allocation4] sm:$0x3] %vm546, %v906
    %v909 = vsel %vm888, %v883, -inf
    %910 = vmax.xlane.f32.xlu0 %v909
    %v911 = vpop.xlane.xlu0 %910
    %vm912 = vcmp.eq.f32.partialorder %v883, %v911
    %v913 = vsel %vm912, %v79, 32
    %v914 = vsel %vm888, %v913, 2147483647
    %v915 = vand.u32 %v914, 65535
    %v916 = vshra.s32 %v914, 16
    %v917 = vcvt.s32.f32 %v915
    %v918 = vcvt.s32.f32 %v916
    %919 = vmin.xlane.f32.xlu0 %v918
    %v920 = vpop.xlane.xlu0 %919
    %vm921 = vcmp.eq.f32.partialorder %v918, %v920
    %v922 = vsel %vm921, %v917, inf
    %923 = vmin.xlane.f32.xlu0 %v922
    %v924 = vpop.xlane.xlu0 %923
    %v925 = vcvt.f32.s32 %v924
    %v926 = vcvt.f32.s32 %v920
    %v927 = vshll.u32 %v926, 16
    %v928 = vadd.s32 %v927, %v925
    %vm929 = vcmp.eq.s32.totalorder %v79, %v928
    %v930 = vsel %vm929, 1, 0
    %v931 = vcvt.s32.f32 %v930
    %v932 = vpack.c.bf16 %v931, %v931
    %v936 = vsel %vm101, %v932, 0
    %938 = vmatprep.subr.bf16.mxu0 0
    %939 = vmatpush1.bf16.msra.mxu0 %v837
    %940 = vmatprep.subr.bf16.mxu0 0
    %941 = vmatpush1.bf16.msra.mxu0 %v838
    %942 = vmatprep.subr.bf16.mxu0 0
    %943 = vmatpush1.bf16.msra.mxu0 0
    %944 = vmatprep.subr.bf16.mxu0 0
    %945 = vmatpush1.bf16.msra.mxu0 0
    %946 = vmatprep.subr.bf16.mxu0 0
    %947 = vmatpush1.bf16.msra.mxu0 0
    %948 = vmatprep.subr.bf16.mxu0 0
    %949 = vmatpush1.bf16.msra.mxu0 0
    %950 = vmatprep.subr.bf16.mxu0 0
    %951 = vmatpush1.bf16.msra.mxu0 0
    %952 = vmatprep.subr.bf16.mxu0 0
    %953 = vmatpush1.bf16.msra.mxu0 0
    %954 = vmatprep.subr.bf16.mxu0 0
    %955 = vmatpush1.bf16.msra.mxu0 0
    %956 = vmatprep.subr.bf16.mxu0 0
    %957 = vmatpush1.bf16.msra.mxu0 0
    %958 = vmatprep.subr.bf16.mxu0 0
    %959 = vmatpush1.bf16.msra.mxu0 0
    %960 = vmatprep.subr.bf16.mxu0 0
    %961 = vmatpush1.bf16.msra.mxu0 0
    %962 = vmatprep.subr.bf16.mxu0 0
    %963 = vmatpush1.bf16.msra.mxu0 0
    %964 = vmatprep.subr.bf16.mxu0 0
    %965 = vmatpush1.bf16.msra.mxu0 0
    %966 = vmatprep.subr.bf16.mxu0 0
    %967 = vmatpush1.bf16.msra.mxu0 0
    %968 = vmatprep.subr.bf16.mxu0 0
    %969 = vmatpush1.bf16.msra.mxu0 0
    %970 = vmatprep.mubr.bf16.mxu0 0
    %971 = vmatmul.mubr.bf16.gmra.mrb[0].mxu0 %v936
    %v972 = vpop.f32.mrb[0].mxu0
    %v973 = vadd.f32 0.0, %v972
    %v974 = vpop.f32.mrb[0].mxu0
    %v975 = vpop.f32.mrb[0].mxu0
    %v976 = vpop.f32.mrb[0].mxu0
    %977 = vdwg.mxu0
    %v978 = vpack.c.bf16 %v973, %v973
    %979 = vmatprep.subr.bf16.mxu0 0
    %980 = vmatpush1.bf16.msra.mxu0 %v97
    %981 = vmatprep.subr.bf16.mxu0 0
    %982 = vmatpush1.bf16.msra.mxu0 %v98
    %983 = vmatprep.subr.bf16.mxu0 0
    %984 = vmatpush1.bf16.msra.mxu0 0
    %985 = vmatprep.subr.bf16.mxu0 0
    %986 = vmatpush1.bf16.msra.mxu0 0
    %987 = vmatprep.subr.bf16.mxu0 0
    %988 = vmatpush1.bf16.msra.mxu0 0
    %989 = vmatprep.subr.bf16.mxu0 0
    %990 = vmatpush1.bf16.msra.mxu0 0
    %991 = vmatprep.subr.bf16.mxu0 0
    %992 = vmatpush1.bf16.msra.mxu0 0
    %993 = vmatprep.subr.bf16.mxu0 0
    %994 = vmatpush1.bf16.msra.mxu0 0
    %995 = vmatprep.subr.bf16.mxu0 0
    %996 = vmatpush1.bf16.msra.mxu0 0
    %997 = vmatprep.subr.bf16.mxu0 0
    %998 = vmatpush1.bf16.msra.mxu0 0
    %999 = vmatprep.subr.bf16.mxu0 0
    %1000 = vmatpush1.bf16.msra.mxu0 0
    %1001 = vmatprep.subr.bf16.mxu0 0
    %1002 = vmatpush1.bf16.msra.mxu0 0
    %1003 = vmatprep.subr.bf16.mxu0 0
    %1004 = vmatpush1.bf16.msra.mxu0 0
    %1005 = vmatprep.subr.bf16.mxu0 0
    %1006 = vmatpush1.bf16.msra.mxu0 0
    %1007 = vmatprep.subr.bf16.mxu0 0
    %1008 = vmatpush1.bf16.msra.mxu0 0
    %1009 = vmatprep.subr.bf16.mxu0 0
    %1010 = vmatpush1.bf16.msra.mxu0 0
    %1011 = vmatprep.mubr.bf16.mxu0 0
    %1012 = vmatmul.mubr.bf16.gmra.mrb[0].mxu0 %v450
    %v1013 = vpop.f32.mrb[0].mxu0
    %v1014 = vadd.f32 0.0, %v1013
    %v1015 = vpop.f32.mrb[0].mxu0
    %v1016 = vpop.f32.mrb[0].mxu0
    %v1017 = vpop.f32.mrb[0].mxu0
    %1018 = vdwg.mxu0
    %v1020 = vsel %vm151, %v978, 0
    %1022 = vmatprep.subr.bf16.mxu0 0
    %1023 = vmatpush1.bf16.msra.mxu0 %v149
    %1024 = vmatprep.subr.bf16.mxu0 0
    %1025 = vmatpush1.bf16.msra.mxu0 0
    %1026 = vmatprep.subr.bf16.mxu0 0
    %1027 = vmatpush1.bf16.msra.mxu0 0
    %1028 = vmatprep.subr.bf16.mxu0 0
    %1029 = vmatpush1.bf16.msra.mxu0 0
    %1030 = vmatprep.subr.bf16.mxu0 0
    %1031 = vmatpush1.bf16.msra.mxu0 0
    %1032 = vmatprep.subr.bf16.mxu0 0
    %1033 = vmatpush1.bf16.msra.mxu0 0
    %1034 = vmatprep.subr.bf16.mxu0 0
    %1035 = vmatpush1.bf16.msra.mxu0 0
    %1036 = vmatprep.subr.bf16.mxu0 0
    %1037 = vmatpush1.bf16.msra.mxu0 0
    %1038 = vmatprep.subr.bf16.mxu0 0
    %1039 = vmatpush1.bf16.msra.mxu0 0
    %1040 = vmatprep.subr.bf16.mxu0 0
    %1041 = vmatpush1.bf16.msra.mxu0 0
    %1042 = vmatprep.subr.bf16.mxu0 0
    %1043 = vmatpush1.bf16.msra.mxu0 0
    %1044 = vmatprep.subr.bf16.mxu0 0
    %1045 = vmatpush1.bf16.msra.mxu0 0
    %1046 = vmatprep.subr.bf16.mxu0 0
    %1047 = vmatpush1.bf16.msra.mxu0 0
    %1048 = vmatprep.subr.bf16.mxu0 0
    %1049 = vmatpush1.bf16.msra.mxu0 0
    %1050 = vmatprep.subr.bf16.mxu0 0
    %1051 = vmatpush1.bf16.msra.mxu0 0
    %1052 = vmatprep.subr.bf16.mxu0 0
    %1053 = vmatpush1.bf16.msra.mxu0 0
    %1054 = vmatprep.mubr.bf16.mxu0 0
    %1055 = vmatmul.mubr.bf16.gmra.mrb[0].mxu0 %v1020
    %v1056 = vpop.f32.mrb[0].mxu0
    %v1057 = vadd.f32 %v1014, %v1056
    %v1058 = vpop.f32.mrb[0].mxu0
    %v1059 = vpop.f32.mrb[0].mxu0
    %v1060 = vpop.f32.mrb[0].mxu0
    %1061 = vdwg.mxu0
    %v1062 = vadd.f32 %v1057, %v199
    %v1063 = vxor.u32 %v1062, 2147483648
    %v1064 = vmul.f32 %v1063, 1.442695
    %v1065 = vpow.pop %v1064
    %v1066 = vadd.f32 %v1065, 1.0
    %v1067 = vrcp.pop %v1066
    %v1068 = vmul.f32 1.0, %v1067
    %1069 = vmatprep.subr.bf16.mxu0 0
    %1070 = vmatpush1.bf16.msra.mxu0 %v216
    %1071 = vmatprep.subr.bf16.mxu0 0
    %1072 = vmatpush1.bf16.msra.mxu0 %v217
    %1073 = vmatprep.subr.bf16.mxu0 0
    %1074 = vmatpush1.bf16.msra.mxu0 0
    %1075 = vmatprep.subr.bf16.mxu0 0
    %1076 = vmatpush1.bf16.msra.mxu0 0
    %1077 = vmatprep.subr.bf16.mxu0 0
    %1078 = vmatpush1.bf16.msra.mxu0 0
    %1079 = vmatprep.subr.bf16.mxu0 0
    %1080 = vmatpush1.bf16.msra.mxu0 0
    %1081 = vmatprep.subr.bf16.mxu0 0
    %1082 = vmatpush1.bf16.msra.mxu0 0
    %1083 = vmatprep.subr.bf16.mxu0 0
    %1084 = vmatpush1.bf16.msra.mxu0 0
    %1085 = vmatprep.subr.bf16.mxu0 0
    %1086 = vmatpush1.bf16.msra.mxu0 0
    %1087 = vmatprep.subr.bf16.mxu0 0
    %1088 = vmatpush1.bf16.msra.mxu0 0
    %1089 = vmatprep.subr.bf16.mxu0 0
    %1090 = vmatpush1.bf16.msra.mxu0 0
    %1091 = vmatprep.subr.bf16.mxu0 0
    %1092 = vmatpush1.bf16.msra.mxu0 0
    %1093 = vmatprep.subr.bf16.mxu0 0
    %1094 = vmatpush1.bf16.msra.mxu0 0
    %1095 = vmatprep.subr.bf16.mxu0 0
    %1096 = vmatpush1.bf16.msra.mxu0 0
    %1097 = vmatprep.subr.bf16.mxu0 0
    %1098 = vmatpush1.bf16.msra.mxu0 0
    %1099 = vmatprep.subr.bf16.mxu0 0
    %1100 = vmatpush1.bf16.msra.mxu0 0
    %1101 = vmatprep.mubr.bf16.mxu0 0
    %1102 = vmatmul.mubr.bf16.gmra.mrb[0].mxu0 %v450
    %v1103 = vpop.f32.mrb[0].mxu0
    %v1104 = vadd.f32 0.0, %v1103
    %v1105 = vpop.f32.mrb[0].mxu0
    %v1106 = vpop.f32.mrb[0].mxu0
    %v1107 = vpop.f32.mrb[0].mxu0
    %1108 = vdwg.mxu0
    %1109 = vmatprep.subr.bf16.mxu0 0
    %1110 = vmatpush1.bf16.msra.mxu0 %v264
    %1111 = vmatprep.subr.bf16.mxu0 0
    %1112 = vmatpush1.bf16.msra.mxu0 0
    %1113 = vmatprep.subr.bf16.mxu0 0
    %1114 = vmatpush1.bf16.msra.mxu0 0
    %1115 = vmatprep.subr.bf16.mxu0 0
    %1116 = vmatpush1.bf16.msra.mxu0 0
    %1117 = vmatprep.subr.bf16.mxu0 0
    %1118 = vmatpush1.bf16.msra.mxu0 0
    %1119 = vmatprep.subr.bf16.mxu0 0
    %1120 = vmatpush1.bf16.msra.mxu0 0
    %1121 = vmatprep.subr.bf16.mxu0 0
    %1122 = vmatpush1.bf16.msra.mxu0 0
    %1123 = vmatprep.subr.bf16.mxu0 0
    %1124 = vmatpush1.bf16.msra.mxu0 0
    %1125 = vmatprep.subr.bf16.mxu0 0
    %1126 = vmatpush1.bf16.msra.mxu0 0
    %1127 = vmatprep.subr.bf16.mxu0 0
    %1128 = vmatpush1.bf16.msra.mxu0 0
    %1129 = vmatprep.subr.bf16.mxu0 0
    %1130 = vmatpush1.bf16.msra.mxu0 0
    %1131 = vmatprep.subr.bf16.mxu0 0
    %1132 = vmatpush1.bf16.msra.mxu0 0
    %1133 = vmatprep.subr.bf16.mxu0 0
    %1134 = vmatpush1.bf16.msra.mxu0 0
    %1135 = vmatprep.subr.bf16.mxu0 0
    %1136 = vmatpush1.bf16.msra.mxu0 0
    %1137 = vmatprep.subr.bf16.mxu0 0
    %1138 = vmatpush1.bf16.msra.mxu0 0
    %1139 = vmatprep.subr.bf16.mxu0 0
    %1140 = vmatpush1.bf16.msra.mxu0 0
    %1141 = vmatprep.mubr.bf16.mxu0 0
    %1142 = vmatmul.mubr.bf16.gmra.mrb[0].mxu0 %v1020
    %v1143 = vpop.f32.mrb[0].mxu0
    %v1144 = vadd.f32 %v1104, %v1143
    %v1145 = vpop.f32.mrb[0].mxu0
    %v1146 = vpop.f32.mrb[0].mxu0
    %v1147 = vpop.f32.mrb[0].mxu0
    %1148 = vdwg.mxu0
    %v1149 = vadd.f32 %v1144, %v310
    %v1150 = vxor.u32 %v1149, 2147483648
    %v1151 = vmul.f32 %v1150, 1.442695
    %v1152 = vpow.pop %v1151
    %v1153 = vadd.f32 %v1152, 1.0
    %v1154 = vrcp.pop %v1153
    %v1155 = vmul.f32 1.0, %v1154
    %1156 = vmatprep.subr.bf16.mxu0 0
    %1157 = vmatpush1.bf16.msra.mxu0 %v329
    %1158 = vmatprep.subr.bf16.mxu0 0
    %1159 = vmatpush1.bf16.msra.mxu0 0
    %1160 = vmatprep.subr.bf16.mxu0 0
    %1161 = vmatpush1.bf16.msra.mxu0 0
    %1162 = vmatprep.subr.bf16.mxu0 0
    %1163 = vmatpush1.bf16.msra.mxu0 0
    %1164 = vmatprep.subr.bf16.mxu0 0
    %1165 = vmatpush1.bf16.msra.mxu0 0
    %1166 = vmatprep.subr.bf16.mxu0 0
    %1167 = vmatpush1.bf16.msra.mxu0 0
    %1168 = vmatprep.subr.bf16.mxu0 0
    %1169 = vmatpush1.bf16.msra.mxu0 0
    %1170 = vmatprep.subr.bf16.mxu0 0
    %1171 = vmatpush1.bf16.msra.mxu0 0
    %1172 = vmatprep.subr.bf16.mxu0 0
    %1173 = vmatpush1.bf16.msra.mxu0 0
    %1174 = vmatprep.subr.bf16.mxu0 0
    %1175 = vmatpush1.bf16.msra.mxu0 0
    %1176 = vmatprep.subr.bf16.mxu0 0
    %1177 = vmatpush1.bf16.msra.mxu0 0
    %1178 = vmatprep.subr.bf16.mxu0 0
    %1179 = vmatpush1.bf16.msra.mxu0 0
    %1180 = vmatprep.subr.bf16.mxu0 0
    %1181 = vmatpush1.bf16.msra.mxu0 0
    %1182 = vmatprep.subr.bf16.mxu0 0
    %1183 = vmatpush1.bf16.msra.mxu0 0
    %1184 = vmatprep.subr.bf16.mxu0 0
    %1185 = vmatpush1.bf16.msra.mxu0 0
    %1186 = vmatprep.subr.bf16.mxu0 0
    %1187 = vmatpush1.bf16.msra.mxu0 0
    %1188 = vmatprep.mubr.bf16.mxu0 0
    %1189 = vmatmul.mubr.bf16.gmra.mrb[0].mxu0 %v1020
    %v1190 = vpop.f32.mrb[0].mxu0
    %v1191 = vadd.f32 %v323, %v1190
    %v1192 = vpop.f32.mrb[0].mxu0
    %v1193 = vpop.f32.mrb[0].mxu0
    %v1194 = vpop.f32.mrb[0].mxu0
    %1195 = vdwg.mxu0
    %1196 = vmatprep.subr.bf16.mxu0 0
    %1197 = vmatpush1.bf16.msra.mxu0 %v385
    %1198 = vmatprep.subr.bf16.mxu0 0
    %1199 = vmatpush1.bf16.msra.mxu0 %v386
    %1200 = vmatprep.subr.bf16.mxu0 0
    %1201 = vmatpush1.bf16.msra.mxu0 0
    %1202 = vmatprep.subr.bf16.mxu0 0
    %1203 = vmatpush1.bf16.msra.mxu0 0
    %1204 = vmatprep.subr.bf16.mxu0 0
    %1205 = vmatpush1.bf16.msra.mxu0 0
    %1206 = vmatprep.subr.bf16.mxu0 0
    %1207 = vmatpush1.bf16.msra.mxu0 0
    %1208 = vmatprep.subr.bf16.mxu0 0
    %1209 = vmatpush1.bf16.msra.mxu0 0
    %1210 = vmatprep.subr.bf16.mxu0 0
    %1211 = vmatpush1.bf16.msra.mxu0 0
    %1212 = vmatprep.subr.bf16.mxu0 0
    %1213 = vmatpush1.bf16.msra.mxu0 0
    %1214 = vmatprep.subr.bf16.mxu0 0
    %1215 = vmatpush1.bf16.msra.mxu0 0
    %1216 = vmatprep.subr.bf16.mxu0 0
    %1217 = vmatpush1.bf16.msra.mxu0 0
    %1218 = vmatprep.subr.bf16.mxu0 0
    %1219 = vmatpush1.bf16.msra.mxu0 0
    %1220 = vmatprep.subr.bf16.mxu0 0
    %1221 = vmatpush1.bf16.msra.mxu0 0
    %1222 = vmatprep.subr.bf16.mxu0 0
    %1223 = vmatpush1.bf16.msra.mxu0 0
    %1224 = vmatprep.subr.bf16.mxu0 0
    %1225 = vmatpush1.bf16.msra.mxu0 0
    %1226 = vmatprep.subr.bf16.mxu0 0
    %1227 = vmatpush1.bf16.msra.mxu0 0
    %1228 = vmatprep.mubr.bf16.mxu0 0
    %1229 = vmatmul.mubr.bf16.gmra.mrb[0].mxu0 %v450
    %v1230 = vpop.f32.mrb[0].mxu0
    %v1231 = vadd.f32 %v375, %v1230
    %v1232 = vpop.f32.mrb[0].mxu0
    %v1233 = vpop.f32.mrb[0].mxu0
    %v1234 = vpop.f32.mrb[0].mxu0
    %1235 = vdwg.mxu0
    %v1236 = vmul.f32 %v1068, %v1231
    %v1237 = vadd.f32 %v1191, %v1236
    %v1238 = vtanh.pop %v1237
    %v1239 = vsub.f32 1.0, %v1155
    %v1240 = vmul.f32 %v1239, %v1238
    %v1241 = vmul.f32 %v1155, %v435
    %v1242 = vadd.f32 %v1240, %v1241
    %v1243 = vpack.c.bf16 %v1242, %v1242
    %v1245 = vsel %vm101, %v1243, 0
    %1247 = vmatprep.subr.bf16.mxu0 0
    %1248 = vmatpush1.bf16.msra.mxu0 %v445
    %1249 = vmatprep.subr.bf16.mxu0 0
    %1250 = vmatpush1.bf16.msra.mxu0 %v446
    %1251 = vmatprep.subr.bf16.mxu0 0
    %1252 = vmatpush1.bf16.msra.mxu0 0
    %1253 = vmatprep.subr.bf16.mxu0 0
    %1254 = vmatpush1.bf16.msra.mxu0 0
    %1255 = vmatprep.subr.bf16.mxu0 0
    %1256 = vmatpush1.bf16.msra.mxu0 0
    %1257 = vmatprep.subr.bf16.mxu0 0
    %1258 = vmatpush1.bf16.msra.mxu0 0
    %1259 = vmatprep.subr.bf16.mxu0 0
    %1260 = vmatpush1.bf16.msra.mxu0 0
    %1261 = vmatprep.subr.bf16.mxu0 0
    %1262 = vmatpush1.bf16.msra.mxu0 0
    %1263 = vmatprep.subr.bf16.mxu0 0
    %1264 = vmatpush1.bf16.msra.mxu0 0
    %1265 = vmatprep.subr.bf16.mxu0 0
    %1266 = vmatpush1.bf16.msra.mxu0 0
    %1267 = vmatprep.subr.bf16.mxu0 0
    %1268 = vmatpush1.bf16.msra.mxu0 0
    %1269 = vmatprep.subr.bf16.mxu0 0
    %1270 = vmatpush1.bf16.msra.mxu0 0
    %1271 = vmatprep.subr.bf16.mxu0 0
    %1272 = vmatpush1.bf16.msra.mxu0 0
    %1273 = vmatprep.subr.bf16.mxu0 0
    %1274 = vmatpush1.bf16.msra.mxu0 0
    %1275 = vmatprep.subr.bf16.mxu0 0
    %1276 = vmatpush1.bf16.msra.mxu0 0
    %1277 = vmatprep.subr.bf16.mxu0 0
    %1278 = vmatpush1.bf16.msra.mxu0 0
    %1279 = vmatprep.mubr.bf16.mxu0 0
    %1280 = vmatmul.mubr.bf16.gmra.mrb[0].mxu0 %v1245
    %v1281 = vpop.f32.mrb[0].mxu0
    %v1282 = vadd.f32 0.0, %v1281
    %v1283 = vpop.f32.mrb[0].mxu0
    %v1284 = vpop.f32.mrb[0].mxu0
    %v1285 = vpop.f32.mrb[0].mxu0
    %1286 = vdwg.mxu0
    %v1289 = vunpack.c.l.s4 1966171168
    %v1290 = vunpack.c.0.s8 %v1289
    %v1291 = vlaneseq
    %v1292 = vshrl.u32 %v1291, 7
    %v1293 = vsub.s32 %v1290, %v1292
    %v1294 = vrot.slane %v1282, %v1293
    %v1295 = vcombine.high %v1294, %v1294
    %v1297 = vunpack.c.l.s4 1966171168
    %v1298 = vunpack.c.0.s8 %v1297
    %v1299 = vlaneseq
    %v1300 = vshrl.u32 %v1299, 7
    %v1301 = vsub.s32 %v1298, %v1300
    %v1302 = vrot.slane %v1294, %v1301
    %v1304 = vunpack.c.l.s4 1966171168
    %v1305 = vunpack.c.0.s8 %v1304
    %v1306 = vlaneseq
    %v1307 = vshrl.u32 %v1306, 7
    %v1308 = vsub.s32 %v1305, %v1307
    %v1309 = vrot.slane %v1295, %v1308
    %v1310 = vlaneseq
    %v1311 = vshrl.u32 %v1310, 7
    %v1312 = vsub.s32 0, %v1311
    %v1313 = vrot.slane %v1302, %v1312
    %v1314 = vlaneseq
    %v1315 = vshrl.u32 %v1314, 7
    %v1316 = vsub.s32 0, %v1315
    %v1317 = vrot.slane %v1309, %v1316
    %v1320 = vmul.f32 %v1313, %v43
    %v1321 = vmul.f32 %v1317, %v44
    %v1322 = vsel %vm151, %v1320, 0.0
    %1323 = vadd.xlane.f32.xlu0 %v1322
    %v1324 = vpop.xlane.xlu0 %1323
    %v1325 = vsel %vm151, %v1321, 0.0
    %1326 = vadd.xlane.f32.xlu0 %v1325
    %v1327 = vpop.xlane.xlu0 %1326
    %v1330 = vlaneseq
    %v1331 = vshrl.u32 %v1330, 7
    %v1332 = vsub.s32 %v79, %v1331
    %v1333 = vrot.slane %v1324, %v1332
    %v1334 = vlaneseq
    %v1335 = vshrl.u32 %v1334, 7
    %v1336 = vsub.s32 %v79, %v1335
    %v1337 = vrot.slane %v1327, %v1336
    %v1338 = vsel %vm543, %v1337, %v1333
    %v1340 = vsel %vm546, %v1338, -inf
    %1341 = vmax.xlane.f32.xlu0 %v1340
    %v1342 = vpop.xlane.xlu0 %1341
    %v1344 = vlaneseq
    %v1345 = vshrl.u32 %v1344, 7
    %v1346 = vsub.s32 0, %v1345
    %v1347 = vrot.slane %v1342, %v1346
    %v1348 = vlaneseq
    %v1349 = vshrl.u32 %v1348, 7
    %v1350 = vsub.s32 1, %v1349
    %v1351 = vrot.slane %v1342, %v1350
    %v1354 = vsub.f32 %v1324, %v1347
    %v1355 = vsub.f32 %v1327, %v1351
    %v1356 = vmul.f32 %v1354, 1.442695
    %v1357 = vpow.pop %v1356
    %v1358 = vmul.f32 %v1355, 1.442695
    %v1359 = vpow.pop %v1358
    %1362 = vset.pattern.permute.xlu0 0
    %1363 = vperm.xlu0 %1362, %v1357
    %v1364 = vpop.permute.xlu0 %1363
    %1365 = vset.pattern.permute.xlu0 0
    %1366 = vperm.xlu0 %1365, %v1359
    %v1367 = vpop.permute.xlu0 %1366
    %v1368 = vlaneseq
    %v1369 = vshrl.u32 %v1368, 7
    %v1370 = vsub.s32 %v79, %v1369
    %v1371 = vrot.slane %v1364, %v1370
    %v1372 = vlaneseq
    %v1373 = vshrl.u32 %v1372, 7
    %v1374 = vsub.s32 %v79, %v1373
    %v1375 = vrot.slane %v1367, %v1374
    %v1376 = vsel %vm543, %v1375, %v1371
    %v1378 = vsel %vm546, %v1376, 0.0
    %1379 = vadd.xlane.f32.xlu0 %v1378
    %v1380 = vpop.xlane.xlu0 %1379
    %v1382 = vlaneseq
    %v1383 = vshrl.u32 %v1382, 7
    %v1384 = vsub.s32 0, %v1383
    %v1385 = vrot.slane %v1380, %v1384
    %v1386 = vlaneseq
    %v1387 = vshrl.u32 %v1386, 7
    %v1388 = vsub.s32 1, %v1387
    %v1389 = vrot.slane %v1380, %v1388
    %v1392 = vrcp.pop %v1385
    %v1393 = vmul.f32 %v1357, %v1392
    %v1394 = vrcp.pop %v1389
    %v1395 = vmul.f32 %v1359, %v1394
    %v1396 = vpack.c.bf16 %v1393, %v1393
    %v1397 = vpack.c.bf16 %v1395, %v1395
    %v1399 = vunpack.c.l.b16 %v1396
    %1400 = vset.pattern.permute.xlu0 0
    %1401 = vperm.xlu0 %1400, %v1399
    %v1402 = vpop.permute.xlu0 %1401
    %v1403 = vlaneseq
    %v1404 = vshrl.u32 %v1403, 7
    %v1405 = vsub.s32 %v79, %v1404
    %v1406 = vrot.slane %v1402, %v1405
    %v1407 = vpack.c.b16 %v1406, %v1406
    %v1409 = vsel %vm615, %v1407, 0
    %1411 = vmatprep.subr.bf16.mxu0 0
    %1412 = vmatpush1.bf16.msra.mxu0 %v621
    %1413 = vmatprep.subr.bf16.mxu0 0
    %1414 = vmatpush1.bf16.msra.mxu0 0
    %1415 = vmatprep.subr.bf16.mxu0 0
    %1416 = vmatpush1.bf16.msra.mxu0 0
    %1417 = vmatprep.subr.bf16.mxu0 0
    %1418 = vmatpush1.bf16.msra.mxu0 0
    %1419 = vmatprep.subr.bf16.mxu0 0
    %1420 = vmatpush1.bf16.msra.mxu0 0
    %1421 = vmatprep.subr.bf16.mxu0 0
    %1422 = vmatpush1.bf16.msra.mxu0 0
    %1423 = vmatprep.subr.bf16.mxu0 0
    %1424 = vmatpush1.bf16.msra.mxu0 0
    %1425 = vmatprep.subr.bf16.mxu0 0
    %1426 = vmatpush1.bf16.msra.mxu0 0
    %1427 = vmatprep.subr.bf16.mxu0 0
    %1428 = vmatpush1.bf16.msra.mxu0 0
    %1429 = vmatprep.subr.bf16.mxu0 0
    %1430 = vmatpush1.bf16.msra.mxu0 0
    %1431 = vmatprep.subr.bf16.mxu0 0
    %1432 = vmatpush1.bf16.msra.mxu0 0
    %1433 = vmatprep.subr.bf16.mxu0 0
    %1434 = vmatpush1.bf16.msra.mxu0 0
    %1435 = vmatprep.subr.bf16.mxu0 0
    %1436 = vmatpush1.bf16.msra.mxu0 0
    %1437 = vmatprep.subr.bf16.mxu0 0
    %1438 = vmatpush1.bf16.msra.mxu0 0
    %1439 = vmatprep.subr.bf16.mxu0 0
    %1440 = vmatpush1.bf16.msra.mxu0 0
    %1441 = vmatprep.subr.bf16.mxu0 0
    %1442 = vmatpush1.bf16.msra.mxu0 0
    %1443 = vmatprep.mubr.bf16.mxu0 0
    %1444 = vmatmul.mubr.bf16.gmra.mrb[0].mxu0 %v1409
    %v1445 = vpop.f32.mrb[0].mxu0
    %v1446 = vadd.f32 0.0, %v1445
    %v1447 = vpop.f32.mrb[0].mxu0
    %v1448 = vpop.f32.mrb[0].mxu0
    %v1449 = vpop.f32.mrb[0].mxu0
    %1450 = vdwg.mxu0
    %v1452 = vunpack.c.l.b16 %v1397
    %1453 = vset.pattern.permute.xlu0 0
    %1454 = vperm.xlu0 %1453, %v1452
    %v1455 = vpop.permute.xlu0 %1454
    %v1456 = vlaneseq
    %v1457 = vshrl.u32 %v1456, 7
    %v1458 = vsub.s32 %v79, %v1457
    %v1459 = vrot.slane %v1455, %v1458
    %v1460 = vpack.c.b16 %v1459, %v1459
    %v1462 = vsel %vm615, %v1460, 0
    %1464 = vmatprep.subr.bf16.mxu0 0
    %1465 = vmatpush1.bf16.msra.mxu0 %v677
    %1466 = vmatprep.subr.bf16.mxu0 0
    %1467 = vmatpush1.bf16.msra.mxu0 0
    %1468 = vmatprep.subr.bf16.mxu0 0
    %1469 = vmatpush1.bf16.msra.mxu0 0
    %1470 = vmatprep.subr.bf16.mxu0 0
    %1471 = vmatpush1.bf16.msra.mxu0 0
    %1472 = vmatprep.subr.bf16.mxu0 0
    %1473 = vmatpush1.bf16.msra.mxu0 0
    %1474 = vmatprep.subr.bf16.mxu0 0
    %1475 = vmatpush1.bf16.msra.mxu0 0
    %1476 = vmatprep.subr.bf16.mxu0 0
    %1477 = vmatpush1.bf16.msra.mxu0 0
    %1478 = vmatprep.subr.bf16.mxu0 0
    %1479 = vmatpush1.bf16.msra.mxu0 0
    %1480 = vmatprep.subr.bf16.mxu0 0
    %1481 = vmatpush1.bf16.msra.mxu0 0
    %1482 = vmatprep.subr.bf16.mxu0 0
    %1483 = vmatpush1.bf16.msra.mxu0 0
    %1484 = vmatprep.subr.bf16.mxu0 0
    %1485 = vmatpush1.bf16.msra.mxu0 0
    %1486 = vmatprep.subr.bf16.mxu0 0
    %1487 = vmatpush1.bf16.msra.mxu0 0
    %1488 = vmatprep.subr.bf16.mxu0 0
    %1489 = vmatpush1.bf16.msra.mxu0 0
    %1490 = vmatprep.subr.bf16.mxu0 0
    %1491 = vmatpush1.bf16.msra.mxu0 0
    %1492 = vmatprep.subr.bf16.mxu0 0
    %1493 = vmatpush1.bf16.msra.mxu0 0
    %1494 = vmatprep.subr.bf16.mxu0 0
    %1495 = vmatpush1.bf16.msra.mxu0 0
    %1496 = vmatprep.mubr.bf16.mxu0 0
    %1497 = vmatmul.mubr.bf16.gmra.mrb[0].mxu0 %v1462
    %v1498 = vpop.f32.mrb[0].mxu0
    %v1499 = vadd.f32 0.0, %v1498
    %v1500 = vpop.f32.mrb[0].mxu0
    %v1501 = vpop.f32.mrb[0].mxu0
    %v1502 = vpop.f32.mrb[0].mxu0
    %1503 = vdwg.mxu0
    %v1504 = vpack.c.bf16 %v1446, %v1446
    %v1505 = vpack.c.bf16 %v1499, %v1499
    %v1506 = vpack.c.bf16 %v1282, %v1282
    %v1508 = vsel %vm151, %v1506, 0
    %1510 = vmatprep.subr.bf16.mxu0 0
    %1511 = vmatpush1.bf16.msra.mxu0 %v726
    %1512 = vmatprep.subr.bf16.mxu0 0
    %1513 = vmatpush1.bf16.msra.mxu0 0
    %1514 = vmatprep.subr.bf16.mxu0 0
    %1515 = vmatpush1.bf16.msra.mxu0 0
    %1516 = vmatprep.subr.bf16.mxu0 0
    %1517 = vmatpush1.bf16.msra.mxu0 0
    %1518 = vmatprep.subr.bf16.mxu0 0
    %1519 = vmatpush1.bf16.msra.mxu0 0
    %1520 = vmatprep.subr.bf16.mxu0 0
    %1521 = vmatpush1.bf16.msra.mxu0 0
    %1522 = vmatprep.subr.bf16.mxu0 0
    %1523 = vmatpush1.bf16.msra.mxu0 0
    %1524 = vmatprep.subr.bf16.mxu0 0
    %1525 = vmatpush1.bf16.msra.mxu0 0
    %1526 = vmatprep.subr.bf16.mxu0 0
    %1527 = vmatpush1.bf16.msra.mxu0 0
    %1528 = vmatprep.subr.bf16.mxu0 0
    %1529 = vmatpush1.bf16.msra.mxu0 0
    %1530 = vmatprep.subr.bf16.mxu0 0
    %1531 = vmatpush1.bf16.msra.mxu0 0
    %1532 = vmatprep.subr.bf16.mxu0 0
    %1533 = vmatpush1.bf16.msra.mxu0 0
    %1534 = vmatprep.subr.bf16.mxu0 0
    %1535 = vmatpush1.bf16.msra.mxu0 0
    %1536 = vmatprep.subr.bf16.mxu0 0
    %1537 = vmatpush1.bf16.msra.mxu0 0
    %1538 = vmatprep.subr.bf16.mxu0 0
    %1539 = vmatpush1.bf16.msra.mxu0 0
    %1540 = vmatprep.subr.bf16.mxu0 0
    %1541 = vmatpush1.bf16.msra.mxu0 0
    %1542 = vmatprep.mubr.bf16.mxu0 0
    %1543 = vmatmul.mubr.bf16.gmra.mrb[0].mxu0 %v1508
    %v1544 = vpop.f32.mrb[0].mxu0
    %v1545 = vadd.f32 0.0, %v1544
    %v1546 = vpop.f32.mrb[0].mxu0
    %v1547 = vpop.f32.mrb[0].mxu0
    %v1548 = vpop.f32.mrb[0].mxu0
    %1549 = vdwg.mxu0
    %v1552 = vunpack.c.l.b16 %v1504
    %v1553 = vunpack.c.l.b16 %v1505
    %v1554 = vrot.slane %v1553, 7
    %v1555 = vsel %vm543, %v1554, %v1552
    %v1556 = vpack.c.b16 %v1555, %v1555
    %v1558 = vsel %vm151, %v1556, 0
    %1560 = vmatprep.subr.bf16.mxu0 0
    %1561 = vmatpush1.bf16.msra.mxu0 %v782
    %1562 = vmatprep.subr.bf16.mxu0 0
    %1563 = vmatpush1.bf16.msra.mxu0 0
    %1564 = vmatprep.subr.bf16.mxu0 0
    %1565 = vmatpush1.bf16.msra.mxu0 0
    %1566 = vmatprep.subr.bf16.mxu0 0
    %1567 = vmatpush1.bf16.msra.mxu0 0
    %1568 = vmatprep.subr.bf16.mxu0 0
    %1569 = vmatpush1.bf16.msra.mxu0 0
    %1570 = vmatprep.subr.bf16.mxu0 0
    %1571 = vmatpush1.bf16.msra.mxu0 0
    %1572 = vmatprep.subr.bf16.mxu0 0
    %1573 = vmatpush1.bf16.msra.mxu0 0
    %1574 = vmatprep.subr.bf16.mxu0 0
    %1575 = vmatpush1.bf16.msra.mxu0 0
    %1576 = vmatprep.subr.bf16.mxu0 0
    %1577 = vmatpush1.bf16.msra.mxu0 0
    %1578 = vmatprep.subr.bf16.mxu0 0
    %1579 = vmatpush1.bf16.msra.mxu0 0
    %1580 = vmatprep.subr.bf16.mxu0 0
    %1581 = vmatpush1.bf16.msra.mxu0 0
    %1582 = vmatprep.subr.bf16.mxu0 0
    %1583 = vmatpush1.bf16.msra.mxu0 0
    %1584 = vmatprep.subr.bf16.mxu0 0
    %1585 = vmatpush1.bf16.msra.mxu0 0
    %1586 = vmatprep.subr.bf16.mxu0 0
    %1587 = vmatpush1.bf16.msra.mxu0 0
    %1588 = vmatprep.subr.bf16.mxu0 0
    %1589 = vmatpush1.bf16.msra.mxu0 0
    %1590 = vmatprep.subr.bf16.mxu0 0
    %1591 = vmatpush1.bf16.msra.mxu0 0
    %1592 = vmatprep.mubr.bf16.mxu0 0
    %1593 = vmatmul.mubr.bf16.gmra.mrb[0].mxu0 %v1558
    %v1594 = vpop.f32.mrb[0].mxu0
    %v1595 = vadd.f32 %v1545, %v1594
    %v1596 = vpop.f32.mrb[0].mxu0
    %v1597 = vpop.f32.mrb[0].mxu0
    %v1598 = vpop.f32.mrb[0].mxu0
    %1599 = vdwg.mxu0
    %v1600 = vtanh.pop %v1595
    %v1601 = vpack.c.bf16 %v1600, %v1600
    %v1603 = vsel %vm151, %v1601, 0
    %1605 = vmatprep.subr.bf16.mxu0 0
    %1606 = vmatpush1.bf16.xpose.msra.mxu0 %v843
    %1607 = vmatprep.subr.bf16.mxu0 0
    %1608 = vmatpush1.bf16.xpose.msra.mxu0 %v846
    %1609 = vmatprep.subr.bf16.mxu0 0
    %1610 = vmatpush1.bf16.xpose.msra.mxu0 0
    %1611 = vmatprep.subr.bf16.mxu0 0
    %1612 = vmatpush1.bf16.xpose.msra.mxu0 0
    %1613 = vmatprep.subr.bf16.mxu0 0
    %1614 = vmatpush1.bf16.xpose.msra.mxu0 0
    %1615 = vmatprep.subr.bf16.mxu0 0
    %1616 = vmatpush1.bf16.xpose.msra.mxu0 0
    %1617 = vmatprep.subr.bf16.mxu0 0
    %1618 = vmatpush1.bf16.xpose.msra.mxu0 0
    %1619 = vmatprep.subr.bf16.mxu0 0
    %1620 = vmatpush1.bf16.xpose.msra.mxu0 0
    %1621 = vmatprep.subr.bf16.mxu0 0
    %1622 = vmatpush1.bf16.xpose.msra.mxu0 0
    %1623 = vmatprep.subr.bf16.mxu0 0
    %1624 = vmatpush1.bf16.xpose.msra.mxu0 0
    %1625 = vmatprep.subr.bf16.mxu0 0
    %1626 = vmatpush1.bf16.xpose.msra.mxu0 0
    %1627 = vmatprep.subr.bf16.mxu0 0
    %1628 = vmatpush1.bf16.xpose.msra.mxu0 0
    %1629 = vmatprep.subr.bf16.mxu0 0
    %1630 = vmatpush1.bf16.xpose.msra.mxu0 0
    %1631 = vmatprep.subr.bf16.mxu0 0
    %1632 = vmatpush1.bf16.xpose.msra.mxu0 0
    %1633 = vmatprep.subr.bf16.mxu0 0
    %1634 = vmatpush1.bf16.xpose.msra.mxu0 0
    %1635 = vmatprep.subr.bf16.mxu0 0
    %1636 = vmatpush1.bf16.xpose.msra.mxu0 0
    %1637 = vmatprep.mubr.bf16.mxu0 0
    %1638 = vmatmul.mubr.bf16.gmra.mrb[0].mxu0 %v1603
    %v1639 = vpop.f32.mrb[0].mxu0
    %v1640 = vadd.f32 0.0, %v1639
    %v1641 = vpop.f32.mrb[0].mxu0
    %v1642 = vpop.f32.mrb[0].mxu0
    %v1643 = vpop.f32.mrb[0].mxu0
    %1644 = vdwg.mxu0
    %s1645 = scalar_lea.vmem [#allocation2], 2
    %1646 = vst.msk [vmem:[%s1645] sm:$0x3] %vm888, %v1640
    %1649 = vset.pattern.permute.xlu0 0
    %1650 = vperm.xlu0 %1649, %v1393
    %v1651 = vpop.permute.xlu0 %1650
    %1652 = vset.pattern.permute.xlu0 0
    %1653 = vperm.xlu0 %1652, %v1395
    %v1654 = vpop.permute.xlu0 %1653
    %v1655 = vlaneseq
    %v1656 = vshrl.u32 %v1655, 7
    %v1657 = vsub.s32 %v79, %v1656
    %v1658 = vrot.slane %v1651, %v1657
    %v1659 = vlaneseq
    %v1660 = vshrl.u32 %v1659, 7
    %v1661 = vsub.s32 %v79, %v1660
    %v1662 = vrot.slane %v1654, %v1661
    %v1663 = vsel %vm543, %v1662, %v1658
    %s1665 = scalar_lea.vmem [#allocation4], 2
    %1666 = vst.msk [vmem:[%s1665] sm:$0x3] %vm546, %v1663
    %v1667 = vsel %vm888, %v1640, -inf
    %1668 = vmax.xlane.f32.xlu0 %v1667
    %v1669 = vpop.xlane.xlu0 %1668
    %vm1670 = vcmp.eq.f32.partialorder %v1640, %v1669
    %v1671 = vsel %vm1670, %v79, 32
    %v1672 = vsel %vm888, %v1671, 2147483647
    %v1673 = vand.u32 %v1672, 65535
    %v1674 = vshra.s32 %v1672, 16
    %v1675 = vcvt.s32.f32 %v1673
    %v1676 = vcvt.s32.f32 %v1674
    %1677 = vmin.xlane.f32.xlu0 %v1676
    %v1678 = vpop.xlane.xlu0 %1677
    %vm1679 = vcmp.eq.f32.partialorder %v1676, %v1678
    %v1680 = vsel %vm1679, %v1675, inf
    %1681 = vmin.xlane.f32.xlu0 %v1680
    %v1682 = vpop.xlane.xlu0 %1681
    %v1683 = vcvt.f32.s32 %v1682
    %v1684 = vcvt.f32.s32 %v1678
    %v1685 = vshll.u32 %v1684, 16
    %v1686 = vadd.s32 %v1685, %v1683
    %vm1687 = vcmp.eq.s32.totalorder %v79, %v1686
    %v1688 = vsel %vm1687, 1, 0
    %v1689 = vcvt.s32.f32 %v1688
    %v1690 = vpack.c.bf16 %v1689, %v1689
    %v1692 = vsel %vm101, %v1690, 0
    %1694 = vmatprep.subr.bf16.mxu0 0
    %1695 = vmatpush1.bf16.msra.mxu0 %v837
    %1696 = vmatprep.subr.bf16.mxu0 0
    %1697 = vmatpush1.bf16.msra.mxu0 %v838
    %1698 = vmatprep.subr.bf16.mxu0 0
    %1699 = vmatpush1.bf16.msra.mxu0 0
    %1700 = vmatprep.subr.bf16.mxu0 0
    %1701 = vmatpush1.bf16.msra.mxu0 0
    %1702 = vmatprep.subr.bf16.mxu0 0
    %1703 = vmatpush1.bf16.msra.mxu0 0
    %1704 = vmatprep.subr.bf16.mxu0 0
    %1705 = vmatpush1.bf16.msra.mxu0 0
    %1706 = vmatprep.subr.bf16.mxu0 0
    %1707 = vmatpush1.bf16.msra.mxu0 0
    %1708 = vmatprep.subr.bf16.mxu0 0
    %1709 = vmatpush1.bf16.msra.mxu0 0
    %1710 = vmatprep.subr.bf16.mxu0 0
    %1711 = vmatpush1.bf16.msra.mxu0 0
    %1712 = vmatprep.subr.bf16.mxu0 0
    %1713 = vmatpush1.bf16.msra.mxu0 0
    %1714 = vmatprep.subr.bf16.mxu0 0
    %1715 = vmatpush1.bf16.msra.mxu0 0
    %1716 = vmatprep.subr.bf16.mxu0 0
    %1717 = vmatpush1.bf16.msra.mxu0 0
    %1718 = vmatprep.subr.bf16.mxu0 0
    %1719 = vmatpush1.bf16.msra.mxu0 0
    %1720 = vmatprep.subr.bf16.mxu0 0
    %1721 = vmatpush1.bf16.msra.mxu0 0
    %1722 = vmatprep.subr.bf16.mxu0 0
    %1723 = vmatpush1.bf16.msra.mxu0 0
    %1724 = vmatprep.subr.bf16.mxu0 0
    %1725 = vmatpush1.bf16.msra.mxu0 0
    %1726 = vmatprep.mubr.bf16.mxu0 0
    %1727 = vmatmul.mubr.bf16.gmra.mrb[0].mxu0 %v1692
    %v1728 = vpop.f32.mrb[0].mxu0
    %v1729 = vadd.f32 0.0, %v1728
    %v1730 = vpop.f32.mrb[0].mxu0
    %v1731 = vpop.f32.mrb[0].mxu0
    %v1732 = vpop.f32.mrb[0].mxu0
    %1733 = vdwg.mxu0
    %v1734 = vpack.c.bf16 %v1729, %v1729
    %1735 = vmatprep.subr.bf16.mxu0 0
    %1736 = vmatpush1.bf16.msra.mxu0 %v97
    %1737 = vmatprep.subr.bf16.mxu0 0
    %1738 = vmatpush1.bf16.msra.mxu0 %v98
    %1739 = vmatprep.subr.bf16.mxu0 0
    %1740 = vmatpush1.bf16.msra.mxu0 0
    %1741 = vmatprep.subr.bf16.mxu0 0
    %1742 = vmatpush1.bf16.msra.mxu0 0
    %1743 = vmatprep.subr.bf16.mxu0 0
    %1744 = vmatpush1.bf16.msra.mxu0 0
    %1745 = vmatprep.subr.bf16.mxu0 0
    %1746 = vmatpush1.bf16.msra.mxu0 0
    %1747 = vmatprep.subr.bf16.mxu0 0
    %1748 = vmatpush1.bf16.msra.mxu0 0
    %1749 = vmatprep.subr.bf16.mxu0 0
    %1750 = vmatpush1.bf16.msra.mxu0 0
    %1751 = vmatprep.subr.bf16.mxu0 0
    %1752 = vmatpush1.bf16.msra.mxu0 0
    %1753 = vmatprep.subr.bf16.mxu0 0
    %1754 = vmatpush1.bf16.msra.mxu0 0
    %1755 = vmatprep.subr.bf16.mxu0 0
    %1756 = vmatpush1.bf16.msra.mxu0 0
    %1757 = vmatprep.subr.bf16.mxu0 0
    %1758 = vmatpush1.bf16.msra.mxu0 0
    %1759 = vmatprep.subr.bf16.mxu0 0
    %1760 = vmatpush1.bf16.msra.mxu0 0
    %1761 = vmatprep.subr.bf16.mxu0 0
    %1762 = vmatpush1.bf16.msra.mxu0 0
    %1763 = vmatprep.subr.bf16.mxu0 0
    %1764 = vmatpush1.bf16.msra.mxu0 0
    %1765 = vmatprep.subr.bf16.mxu0 0
    %1766 = vmatpush1.bf16.msra.mxu0 0
    %1767 = vmatprep.mubr.bf16.mxu0 0
    %1768 = vmatmul.mubr.bf16.gmra.mrb[0].mxu0 %v1245
    %v1769 = vpop.f32.mrb[0].mxu0
    %v1770 = vadd.f32 0.0, %v1769
    %v1771 = vpop.f32.mrb[0].mxu0
    %v1772 = vpop.f32.mrb[0].mxu0
    %v1773 = vpop.f32.mrb[0].mxu0
    %1774 = vdwg.mxu0
    %v1776 = vsel %vm151, %v1734, 0
    %1778 = vmatprep.subr.bf16.mxu0 0
    %1779 = vmatpush1.bf16.msra.mxu0 %v149
    %1780 = vmatprep.subr.bf16.mxu0 0
    %1781 = vmatpush1.bf16.msra.mxu0 0
    %1782 = vmatprep.subr.bf16.mxu0 0
    %1783 = vmatpush1.bf16.msra.mxu0 0
    %1784 = vmatprep.subr.bf16.mxu0 0
    %1785 = vmatpush1.bf16.msra.mxu0 0
    %1786 = vmatprep.subr.bf16.mxu0 0
    %1787 = vmatpush1.bf16.msra.mxu0 0
    %1788 = vmatprep.subr.bf16.mxu0 0
    %1789 = vmatpush1.bf16.msra.mxu0 0
    %1790 = vmatprep.subr.bf16.mxu0 0
    %1791 = vmatpush1.bf16.msra.mxu0 0
    %1792 = vmatprep.subr.bf16.mxu0 0
    %1793 = vmatpush1.bf16.msra.mxu0 0
    %1794 = vmatprep.subr.bf16.mxu0 0
    %1795 = vmatpush1.bf16.msra.mxu0 0
    %1796 = vmatprep.subr.bf16.mxu0 0
    %1797 = vmatpush1.bf16.msra.mxu0 0
    %1798 = vmatprep.subr.bf16.mxu0 0
    %1799 = vmatpush1.bf16.msra.mxu0 0
    %1800 = vmatprep.subr.bf16.mxu0 0
    %1801 = vmatpush1.bf16.msra.mxu0 0
    %1802 = vmatprep.subr.bf16.mxu0 0
    %1803 = vmatpush1.bf16.msra.mxu0 0
    %1804 = vmatprep.subr.bf16.mxu0 0
    %1805 = vmatpush1.bf16.msra.mxu0 0
    %1806 = vmatprep.subr.bf16.mxu0 0
    %1807 = vmatpush1.bf16.msra.mxu0 0
    %1808 = vmatprep.subr.bf16.mxu0 0
    %1809 = vmatpush1.bf16.msra.mxu0 0
    %1810 = vmatprep.mubr.bf16.mxu0 0
    %1811 = vmatmul.mubr.bf16.gmra.mrb[0].mxu0 %v1776
    %v1812 = vpop.f32.mrb[0].mxu0
    %v1813 = vadd.f32 %v1770, %v1812
    %v1814 = vpop.f32.mrb[0].mxu0
    %v1815 = vpop.f32.mrb[0].mxu0
    %v1816 = vpop.f32.mrb[0].mxu0
    %1817 = vdwg.mxu0
    %v1818 = vadd.f32 %v1813, %v199
    %v1819 = vxor.u32 %v1818, 2147483648
    %v1820 = vmul.f32 %v1819, 1.442695
    %v1821 = vpow.pop %v1820
    %v1822 = vadd.f32 %v1821, 1.0
    %v1823 = vrcp.pop %v1822
    %v1824 = vmul.f32 1.0, %v1823
    %1825 = vmatprep.subr.bf16.mxu0 0
    %1826 = vmatpush1.bf16.msra.mxu0 %v216
    %1827 = vmatprep.subr.bf16.mxu0 0
    %1828 = vmatpush1.bf16.msra.mxu0 %v217
    %1829 = vmatprep.subr.bf16.mxu0 0
    %1830 = vmatpush1.bf16.msra.mxu0 0
    %1831 = vmatprep.subr.bf16.mxu0 0
    %1832 = vmatpush1.bf16.msra.mxu0 0
    %1833 = vmatprep.subr.bf16.mxu0 0
    %1834 = vmatpush1.bf16.msra.mxu0 0
    %1835 = vmatprep.subr.bf16.mxu0 0
    %1836 = vmatpush1.bf16.msra.mxu0 0
    %1837 = vmatprep.subr.bf16.mxu0 0
    %1838 = vmatpush1.bf16.msra.mxu0 0
    %1839 = vmatprep.subr.bf16.mxu0 0
    %1840 = vmatpush1.bf16.msra.mxu0 0
    %1841 = vmatprep.subr.bf16.mxu0 0
    %1842 = vmatpush1.bf16.msra.mxu0 0
    %1843 = vmatprep.subr.bf16.mxu0 0
    %1844 = vmatpush1.bf16.msra.mxu0 0
    %1845 = vmatprep.subr.bf16.mxu0 0
    %1846 = vmatpush1.bf16.msra.mxu0 0
    %1847 = vmatprep.subr.bf16.mxu0 0
    %1848 = vmatpush1.bf16.msra.mxu0 0
    %1849 = vmatprep.subr.bf16.mxu0 0
    %1850 = vmatpush1.bf16.msra.mxu0 0
    %1851 = vmatprep.subr.bf16.mxu0 0
    %1852 = vmatpush1.bf16.msra.mxu0 0
    %1853 = vmatprep.subr.bf16.mxu0 0
    %1854 = vmatpush1.bf16.msra.mxu0 0
    %1855 = vmatprep.subr.bf16.mxu0 0
    %1856 = vmatpush1.bf16.msra.mxu0 0
    %1857 = vmatprep.mubr.bf16.mxu0 0
    %1858 = vmatmul.mubr.bf16.gmra.mrb[0].mxu0 %v1245
    %v1859 = vpop.f32.mrb[0].mxu0
    %v1860 = vadd.f32 0.0, %v1859
    %v1861 = vpop.f32.mrb[0].mxu0
    %v1862 = vpop.f32.mrb[0].mxu0
    %v1863 = vpop.f32.mrb[0].mxu0
    %1864 = vdwg.mxu0
    %1865 = vmatprep.subr.bf16.mxu0 0
    %1866 = vmatpush1.bf16.msra.mxu0 %v264
    %1867 = vmatprep.subr.bf16.mxu0 0
    %1868 = vmatpush1.bf16.msra.mxu0 0
    %1869 = vmatprep.subr.bf16.mxu0 0
    %1870 = vmatpush1.bf16.msra.mxu0 0
    %1871 = vmatprep.subr.bf16.mxu0 0
    %1872 = vmatpush1.bf16.msra.mxu0 0
    %1873 = vmatprep.subr.bf16.mxu0 0
    %1874 = vmatpush1.bf16.msra.mxu0 0
    %1875 = vmatprep.subr.bf16.mxu0 0
    %1876 = vmatpush1.bf16.msra.mxu0 0
    %1877 = vmatprep.subr.bf16.mxu0 0
    %1878 = vmatpush1.bf16.msra.mxu0 0
    %1879 = vmatprep.subr.bf16.mxu0 0
    %1880 = vmatpush1.bf16.msra.mxu0 0
    %1881 = vmatprep.subr.bf16.mxu0 0
    %1882 = vmatpush1.bf16.msra.mxu0 0
    %1883 = vmatprep.subr.bf16.mxu0 0
    %1884 = vmatpush1.bf16.msra.mxu0 0
    %1885 = vmatprep.subr.bf16.mxu0 0
    %1886 = vmatpush1.bf16.msra.mxu0 0
    %1887 = vmatprep.subr.bf16.mxu0 0
    %1888 = vmatpush1.bf16.msra.mxu0 0
    %1889 = vmatprep.subr.bf16.mxu0 0
    %1890 = vmatpush1.bf16.msra.mxu0 0
    %1891 = vmatprep.subr.bf16.mxu0 0
    %1892 = vmatpush1.bf16.msra.mxu0 0
    %1893 = vmatprep.subr.bf16.mxu0 0
    %1894 = vmatpush1.bf16.msra.mxu0 0
    %1895 = vmatprep.subr.bf16.mxu0 0
    %1896 = vmatpush1.bf16.msra.mxu0 0
    %1897 = vmatprep.mubr.bf16.mxu0 0
    %1898 = vmatmul.mubr.bf16.gmra.mrb[0].mxu0 %v1776
    %v1899 = vpop.f32.mrb[0].mxu0
    %v1900 = vadd.f32 %v1860, %v1899
    %v1901 = vpop.f32.mrb[0].mxu0
    %v1902 = vpop.f32.mrb[0].mxu0
    %v1903 = vpop.f32.mrb[0].mxu0
    %1904 = vdwg.mxu0
    %v1905 = vadd.f32 %v1900, %v310
    %v1906 = vxor.u32 %v1905, 2147483648
    %v1907 = vmul.f32 %v1906, 1.442695
    %v1908 = vpow.pop %v1907
    %v1909 = vadd.f32 %v1908, 1.0
    %v1910 = vrcp.pop %v1909
    %v1911 = vmul.f32 1.0, %v1910
    %1912 = vmatprep.subr.bf16.mxu0 0
    %1913 = vmatpush1.bf16.msra.mxu0 %v329
    %1914 = vmatprep.subr.bf16.mxu0 0
    %1915 = vmatpush1.bf16.msra.mxu0 0
    %1916 = vmatprep.subr.bf16.mxu0 0
    %1917 = vmatpush1.bf16.msra.mxu0 0
    %1918 = vmatprep.subr.bf16.mxu0 0
    %1919 = vmatpush1.bf16.msra.mxu0 0
    %1920 = vmatprep.subr.bf16.mxu0 0
    %1921 = vmatpush1.bf16.msra.mxu0 0
    %1922 = vmatprep.subr.bf16.mxu0 0
    %1923 = vmatpush1.bf16.msra.mxu0 0
    %1924 = vmatprep.subr.bf16.mxu0 0
    %1925 = vmatpush1.bf16.msra.mxu0 0
    %1926 = vmatprep.subr.bf16.mxu0 0
    %1927 = vmatpush1.bf16.msra.mxu0 0
    %1928 = vmatprep.subr.bf16.mxu0 0
    %1929 = vmatpush1.bf16.msra.mxu0 0
    %1930 = vmatprep.subr.bf16.mxu0 0
    %1931 = vmatpush1.bf16.msra.mxu0 0
    %1932 = vmatprep.subr.bf16.mxu0 0
    %1933 = vmatpush1.bf16.msra.mxu0 0
    %1934 = vmatprep.subr.bf16.mxu0 0
    %1935 = vmatpush1.bf16.msra.mxu0 0
    %1936 = vmatprep.subr.bf16.mxu0 0
    %1937 = vmatpush1.bf16.msra.mxu0 0
    %1938 = vmatprep.subr.bf16.mxu0 0
    %1939 = vmatpush1.bf16.msra.mxu0 0
    %1940 = vmatprep.subr.bf16.mxu0 0
    %1941 = vmatpush1.bf16.msra.mxu0 0
    %1942 = vmatprep.subr.bf16.mxu0 0
    %1943 = vmatpush1.bf16.msra.mxu0 0
    %1944 = vmatprep.mubr.bf16.mxu0 0
    %1945 = vmatmul.mubr.bf16.gmra.mrb[0].mxu0 %v1776
    %v1946 = vpop.f32.mrb[0].mxu0
    %v1947 = vadd.f32 %v323, %v1946
    %v1948 = vpop.f32.mrb[0].mxu0
    %v1949 = vpop.f32.mrb[0].mxu0
    %v1950 = vpop.f32.mrb[0].mxu0
    %1951 = vdwg.mxu0
    %1952 = vmatprep.subr.bf16.mxu0 0
    %1953 = vmatpush1.bf16.msra.mxu0 %v385
    %1954 = vmatprep.subr.bf16.mxu0 0
    %1955 = vmatpush1.bf16.msra.mxu0 %v386
    %1956 = vmatprep.subr.bf16.mxu0 0
    %1957 = vmatpush1.bf16.msra.mxu0 0
    %1958 = vmatprep.subr.bf16.mxu0 0
    %1959 = vmatpush1.bf16.msra.mxu0 0
    %1960 = vmatprep.subr.bf16.mxu0 0
    %1961 = vmatpush1.bf16.msra.mxu0 0
    %1962 = vmatprep.subr.bf16.mxu0 0
    %1963 = vmatpush1.bf16.msra.mxu0 0
    %1964 = vmatprep.subr.bf16.mxu0 0
    %1965 = vmatpush1.bf16.msra.mxu0 0
    %1966 = vmatprep.subr.bf16.mxu0 0
    %1967 = vmatpush1.bf16.msra.mxu0 0
    %1968 = vmatprep.subr.bf16.mxu0 0
    %1969 = vmatpush1.bf16.msra.mxu0 0
    %1970 = vmatprep.subr.bf16.mxu0 0
    %1971 = vmatpush1.bf16.msra.mxu0 0
    %1972 = vmatprep.subr.bf16.mxu0 0
    %1973 = vmatpush1.bf16.msra.mxu0 0
    %1974 = vmatprep.subr.bf16.mxu0 0
    %1975 = vmatpush1.bf16.msra.mxu0 0
    %1976 = vmatprep.subr.bf16.mxu0 0
    %1977 = vmatpush1.bf16.msra.mxu0 0
    %1978 = vmatprep.subr.bf16.mxu0 0
    %1979 = vmatpush1.bf16.msra.mxu0 0
    %1980 = vmatprep.subr.bf16.mxu0 0
    %1981 = vmatpush1.bf16.msra.mxu0 0
    %1982 = vmatprep.subr.bf16.mxu0 0
    %1983 = vmatpush1.bf16.msra.mxu0 0
    %1984 = vmatprep.mubr.bf16.mxu0 0
    %1985 = vmatmul.mubr.bf16.gmra.mrb[0].mxu0 %v1245
    %v1986 = vpop.f32.mrb[0].mxu0
    %v1987 = vadd.f32 %v375, %v1986
    %v1988 = vpop.f32.mrb[0].mxu0
    %v1989 = vpop.f32.mrb[0].mxu0
    %v1990 = vpop.f32.mrb[0].mxu0
    %1991 = vdwg.mxu0
    %v1992 = vmul.f32 %v1824, %v1987
    %v1993 = vadd.f32 %v1947, %v1992
    %v1994 = vtanh.pop %v1993
    %v1995 = vsub.f32 1.0, %v1911
    %v1996 = vmul.f32 %v1995, %v1994
    %v1997 = vmul.f32 %v1911, %v1242
    %v1998 = vadd.f32 %v1996, %v1997
    %v1999 = vpack.c.bf16 %v1998, %v1998
    %v2001 = vsel %vm101, %v1999, 0
    %2003 = vmatprep.subr.bf16.mxu0 0
    %2004 = vmatpush1.bf16.msra.mxu0 %v445
    %2005 = vmatprep.subr.bf16.mxu0 0
    %2006 = vmatpush1.bf16.msra.mxu0 %v446
    %2007 = vmatprep.subr.bf16.mxu0 0
    %2008 = vmatpush1.bf16.msra.mxu0 0
    %2009 = vmatprep.subr.bf16.mxu0 0
    %2010 = vmatpush1.bf16.msra.mxu0 0
    %2011 = vmatprep.subr.bf16.mxu0 0
    %2012 = vmatpush1.bf16.msra.mxu0 0
    %2013 = vmatprep.subr.bf16.mxu0 0
    %2014 = vmatpush1.bf16.msra.mxu0 0
    %2015 = vmatprep.subr.bf16.mxu0 0
    %2016 = vmatpush1.bf16.msra.mxu0 0
    %2017 = vmatprep.subr.bf16.mxu0 0
    %2018 = vmatpush1.bf16.msra.mxu0 0
    %2019 = vmatprep.subr.bf16.mxu0 0
    %2020 = vmatpush1.bf16.msra.mxu0 0
    %2021 = vmatprep.subr.bf16.mxu0 0
    %2022 = vmatpush1.bf16.msra.mxu0 0
    %2023 = vmatprep.subr.bf16.mxu0 0
    %2024 = vmatpush1.bf16.msra.mxu0 0
    %2025 = vmatprep.subr.bf16.mxu0 0
    %2026 = vmatpush1.bf16.msra.mxu0 0
    %2027 = vmatprep.subr.bf16.mxu0 0
    %2028 = vmatpush1.bf16.msra.mxu0 0
    %2029 = vmatprep.subr.bf16.mxu0 0
    %2030 = vmatpush1.bf16.msra.mxu0 0
    %2031 = vmatprep.subr.bf16.mxu0 0
    %2032 = vmatpush1.bf16.msra.mxu0 0
    %2033 = vmatprep.subr.bf16.mxu0 0
    %2034 = vmatpush1.bf16.msra.mxu0 0
    %2035 = vmatprep.mubr.bf16.mxu0 0
    %2036 = vmatmul.mubr.bf16.gmra.mrb[0].mxu0 %v2001
    %v2037 = vpop.f32.mrb[0].mxu0
    %v2038 = vadd.f32 0.0, %v2037
    %v2039 = vpop.f32.mrb[0].mxu0
    %v2040 = vpop.f32.mrb[0].mxu0
    %v2041 = vpop.f32.mrb[0].mxu0
    %2042 = vdwg.mxu0
    %v2045 = vunpack.c.l.s4 1966171168
    %v2046 = vunpack.c.0.s8 %v2045
    %v2047 = vlaneseq
    %v2048 = vshrl.u32 %v2047, 7
    %v2049 = vsub.s32 %v2046, %v2048
    %v2050 = vrot.slane %v2038, %v2049
    %v2051 = vcombine.high %v2050, %v2050
    %v2053 = vunpack.c.l.s4 1966171168
    %v2054 = vunpack.c.0.s8 %v2053
    %v2055 = vlaneseq
    %v2056 = vshrl.u32 %v2055, 7
    %v2057 = vsub.s32 %v2054, %v2056
    %v2058 = vrot.slane %v2050, %v2057
    %v2060 = vunpack.c.l.s4 1966171168
    %v2061 = vunpack.c.0.s8 %v2060
    %v2062 = vlaneseq
    %v2063 = vshrl.u32 %v2062, 7
    %v2064 = vsub.s32 %v2061, %v2063
    %v2065 = vrot.slane %v2051, %v2064
    %v2066 = vlaneseq
    %v2067 = vshrl.u32 %v2066, 7
    %v2068 = vsub.s32 0, %v2067
    %v2069 = vrot.slane %v2058, %v2068
    %v2070 = vlaneseq
    %v2071 = vshrl.u32 %v2070, 7
    %v2072 = vsub.s32 0, %v2071
    %v2073 = vrot.slane %v2065, %v2072
    %v2076 = vmul.f32 %v2069, %v43
    %v2077 = vmul.f32 %v2073, %v44
    %v2078 = vsel %vm151, %v2076, 0.0
    %2079 = vadd.xlane.f32.xlu0 %v2078
    %v2080 = vpop.xlane.xlu0 %2079
    %v2081 = vsel %vm151, %v2077, 0.0
    %2082 = vadd.xlane.f32.xlu0 %v2081
    %v2083 = vpop.xlane.xlu0 %2082
    %v2086 = vlaneseq
    %v2087 = vshrl.u32 %v2086, 7
    %v2088 = vsub.s32 %v79, %v2087
    %v2089 = vrot.slane %v2080, %v2088
    %v2090 = vlaneseq
    %v2091 = vshrl.u32 %v2090, 7
    %v2092 = vsub.s32 %v79, %v2091
    %v2093 = vrot.slane %v2083, %v2092
    %v2094 = vsel %vm543, %v2093, %v2089
    %v2096 = vsel %vm546, %v2094, -inf
    %2097 = vmax.xlane.f32.xlu0 %v2096
    %v2098 = vpop.xlane.xlu0 %2097
    %v2100 = vlaneseq
    %v2101 = vshrl.u32 %v2100, 7
    %v2102 = vsub.s32 0, %v2101
    %v2103 = vrot.slane %v2098, %v2102
    %v2104 = vlaneseq
    %v2105 = vshrl.u32 %v2104, 7
    %v2106 = vsub.s32 1, %v2105
    %v2107 = vrot.slane %v2098, %v2106
    %v2110 = vsub.f32 %v2080, %v2103
    %v2111 = vsub.f32 %v2083, %v2107
    %v2112 = vmul.f32 %v2110, 1.442695
    %v2113 = vpow.pop %v2112
    %v2114 = vmul.f32 %v2111, 1.442695
    %v2115 = vpow.pop %v2114
    %2118 = vset.pattern.permute.xlu0 0
    %2119 = vperm.xlu0 %2118, %v2113
    %v2120 = vpop.permute.xlu0 %2119
    %2121 = vset.pattern.permute.xlu0 0
    %2122 = vperm.xlu0 %2121, %v2115
    %v2123 = vpop.permute.xlu0 %2122
    %v2124 = vlaneseq
    %v2125 = vshrl.u32 %v2124, 7
    %v2126 = vsub.s32 %v79, %v2125
    %v2127 = vrot.slane %v2120, %v2126
    %v2128 = vlaneseq
    %v2129 = vshrl.u32 %v2128, 7
    %v2130 = vsub.s32 %v79, %v2129
    %v2131 = vrot.slane %v2123, %v2130
    %v2132 = vsel %vm543, %v2131, %v2127
    %v2134 = vsel %vm546, %v2132, 0.0
    %2135 = vadd.xlane.f32.xlu0 %v2134
    %v2136 = vpop.xlane.xlu0 %2135
    %v2138 = vlaneseq
    %v2139 = vshrl.u32 %v2138, 7
    %v2140 = vsub.s32 0, %v2139
    %v2141 = vrot.slane %v2136, %v2140
    %v2142 = vlaneseq
    %v2143 = vshrl.u32 %v2142, 7
    %v2144 = vsub.s32 1, %v2143
    %v2145 = vrot.slane %v2136, %v2144
    %v2148 = vrcp.pop %v2141
    %v2149 = vmul.f32 %v2113, %v2148
    %v2150 = vrcp.pop %v2145
    %v2151 = vmul.f32 %v2115, %v2150
    %v2152 = vpack.c.bf16 %v2149, %v2149
    %v2153 = vpack.c.bf16 %v2151, %v2151
    %v2155 = vunpack.c.l.b16 %v2152
    %2156 = vset.pattern.permute.xlu0 0
    %2157 = vperm.xlu0 %2156, %v2155
    %v2158 = vpop.permute.xlu0 %2157
    %v2159 = vlaneseq
    %v2160 = vshrl.u32 %v2159, 7
    %v2161 = vsub.s32 %v79, %v2160
    %v2162 = vrot.slane %v2158, %v2161
    %v2163 = vpack.c.b16 %v2162, %v2162
    %v2165 = vsel %vm615, %v2163, 0
    %2167 = vmatprep.subr.bf16.mxu0 0
    %2168 = vmatpush1.bf16.msra.mxu0 %v621
    %2169 = vmatprep.subr.bf16.mxu0 0
    %2170 = vmatpush1.bf16.msra.mxu0 0
    %2171 = vmatprep.subr.bf16.mxu0 0
    %2172 = vmatpush1.bf16.msra.mxu0 0
    %2173 = vmatprep.subr.bf16.mxu0 0
    %2174 = vmatpush1.bf16.msra.mxu0 0
    %2175 = vmatprep.subr.bf16.mxu0 0
    %2176 = vmatpush1.bf16.msra.mxu0 0
    %2177 = vmatprep.subr.bf16.mxu0 0
    %2178 = vmatpush1.bf16.msra.mxu0 0
    %2179 = vmatprep.subr.bf16.mxu0 0
    %2180 = vmatpush1.bf16.msra.mxu0 0
    %2181 = vmatprep.subr.bf16.mxu0 0
    %2182 = vmatpush1.bf16.msra.mxu0 0
    %2183 = vmatprep.subr.bf16.mxu0 0
    %2184 = vmatpush1.bf16.msra.mxu0 0
    %2185 = vmatprep.subr.bf16.mxu0 0
    %2186 = vmatpush1.bf16.msra.mxu0 0
    %2187 = vmatprep.subr.bf16.mxu0 0
    %2188 = vmatpush1.bf16.msra.mxu0 0
    %2189 = vmatprep.subr.bf16.mxu0 0
    %2190 = vmatpush1.bf16.msra.mxu0 0
    %2191 = vmatprep.subr.bf16.mxu0 0
    %2192 = vmatpush1.bf16.msra.mxu0 0
    %2193 = vmatprep.subr.bf16.mxu0 0
    %2194 = vmatpush1.bf16.msra.mxu0 0
    %2195 = vmatprep.subr.bf16.mxu0 0
    %2196 = vmatpush1.bf16.msra.mxu0 0
    %2197 = vmatprep.subr.bf16.mxu0 0
    %2198 = vmatpush1.bf16.msra.mxu0 0
    %2199 = vmatprep.mubr.bf16.mxu0 0
    %2200 = vmatmul.mubr.bf16.gmra.mrb[0].mxu0 %v2165
    %v2201 = vpop.f32.mrb[0].mxu0
    %v2202 = vadd.f32 0.0, %v2201
    %v2203 = vpop.f32.mrb[0].mxu0
    %v2204 = vpop.f32.mrb[0].mxu0
    %v2205 = vpop.f32.mrb[0].mxu0
    %2206 = vdwg.mxu0
    %v2208 = vunpack.c.l.b16 %v2153
    %2209 = vset.pattern.permute.xlu0 0
    %2210 = vperm.xlu0 %2209, %v2208
    %v2211 = vpop.permute.xlu0 %2210
    %v2212 = vlaneseq
    %v2213 = vshrl.u32 %v2212, 7
    %v2214 = vsub.s32 %v79, %v2213
    %v2215 = vrot.slane %v2211, %v2214
    %v2216 = vpack.c.b16 %v2215, %v2215
    %v2218 = vsel %vm615, %v2216, 0
    %2220 = vmatprep.subr.bf16.mxu0 0
    %2221 = vmatpush1.bf16.msra.mxu0 %v677
    %2222 = vmatprep.subr.bf16.mxu0 0
    %2223 = vmatpush1.bf16.msra.mxu0 0
    %2224 = vmatprep.subr.bf16.mxu0 0
    %2225 = vmatpush1.bf16.msra.mxu0 0
    %2226 = vmatprep.subr.bf16.mxu0 0
    %2227 = vmatpush1.bf16.msra.mxu0 0
    %2228 = vmatprep.subr.bf16.mxu0 0
    %2229 = vmatpush1.bf16.msra.mxu0 0
    %2230 = vmatprep.subr.bf16.mxu0 0
    %2231 = vmatpush1.bf16.msra.mxu0 0
    %2232 = vmatprep.subr.bf16.mxu0 0
    %2233 = vmatpush1.bf16.msra.mxu0 0
    %2234 = vmatprep.subr.bf16.mxu0 0
    %2235 = vmatpush1.bf16.msra.mxu0 0
    %2236 = vmatprep.subr.bf16.mxu0 0
    %2237 = vmatpush1.bf16.msra.mxu0 0
    %2238 = vmatprep.subr.bf16.mxu0 0
    %2239 = vmatpush1.bf16.msra.mxu0 0
    %2240 = vmatprep.subr.bf16.mxu0 0
    %2241 = vmatpush1.bf16.msra.mxu0 0
    %2242 = vmatprep.subr.bf16.mxu0 0
    %2243 = vmatpush1.bf16.msra.mxu0 0
    %2244 = vmatprep.subr.bf16.mxu0 0
    %2245 = vmatpush1.bf16.msra.mxu0 0
    %2246 = vmatprep.subr.bf16.mxu0 0
    %2247 = vmatpush1.bf16.msra.mxu0 0
    %2248 = vmatprep.subr.bf16.mxu0 0
    %2249 = vmatpush1.bf16.msra.mxu0 0
    %2250 = vmatprep.subr.bf16.mxu0 0
    %2251 = vmatpush1.bf16.msra.mxu0 0
    %2252 = vmatprep.mubr.bf16.mxu0 0
    %2253 = vmatmul.mubr.bf16.gmra.mrb[0].mxu0 %v2218
    %v2254 = vpop.f32.mrb[0].mxu0
    %v2255 = vadd.f32 0.0, %v2254
    %v2256 = vpop.f32.mrb[0].mxu0
    %v2257 = vpop.f32.mrb[0].mxu0
    %v2258 = vpop.f32.mrb[0].mxu0
    %2259 = vdwg.mxu0
    %v2260 = vpack.c.bf16 %v2202, %v2202
    %v2261 = vpack.c.bf16 %v2255, %v2255
    %v2262 = vpack.c.bf16 %v2038, %v2038
    %v2264 = vsel %vm151, %v2262, 0
    %2266 = vmatprep.subr.bf16.mxu0 0
    %2267 = vmatpush1.bf16.msra.mxu0 %v726
    %2268 = vmatprep.subr.bf16.mxu0 0
    %2269 = vmatpush1.bf16.msra.mxu0 0
    %2270 = vmatprep.subr.bf16.mxu0 0
    %2271 = vmatpush1.bf16.msra.mxu0 0
    %2272 = vmatprep.subr.bf16.mxu0 0
    %2273 = vmatpush1.bf16.msra.mxu0 0
    %2274 = vmatprep.subr.bf16.mxu0 0
    %2275 = vmatpush1.bf16.msra.mxu0 0
    %2276 = vmatprep.subr.bf16.mxu0 0
    %2277 = vmatpush1.bf16.msra.mxu0 0
    %2278 = vmatprep.subr.bf16.mxu0 0
    %2279 = vmatpush1.bf16.msra.mxu0 0
    %2280 = vmatprep.subr.bf16.mxu0 0
    %2281 = vmatpush1.bf16.msra.mxu0 0
    %2282 = vmatprep.subr.bf16.mxu0 0
    %2283 = vmatpush1.bf16.msra.mxu0 0
    %2284 = vmatprep.subr.bf16.mxu0 0
    %2285 = vmatpush1.bf16.msra.mxu0 0
    %2286 = vmatprep.subr.bf16.mxu0 0
    %2287 = vmatpush1.bf16.msra.mxu0 0
    %2288 = vmatprep.subr.bf16.mxu0 0
    %2289 = vmatpush1.bf16.msra.mxu0 0
    %2290 = vmatprep.subr.bf16.mxu0 0
    %2291 = vmatpush1.bf16.msra.mxu0 0
    %2292 = vmatprep.subr.bf16.mxu0 0
    %2293 = vmatpush1.bf16.msra.mxu0 0
    %2294 = vmatprep.subr.bf16.mxu0 0
    %2295 = vmatpush1.bf16.msra.mxu0 0
    %2296 = vmatprep.subr.bf16.mxu0 0
    %2297 = vmatpush1.bf16.msra.mxu0 0
    %2298 = vmatprep.mubr.bf16.mxu0 0
    %2299 = vmatmul.mubr.bf16.gmra.mrb[0].mxu0 %v2264
    %v2300 = vpop.f32.mrb[0].mxu0
    %v2301 = vadd.f32 0.0, %v2300
    %v2302 = vpop.f32.mrb[0].mxu0
    %v2303 = vpop.f32.mrb[0].mxu0
    %v2304 = vpop.f32.mrb[0].mxu0
    %2305 = vdwg.mxu0
    %v2308 = vunpack.c.l.b16 %v2260
    %v2309 = vunpack.c.l.b16 %v2261
    %v2310 = vrot.slane %v2309, 7
    %v2311 = vsel %vm543, %v2310, %v2308
    %v2312 = vpack.c.b16 %v2311, %v2311
    %v2314 = vsel %vm151, %v2312, 0
    %2316 = vmatprep.subr.bf16.mxu0 0
    %2317 = vmatpush1.bf16.msra.mxu0 %v782
    %2318 = vmatprep.subr.bf16.mxu0 0
    %2319 = vmatpush1.bf16.msra.mxu0 0
    %2320 = vmatprep.subr.bf16.mxu0 0
    %2321 = vmatpush1.bf16.msra.mxu0 0
    %2322 = vmatprep.subr.bf16.mxu0 0
    %2323 = vmatpush1.bf16.msra.mxu0 0
    %2324 = vmatprep.subr.bf16.mxu0 0
    %2325 = vmatpush1.bf16.msra.mxu0 0
    %2326 = vmatprep.subr.bf16.mxu0 0
    %2327 = vmatpush1.bf16.msra.mxu0 0
    %2328 = vmatprep.subr.bf16.mxu0 0
    %2329 = vmatpush1.bf16.msra.mxu0 0
    %2330 = vmatprep.subr.bf16.mxu0 0
    %2331 = vmatpush1.bf16.msra.mxu0 0
    %2332 = vmatprep.subr.bf16.mxu0 0
    %2333 = vmatpush1.bf16.msra.mxu0 0
    %2334 = vmatprep.subr.bf16.mxu0 0
    %2335 = vmatpush1.bf16.msra.mxu0 0
    %2336 = vmatprep.subr.bf16.mxu0 0
    %2337 = vmatpush1.bf16.msra.mxu0 0
    %2338 = vmatprep.subr.bf16.mxu0 0
    %2339 = vmatpush1.bf16.msra.mxu0 0
    %2340 = vmatprep.subr.bf16.mxu0 0
    %2341 = vmatpush1.bf16.msra.mxu0 0
    %2342 = vmatprep.subr.bf16.mxu0 0
    %2343 = vmatpush1.bf16.msra.mxu0 0
    %2344 = vmatprep.subr.bf16.mxu0 0
    %2345 = vmatpush1.bf16.msra.mxu0 0
    %2346 = vmatprep.subr.bf16.mxu0 0
    %2347 = vmatpush1.bf16.msra.mxu0 0
    %2348 = vmatprep.mubr.bf16.mxu0 0
    %2349 = vmatmul.mubr.bf16.gmra.mrb[0].mxu0 %v2314
    %v2350 = vpop.f32.mrb[0].mxu0
    %v2351 = vadd.f32 %v2301, %v2350
    %v2352 = vpop.f32.mrb[0].mxu0
    %v2353 = vpop.f32.mrb[0].mxu0
    %v2354 = vpop.f32.mrb[0].mxu0
    %2355 = vdwg.mxu0
    %v2356 = vtanh.pop %v2351
    %v2357 = vpack.c.bf16 %v2356, %v2356
    %v2359 = vsel %vm151, %v2357, 0
    %2361 = vmatprep.subr.bf16.mxu0 0
    %2362 = vmatpush1.bf16.xpose.msra.mxu0 %v843
    %2363 = vmatprep.subr.bf16.mxu0 0
    %2364 = vmatpush1.bf16.xpose.msra.mxu0 %v846
    %2365 = vmatprep.subr.bf16.mxu0 0
    %2366 = vmatpush1.bf16.xpose.msra.mxu0 0
    %2367 = vmatprep.subr.bf16.mxu0 0
    %2368 = vmatpush1.bf16.xpose.msra.mxu0 0
    %2369 = vmatprep.subr.bf16.mxu0 0
    %2370 = vmatpush1.bf16.xpose.msra.mxu0 0
    %2371 = vmatprep.subr.bf16.mxu0 0
    %2372 = vmatpush1.bf16.xpose.msra.mxu0 0
    %2373 = vmatprep.subr.bf16.mxu0 0
    %2374 = vmatpush1.bf16.xpose.msra.mxu0 0
    %2375 = vmatprep.subr.bf16.mxu0 0
    %2376 = vmatpush1.bf16.xpose.msra.mxu0 0
    %2377 = vmatprep.subr.bf16.mxu0 0
    %2378 = vmatpush1.bf16.xpose.msra.mxu0 0
    %2379 = vmatprep.subr.bf16.mxu0 0
    %2380 = vmatpush1.bf16.xpose.msra.mxu0 0
    %2381 = vmatprep.subr.bf16.mxu0 0
    %2382 = vmatpush1.bf16.xpose.msra.mxu0 0
    %2383 = vmatprep.subr.bf16.mxu0 0
    %2384 = vmatpush1.bf16.xpose.msra.mxu0 0
    %2385 = vmatprep.subr.bf16.mxu0 0
    %2386 = vmatpush1.bf16.xpose.msra.mxu0 0
    %2387 = vmatprep.subr.bf16.mxu0 0
    %2388 = vmatpush1.bf16.xpose.msra.mxu0 0
    %2389 = vmatprep.subr.bf16.mxu0 0
    %2390 = vmatpush1.bf16.xpose.msra.mxu0 0
    %2391 = vmatprep.subr.bf16.mxu0 0
    %2392 = vmatpush1.bf16.xpose.msra.mxu0 0
    %2393 = vmatprep.mubr.bf16.mxu0 0
    %2394 = vmatmul.mubr.bf16.gmra.mrb[0].mxu0 %v2359
    %v2395 = vpop.f32.mrb[0].mxu0
    %v2396 = vadd.f32 0.0, %v2395
    %v2397 = vpop.f32.mrb[0].mxu0
    %v2398 = vpop.f32.mrb[0].mxu0
    %v2399 = vpop.f32.mrb[0].mxu0
    %2400 = vdwg.mxu0
    %s2401 = scalar_lea.vmem [#allocation2], 4
    %2402 = vst.msk [vmem:[%s2401] sm:$0x3] %vm888, %v2396
    %2405 = vset.pattern.permute.xlu0 0
    %2406 = vperm.xlu0 %2405, %v2149
    %v2407 = vpop.permute.xlu0 %2406
    %2408 = vset.pattern.permute.xlu0 0
    %2409 = vperm.xlu0 %2408, %v2151
    %v2410 = vpop.permute.xlu0 %2409
    %v2411 = vlaneseq
    %v2412 = vshrl.u32 %v2411, 7
    %v2413 = vsub.s32 %v79, %v2412
    %v2414 = vrot.slane %v2407, %v2413
    %v2415 = vlaneseq
    %v2416 = vshrl.u32 %v2415, 7
    %v2417 = vsub.s32 %v79, %v2416
    %v2418 = vrot.slane %v2410, %v2417
    %v2419 = vsel %vm543, %v2418, %v2414
    %s2421 = scalar_lea.vmem [#allocation4], 4
    %2422 = vst.msk [vmem:[%s2421] sm:$0x3] %vm546, %v2419
    %v2423 = vsel %vm888, %v2396, -inf
    %2424 = vmax.xlane.f32.xlu0 %v2423
    %v2425 = vpop.xlane.xlu0 %2424
    %vm2426 = vcmp.eq.f32.partialorder %v2396, %v2425
    %v2427 = vsel %vm2426, %v79, 32
    %v2428 = vsel %vm888, %v2427, 2147483647
    %v2429 = vand.u32 %v2428, 65535
    %v2430 = vshra.s32 %v2428, 16
    %v2431 = vcvt.s32.f32 %v2429
    %v2432 = vcvt.s32.f32 %v2430
    %2433 = vmin.xlane.f32.xlu0 %v2432
    %v2434 = vpop.xlane.xlu0 %2433
    %vm2435 = vcmp.eq.f32.partialorder %v2432, %v2434
    %v2436 = vsel %vm2435, %v2431, inf
    %2437 = vmin.xlane.f32.xlu0 %v2436
    %v2438 = vpop.xlane.xlu0 %2437
    %v2439 = vcvt.f32.s32 %v2438
    %v2440 = vcvt.f32.s32 %v2434
    %v2441 = vshll.u32 %v2440, 16
    %v2442 = vadd.s32 %v2441, %v2439
    %vm2443 = vcmp.eq.s32.totalorder %v79, %v2442
    %v2444 = vsel %vm2443, 1, 0
    %v2445 = vcvt.s32.f32 %v2444
    %v2446 = vpack.c.bf16 %v2445, %v2445
    %v2448 = vsel %vm101, %v2446, 0
    %2450 = vmatprep.subr.bf16.mxu0 0
    %2451 = vmatpush1.bf16.msra.mxu0 %v837
    %2452 = vmatprep.subr.bf16.mxu0 0
    %2453 = vmatpush1.bf16.msra.mxu0 %v838
    %2454 = vmatprep.subr.bf16.mxu0 0
    %2455 = vmatpush1.bf16.msra.mxu0 0
    %2456 = vmatprep.subr.bf16.mxu0 0
    %2457 = vmatpush1.bf16.msra.mxu0 0
    %2458 = vmatprep.subr.bf16.mxu0 0
    %2459 = vmatpush1.bf16.msra.mxu0 0
    %2460 = vmatprep.subr.bf16.mxu0 0
    %2461 = vmatpush1.bf16.msra.mxu0 0
    %2462 = vmatprep.subr.bf16.mxu0 0
    %2463 = vmatpush1.bf16.msra.mxu0 0
    %2464 = vmatprep.subr.bf16.mxu0 0
    %2465 = vmatpush1.bf16.msra.mxu0 0
    %2466 = vmatprep.subr.bf16.mxu0 0
    %2467 = vmatpush1.bf16.msra.mxu0 0
    %2468 = vmatprep.subr.bf16.mxu0 0
    %2469 = vmatpush1.bf16.msra.mxu0 0
    %2470 = vmatprep.subr.bf16.mxu0 0
    %2471 = vmatpush1.bf16.msra.mxu0 0
    %2472 = vmatprep.subr.bf16.mxu0 0
    %2473 = vmatpush1.bf16.msra.mxu0 0
    %2474 = vmatprep.subr.bf16.mxu0 0
    %2475 = vmatpush1.bf16.msra.mxu0 0
    %2476 = vmatprep.subr.bf16.mxu0 0
    %2477 = vmatpush1.bf16.msra.mxu0 0
    %2478 = vmatprep.subr.bf16.mxu0 0
    %2479 = vmatpush1.bf16.msra.mxu0 0
    %2480 = vmatprep.subr.bf16.mxu0 0
    %2481 = vmatpush1.bf16.msra.mxu0 0
    %2482 = vmatprep.mubr.bf16.mxu0 0
    %2483 = vmatmul.mubr.bf16.gmra.mrb[0].mxu0 %v2448
    %v2484 = vpop.f32.mrb[0].mxu0
    %v2485 = vadd.f32 0.0, %v2484
    %v2486 = vpop.f32.mrb[0].mxu0
    %v2487 = vpop.f32.mrb[0].mxu0
    %v2488 = vpop.f32.mrb[0].mxu0
    %2489 = vdwg.mxu0
    %v2490 = vpack.c.bf16 %v2485, %v2485
    %2491 = vmatprep.subr.bf16.mxu0 0
    %2492 = vmatpush1.bf16.msra.mxu0 %v97
    %2493 = vmatprep.subr.bf16.mxu0 0
    %2494 = vmatpush1.bf16.msra.mxu0 %v98
    %2495 = vmatprep.subr.bf16.mxu0 0
    %2496 = vmatpush1.bf16.msra.mxu0 0
    %2497 = vmatprep.subr.bf16.mxu0 0
    %2498 = vmatpush1.bf16.msra.mxu0 0
    %2499 = vmatprep.subr.bf16.mxu0 0
    %2500 = vmatpush1.bf16.msra.mxu0 0
    %2501 = vmatprep.subr.bf16.mxu0 0
    %2502 = vmatpush1.bf16.msra.mxu0 0
    %2503 = vmatprep.subr.bf16.mxu0 0
    %2504 = vmatpush1.bf16.msra.mxu0 0
    %2505 = vmatprep.subr.bf16.mxu0 0
    %2506 = vmatpush1.bf16.msra.mxu0 0
    %2507 = vmatprep.subr.bf16.mxu0 0
    %2508 = vmatpush1.bf16.msra.mxu0 0
    %2509 = vmatprep.subr.bf16.mxu0 0
    %2510 = vmatpush1.bf16.msra.mxu0 0
    %2511 = vmatprep.subr.bf16.mxu0 0
    %2512 = vmatpush1.bf16.msra.mxu0 0
    %2513 = vmatprep.subr.bf16.mxu0 0
    %2514 = vmatpush1.bf16.msra.mxu0 0
    %2515 = vmatprep.subr.bf16.mxu0 0
    %2516 = vmatpush1.bf16.msra.mxu0 0
    %2517 = vmatprep.subr.bf16.mxu0 0
    %2518 = vmatpush1.bf16.msra.mxu0 0
    %2519 = vmatprep.subr.bf16.mxu0 0
    %2520 = vmatpush1.bf16.msra.mxu0 0
    %2521 = vmatprep.subr.bf16.mxu0 0
    %2522 = vmatpush1.bf16.msra.mxu0 0
    %2523 = vmatprep.mubr.bf16.mxu0 0
    %2524 = vmatmul.mubr.bf16.gmra.mrb[0].mxu0 %v2001
    %v2525 = vpop.f32.mrb[0].mxu0
    %v2526 = vadd.f32 0.0, %v2525
    %v2527 = vpop.f32.mrb[0].mxu0
    %v2528 = vpop.f32.mrb[0].mxu0
    %v2529 = vpop.f32.mrb[0].mxu0
    %2530 = vdwg.mxu0
    %v2532 = vsel %vm151, %v2490, 0
    %2534 = vmatprep.subr.bf16.mxu0 0
    %2535 = vmatpush1.bf16.msra.mxu0 %v149
    %2536 = vmatprep.subr.bf16.mxu0 0
    %2537 = vmatpush1.bf16.msra.mxu0 0
    %2538 = vmatprep.subr.bf16.mxu0 0
    %2539 = vmatpush1.bf16.msra.mxu0 0
    %2540 = vmatprep.subr.bf16.mxu0 0
    %2541 = vmatpush1.bf16.msra.mxu0 0
    %2542 = vmatprep.subr.bf16.mxu0 0
    %2543 = vmatpush1.bf16.msra.mxu0 0
    %2544 = vmatprep.subr.bf16.mxu0 0
    %2545 = vmatpush1.bf16.msra.mxu0 0
    %2546 = vmatprep.subr.bf16.mxu0 0
    %2547 = vmatpush1.bf16.msra.mxu0 0
    %2548 = vmatprep.subr.bf16.mxu0 0
    %2549 = vmatpush1.bf16.msra.mxu0 0
    %2550 = vmatprep.subr.bf16.mxu0 0
    %2551 = vmatpush1.bf16.msra.mxu0 0
    %2552 = vmatprep.subr.bf16.mxu0 0
    %2553 = vmatpush1.bf16.msra.mxu0 0
    %2554 = vmatprep.subr.bf16.mxu0 0
    %2555 = vmatpush1.bf16.msra.mxu0 0
    %2556 = vmatprep.subr.bf16.mxu0 0
    %2557 = vmatpush1.bf16.msra.mxu0 0
    %2558 = vmatprep.subr.bf16.mxu0 0
    %2559 = vmatpush1.bf16.msra.mxu0 0
    %2560 = vmatprep.subr.bf16.mxu0 0
    %2561 = vmatpush1.bf16.msra.mxu0 0
    %2562 = vmatprep.subr.bf16.mxu0 0
    %2563 = vmatpush1.bf16.msra.mxu0 0
    %2564 = vmatprep.subr.bf16.mxu0 0
    %2565 = vmatpush1.bf16.msra.mxu0 0
    %2566 = vmatprep.mubr.bf16.mxu0 0
    %2567 = vmatmul.mubr.bf16.gmra.mrb[0].mxu0 %v2532
    %v2568 = vpop.f32.mrb[0].mxu0
    %v2569 = vadd.f32 %v2526, %v2568
    %v2570 = vpop.f32.mrb[0].mxu0
    %v2571 = vpop.f32.mrb[0].mxu0
    %v2572 = vpop.f32.mrb[0].mxu0
    %2573 = vdwg.mxu0
    %v2574 = vadd.f32 %v2569, %v199
    %v2575 = vxor.u32 %v2574, 2147483648
    %v2576 = vmul.f32 %v2575, 1.442695
    %v2577 = vpow.pop %v2576
    %v2578 = vadd.f32 %v2577, 1.0
    %v2579 = vrcp.pop %v2578
    %v2580 = vmul.f32 1.0, %v2579
    %2581 = vmatprep.subr.bf16.mxu0 0
    %2582 = vmatpush1.bf16.msra.mxu0 %v216
    %2583 = vmatprep.subr.bf16.mxu0 0
    %2584 = vmatpush1.bf16.msra.mxu0 %v217
    %2585 = vmatprep.subr.bf16.mxu0 0
    %2586 = vmatpush1.bf16.msra.mxu0 0
    %2587 = vmatprep.subr.bf16.mxu0 0
    %2588 = vmatpush1.bf16.msra.mxu0 0
    %2589 = vmatprep.subr.bf16.mxu0 0
    %2590 = vmatpush1.bf16.msra.mxu0 0
    %2591 = vmatprep.subr.bf16.mxu0 0
    %2592 = vmatpush1.bf16.msra.mxu0 0
    %2593 = vmatprep.subr.bf16.mxu0 0
    %2594 = vmatpush1.bf16.msra.mxu0 0
    %2595 = vmatprep.subr.bf16.mxu0 0
    %2596 = vmatpush1.bf16.msra.mxu0 0
    %2597 = vmatprep.subr.bf16.mxu0 0
    %2598 = vmatpush1.bf16.msra.mxu0 0
    %2599 = vmatprep.subr.bf16.mxu0 0
    %2600 = vmatpush1.bf16.msra.mxu0 0
    %2601 = vmatprep.subr.bf16.mxu0 0
    %2602 = vmatpush1.bf16.msra.mxu0 0
    %2603 = vmatprep.subr.bf16.mxu0 0
    %2604 = vmatpush1.bf16.msra.mxu0 0
    %2605 = vmatprep.subr.bf16.mxu0 0
    %2606 = vmatpush1.bf16.msra.mxu0 0
    %2607 = vmatprep.subr.bf16.mxu0 0
    %2608 = vmatpush1.bf16.msra.mxu0 0
    %2609 = vmatprep.subr.bf16.mxu0 0
    %2610 = vmatpush1.bf16.msra.mxu0 0
    %2611 = vmatprep.subr.bf16.mxu0 0
    %2612 = vmatpush1.bf16.msra.mxu0 0
    %2613 = vmatprep.mubr.bf16.mxu0 0
    %2614 = vmatmul.mubr.bf16.gmra.mrb[0].mxu0 %v2001
    %v2615 = vpop.f32.mrb[0].mxu0
    %v2616 = vadd.f32 0.0, %v2615
    %v2617 = vpop.f32.mrb[0].mxu0
    %v2618 = vpop.f32.mrb[0].mxu0
    %v2619 = vpop.f32.mrb[0].mxu0
    %2620 = vdwg.mxu0
    %2621 = vmatprep.subr.bf16.mxu0 0
    %2622 = vmatpush1.bf16.msra.mxu0 %v264
    %2623 = vmatprep.subr.bf16.mxu0 0
    %2624 = vmatpush1.bf16.msra.mxu0 0
    %2625 = vmatprep.subr.bf16.mxu0 0
    %2626 = vmatpush1.bf16.msra.mxu0 0
    %2627 = vmatprep.subr.bf16.mxu0 0
    %2628 = vmatpush1.bf16.msra.mxu0 0
    %2629 = vmatprep.subr.bf16.mxu0 0
    %2630 = vmatpush1.bf16.msra.mxu0 0
    %2631 = vmatprep.subr.bf16.mxu0 0
    %2632 = vmatpush1.bf16.msra.mxu0 0
    %2633 = vmatprep.subr.bf16.mxu0 0
    %2634 = vmatpush1.bf16.msra.mxu0 0
    %2635 = vmatprep.subr.bf16.mxu0 0
    %2636 = vmatpush1.bf16.msra.mxu0 0
    %2637 = vmatprep.subr.bf16.mxu0 0
    %2638 = vmatpush1.bf16.msra.mxu0 0
    %2639 = vmatprep.subr.bf16.mxu0 0
    %2640 = vmatpush1.bf16.msra.mxu0 0
    %2641 = vmatprep.subr.bf16.mxu0 0
    %2642 = vmatpush1.bf16.msra.mxu0 0
    %2643 = vmatprep.subr.bf16.mxu0 0
    %2644 = vmatpush1.bf16.msra.mxu0 0
    %2645 = vmatprep.subr.bf16.mxu0 0
    %2646 = vmatpush1.bf16.msra.mxu0 0
    %2647 = vmatprep.subr.bf16.mxu0 0
    %2648 = vmatpush1.bf16.msra.mxu0 0
    %2649 = vmatprep.subr.bf16.mxu0 0
    %2650 = vmatpush1.bf16.msra.mxu0 0
    %2651 = vmatprep.subr.bf16.mxu0 0
    %2652 = vmatpush1.bf16.msra.mxu0 0
    %2653 = vmatprep.mubr.bf16.mxu0 0
    %2654 = vmatmul.mubr.bf16.gmra.mrb[0].mxu0 %v2532
    %v2655 = vpop.f32.mrb[0].mxu0
    %v2656 = vadd.f32 %v2616, %v2655
    %v2657 = vpop.f32.mrb[0].mxu0
    %v2658 = vpop.f32.mrb[0].mxu0
    %v2659 = vpop.f32.mrb[0].mxu0
    %2660 = vdwg.mxu0
    %v2661 = vadd.f32 %v2656, %v310
    %v2662 = vxor.u32 %v2661, 2147483648
    %v2663 = vmul.f32 %v2662, 1.442695
    %v2664 = vpow.pop %v2663
    %v2665 = vadd.f32 %v2664, 1.0
    %v2666 = vrcp.pop %v2665
    %v2667 = vmul.f32 1.0, %v2666
    %2668 = vmatprep.subr.bf16.mxu0 0
    %2669 = vmatpush1.bf16.msra.mxu0 %v329
    %2670 = vmatprep.subr.bf16.mxu0 0
    %2671 = vmatpush1.bf16.msra.mxu0 0
    %2672 = vmatprep.subr.bf16.mxu0 0
    %2673 = vmatpush1.bf16.msra.mxu0 0
    %2674 = vmatprep.subr.bf16.mxu0 0
    %2675 = vmatpush1.bf16.msra.mxu0 0
    %2676 = vmatprep.subr.bf16.mxu0 0
    %2677 = vmatpush1.bf16.msra.mxu0 0
    %2678 = vmatprep.subr.bf16.mxu0 0
    %2679 = vmatpush1.bf16.msra.mxu0 0
    %2680 = vmatprep.subr.bf16.mxu0 0
    %2681 = vmatpush1.bf16.msra.mxu0 0
    %2682 = vmatprep.subr.bf16.mxu0 0
    %2683 = vmatpush1.bf16.msra.mxu0 0
    %2684 = vmatprep.subr.bf16.mxu0 0
    %2685 = vmatpush1.bf16.msra.mxu0 0
    %2686 = vmatprep.subr.bf16.mxu0 0
    %2687 = vmatpush1.bf16.msra.mxu0 0
    %2688 = vmatprep.subr.bf16.mxu0 0
    %2689 = vmatpush1.bf16.msra.mxu0 0
    %2690 = vmatprep.subr.bf16.mxu0 0
    %2691 = vmatpush1.bf16.msra.mxu0 0
    %2692 = vmatprep.subr.bf16.mxu0 0
    %2693 = vmatpush1.bf16.msra.mxu0 0
    %2694 = vmatprep.subr.bf16.mxu0 0
    %2695 = vmatpush1.bf16.msra.mxu0 0
    %2696 = vmatprep.subr.bf16.mxu0 0
    %2697 = vmatpush1.bf16.msra.mxu0 0
    %2698 = vmatprep.subr.bf16.mxu0 0
    %2699 = vmatpush1.bf16.msra.mxu0 0
    %2700 = vmatprep.mubr.bf16.mxu0 0
    %2701 = vmatmul.mubr.bf16.gmra.mrb[0].mxu0 %v2532
    %v2702 = vpop.f32.mrb[0].mxu0
    %v2703 = vadd.f32 %v323, %v2702
    %v2704 = vpop.f32.mrb[0].mxu0
    %v2705 = vpop.f32.mrb[0].mxu0
    %v2706 = vpop.f32.mrb[0].mxu0
    %2707 = vdwg.mxu0
    %2708 = vmatprep.subr.bf16.mxu0 0
    %2709 = vmatpush1.bf16.msra.mxu0 %v385
    %2710 = vmatprep.subr.bf16.mxu0 0
    %2711 = vmatpush1.bf16.msra.mxu0 %v386
    %2712 = vmatprep.subr.bf16.mxu0 0
    %2713 = vmatpush1.bf16.msra.mxu0 0
    %2714 = vmatprep.subr.bf16.mxu0 0
    %2715 = vmatpush1.bf16.msra.mxu0 0
    %2716 = vmatprep.subr.bf16.mxu0 0
    %2717 = vmatpush1.bf16.msra.mxu0 0
    %2718 = vmatprep.subr.bf16.mxu0 0
    %2719 = vmatpush1.bf16.msra.mxu0 0
    %2720 = vmatprep.subr.bf16.mxu0 0
    %2721 = vmatpush1.bf16.msra.mxu0 0
    %2722 = vmatprep.subr.bf16.mxu0 0
    %2723 = vmatpush1.bf16.msra.mxu0 0
    %2724 = vmatprep.subr.bf16.mxu0 0
    %2725 = vmatpush1.bf16.msra.mxu0 0
    %2726 = vmatprep.subr.bf16.mxu0 0
    %2727 = vmatpush1.bf16.msra.mxu0 0
    %2728 = vmatprep.subr.bf16.mxu0 0
    %2729 = vmatpush1.bf16.msra.mxu0 0
    %2730 = vmatprep.subr.bf16.mxu0 0
    %2731 = vmatpush1.bf16.msra.mxu0 0
    %2732 = vmatprep.subr.bf16.mxu0 0
    %2733 = vmatpush1.bf16.msra.mxu0 0
    %2734 = vmatprep.subr.bf16.mxu0 0
    %2735 = vmatpush1.bf16.msra.mxu0 0
    %2736 = vmatprep.subr.bf16.mxu0 0
    %2737 = vmatpush1.bf16.msra.mxu0 0
    %2738 = vmatprep.subr.bf16.mxu0 0
    %2739 = vmatpush1.bf16.msra.mxu0 0
    %2740 = vmatprep.mubr.bf16.mxu0 0
    %2741 = vmatmul.mubr.bf16.gmra.mrb[0].mxu0 %v2001
    %v2742 = vpop.f32.mrb[0].mxu0
    %v2743 = vadd.f32 %v375, %v2742
    %v2744 = vpop.f32.mrb[0].mxu0
    %v2745 = vpop.f32.mrb[0].mxu0
    %v2746 = vpop.f32.mrb[0].mxu0
    %2747 = vdwg.mxu0
    %v2748 = vmul.f32 %v2580, %v2743
    %v2749 = vadd.f32 %v2703, %v2748
    %v2750 = vtanh.pop %v2749
    %v2751 = vsub.f32 1.0, %v2667
    %v2752 = vmul.f32 %v2751, %v2750
    %v2753 = vmul.f32 %v2667, %v1998
    %v2754 = vadd.f32 %v2752, %v2753
    %v2755 = vpack.c.bf16 %v2754, %v2754
    %v2757 = vsel %vm101, %v2755, 0
    %2759 = vmatprep.subr.bf16.mxu0 0
    %2760 = vmatpush1.bf16.msra.mxu0 %v445
    %2761 = vmatprep.subr.bf16.mxu0 0
    %2762 = vmatpush1.bf16.msra.mxu0 %v446
    %2763 = vmatprep.subr.bf16.mxu0 0
    %2764 = vmatpush1.bf16.msra.mxu0 0
    %2765 = vmatprep.subr.bf16.mxu0 0
    %2766 = vmatpush1.bf16.msra.mxu0 0
    %2767 = vmatprep.subr.bf16.mxu0 0
    %2768 = vmatpush1.bf16.msra.mxu0 0
    %2769 = vmatprep.subr.bf16.mxu0 0
    %2770 = vmatpush1.bf16.msra.mxu0 0
    %2771 = vmatprep.subr.bf16.mxu0 0
    %2772 = vmatpush1.bf16.msra.mxu0 0
    %2773 = vmatprep.subr.bf16.mxu0 0
    %2774 = vmatpush1.bf16.msra.mxu0 0
    %2775 = vmatprep.subr.bf16.mxu0 0
    %2776 = vmatpush1.bf16.msra.mxu0 0
    %2777 = vmatprep.subr.bf16.mxu0 0
    %2778 = vmatpush1.bf16.msra.mxu0 0
    %2779 = vmatprep.subr.bf16.mxu0 0
    %2780 = vmatpush1.bf16.msra.mxu0 0
    %2781 = vmatprep.subr.bf16.mxu0 0
    %2782 = vmatpush1.bf16.msra.mxu0 0
    %2783 = vmatprep.subr.bf16.mxu0 0
    %2784 = vmatpush1.bf16.msra.mxu0 0
    %2785 = vmatprep.subr.bf16.mxu0 0
    %2786 = vmatpush1.bf16.msra.mxu0 0
    %2787 = vmatprep.subr.bf16.mxu0 0
    %2788 = vmatpush1.bf16.msra.mxu0 0
    %2789 = vmatprep.subr.bf16.mxu0 0
    %2790 = vmatpush1.bf16.msra.mxu0 0
    %2791 = vmatprep.mubr.bf16.mxu0 0
    %2792 = vmatmul.mubr.bf16.gmra.mrb[0].mxu0 %v2757
    %v2793 = vpop.f32.mrb[0].mxu0
    %v2794 = vadd.f32 0.0, %v2793
    %v2795 = vpop.f32.mrb[0].mxu0
    %v2796 = vpop.f32.mrb[0].mxu0
    %v2797 = vpop.f32.mrb[0].mxu0
    %2798 = vdwg.mxu0
    %v2801 = vunpack.c.l.s4 1966171168
    %v2802 = vunpack.c.0.s8 %v2801
    %v2803 = vlaneseq
    %v2804 = vshrl.u32 %v2803, 7
    %v2805 = vsub.s32 %v2802, %v2804
    %v2806 = vrot.slane %v2794, %v2805
    %v2807 = vcombine.high %v2806, %v2806
    %v2809 = vunpack.c.l.s4 1966171168
    %v2810 = vunpack.c.0.s8 %v2809
    %v2811 = vlaneseq
    %v2812 = vshrl.u32 %v2811, 7
    %v2813 = vsub.s32 %v2810, %v2812
    %v2814 = vrot.slane %v2806, %v2813
    %v2816 = vunpack.c.l.s4 1966171168
    %v2817 = vunpack.c.0.s8 %v2816
    %v2818 = vlaneseq
    %v2819 = vshrl.u32 %v2818, 7
    %v2820 = vsub.s32 %v2817, %v2819
    %v2821 = vrot.slane %v2807, %v2820
    %v2822 = vlaneseq
    %v2823 = vshrl.u32 %v2822, 7
    %v2824 = vsub.s32 0, %v2823
    %v2825 = vrot.slane %v2814, %v2824
    %v2826 = vlaneseq
    %v2827 = vshrl.u32 %v2826, 7
    %v2828 = vsub.s32 0, %v2827
    %v2829 = vrot.slane %v2821, %v2828
    %v2832 = vmul.f32 %v2825, %v43
    %v2833 = vmul.f32 %v2829, %v44
    %v2834 = vsel %vm151, %v2832, 0.0
    %2835 = vadd.xlane.f32.xlu0 %v2834
    %v2836 = vpop.xlane.xlu0 %2835
    %v2837 = vsel %vm151, %v2833, 0.0
    %2838 = vadd.xlane.f32.xlu0 %v2837
    %v2839 = vpop.xlane.xlu0 %2838
    %v2842 = vlaneseq
    %v2843 = vshrl.u32 %v2842, 7
    %v2844 = vsub.s32 %v79, %v2843
    %v2845 = vrot.slane %v2836, %v2844
    %v2846 = vlaneseq
    %v2847 = vshrl.u32 %v2846, 7
    %v2848 = vsub.s32 %v79, %v2847
    %v2849 = vrot.slane %v2839, %v2848
    %v2850 = vsel %vm543, %v2849, %v2845
    %v2852 = vsel %vm546, %v2850, -inf
    %2853 = vmax.xlane.f32.xlu0 %v2852
    %v2854 = vpop.xlane.xlu0 %2853
    %v2856 = vlaneseq
    %v2857 = vshrl.u32 %v2856, 7
    %v2858 = vsub.s32 0, %v2857
    %v2859 = vrot.slane %v2854, %v2858
    %v2860 = vlaneseq
    %v2861 = vshrl.u32 %v2860, 7
    %v2862 = vsub.s32 1, %v2861
    %v2863 = vrot.slane %v2854, %v2862
    %v2866 = vsub.f32 %v2836, %v2859
    %v2867 = vsub.f32 %v2839, %v2863
    %v2868 = vmul.f32 %v2866, 1.442695
    %v2869 = vpow.pop %v2868
    %v2870 = vmul.f32 %v2867, 1.442695
    %v2871 = vpow.pop %v2870
    %2874 = vset.pattern.permute.xlu0 0
    %2875 = vperm.xlu0 %2874, %v2869
    %v2876 = vpop.permute.xlu0 %2875
    %2877 = vset.pattern.permute.xlu0 0
    %2878 = vperm.xlu0 %2877, %v2871
    %v2879 = vpop.permute.xlu0 %2878
    %v2880 = vlaneseq
    %v2881 = vshrl.u32 %v2880, 7
    %v2882 = vsub.s32 %v79, %v2881
    %v2883 = vrot.slane %v2876, %v2882
    %v2884 = vlaneseq
    %v2885 = vshrl.u32 %v2884, 7
    %v2886 = vsub.s32 %v79, %v2885
    %v2887 = vrot.slane %v2879, %v2886
    %v2888 = vsel %vm543, %v2887, %v2883
    %v2890 = vsel %vm546, %v2888, 0.0
    %2891 = vadd.xlane.f32.xlu0 %v2890
    %v2892 = vpop.xlane.xlu0 %2891
    %v2894 = vlaneseq
    %v2895 = vshrl.u32 %v2894, 7
    %v2896 = vsub.s32 0, %v2895
    %v2897 = vrot.slane %v2892, %v2896
    %v2898 = vlaneseq
    %v2899 = vshrl.u32 %v2898, 7
    %v2900 = vsub.s32 1, %v2899
    %v2901 = vrot.slane %v2892, %v2900
    %v2904 = vrcp.pop %v2897
    %v2905 = vmul.f32 %v2869, %v2904
    %v2906 = vrcp.pop %v2901
    %v2907 = vmul.f32 %v2871, %v2906
    %v2908 = vpack.c.bf16 %v2905, %v2905
    %v2909 = vpack.c.bf16 %v2907, %v2907
    %v2911 = vunpack.c.l.b16 %v2908
    %2912 = vset.pattern.permute.xlu0 0
    %2913 = vperm.xlu0 %2912, %v2911
    %v2914 = vpop.permute.xlu0 %2913
    %v2915 = vlaneseq
    %v2916 = vshrl.u32 %v2915, 7
    %v2917 = vsub.s32 %v79, %v2916
    %v2918 = vrot.slane %v2914, %v2917
    %v2919 = vpack.c.b16 %v2918, %v2918
    %v2921 = vsel %vm615, %v2919, 0
    %2923 = vmatprep.subr.bf16.mxu0 0
    %2924 = vmatpush1.bf16.msra.mxu0 %v621
    %2925 = vmatprep.subr.bf16.mxu0 0
    %2926 = vmatpush1.bf16.msra.mxu0 0
    %2927 = vmatprep.subr.bf16.mxu0 0
    %2928 = vmatpush1.bf16.msra.mxu0 0
    %2929 = vmatprep.subr.bf16.mxu0 0
    %2930 = vmatpush1.bf16.msra.mxu0 0
    %2931 = vmatprep.subr.bf16.mxu0 0
    %2932 = vmatpush1.bf16.msra.mxu0 0
    %2933 = vmatprep.subr.bf16.mxu0 0
    %2934 = vmatpush1.bf16.msra.mxu0 0
    %2935 = vmatprep.subr.bf16.mxu0 0
    %2936 = vmatpush1.bf16.msra.mxu0 0
    %2937 = vmatprep.subr.bf16.mxu0 0
    %2938 = vmatpush1.bf16.msra.mxu0 0
    %2939 = vmatprep.subr.bf16.mxu0 0
    %2940 = vmatpush1.bf16.msra.mxu0 0
    %2941 = vmatprep.subr.bf16.mxu0 0
    %2942 = vmatpush1.bf16.msra.mxu0 0
    %2943 = vmatprep.subr.bf16.mxu0 0
    %2944 = vmatpush1.bf16.msra.mxu0 0
    %2945 = vmatprep.subr.bf16.mxu0 0
    %2946 = vmatpush1.bf16.msra.mxu0 0
    %2947 = vmatprep.subr.bf16.mxu0 0
    %2948 = vmatpush1.bf16.msra.mxu0 0
    %2949 = vmatprep.subr.bf16.mxu0 0
    %2950 = vmatpush1.bf16.msra.mxu0 0
    %2951 = vmatprep.subr.bf16.mxu0 0
    %2952 = vmatpush1.bf16.msra.mxu0 0
    %2953 = vmatprep.subr.bf16.mxu0 0
    %2954 = vmatpush1.bf16.msra.mxu0 0
    %2955 = vmatprep.mubr.bf16.mxu0 0
    %2956 = vmatmul.mubr.bf16.gmra.mrb[0].mxu0 %v2921
    %v2957 = vpop.f32.mrb[0].mxu0
    %v2958 = vadd.f32 0.0, %v2957
    %v2959 = vpop.f32.mrb[0].mxu0
    %v2960 = vpop.f32.mrb[0].mxu0
    %v2961 = vpop.f32.mrb[0].mxu0
    %2962 = vdwg.mxu0
    %v2964 = vunpack.c.l.b16 %v2909
    %2965 = vset.pattern.permute.xlu0 0
    %2966 = vperm.xlu0 %2965, %v2964
    %v2967 = vpop.permute.xlu0 %2966
    %v2968 = vlaneseq
    %v2969 = vshrl.u32 %v2968, 7
    %v2970 = vsub.s32 %v79, %v2969
    %v2971 = vrot.slane %v2967, %v2970
    %v2972 = vpack.c.b16 %v2971, %v2971
    %v2974 = vsel %vm615, %v2972, 0
    %2976 = vmatprep.subr.bf16.mxu0 0
    %2977 = vmatpush1.bf16.msra.mxu0 %v677
    %2978 = vmatprep.subr.bf16.mxu0 0
    %2979 = vmatpush1.bf16.msra.mxu0 0
    %2980 = vmatprep.subr.bf16.mxu0 0
    %2981 = vmatpush1.bf16.msra.mxu0 0
    %2982 = vmatprep.subr.bf16.mxu0 0
    %2983 = vmatpush1.bf16.msra.mxu0 0
    %2984 = vmatprep.subr.bf16.mxu0 0
    %2985 = vmatpush1.bf16.msra.mxu0 0
    %2986 = vmatprep.subr.bf16.mxu0 0
    %2987 = vmatpush1.bf16.msra.mxu0 0
    %2988 = vmatprep.subr.bf16.mxu0 0
    %2989 = vmatpush1.bf16.msra.mxu0 0
    %2990 = vmatprep.subr.bf16.mxu0 0
    %2991 = vmatpush1.bf16.msra.mxu0 0
    %2992 = vmatprep.subr.bf16.mxu0 0
    %2993 = vmatpush1.bf16.msra.mxu0 0
    %2994 = vmatprep.subr.bf16.mxu0 0
    %2995 = vmatpush1.bf16.msra.mxu0 0
    %2996 = vmatprep.subr.bf16.mxu0 0
    %2997 = vmatpush1.bf16.msra.mxu0 0
    %2998 = vmatprep.subr.bf16.mxu0 0
    %2999 = vmatpush1.bf16.msra.mxu0 0
    %3000 = vmatprep.subr.bf16.mxu0 0
    %3001 = vmatpush1.bf16.msra.mxu0 0
    %3002 = vmatprep.subr.bf16.mxu0 0
    %3003 = vmatpush1.bf16.msra.mxu0 0
    %3004 = vmatprep.subr.bf16.mxu0 0
    %3005 = vmatpush1.bf16.msra.mxu0 0
    %3006 = vmatprep.subr.bf16.mxu0 0
    %3007 = vmatpush1.bf16.msra.mxu0 0
    %3008 = vmatprep.mubr.bf16.mxu0 0
    %3009 = vmatmul.mubr.bf16.gmra.mrb[0].mxu0 %v2974
    %v3010 = vpop.f32.mrb[0].mxu0
    %v3011 = vadd.f32 0.0, %v3010
    %v3012 = vpop.f32.mrb[0].mxu0
    %v3013 = vpop.f32.mrb[0].mxu0
    %v3014 = vpop.f32.mrb[0].mxu0
    %3015 = vdwg.mxu0
    %v3016 = vpack.c.bf16 %v2958, %v2958
    %v3017 = vpack.c.bf16 %v3011, %v3011
    %v3018 = vpack.c.bf16 %v2794, %v2794
    %v3020 = vsel %vm151, %v3018, 0
    %3022 = vmatprep.subr.bf16.mxu0 0
    %3023 = vmatpush1.bf16.msra.mxu0 %v726
    %3024 = vmatprep.subr.bf16.mxu0 0
    %3025 = vmatpush1.bf16.msra.mxu0 0
    %3026 = vmatprep.subr.bf16.mxu0 0
    %3027 = vmatpush1.bf16.msra.mxu0 0
    %3028 = vmatprep.subr.bf16.mxu0 0
    %3029 = vmatpush1.bf16.msra.mxu0 0
    %3030 = vmatprep.subr.bf16.mxu0 0
    %3031 = vmatpush1.bf16.msra.mxu0 0
    %3032 = vmatprep.subr.bf16.mxu0 0
    %3033 = vmatpush1.bf16.msra.mxu0 0
    %3034 = vmatprep.subr.bf16.mxu0 0
    %3035 = vmatpush1.bf16.msra.mxu0 0
    %3036 = vmatprep.subr.bf16.mxu0 0
    %3037 = vmatpush1.bf16.msra.mxu0 0
    %3038 = vmatprep.subr.bf16.mxu0 0
    %3039 = vmatpush1.bf16.msra.mxu0 0
    %3040 = vmatprep.subr.bf16.mxu0 0
    %3041 = vmatpush1.bf16.msra.mxu0 0
    %3042 = vmatprep.subr.bf16.mxu0 0
    %3043 = vmatpush1.bf16.msra.mxu0 0
    %3044 = vmatprep.subr.bf16.mxu0 0
    %3045 = vmatpush1.bf16.msra.mxu0 0
    %3046 = vmatprep.subr.bf16.mxu0 0
    %3047 = vmatpush1.bf16.msra.mxu0 0
    %3048 = vmatprep.subr.bf16.mxu0 0
    %3049 = vmatpush1.bf16.msra.mxu0 0
    %3050 = vmatprep.subr.bf16.mxu0 0
    %3051 = vmatpush1.bf16.msra.mxu0 0
    %3052 = vmatprep.subr.bf16.mxu0 0
    %3053 = vmatpush1.bf16.msra.mxu0 0
    %3054 = vmatprep.mubr.bf16.mxu0 0
    %3055 = vmatmul.mubr.bf16.gmra.mrb[0].mxu0 %v3020
    %v3056 = vpop.f32.mrb[0].mxu0
    %v3057 = vadd.f32 0.0, %v3056
    %v3058 = vpop.f32.mrb[0].mxu0
    %v3059 = vpop.f32.mrb[0].mxu0
    %v3060 = vpop.f32.mrb[0].mxu0
    %3061 = vdwg.mxu0
    %v3064 = vunpack.c.l.b16 %v3016
    %v3065 = vunpack.c.l.b16 %v3017
    %v3066 = vrot.slane %v3065, 7
    %v3067 = vsel %vm543, %v3066, %v3064
    %v3068 = vpack.c.b16 %v3067, %v3067
    %v3070 = vsel %vm151, %v3068, 0
    %3072 = vmatprep.subr.bf16.mxu0 0
    %3073 = vmatpush1.bf16.msra.mxu0 %v782
    %3074 = vmatprep.subr.bf16.mxu0 0
    %3075 = vmatpush1.bf16.msra.mxu0 0
    %3076 = vmatprep.subr.bf16.mxu0 0
    %3077 = vmatpush1.bf16.msra.mxu0 0
    %3078 = vmatprep.subr.bf16.mxu0 0
    %3079 = vmatpush1.bf16.msra.mxu0 0
    %3080 = vmatprep.subr.bf16.mxu0 0
    %3081 = vmatpush1.bf16.msra.mxu0 0
    %3082 = vmatprep.subr.bf16.mxu0 0
    %3083 = vmatpush1.bf16.msra.mxu0 0
    %3084 = vmatprep.subr.bf16.mxu0 0
    %3085 = vmatpush1.bf16.msra.mxu0 0
    %3086 = vmatprep.subr.bf16.mxu0 0
    %3087 = vmatpush1.bf16.msra.mxu0 0
    %3088 = vmatprep.subr.bf16.mxu0 0
    %3089 = vmatpush1.bf16.msra.mxu0 0
    %3090 = vmatprep.subr.bf16.mxu0 0
    %3091 = vmatpush1.bf16.msra.mxu0 0
    %3092 = vmatprep.subr.bf16.mxu0 0
    %3093 = vmatpush1.bf16.msra.mxu0 0
    %3094 = vmatprep.subr.bf16.mxu0 0
    %3095 = vmatpush1.bf16.msra.mxu0 0
    %3096 = vmatprep.subr.bf16.mxu0 0
    %3097 = vmatpush1.bf16.msra.mxu0 0
    %3098 = vmatprep.subr.bf16.mxu0 0
    %3099 = vmatpush1.bf16.msra.mxu0 0
    %3100 = vmatprep.subr.bf16.mxu0 0
    %3101 = vmatpush1.bf16.msra.mxu0 0
    %3102 = vmatprep.subr.bf16.mxu0 0
    %3103 = vmatpush1.bf16.msra.mxu0 0
    %3104 = vmatprep.mubr.bf16.mxu0 0
    %3105 = vmatmul.mubr.bf16.gmra.mrb[0].mxu0 %v3070
    %v3106 = vpop.f32.mrb[0].mxu0
    %v3107 = vadd.f32 %v3057, %v3106
    %v3108 = vpop.f32.mrb[0].mxu0
    %v3109 = vpop.f32.mrb[0].mxu0
    %v3110 = vpop.f32.mrb[0].mxu0
    %3111 = vdwg.mxu0
    %v3112 = vtanh.pop %v3107
    %v3113 = vpack.c.bf16 %v3112, %v3112
    %v3115 = vsel %vm151, %v3113, 0
    %3117 = vmatprep.subr.bf16.mxu0 0
    %3118 = vmatpush1.bf16.xpose.msra.mxu0 %v843
    %3119 = vmatprep.subr.bf16.mxu0 0
    %3120 = vmatpush1.bf16.xpose.msra.mxu0 %v846
    %3121 = vmatprep.subr.bf16.mxu0 0
    %3122 = vmatpush1.bf16.xpose.msra.mxu0 0
    %3123 = vmatprep.subr.bf16.mxu0 0
    %3124 = vmatpush1.bf16.xpose.msra.mxu0 0
    %3125 = vmatprep.subr.bf16.mxu0 0
    %3126 = vmatpush1.bf16.xpose.msra.mxu0 0
    %3127 = vmatprep.subr.bf16.mxu0 0
    %3128 = vmatpush1.bf16.xpose.msra.mxu0 0
    %3129 = vmatprep.subr.bf16.mxu0 0
    %3130 = vmatpush1.bf16.xpose.msra.mxu0 0
    %3131 = vmatprep.subr.bf16.mxu0 0
    %3132 = vmatpush1.bf16.xpose.msra.mxu0 0
    %3133 = vmatprep.subr.bf16.mxu0 0
    %3134 = vmatpush1.bf16.xpose.msra.mxu0 0
    %3135 = vmatprep.subr.bf16.mxu0 0
    %3136 = vmatpush1.bf16.xpose.msra.mxu0 0
    %3137 = vmatprep.subr.bf16.mxu0 0
    %3138 = vmatpush1.bf16.xpose.msra.mxu0 0
    %3139 = vmatprep.subr.bf16.mxu0 0
    %3140 = vmatpush1.bf16.xpose.msra.mxu0 0
    %3141 = vmatprep.subr.bf16.mxu0 0
    %3142 = vmatpush1.bf16.xpose.msra.mxu0 0
    %3143 = vmatprep.subr.bf16.mxu0 0
    %3144 = vmatpush1.bf16.xpose.msra.mxu0 0
    %3145 = vmatprep.subr.bf16.mxu0 0
    %3146 = vmatpush1.bf16.xpose.msra.mxu0 0
    %3147 = vmatprep.subr.bf16.mxu0 0
    %3148 = vmatpush1.bf16.xpose.msra.mxu0 0
    %3149 = vmatprep.mubr.bf16.mxu0 0
    %3150 = vmatmul.mubr.bf16.gmra.mrb[0].mxu0 %v3115
    %v3151 = vpop.f32.mrb[0].mxu0
    %v3152 = vadd.f32 0.0, %v3151
    %v3153 = vpop.f32.mrb[0].mxu0
    %v3154 = vpop.f32.mrb[0].mxu0
    %v3155 = vpop.f32.mrb[0].mxu0
    %3156 = vdwg.mxu0
    %s3157 = scalar_lea.vmem [#allocation2], 6
    %3158 = vst.msk [vmem:[%s3157] sm:$0x3] %vm888, %v3152
    %3161 = vset.pattern.permute.xlu0 0
    %3162 = vperm.xlu0 %3161, %v2905
    %v3163 = vpop.permute.xlu0 %3162
    %3164 = vset.pattern.permute.xlu0 0
    %3165 = vperm.xlu0 %3164, %v2907
    %v3166 = vpop.permute.xlu0 %3165
    %v3167 = vlaneseq
    %v3168 = vshrl.u32 %v3167, 7
    %v3169 = vsub.s32 %v79, %v3168
    %v3170 = vrot.slane %v3163, %v3169
    %v3171 = vlaneseq
    %v3172 = vshrl.u32 %v3171, 7
    %v3173 = vsub.s32 %v79, %v3172
    %v3174 = vrot.slane %v3166, %v3173
    %v3175 = vsel %vm543, %v3174, %v3170
    %s3177 = scalar_lea.vmem [#allocation4], 6
    %3178 = vst.msk [vmem:[%s3177] sm:$0x3] %vm546, %v3175
    %v3179 = vsel %vm888, %v3152, -inf
    %3180 = vmax.xlane.f32.xlu0 %v3179
    %v3181 = vpop.xlane.xlu0 %3180
    %vm3182 = vcmp.eq.f32.partialorder %v3152, %v3181
    %v3183 = vsel %vm3182, %v79, 32
    %v3184 = vsel %vm888, %v3183, 2147483647
    %v3185 = vand.u32 %v3184, 65535
    %v3186 = vshra.s32 %v3184, 16
    %v3187 = vcvt.s32.f32 %v3185
    %v3188 = vcvt.s32.f32 %v3186
    %3189 = vmin.xlane.f32.xlu0 %v3188
    %v3190 = vpop.xlane.xlu0 %3189
    %vm3191 = vcmp.eq.f32.partialorder %v3188, %v3190
    %v3192 = vsel %vm3191, %v3187, inf
    %3193 = vmin.xlane.f32.xlu0 %v3192
    %v3194 = vpop.xlane.xlu0 %3193
    %v3195 = vcvt.f32.s32 %v3194
    %v3196 = vcvt.f32.s32 %v3190
    %v3197 = vshll.u32 %v3196, 16
    %v3198 = vadd.s32 %v3197, %v3195
    %vm3199 = vcmp.eq.s32.totalorder %v79, %v3198
    %v3200 = vsel %vm3199, 1, 0
    %v3201 = vcvt.s32.f32 %v3200
    %v3202 = vpack.c.bf16 %v3201, %v3201
    %v3204 = vsel %vm101, %v3202, 0
    %3206 = vmatprep.subr.bf16.mxu0 0
    %3207 = vmatpush1.bf16.msra.mxu0 %v837
    %3208 = vmatprep.subr.bf16.mxu0 0
    %3209 = vmatpush1.bf16.msra.mxu0 %v838
    %3210 = vmatprep.subr.bf16.mxu0 0
    %3211 = vmatpush1.bf16.msra.mxu0 0
    %3212 = vmatprep.subr.bf16.mxu0 0
    %3213 = vmatpush1.bf16.msra.mxu0 0
    %3214 = vmatprep.subr.bf16.mxu0 0
    %3215 = vmatpush1.bf16.msra.mxu0 0
    %3216 = vmatprep.subr.bf16.mxu0 0
    %3217 = vmatpush1.bf16.msra.mxu0 0
    %3218 = vmatprep.subr.bf16.mxu0 0
    %3219 = vmatpush1.bf16.msra.mxu0 0
    %3220 = vmatprep.subr.bf16.mxu0 0
    %3221 = vmatpush1.bf16.msra.mxu0 0
    %3222 = vmatprep.subr.bf16.mxu0 0
    %3223 = vmatpush1.bf16.msra.mxu0 0
    %3224 = vmatprep.subr.bf16.mxu0 0
    %3225 = vmatpush1.bf16.msra.mxu0 0
    %3226 = vmatprep.subr.bf16.mxu0 0
    %3227 = vmatpush1.bf16.msra.mxu0 0
    %3228 = vmatprep.subr.bf16.mxu0 0
    %3229 = vmatpush1.bf16.msra.mxu0 0
    %3230 = vmatprep.subr.bf16.mxu0 0
    %3231 = vmatpush1.bf16.msra.mxu0 0
    %3232 = vmatprep.subr.bf16.mxu0 0
    %3233 = vmatpush1.bf16.msra.mxu0 0
    %3234 = vmatprep.subr.bf16.mxu0 0
    %3235 = vmatpush1.bf16.msra.mxu0 0
    %3236 = vmatprep.subr.bf16.mxu0 0
    %3237 = vmatpush1.bf16.msra.mxu0 0
    %3238 = vmatprep.mubr.bf16.mxu0 0
    %3239 = vmatmul.mubr.bf16.gmra.mrb[0].mxu0 %v3204
    %v3240 = vpop.f32.mrb[0].mxu0
    %v3241 = vadd.f32 0.0, %v3240
    %v3242 = vpop.f32.mrb[0].mxu0
    %v3243 = vpop.f32.mrb[0].mxu0
    %v3244 = vpop.f32.mrb[0].mxu0
    %3245 = vdwg.mxu0
    %v3246 = vpack.c.bf16 %v3241, %v3241
    %3247 = vmatprep.subr.bf16.mxu0 0
    %3248 = vmatpush1.bf16.msra.mxu0 %v97
    %3249 = vmatprep.subr.bf16.mxu0 0
    %3250 = vmatpush1.bf16.msra.mxu0 %v98
    %3251 = vmatprep.subr.bf16.mxu0 0
    %3252 = vmatpush1.bf16.msra.mxu0 0
    %3253 = vmatprep.subr.bf16.mxu0 0
    %3254 = vmatpush1.bf16.msra.mxu0 0
    %3255 = vmatprep.subr.bf16.mxu0 0
    %3256 = vmatpush1.bf16.msra.mxu0 0
    %3257 = vmatprep.subr.bf16.mxu0 0
    %3258 = vmatpush1.bf16.msra.mxu0 0
    %3259 = vmatprep.subr.bf16.mxu0 0
    %3260 = vmatpush1.bf16.msra.mxu0 0
    %3261 = vmatprep.subr.bf16.mxu0 0
    %3262 = vmatpush1.bf16.msra.mxu0 0
    %3263 = vmatprep.subr.bf16.mxu0 0
    %3264 = vmatpush1.bf16.msra.mxu0 0
    %3265 = vmatprep.subr.bf16.mxu0 0
    %3266 = vmatpush1.bf16.msra.mxu0 0
    %3267 = vmatprep.subr.bf16.mxu0 0
    %3268 = vmatpush1.bf16.msra.mxu0 0
    %3269 = vmatprep.subr.bf16.mxu0 0
    %3270 = vmatpush1.bf16.msra.mxu0 0
    %3271 = vmatprep.subr.bf16.mxu0 0
    %3272 = vmatpush1.bf16.msra.mxu0 0
    %3273 = vmatprep.subr.bf16.mxu0 0
    %3274 = vmatpush1.bf16.msra.mxu0 0
    %3275 = vmatprep.subr.bf16.mxu0 0
    %3276 = vmatpush1.bf16.msra.mxu0 0
    %3277 = vmatprep.subr.bf16.mxu0 0
    %3278 = vmatpush1.bf16.msra.mxu0 0
    %3279 = vmatprep.mubr.bf16.mxu0 0
    %3280 = vmatmul.mubr.bf16.gmra.mrb[0].mxu0 %v2757
    %v3281 = vpop.f32.mrb[0].mxu0
    %v3282 = vadd.f32 0.0, %v3281
    %v3283 = vpop.f32.mrb[0].mxu0
    %v3284 = vpop.f32.mrb[0].mxu0
    %v3285 = vpop.f32.mrb[0].mxu0
    %3286 = vdwg.mxu0
    %v3288 = vsel %vm151, %v3246, 0
    %3290 = vmatprep.subr.bf16.mxu0 0
    %3291 = vmatpush1.bf16.msra.mxu0 %v149
    %3292 = vmatprep.subr.bf16.mxu0 0
    %3293 = vmatpush1.bf16.msra.mxu0 0
    %3294 = vmatprep.subr.bf16.mxu0 0
    %3295 = vmatpush1.bf16.msra.mxu0 0
    %3296 = vmatprep.subr.bf16.mxu0 0
    %3297 = vmatpush1.bf16.msra.mxu0 0
    %3298 = vmatprep.subr.bf16.mxu0 0
    %3299 = vmatpush1.bf16.msra.mxu0 0
    %3300 = vmatprep.subr.bf16.mxu0 0
    %3301 = vmatpush1.bf16.msra.mxu0 0
    %3302 = vmatprep.subr.bf16.mxu0 0
    %3303 = vmatpush1.bf16.msra.mxu0 0
    %3304 = vmatprep.subr.bf16.mxu0 0
    %3305 = vmatpush1.bf16.msra.mxu0 0
    %3306 = vmatprep.subr.bf16.mxu0 0
    %3307 = vmatpush1.bf16.msra.mxu0 0
    %3308 = vmatprep.subr.bf16.mxu0 0
    %3309 = vmatpush1.bf16.msra.mxu0 0
    %3310 = vmatprep.subr.bf16.mxu0 0
    %3311 = vmatpush1.bf16.msra.mxu0 0
    %3312 = vmatprep.subr.bf16.mxu0 0
    %3313 = vmatpush1.bf16.msra.mxu0 0
    %3314 = vmatprep.subr.bf16.mxu0 0
    %3315 = vmatpush1.bf16.msra.mxu0 0
    %3316 = vmatprep.subr.bf16.mxu0 0
    %3317 = vmatpush1.bf16.msra.mxu0 0
    %3318 = vmatprep.subr.bf16.mxu0 0
    %3319 = vmatpush1.bf16.msra.mxu0 0
    %3320 = vmatprep.subr.bf16.mxu0 0
    %3321 = vmatpush1.bf16.msra.mxu0 0
    %3322 = vmatprep.mubr.bf16.mxu0 0
    %3323 = vmatmul.mubr.bf16.gmra.mrb[0].mxu0 %v3288
    %v3324 = vpop.f32.mrb[0].mxu0
    %v3325 = vadd.f32 %v3282, %v3324
    %v3326 = vpop.f32.mrb[0].mxu0
    %v3327 = vpop.f32.mrb[0].mxu0
    %v3328 = vpop.f32.mrb[0].mxu0
    %3329 = vdwg.mxu0
    %v3330 = vadd.f32 %v3325, %v199
    %v3331 = vxor.u32 %v3330, 2147483648
    %v3332 = vmul.f32 %v3331, 1.442695
    %v3333 = vpow.pop %v3332
    %v3334 = vadd.f32 %v3333, 1.0
    %v3335 = vrcp.pop %v3334
    %v3336 = vmul.f32 1.0, %v3335
    %3337 = vmatprep.subr.bf16.mxu0 0
    %3338 = vmatpush1.bf16.msra.mxu0 %v216
    %3339 = vmatprep.subr.bf16.mxu0 0
    %3340 = vmatpush1.bf16.msra.mxu0 %v217
    %3341 = vmatprep.subr.bf16.mxu0 0
    %3342 = vmatpush1.bf16.msra.mxu0 0
    %3343 = vmatprep.subr.bf16.mxu0 0
    %3344 = vmatpush1.bf16.msra.mxu0 0
    %3345 = vmatprep.subr.bf16.mxu0 0
    %3346 = vmatpush1.bf16.msra.mxu0 0
    %3347 = vmatprep.subr.bf16.mxu0 0
    %3348 = vmatpush1.bf16.msra.mxu0 0
    %3349 = vmatprep.subr.bf16.mxu0 0
    %3350 = vmatpush1.bf16.msra.mxu0 0
    %3351 = vmatprep.subr.bf16.mxu0 0
    %3352 = vmatpush1.bf16.msra.mxu0 0
    %3353 = vmatprep.subr.bf16.mxu0 0
    %3354 = vmatpush1.bf16.msra.mxu0 0
    %3355 = vmatprep.subr.bf16.mxu0 0
    %3356 = vmatpush1.bf16.msra.mxu0 0
    %3357 = vmatprep.subr.bf16.mxu0 0
    %3358 = vmatpush1.bf16.msra.mxu0 0
    %3359 = vmatprep.subr.bf16.mxu0 0
    %3360 = vmatpush1.bf16.msra.mxu0 0
    %3361 = vmatprep.subr.bf16.mxu0 0
    %3362 = vmatpush1.bf16.msra.mxu0 0
    %3363 = vmatprep.subr.bf16.mxu0 0
    %3364 = vmatpush1.bf16.msra.mxu0 0
    %3365 = vmatprep.subr.bf16.mxu0 0
    %3366 = vmatpush1.bf16.msra.mxu0 0
    %3367 = vmatprep.subr.bf16.mxu0 0
    %3368 = vmatpush1.bf16.msra.mxu0 0
    %3369 = vmatprep.mubr.bf16.mxu0 0
    %3370 = vmatmul.mubr.bf16.gmra.mrb[0].mxu0 %v2757
    %v3371 = vpop.f32.mrb[0].mxu0
    %v3372 = vadd.f32 0.0, %v3371
    %v3373 = vpop.f32.mrb[0].mxu0
    %v3374 = vpop.f32.mrb[0].mxu0
    %v3375 = vpop.f32.mrb[0].mxu0
    %3376 = vdwg.mxu0
    %3377 = vmatprep.subr.bf16.mxu0 0
    %3378 = vmatpush1.bf16.msra.mxu0 %v264
    %3379 = vmatprep.subr.bf16.mxu0 0
    %3380 = vmatpush1.bf16.msra.mxu0 0
    %3381 = vmatprep.subr.bf16.mxu0 0
    %3382 = vmatpush1.bf16.msra.mxu0 0
    %3383 = vmatprep.subr.bf16.mxu0 0
    %3384 = vmatpush1.bf16.msra.mxu0 0
    %3385 = vmatprep.subr.bf16.mxu0 0
    %3386 = vmatpush1.bf16.msra.mxu0 0
    %3387 = vmatprep.subr.bf16.mxu0 0
    %3388 = vmatpush1.bf16.msra.mxu0 0
    %3389 = vmatprep.subr.bf16.mxu0 0
    %3390 = vmatpush1.bf16.msra.mxu0 0
    %3391 = vmatprep.subr.bf16.mxu0 0
    %3392 = vmatpush1.bf16.msra.mxu0 0
    %3393 = vmatprep.subr.bf16.mxu0 0
    %3394 = vmatpush1.bf16.msra.mxu0 0
    %3395 = vmatprep.subr.bf16.mxu0 0
    %3396 = vmatpush1.bf16.msra.mxu0 0
    %3397 = vmatprep.subr.bf16.mxu0 0
    %3398 = vmatpush1.bf16.msra.mxu0 0
    %3399 = vmatprep.subr.bf16.mxu0 0
    %3400 = vmatpush1.bf16.msra.mxu0 0
    %3401 = vmatprep.subr.bf16.mxu0 0
    %3402 = vmatpush1.bf16.msra.mxu0 0
    %3403 = vmatprep.subr.bf16.mxu0 0
    %3404 = vmatpush1.bf16.msra.mxu0 0
    %3405 = vmatprep.subr.bf16.mxu0 0
    %3406 = vmatpush1.bf16.msra.mxu0 0
    %3407 = vmatprep.subr.bf16.mxu0 0
    %3408 = vmatpush1.bf16.msra.mxu0 0
    %3409 = vmatprep.mubr.bf16.mxu0 0
    %3410 = vmatmul.mubr.bf16.gmra.mrb[0].mxu0 %v3288
    %v3411 = vpop.f32.mrb[0].mxu0
    %v3412 = vadd.f32 %v3372, %v3411
    %v3413 = vpop.f32.mrb[0].mxu0
    %v3414 = vpop.f32.mrb[0].mxu0
    %v3415 = vpop.f32.mrb[0].mxu0
    %3416 = vdwg.mxu0
    %v3417 = vadd.f32 %v3412, %v310
    %v3418 = vxor.u32 %v3417, 2147483648
    %v3419 = vmul.f32 %v3418, 1.442695
    %v3420 = vpow.pop %v3419
    %v3421 = vadd.f32 %v3420, 1.0
    %v3422 = vrcp.pop %v3421
    %v3423 = vmul.f32 1.0, %v3422
    %3424 = vmatprep.subr.bf16.mxu0 0
    %3425 = vmatpush1.bf16.msra.mxu0 %v329
    %3426 = vmatprep.subr.bf16.mxu0 0
    %3427 = vmatpush1.bf16.msra.mxu0 0
    %3428 = vmatprep.subr.bf16.mxu0 0
    %3429 = vmatpush1.bf16.msra.mxu0 0
    %3430 = vmatprep.subr.bf16.mxu0 0
    %3431 = vmatpush1.bf16.msra.mxu0 0
    %3432 = vmatprep.subr.bf16.mxu0 0
    %3433 = vmatpush1.bf16.msra.mxu0 0
    %3434 = vmatprep.subr.bf16.mxu0 0
    %3435 = vmatpush1.bf16.msra.mxu0 0
    %3436 = vmatprep.subr.bf16.mxu0 0
    %3437 = vmatpush1.bf16.msra.mxu0 0
    %3438 = vmatprep.subr.bf16.mxu0 0
    %3439 = vmatpush1.bf16.msra.mxu0 0
    %3440 = vmatprep.subr.bf16.mxu0 0
    %3441 = vmatpush1.bf16.msra.mxu0 0
    %3442 = vmatprep.subr.bf16.mxu0 0
    %3443 = vmatpush1.bf16.msra.mxu0 0
    %3444 = vmatprep.subr.bf16.mxu0 0
    %3445 = vmatpush1.bf16.msra.mxu0 0
    %3446 = vmatprep.subr.bf16.mxu0 0
    %3447 = vmatpush1.bf16.msra.mxu0 0
    %3448 = vmatprep.subr.bf16.mxu0 0
    %3449 = vmatpush1.bf16.msra.mxu0 0
    %3450 = vmatprep.subr.bf16.mxu0 0
    %3451 = vmatpush1.bf16.msra.mxu0 0
    %3452 = vmatprep.subr.bf16.mxu0 0
    %3453 = vmatpush1.bf16.msra.mxu0 0
    %3454 = vmatprep.subr.bf16.mxu0 0
    %3455 = vmatpush1.bf16.msra.mxu0 0
    %3456 = vmatprep.mubr.bf16.mxu0 0
    %3457 = vmatmul.mubr.bf16.gmra.mrb[0].mxu0 %v3288
    %v3458 = vpop.f32.mrb[0].mxu0
    %v3459 = vadd.f32 %v323, %v3458
    %v3460 = vpop.f32.mrb[0].mxu0
    %v3461 = vpop.f32.mrb[0].mxu0
    %v3462 = vpop.f32.mrb[0].mxu0
    %3463 = vdwg.mxu0
    %3464 = vmatprep.subr.bf16.mxu0 0
    %3465 = vmatpush1.bf16.msra.mxu0 %v385
    %3466 = vmatprep.subr.bf16.mxu0 0
    %3467 = vmatpush1.bf16.msra.mxu0 %v386
    %3468 = vmatprep.subr.bf16.mxu0 0
    %3469 = vmatpush1.bf16.msra.mxu0 0
    %3470 = vmatprep.subr.bf16.mxu0 0
    %3471 = vmatpush1.bf16.msra.mxu0 0
    %3472 = vmatprep.subr.bf16.mxu0 0
    %3473 = vmatpush1.bf16.msra.mxu0 0
    %3474 = vmatprep.subr.bf16.mxu0 0
    %3475 = vmatpush1.bf16.msra.mxu0 0
    %3476 = vmatprep.subr.bf16.mxu0 0
    %3477 = vmatpush1.bf16.msra.mxu0 0
    %3478 = vmatprep.subr.bf16.mxu0 0
    %3479 = vmatpush1.bf16.msra.mxu0 0
    %3480 = vmatprep.subr.bf16.mxu0 0
    %3481 = vmatpush1.bf16.msra.mxu0 0
    %3482 = vmatprep.subr.bf16.mxu0 0
    %3483 = vmatpush1.bf16.msra.mxu0 0
    %3484 = vmatprep.subr.bf16.mxu0 0
    %3485 = vmatpush1.bf16.msra.mxu0 0
    %3486 = vmatprep.subr.bf16.mxu0 0
    %3487 = vmatpush1.bf16.msra.mxu0 0
    %3488 = vmatprep.subr.bf16.mxu0 0
    %3489 = vmatpush1.bf16.msra.mxu0 0
    %3490 = vmatprep.subr.bf16.mxu0 0
    %3491 = vmatpush1.bf16.msra.mxu0 0
    %3492 = vmatprep.subr.bf16.mxu0 0
    %3493 = vmatpush1.bf16.msra.mxu0 0
    %3494 = vmatprep.subr.bf16.mxu0 0
    %3495 = vmatpush1.bf16.msra.mxu0 0
    %3496 = vmatprep.mubr.bf16.mxu0 0
    %3497 = vmatmul.mubr.bf16.gmra.mrb[0].mxu0 %v2757
    %v3498 = vpop.f32.mrb[0].mxu0
    %v3499 = vadd.f32 %v375, %v3498
    %v3500 = vpop.f32.mrb[0].mxu0
    %v3501 = vpop.f32.mrb[0].mxu0
    %v3502 = vpop.f32.mrb[0].mxu0
    %3503 = vdwg.mxu0
    %v3504 = vmul.f32 %v3336, %v3499
    %v3505 = vadd.f32 %v3459, %v3504
    %v3506 = vtanh.pop %v3505
    %v3507 = vsub.f32 1.0, %v3423
    %v3508 = vmul.f32 %v3507, %v3506
    %v3509 = vmul.f32 %v3423, %v2754
    %v3510 = vadd.f32 %v3508, %v3509
    %v3511 = vpack.c.bf16 %v3510, %v3510
    %v3513 = vsel %vm101, %v3511, 0
    %3515 = vmatprep.subr.bf16.mxu0 0
    %3516 = vmatpush1.bf16.msra.mxu0 %v445
    %3517 = vmatprep.subr.bf16.mxu0 0
    %3518 = vmatpush1.bf16.msra.mxu0 %v446
    %3519 = vmatprep.subr.bf16.mxu0 0
    %3520 = vmatpush1.bf16.msra.mxu0 0
    %3521 = vmatprep.subr.bf16.mxu0 0
    %3522 = vmatpush1.bf16.msra.mxu0 0
    %3523 = vmatprep.subr.bf16.mxu0 0
    %3524 = vmatpush1.bf16.msra.mxu0 0
    %3525 = vmatprep.subr.bf16.mxu0 0
    %3526 = vmatpush1.bf16.msra.mxu0 0
    %3527 = vmatprep.subr.bf16.mxu0 0
    %3528 = vmatpush1.bf16.msra.mxu0 0
    %3529 = vmatprep.subr.bf16.mxu0 0
    %3530 = vmatpush1.bf16.msra.mxu0 0
    %3531 = vmatprep.subr.bf16.mxu0 0
    %3532 = vmatpush1.bf16.msra.mxu0 0
    %3533 = vmatprep.subr.bf16.mxu0 0
    %3534 = vmatpush1.bf16.msra.mxu0 0
    %3535 = vmatprep.subr.bf16.mxu0 0
    %3536 = vmatpush1.bf16.msra.mxu0 0
    %3537 = vmatprep.subr.bf16.mxu0 0
    %3538 = vmatpush1.bf16.msra.mxu0 0
    %3539 = vmatprep.subr.bf16.mxu0 0
    %3540 = vmatpush1.bf16.msra.mxu0 0
    %3541 = vmatprep.subr.bf16.mxu0 0
    %3542 = vmatpush1.bf16.msra.mxu0 0
    %3543 = vmatprep.subr.bf16.mxu0 0
    %3544 = vmatpush1.bf16.msra.mxu0 0
    %3545 = vmatprep.subr.bf16.mxu0 0
    %3546 = vmatpush1.bf16.msra.mxu0 0
    %3547 = vmatprep.mubr.bf16.mxu0 0
    %3548 = vmatmul.mubr.bf16.gmra.mrb[0].mxu0 %v3513
    %v3549 = vpop.f32.mrb[0].mxu0
    %v3550 = vadd.f32 0.0, %v3549
    %v3551 = vpop.f32.mrb[0].mxu0
    %v3552 = vpop.f32.mrb[0].mxu0
    %v3553 = vpop.f32.mrb[0].mxu0
    %3554 = vdwg.mxu0
    %v3557 = vunpack.c.l.s4 1966171168
    %v3558 = vunpack.c.0.s8 %v3557
    %v3559 = vlaneseq
    %v3560 = vshrl.u32 %v3559, 7
    %v3561 = vsub.s32 %v3558, %v3560
    %v3562 = vrot.slane %v3550, %v3561
    %v3563 = vcombine.high %v3562, %v3562
    %v3565 = vunpack.c.l.s4 1966171168
    %v3566 = vunpack.c.0.s8 %v3565
    %v3567 = vlaneseq
    %v3568 = vshrl.u32 %v3567, 7
    %v3569 = vsub.s32 %v3566, %v3568
    %v3570 = vrot.slane %v3562, %v3569
    %v3572 = vunpack.c.l.s4 1966171168
    %v3573 = vunpack.c.0.s8 %v3572
    %v3574 = vlaneseq
    %v3575 = vshrl.u32 %v3574, 7
    %v3576 = vsub.s32 %v3573, %v3575
    %v3577 = vrot.slane %v3563, %v3576
    %v3578 = vlaneseq
    %v3579 = vshrl.u32 %v3578, 7
    %v3580 = vsub.s32 0, %v3579
    %v3581 = vrot.slane %v3570, %v3580
    %v3582 = vlaneseq
    %v3583 = vshrl.u32 %v3582, 7
    %v3584 = vsub.s32 0, %v3583
    %v3585 = vrot.slane %v3577, %v3584
    %v3588 = vmul.f32 %v3581, %v43
    %v3589 = vmul.f32 %v3585, %v44
    %v3590 = vsel %vm151, %v3588, 0.0
    %3591 = vadd.xlane.f32.xlu0 %v3590
    %v3592 = vpop.xlane.xlu0 %3591
    %v3593 = vsel %vm151, %v3589, 0.0
    %3594 = vadd.xlane.f32.xlu0 %v3593
    %v3595 = vpop.xlane.xlu0 %3594
    %v3598 = vlaneseq
    %v3599 = vshrl.u32 %v3598, 7
    %v3600 = vsub.s32 %v79, %v3599
    %v3601 = vrot.slane %v3592, %v3600
    %v3602 = vlaneseq
    %v3603 = vshrl.u32 %v3602, 7
    %v3604 = vsub.s32 %v79, %v3603
    %v3605 = vrot.slane %v3595, %v3604
    %v3606 = vsel %vm543, %v3605, %v3601
    %v3608 = vsel %vm546, %v3606, -inf
    %3609 = vmax.xlane.f32.xlu0 %v3608
    %v3610 = vpop.xlane.xlu0 %3609
    %v3612 = vlaneseq
    %v3613 = vshrl.u32 %v3612, 7
    %v3614 = vsub.s32 0, %v3613
    %v3615 = vrot.slane %v3610, %v3614
    %v3616 = vlaneseq
    %v3617 = vshrl.u32 %v3616, 7
    %v3618 = vsub.s32 1, %v3617
    %v3619 = vrot.slane %v3610, %v3618
    %v3622 = vsub.f32 %v3592, %v3615
    %v3623 = vsub.f32 %v3595, %v3619
    %v3624 = vmul.f32 %v3622, 1.442695
    %v3625 = vpow.pop %v3624
    %v3626 = vmul.f32 %v3623, 1.442695
    %v3627 = vpow.pop %v3626
    %3630 = vset.pattern.permute.xlu0 0
    %3631 = vperm.xlu0 %3630, %v3625
    %v3632 = vpop.permute.xlu0 %3631
    %3633 = vset.pattern.permute.xlu0 0
    %3634 = vperm.xlu0 %3633, %v3627
    %v3635 = vpop.permute.xlu0 %3634
    %v3636 = vlaneseq
    %v3637 = vshrl.u32 %v3636, 7
    %v3638 = vsub.s32 %v79, %v3637
    %v3639 = vrot.slane %v3632, %v3638
    %v3640 = vlaneseq
    %v3641 = vshrl.u32 %v3640, 7
    %v3642 = vsub.s32 %v79, %v3641
    %v3643 = vrot.slane %v3635, %v3642
    %v3644 = vsel %vm543, %v3643, %v3639
    %v3646 = vsel %vm546, %v3644, 0.0
    %3647 = vadd.xlane.f32.xlu0 %v3646
    %v3648 = vpop.xlane.xlu0 %3647
    %v3650 = vlaneseq
    %v3651 = vshrl.u32 %v3650, 7
    %v3652 = vsub.s32 0, %v3651
    %v3653 = vrot.slane %v3648, %v3652
    %v3654 = vlaneseq
    %v3655 = vshrl.u32 %v3654, 7
    %v3656 = vsub.s32 1, %v3655
    %v3657 = vrot.slane %v3648, %v3656
    %v3660 = vrcp.pop %v3653
    %v3661 = vmul.f32 %v3625, %v3660
    %v3662 = vrcp.pop %v3657
    %v3663 = vmul.f32 %v3627, %v3662
    %v3664 = vpack.c.bf16 %v3661, %v3661
    %v3665 = vpack.c.bf16 %v3663, %v3663
    %v3667 = vunpack.c.l.b16 %v3664
    %3668 = vset.pattern.permute.xlu0 0
    %3669 = vperm.xlu0 %3668, %v3667
    %v3670 = vpop.permute.xlu0 %3669
    %v3671 = vlaneseq
    %v3672 = vshrl.u32 %v3671, 7
    %v3673 = vsub.s32 %v79, %v3672
    %v3674 = vrot.slane %v3670, %v3673
    %v3675 = vpack.c.b16 %v3674, %v3674
    %v3677 = vsel %vm615, %v3675, 0
    %3679 = vmatprep.subr.bf16.mxu0 0
    %3680 = vmatpush1.bf16.msra.mxu0 %v621
    %3681 = vmatprep.subr.bf16.mxu0 0
    %3682 = vmatpush1.bf16.msra.mxu0 0
    %3683 = vmatprep.subr.bf16.mxu0 0
    %3684 = vmatpush1.bf16.msra.mxu0 0
    %3685 = vmatprep.subr.bf16.mxu0 0
    %3686 = vmatpush1.bf16.msra.mxu0 0
    %3687 = vmatprep.subr.bf16.mxu0 0
    %3688 = vmatpush1.bf16.msra.mxu0 0
    %3689 = vmatprep.subr.bf16.mxu0 0
    %3690 = vmatpush1.bf16.msra.mxu0 0
    %3691 = vmatprep.subr.bf16.mxu0 0
    %3692 = vmatpush1.bf16.msra.mxu0 0
    %3693 = vmatprep.subr.bf16.mxu0 0
    %3694 = vmatpush1.bf16.msra.mxu0 0
    %3695 = vmatprep.subr.bf16.mxu0 0
    %3696 = vmatpush1.bf16.msra.mxu0 0
    %3697 = vmatprep.subr.bf16.mxu0 0
    %3698 = vmatpush1.bf16.msra.mxu0 0
    %3699 = vmatprep.subr.bf16.mxu0 0
    %3700 = vmatpush1.bf16.msra.mxu0 0
    %3701 = vmatprep.subr.bf16.mxu0 0
    %3702 = vmatpush1.bf16.msra.mxu0 0
    %3703 = vmatprep.subr.bf16.mxu0 0
    %3704 = vmatpush1.bf16.msra.mxu0 0
    %3705 = vmatprep.subr.bf16.mxu0 0
    %3706 = vmatpush1.bf16.msra.mxu0 0
    %3707 = vmatprep.subr.bf16.mxu0 0
    %3708 = vmatpush1.bf16.msra.mxu0 0
    %3709 = vmatprep.subr.bf16.mxu0 0
    %3710 = vmatpush1.bf16.msra.mxu0 0
    %3711 = vmatprep.mubr.bf16.mxu0 0
    %3712 = vmatmul.mubr.bf16.gmra.mrb[0].mxu0 %v3677
    %v3713 = vpop.f32.mrb[0].mxu0
    %v3714 = vadd.f32 0.0, %v3713
    %v3715 = vpop.f32.mrb[0].mxu0
    %v3716 = vpop.f32.mrb[0].mxu0
    %v3717 = vpop.f32.mrb[0].mxu0
    %3718 = vdwg.mxu0
    %v3720 = vunpack.c.l.b16 %v3665
    %3721 = vset.pattern.permute.xlu0 0
    %3722 = vperm.xlu0 %3721, %v3720
    %v3723 = vpop.permute.xlu0 %3722
    %v3724 = vlaneseq
    %v3725 = vshrl.u32 %v3724, 7
    %v3726 = vsub.s32 %v79, %v3725
    %v3727 = vrot.slane %v3723, %v3726
    %v3728 = vpack.c.b16 %v3727, %v3727
    %v3730 = vsel %vm615, %v3728, 0
    %3732 = vmatprep.subr.bf16.mxu0 0
    %3733 = vmatpush1.bf16.msra.mxu0 %v677
    %3734 = vmatprep.subr.bf16.mxu0 0
    %3735 = vmatpush1.bf16.msra.mxu0 0
    %3736 = vmatprep.subr.bf16.mxu0 0
    %3737 = vmatpush1.bf16.msra.mxu0 0
    %3738 = vmatprep.subr.bf16.mxu0 0
    %3739 = vmatpush1.bf16.msra.mxu0 0
    %3740 = vmatprep.subr.bf16.mxu0 0
    %3741 = vmatpush1.bf16.msra.mxu0 0
    %3742 = vmatprep.subr.bf16.mxu0 0
    %3743 = vmatpush1.bf16.msra.mxu0 0
    %3744 = vmatprep.subr.bf16.mxu0 0
    %3745 = vmatpush1.bf16.msra.mxu0 0
    %3746 = vmatprep.subr.bf16.mxu0 0
    %3747 = vmatpush1.bf16.msra.mxu0 0
    %3748 = vmatprep.subr.bf16.mxu0 0
    %3749 = vmatpush1.bf16.msra.mxu0 0
    %3750 = vmatprep.subr.bf16.mxu0 0
    %3751 = vmatpush1.bf16.msra.mxu0 0
    %3752 = vmatprep.subr.bf16.mxu0 0
    %3753 = vmatpush1.bf16.msra.mxu0 0
    %3754 = vmatprep.subr.bf16.mxu0 0
    %3755 = vmatpush1.bf16.msra.mxu0 0
    %3756 = vmatprep.subr.bf16.mxu0 0
    %3757 = vmatpush1.bf16.msra.mxu0 0
    %3758 = vmatprep.subr.bf16.mxu0 0
    %3759 = vmatpush1.bf16.msra.mxu0 0
    %3760 = vmatprep.subr.bf16.mxu0 0
    %3761 = vmatpush1.bf16.msra.mxu0 0
    %3762 = vmatprep.subr.bf16.mxu0 0
    %3763 = vmatpush1.bf16.msra.mxu0 0
    %3764 = vmatprep.mubr.bf16.mxu0 0
    %3765 = vmatmul.mubr.bf16.gmra.mrb[0].mxu0 %v3730
    %v3766 = vpop.f32.mrb[0].mxu0
    %v3767 = vadd.f32 0.0, %v3766
    %v3768 = vpop.f32.mrb[0].mxu0
    %v3769 = vpop.f32.mrb[0].mxu0
    %v3770 = vpop.f32.mrb[0].mxu0
    %3771 = vdwg.mxu0
    %v3772 = vpack.c.bf16 %v3714, %v3714
    %v3773 = vpack.c.bf16 %v3767, %v3767
    %v3774 = vpack.c.bf16 %v3550, %v3550
    %v3776 = vsel %vm151, %v3774, 0
    %3778 = vmatprep.subr.bf16.mxu0 0
    %3779 = vmatpush1.bf16.msra.mxu0 %v726
    %3780 = vmatprep.subr.bf16.mxu0 0
    %3781 = vmatpush1.bf16.msra.mxu0 0
    %3782 = vmatprep.subr.bf16.mxu0 0
    %3783 = vmatpush1.bf16.msra.mxu0 0
    %3784 = vmatprep.subr.bf16.mxu0 0
    %3785 = vmatpush1.bf16.msra.mxu0 0
    %3786 = vmatprep.subr.bf16.mxu0 0
    %3787 = vmatpush1.bf16.msra.mxu0 0
    %3788 = vmatprep.subr.bf16.mxu0 0
    %3789 = vmatpush1.bf16.msra.mxu0 0
    %3790 = vmatprep.subr.bf16.mxu0 0
    %3791 = vmatpush1.bf16.msra.mxu0 0
    %3792 = vmatprep.subr.bf16.mxu0 0
    %3793 = vmatpush1.bf16.msra.mxu0 0
    %3794 = vmatprep.subr.bf16.mxu0 0
    %3795 = vmatpush1.bf16.msra.mxu0 0
    %3796 = vmatprep.subr.bf16.mxu0 0
    %3797 = vmatpush1.bf16.msra.mxu0 0
    %3798 = vmatprep.subr.bf16.mxu0 0
    %3799 = vmatpush1.bf16.msra.mxu0 0
    %3800 = vmatprep.subr.bf16.mxu0 0
    %3801 = vmatpush1.bf16.msra.mxu0 0
    %3802 = vmatprep.subr.bf16.mxu0 0
    %3803 = vmatpush1.bf16.msra.mxu0 0
    %3804 = vmatprep.subr.bf16.mxu0 0
    %3805 = vmatpush1.bf16.msra.mxu0 0
    %3806 = vmatprep.subr.bf16.mxu0 0
    %3807 = vmatpush1.bf16.msra.mxu0 0
    %3808 = vmatprep.subr.bf16.mxu0 0
    %3809 = vmatpush1.bf16.msra.mxu0 0
    %3810 = vmatprep.mubr.bf16.mxu0 0
    %3811 = vmatmul.mubr.bf16.gmra.mrb[0].mxu0 %v3776
    %v3812 = vpop.f32.mrb[0].mxu0
    %v3813 = vadd.f32 0.0, %v3812
    %v3814 = vpop.f32.mrb[0].mxu0
    %v3815 = vpop.f32.mrb[0].mxu0
    %v3816 = vpop.f32.mrb[0].mxu0
    %3817 = vdwg.mxu0
    %v3820 = vunpack.c.l.b16 %v3772
    %v3821 = vunpack.c.l.b16 %v3773
    %v3822 = vrot.slane %v3821, 7
    %v3823 = vsel %vm543, %v3822, %v3820
    %v3824 = vpack.c.b16 %v3823, %v3823
    %v3826 = vsel %vm151, %v3824, 0
    %3828 = vmatprep.subr.bf16.mxu0 0
    %3829 = vmatpush1.bf16.msra.mxu0 %v782
    %3830 = vmatprep.subr.bf16.mxu0 0
    %3831 = vmatpush1.bf16.msra.mxu0 0
    %3832 = vmatprep.subr.bf16.mxu0 0
    %3833 = vmatpush1.bf16.msra.mxu0 0
    %3834 = vmatprep.subr.bf16.mxu0 0
    %3835 = vmatpush1.bf16.msra.mxu0 0
    %3836 = vmatprep.subr.bf16.mxu0 0
    %3837 = vmatpush1.bf16.msra.mxu0 0
    %3838 = vmatprep.subr.bf16.mxu0 0
    %3839 = vmatpush1.bf16.msra.mxu0 0
    %3840 = vmatprep.subr.bf16.mxu0 0
    %3841 = vmatpush1.bf16.msra.mxu0 0
    %3842 = vmatprep.subr.bf16.mxu0 0
    %3843 = vmatpush1.bf16.msra.mxu0 0
    %3844 = vmatprep.subr.bf16.mxu0 0
    %3845 = vmatpush1.bf16.msra.mxu0 0
    %3846 = vmatprep.subr.bf16.mxu0 0
    %3847 = vmatpush1.bf16.msra.mxu0 0
    %3848 = vmatprep.subr.bf16.mxu0 0
    %3849 = vmatpush1.bf16.msra.mxu0 0
    %3850 = vmatprep.subr.bf16.mxu0 0
    %3851 = vmatpush1.bf16.msra.mxu0 0
    %3852 = vmatprep.subr.bf16.mxu0 0
    %3853 = vmatpush1.bf16.msra.mxu0 0
    %3854 = vmatprep.subr.bf16.mxu0 0
    %3855 = vmatpush1.bf16.msra.mxu0 0
    %3856 = vmatprep.subr.bf16.mxu0 0
    %3857 = vmatpush1.bf16.msra.mxu0 0
    %3858 = vmatprep.subr.bf16.mxu0 0
    %3859 = vmatpush1.bf16.msra.mxu0 0
    %3860 = vmatprep.mubr.bf16.mxu0 0
    %3861 = vmatmul.mubr.bf16.gmra.mrb[0].mxu0 %v3826
    %v3862 = vpop.f32.mrb[0].mxu0
    %v3863 = vadd.f32 %v3813, %v3862
    %v3864 = vpop.f32.mrb[0].mxu0
    %v3865 = vpop.f32.mrb[0].mxu0
    %v3866 = vpop.f32.mrb[0].mxu0
    %3867 = vdwg.mxu0
    %v3868 = vtanh.pop %v3863
    %v3869 = vpack.c.bf16 %v3868, %v3868
    %v3871 = vsel %vm151, %v3869, 0
    %3873 = vmatprep.subr.bf16.mxu0 0
    %3874 = vmatpush1.bf16.xpose.msra.mxu0 %v843
    %3875 = vmatprep.subr.bf16.mxu0 0
    %3876 = vmatpush1.bf16.xpose.msra.mxu0 %v846
    %3877 = vmatprep.subr.bf16.mxu0 0
    %3878 = vmatpush1.bf16.xpose.msra.mxu0 0
    %3879 = vmatprep.subr.bf16.mxu0 0
    %3880 = vmatpush1.bf16.xpose.msra.mxu0 0
    %3881 = vmatprep.subr.bf16.mxu0 0
    %3882 = vmatpush1.bf16.xpose.msra.mxu0 0
    %3883 = vmatprep.subr.bf16.mxu0 0
    %3884 = vmatpush1.bf16.xpose.msra.mxu0 0
    %3885 = vmatprep.subr.bf16.mxu0 0
    %3886 = vmatpush1.bf16.xpose.msra.mxu0 0
    %3887 = vmatprep.subr.bf16.mxu0 0
    %3888 = vmatpush1.bf16.xpose.msra.mxu0 0
    %3889 = vmatprep.subr.bf16.mxu0 0
    %3890 = vmatpush1.bf16.xpose.msra.mxu0 0
    %3891 = vmatprep.subr.bf16.mxu0 0
    %3892 = vmatpush1.bf16.xpose.msra.mxu0 0
    %3893 = vmatprep.subr.bf16.mxu0 0
    %3894 = vmatpush1.bf16.xpose.msra.mxu0 0
    %3895 = vmatprep.subr.bf16.mxu0 0
    %3896 = vmatpush1.bf16.xpose.msra.mxu0 0
    %3897 = vmatprep.subr.bf16.mxu0 0
    %3898 = vmatpush1.bf16.xpose.msra.mxu0 0
    %3899 = vmatprep.subr.bf16.mxu0 0
    %3900 = vmatpush1.bf16.xpose.msra.mxu0 0
    %3901 = vmatprep.subr.bf16.mxu0 0
    %3902 = vmatpush1.bf16.xpose.msra.mxu0 0
    %3903 = vmatprep.subr.bf16.mxu0 0
    %3904 = vmatpush1.bf16.xpose.msra.mxu0 0
    %3905 = vmatprep.mubr.bf16.mxu0 0
    %3906 = vmatmul.mubr.bf16.gmra.mrb[0].mxu0 %v3871
    %v3907 = vpop.f32.mrb[0].mxu0
    %v3908 = vadd.f32 0.0, %v3907
    %v3909 = vpop.f32.mrb[0].mxu0
    %v3910 = vpop.f32.mrb[0].mxu0
    %v3911 = vpop.f32.mrb[0].mxu0
    %3912 = vdwg.mxu0
    %s3913 = scalar_lea.vmem [#allocation2], 8
    %3914 = vst.msk [vmem:[%s3913] sm:$0x3] %vm888, %v3908
    %3917 = vset.pattern.permute.xlu0 0
    %3918 = vperm.xlu0 %3917, %v3661
    %v3919 = vpop.permute.xlu0 %3918
    %3920 = vset.pattern.permute.xlu0 0
    %3921 = vperm.xlu0 %3920, %v3663
    %v3922 = vpop.permute.xlu0 %3921
    %v3923 = vlaneseq
    %v3924 = vshrl.u32 %v3923, 7
    %v3925 = vsub.s32 %v79, %v3924
    %v3926 = vrot.slane %v3919, %v3925
    %v3927 = vlaneseq
    %v3928 = vshrl.u32 %v3927, 7
    %v3929 = vsub.s32 %v79, %v3928
    %v3930 = vrot.slane %v3922, %v3929
    %v3931 = vsel %vm543, %v3930, %v3926
    %s3933 = scalar_lea.vmem [#allocation4], 8
    %3934 = vst.msk [vmem:[%s3933] sm:$0x3] %vm546, %v3931
    %v3935 = vsel %vm888, %v3908, -inf
    %3936 = vmax.xlane.f32.xlu0 %v3935
    %v3937 = vpop.xlane.xlu0 %3936
    %vm3938 = vcmp.eq.f32.partialorder %v3908, %v3937
    %v3939 = vsel %vm3938, %v79, 32
    %v3940 = vsel %vm888, %v3939, 2147483647
    %v3941 = vand.u32 %v3940, 65535
    %v3942 = vshra.s32 %v3940, 16
    %v3943 = vcvt.s32.f32 %v3941
    %v3944 = vcvt.s32.f32 %v3942
    %3945 = vmin.xlane.f32.xlu0 %v3944
    %v3946 = vpop.xlane.xlu0 %3945
    %vm3947 = vcmp.eq.f32.partialorder %v3944, %v3946
    %v3948 = vsel %vm3947, %v3943, inf
    %3949 = vmin.xlane.f32.xlu0 %v3948
    %v3950 = vpop.xlane.xlu0 %3949
    %v3951 = vcvt.f32.s32 %v3950
    %v3952 = vcvt.f32.s32 %v3946
    %v3953 = vshll.u32 %v3952, 16
    %v3954 = vadd.s32 %v3953, %v3951
    %vm3955 = vcmp.eq.s32.totalorder %v79, %v3954
    %v3956 = vsel %vm3955, 1, 0
    %v3957 = vcvt.s32.f32 %v3956
    %v3958 = vpack.c.bf16 %v3957, %v3957
    %v3960 = vsel %vm101, %v3958, 0
    %3962 = vmatprep.subr.bf16.mxu0 0
    %3963 = vmatpush1.bf16.msra.mxu0 %v837
    %3964 = vmatprep.subr.bf16.mxu0 0
    %3965 = vmatpush1.bf16.msra.mxu0 %v838
    %3966 = vmatprep.subr.bf16.mxu0 0
    %3967 = vmatpush1.bf16.msra.mxu0 0
    %3968 = vmatprep.subr.bf16.mxu0 0
    %3969 = vmatpush1.bf16.msra.mxu0 0
    %3970 = vmatprep.subr.bf16.mxu0 0
    %3971 = vmatpush1.bf16.msra.mxu0 0
    %3972 = vmatprep.subr.bf16.mxu0 0
    %3973 = vmatpush1.bf16.msra.mxu0 0
    %3974 = vmatprep.subr.bf16.mxu0 0
    %3975 = vmatpush1.bf16.msra.mxu0 0
    %3976 = vmatprep.subr.bf16.mxu0 0
    %3977 = vmatpush1.bf16.msra.mxu0 0
    %3978 = vmatprep.subr.bf16.mxu0 0
    %3979 = vmatpush1.bf16.msra.mxu0 0
    %3980 = vmatprep.subr.bf16.mxu0 0
    %3981 = vmatpush1.bf16.msra.mxu0 0
    %3982 = vmatprep.subr.bf16.mxu0 0
    %3983 = vmatpush1.bf16.msra.mxu0 0
    %3984 = vmatprep.subr.bf16.mxu0 0
    %3985 = vmatpush1.bf16.msra.mxu0 0
    %3986 = vmatprep.subr.bf16.mxu0 0
    %3987 = vmatpush1.bf16.msra.mxu0 0
    %3988 = vmatprep.subr.bf16.mxu0 0
    %3989 = vmatpush1.bf16.msra.mxu0 0
    %3990 = vmatprep.subr.bf16.mxu0 0
    %3991 = vmatpush1.bf16.msra.mxu0 0
    %3992 = vmatprep.subr.bf16.mxu0 0
    %3993 = vmatpush1.bf16.msra.mxu0 0
    %3994 = vmatprep.mubr.bf16.mxu0 0
    %3995 = vmatmul.mubr.bf16.gmra.mrb[0].mxu0 %v3960
    %v3996 = vpop.f32.mrb[0].mxu0
    %v3997 = vadd.f32 0.0, %v3996
    %v3998 = vpop.f32.mrb[0].mxu0
    %v3999 = vpop.f32.mrb[0].mxu0
    %v4000 = vpop.f32.mrb[0].mxu0
    %4001 = vdwg.mxu0
    %v4002 = vpack.c.bf16 %v3997, %v3997
    %4003 = vmatprep.subr.bf16.mxu0 0
    %4004 = vmatpush1.bf16.msra.mxu0 %v97
    %4005 = vmatprep.subr.bf16.mxu0 0
    %4006 = vmatpush1.bf16.msra.mxu0 %v98
    %4007 = vmatprep.subr.bf16.mxu0 0
    %4008 = vmatpush1.bf16.msra.mxu0 0
    %4009 = vmatprep.subr.bf16.mxu0 0
    %4010 = vmatpush1.bf16.msra.mxu0 0
    %4011 = vmatprep.subr.bf16.mxu0 0
    %4012 = vmatpush1.bf16.msra.mxu0 0
    %4013 = vmatprep.subr.bf16.mxu0 0
    %4014 = vmatpush1.bf16.msra.mxu0 0
    %4015 = vmatprep.subr.bf16.mxu0 0
    %4016 = vmatpush1.bf16.msra.mxu0 0
    %4017 = vmatprep.subr.bf16.mxu0 0
    %4018 = vmatpush1.bf16.msra.mxu0 0
    %4019 = vmatprep.subr.bf16.mxu0 0
    %4020 = vmatpush1.bf16.msra.mxu0 0
    %4021 = vmatprep.subr.bf16.mxu0 0
    %4022 = vmatpush1.bf16.msra.mxu0 0
    %4023 = vmatprep.subr.bf16.mxu0 0
    %4024 = vmatpush1.bf16.msra.mxu0 0
    %4025 = vmatprep.subr.bf16.mxu0 0
    %4026 = vmatpush1.bf16.msra.mxu0 0
    %4027 = vmatprep.subr.bf16.mxu0 0
    %4028 = vmatpush1.bf16.msra.mxu0 0
    %4029 = vmatprep.subr.bf16.mxu0 0
    %4030 = vmatpush1.bf16.msra.mxu0 0
    %4031 = vmatprep.subr.bf16.mxu0 0
    %4032 = vmatpush1.bf16.msra.mxu0 0
    %4033 = vmatprep.subr.bf16.mxu0 0
    %4034 = vmatpush1.bf16.msra.mxu0 0
    %4035 = vmatprep.mubr.bf16.mxu0 0
    %4036 = vmatmul.mubr.bf16.gmra.mrb[0].mxu0 %v3513
    %v4037 = vpop.f32.mrb[0].mxu0
    %v4038 = vadd.f32 0.0, %v4037
    %v4039 = vpop.f32.mrb[0].mxu0
    %v4040 = vpop.f32.mrb[0].mxu0
    %v4041 = vpop.f32.mrb[0].mxu0
    %4042 = vdwg.mxu0
    %v4044 = vsel %vm151, %v4002, 0
    %4046 = vmatprep.subr.bf16.mxu0 0
    %4047 = vmatpush1.bf16.msra.mxu0 %v149
    %4048 = vmatprep.subr.bf16.mxu0 0
    %4049 = vmatpush1.bf16.msra.mxu0 0
    %4050 = vmatprep.subr.bf16.mxu0 0
    %4051 = vmatpush1.bf16.msra.mxu0 0
    %4052 = vmatprep.subr.bf16.mxu0 0
    %4053 = vmatpush1.bf16.msra.mxu0 0
    %4054 = vmatprep.subr.bf16.mxu0 0
    %4055 = vmatpush1.bf16.msra.mxu0 0
    %4056 = vmatprep.subr.bf16.mxu0 0
    %4057 = vmatpush1.bf16.msra.mxu0 0
    %4058 = vmatprep.subr.bf16.mxu0 0
    %4059 = vmatpush1.bf16.msra.mxu0 0
    %4060 = vmatprep.subr.bf16.mxu0 0
    %4061 = vmatpush1.bf16.msra.mxu0 0
    %4062 = vmatprep.subr.bf16.mxu0 0
    %4063 = vmatpush1.bf16.msra.mxu0 0
    %4064 = vmatprep.subr.bf16.mxu0 0
    %4065 = vmatpush1.bf16.msra.mxu0 0
    %4066 = vmatprep.subr.bf16.mxu0 0
    %4067 = vmatpush1.bf16.msra.mxu0 0
    %4068 = vmatprep.subr.bf16.mxu0 0
    %4069 = vmatpush1.bf16.msra.mxu0 0
    %4070 = vmatprep.subr.bf16.mxu0 0
    %4071 = vmatpush1.bf16.msra.mxu0 0
    %4072 = vmatprep.subr.bf16.mxu0 0
    %4073 = vmatpush1.bf16.msra.mxu0 0
    %4074 = vmatprep.subr.bf16.mxu0 0
    %4075 = vmatpush1.bf16.msra.mxu0 0
    %4076 = vmatprep.subr.bf16.mxu0 0
    %4077 = vmatpush1.bf16.msra.mxu0 0
    %4078 = vmatprep.mubr.bf16.mxu0 0
    %4079 = vmatmul.mubr.bf16.gmra.mrb[0].mxu0 %v4044
    %v4080 = vpop.f32.mrb[0].mxu0
    %v4081 = vadd.f32 %v4038, %v4080
    %v4082 = vpop.f32.mrb[0].mxu0
    %v4083 = vpop.f32.mrb[0].mxu0
    %v4084 = vpop.f32.mrb[0].mxu0
    %4085 = vdwg.mxu0
    %v4086 = vadd.f32 %v4081, %v199
    %v4087 = vxor.u32 %v4086, 2147483648
    %v4088 = vmul.f32 %v4087, 1.442695
    %v4089 = vpow.pop %v4088
    %v4090 = vadd.f32 %v4089, 1.0
    %v4091 = vrcp.pop %v4090
    %v4092 = vmul.f32 1.0, %v4091
    %4093 = vmatprep.subr.bf16.mxu0 0
    %4094 = vmatpush1.bf16.msra.mxu0 %v216
    %4095 = vmatprep.subr.bf16.mxu0 0
    %4096 = vmatpush1.bf16.msra.mxu0 %v217
    %4097 = vmatprep.subr.bf16.mxu0 0
    %4098 = vmatpush1.bf16.msra.mxu0 0
    %4099 = vmatprep.subr.bf16.mxu0 0
    %4100 = vmatpush1.bf16.msra.mxu0 0
    %4101 = vmatprep.subr.bf16.mxu0 0
    %4102 = vmatpush1.bf16.msra.mxu0 0
    %4103 = vmatprep.subr.bf16.mxu0 0
    %4104 = vmatpush1.bf16.msra.mxu0 0
    %4105 = vmatprep.subr.bf16.mxu0 0
    %4106 = vmatpush1.bf16.msra.mxu0 0
    %4107 = vmatprep.subr.bf16.mxu0 0
    %4108 = vmatpush1.bf16.msra.mxu0 0
    %4109 = vmatprep.subr.bf16.mxu0 0
    %4110 = vmatpush1.bf16.msra.mxu0 0
    %4111 = vmatprep.subr.bf16.mxu0 0
    %4112 = vmatpush1.bf16.msra.mxu0 0
    %4113 = vmatprep.subr.bf16.mxu0 0
    %4114 = vmatpush1.bf16.msra.mxu0 0
    %4115 = vmatprep.subr.bf16.mxu0 0
    %4116 = vmatpush1.bf16.msra.mxu0 0
    %4117 = vmatprep.subr.bf16.mxu0 0
    %4118 = vmatpush1.bf16.msra.mxu0 0
    %4119 = vmatprep.subr.bf16.mxu0 0
    %4120 = vmatpush1.bf16.msra.mxu0 0
    %4121 = vmatprep.subr.bf16.mxu0 0
    %4122 = vmatpush1.bf16.msra.mxu0 0
    %4123 = vmatprep.subr.bf16.mxu0 0
    %4124 = vmatpush1.bf16.msra.mxu0 0
    %4125 = vmatprep.mubr.bf16.mxu0 0
    %4126 = vmatmul.mubr.bf16.gmra.mrb[0].mxu0 %v3513
    %v4127 = vpop.f32.mrb[0].mxu0
    %v4128 = vadd.f32 0.0, %v4127
    %v4129 = vpop.f32.mrb[0].mxu0
    %v4130 = vpop.f32.mrb[0].mxu0
    %v4131 = vpop.f32.mrb[0].mxu0
    %4132 = vdwg.mxu0
    %4133 = vmatprep.subr.bf16.mxu0 0
    %4134 = vmatpush1.bf16.msra.mxu0 %v264
    %4135 = vmatprep.subr.bf16.mxu0 0
    %4136 = vmatpush1.bf16.msra.mxu0 0
    %4137 = vmatprep.subr.bf16.mxu0 0
    %4138 = vmatpush1.bf16.msra.mxu0 0
    %4139 = vmatprep.subr.bf16.mxu0 0
    %4140 = vmatpush1.bf16.msra.mxu0 0
    %4141 = vmatprep.subr.bf16.mxu0 0
    %4142 = vmatpush1.bf16.msra.mxu0 0
    %4143 = vmatprep.subr.bf16.mxu0 0
    %4144 = vmatpush1.bf16.msra.mxu0 0
    %4145 = vmatprep.subr.bf16.mxu0 0
    %4146 = vmatpush1.bf16.msra.mxu0 0
    %4147 = vmatprep.subr.bf16.mxu0 0
    %4148 = vmatpush1.bf16.msra.mxu0 0
    %4149 = vmatprep.subr.bf16.mxu0 0
    %4150 = vmatpush1.bf16.msra.mxu0 0
    %4151 = vmatprep.subr.bf16.mxu0 0
    %4152 = vmatpush1.bf16.msra.mxu0 0
    %4153 = vmatprep.subr.bf16.mxu0 0
    %4154 = vmatpush1.bf16.msra.mxu0 0
    %4155 = vmatprep.subr.bf16.mxu0 0
    %4156 = vmatpush1.bf16.msra.mxu0 0
    %4157 = vmatprep.subr.bf16.mxu0 0
    %4158 = vmatpush1.bf16.msra.mxu0 0
    %4159 = vmatprep.subr.bf16.mxu0 0
    %4160 = vmatpush1.bf16.msra.mxu0 0
    %4161 = vmatprep.subr.bf16.mxu0 0
    %4162 = vmatpush1.bf16.msra.mxu0 0
    %4163 = vmatprep.subr.bf16.mxu0 0
    %4164 = vmatpush1.bf16.msra.mxu0 0
    %4165 = vmatprep.mubr.bf16.mxu0 0
    %4166 = vmatmul.mubr.bf16.gmra.mrb[0].mxu0 %v4044
    %v4167 = vpop.f32.mrb[0].mxu0
    %v4168 = vadd.f32 %v4128, %v4167
    %v4169 = vpop.f32.mrb[0].mxu0
    %v4170 = vpop.f32.mrb[0].mxu0
    %v4171 = vpop.f32.mrb[0].mxu0
    %4172 = vdwg.mxu0
    %v4173 = vadd.f32 %v4168, %v310
    %v4174 = vxor.u32 %v4173, 2147483648
    %v4175 = vmul.f32 %v4174, 1.442695
    %v4176 = vpow.pop %v4175
    %v4177 = vadd.f32 %v4176, 1.0
    %v4178 = vrcp.pop %v4177
    %v4179 = vmul.f32 1.0, %v4178
    %4180 = vmatprep.subr.bf16.mxu0 0
    %4181 = vmatpush1.bf16.msra.mxu0 %v329
    %4182 = vmatprep.subr.bf16.mxu0 0
    %4183 = vmatpush1.bf16.msra.mxu0 0
    %4184 = vmatprep.subr.bf16.mxu0 0
    %4185 = vmatpush1.bf16.msra.mxu0 0
    %4186 = vmatprep.subr.bf16.mxu0 0
    %4187 = vmatpush1.bf16.msra.mxu0 0
    %4188 = vmatprep.subr.bf16.mxu0 0
    %4189 = vmatpush1.bf16.msra.mxu0 0
    %4190 = vmatprep.subr.bf16.mxu0 0
    %4191 = vmatpush1.bf16.msra.mxu0 0
    %4192 = vmatprep.subr.bf16.mxu0 0
    %4193 = vmatpush1.bf16.msra.mxu0 0
    %4194 = vmatprep.subr.bf16.mxu0 0
    %4195 = vmatpush1.bf16.msra.mxu0 0
    %4196 = vmatprep.subr.bf16.mxu0 0
    %4197 = vmatpush1.bf16.msra.mxu0 0
    %4198 = vmatprep.subr.bf16.mxu0 0
    %4199 = vmatpush1.bf16.msra.mxu0 0
    %4200 = vmatprep.subr.bf16.mxu0 0
    %4201 = vmatpush1.bf16.msra.mxu0 0
    %4202 = vmatprep.subr.bf16.mxu0 0
    %4203 = vmatpush1.bf16.msra.mxu0 0
    %4204 = vmatprep.subr.bf16.mxu0 0
    %4205 = vmatpush1.bf16.msra.mxu0 0
    %4206 = vmatprep.subr.bf16.mxu0 0
    %4207 = vmatpush1.bf16.msra.mxu0 0
    %4208 = vmatprep.subr.bf16.mxu0 0
    %4209 = vmatpush1.bf16.msra.mxu0 0
    %4210 = vmatprep.subr.bf16.mxu0 0
    %4211 = vmatpush1.bf16.msra.mxu0 0
    %4212 = vmatprep.mubr.bf16.mxu0 0
    %4213 = vmatmul.mubr.bf16.gmra.mrb[0].mxu0 %v4044
    %v4214 = vpop.f32.mrb[0].mxu0
    %v4215 = vadd.f32 %v323, %v4214
    %v4216 = vpop.f32.mrb[0].mxu0
    %v4217 = vpop.f32.mrb[0].mxu0
    %v4218 = vpop.f32.mrb[0].mxu0
    %4219 = vdwg.mxu0
    %4220 = vmatprep.subr.bf16.mxu0 0
    %4221 = vmatpush1.bf16.msra.mxu0 %v385
    %4222 = vmatprep.subr.bf16.mxu0 0
    %4223 = vmatpush1.bf16.msra.mxu0 %v386
    %4224 = vmatprep.subr.bf16.mxu0 0
    %4225 = vmatpush1.bf16.msra.mxu0 0
    %4226 = vmatprep.subr.bf16.mxu0 0
    %4227 = vmatpush1.bf16.msra.mxu0 0
    %4228 = vmatprep.subr.bf16.mxu0 0
    %4229 = vmatpush1.bf16.msra.mxu0 0
    %4230 = vmatprep.subr.bf16.mxu0 0
    %4231 = vmatpush1.bf16.msra.mxu0 0
    %4232 = vmatprep.subr.bf16.mxu0 0
    %4233 = vmatpush1.bf16.msra.mxu0 0
    %4234 = vmatprep.subr.bf16.mxu0 0
    %4235 = vmatpush1.bf16.msra.mxu0 0
    %4236 = vmatprep.subr.bf16.mxu0 0
    %4237 = vmatpush1.bf16.msra.mxu0 0
    %4238 = vmatprep.subr.bf16.mxu0 0
    %4239 = vmatpush1.bf16.msra.mxu0 0
    %4240 = vmatprep.subr.bf16.mxu0 0
    %4241 = vmatpush1.bf16.msra.mxu0 0
    %4242 = vmatprep.subr.bf16.mxu0 0
    %4243 = vmatpush1.bf16.msra.mxu0 0
    %4244 = vmatprep.subr.bf16.mxu0 0
    %4245 = vmatpush1.bf16.msra.mxu0 0
    %4246 = vmatprep.subr.bf16.mxu0 0
    %4247 = vmatpush1.bf16.msra.mxu0 0
    %4248 = vmatprep.subr.bf16.mxu0 0
    %4249 = vmatpush1.bf16.msra.mxu0 0
    %4250 = vmatprep.subr.bf16.mxu0 0
    %4251 = vmatpush1.bf16.msra.mxu0 0
    %4252 = vmatprep.mubr.bf16.mxu0 0
    %4253 = vmatmul.mubr.bf16.gmra.mrb[0].mxu0 %v3513
    %v4254 = vpop.f32.mrb[0].mxu0
    %v4255 = vadd.f32 %v375, %v4254
    %v4256 = vpop.f32.mrb[0].mxu0
    %v4257 = vpop.f32.mrb[0].mxu0
    %v4258 = vpop.f32.mrb[0].mxu0
    %4259 = vdwg.mxu0
    %v4260 = vmul.f32 %v4092, %v4255
    %v4261 = vadd.f32 %v4215, %v4260
    %v4262 = vtanh.pop %v4261
    %v4263 = vsub.f32 1.0, %v4179
    %v4264 = vmul.f32 %v4263, %v4262
    %v4265 = vmul.f32 %v4179, %v3510
    %v4266 = vadd.f32 %v4264, %v4265
    %v4267 = vpack.c.bf16 %v4266, %v4266
    %v4269 = vsel %vm101, %v4267, 0
    %4271 = vmatprep.subr.bf16.mxu0 0
    %4272 = vmatpush1.bf16.msra.mxu0 %v445
    %4273 = vmatprep.subr.bf16.mxu0 0
    %4274 = vmatpush1.bf16.msra.mxu0 %v446
    %4275 = vmatprep.subr.bf16.mxu0 0
    %4276 = vmatpush1.bf16.msra.mxu0 0
    %4277 = vmatprep.subr.bf16.mxu0 0
    %4278 = vmatpush1.bf16.msra.mxu0 0
    %4279 = vmatprep.subr.bf16.mxu0 0
    %4280 = vmatpush1.bf16.msra.mxu0 0
    %4281 = vmatprep.subr.bf16.mxu0 0
    %4282 = vmatpush1.bf16.msra.mxu0 0
    %4283 = vmatprep.subr.bf16.mxu0 0
    %4284 = vmatpush1.bf16.msra.mxu0 0
    %4285 = vmatprep.subr.bf16.mxu0 0
    %4286 = vmatpush1.bf16.msra.mxu0 0
    %4287 = vmatprep.subr.bf16.mxu0 0
    %4288 = vmatpush1.bf16.msra.mxu0 0
    %4289 = vmatprep.subr.bf16.mxu0 0
    %4290 = vmatpush1.bf16.msra.mxu0 0
    %4291 = vmatprep.subr.bf16.mxu0 0
    %4292 = vmatpush1.bf16.msra.mxu0 0
    %4293 = vmatprep.subr.bf16.mxu0 0
    %4294 = vmatpush1.bf16.msra.mxu0 0
    %4295 = vmatprep.subr.bf16.mxu0 0
    %4296 = vmatpush1.bf16.msra.mxu0 0
    %4297 = vmatprep.subr.bf16.mxu0 0
    %4298 = vmatpush1.bf16.msra.mxu0 0
    %4299 = vmatprep.subr.bf16.mxu0 0
    %4300 = vmatpush1.bf16.msra.mxu0 0
    %4301 = vmatprep.subr.bf16.mxu0 0
    %4302 = vmatpush1.bf16.msra.mxu0 0
    %4303 = vmatprep.mubr.bf16.mxu0 0
    %4304 = vmatmul.mubr.bf16.gmra.mrb[0].mxu0 %v4269
    %v4305 = vpop.f32.mrb[0].mxu0
    %v4306 = vadd.f32 0.0, %v4305
    %v4307 = vpop.f32.mrb[0].mxu0
    %v4308 = vpop.f32.mrb[0].mxu0
    %v4309 = vpop.f32.mrb[0].mxu0
    %4310 = vdwg.mxu0
    %v4313 = vunpack.c.l.s4 1966171168
    %v4314 = vunpack.c.0.s8 %v4313
    %v4315 = vlaneseq
    %v4316 = vshrl.u32 %v4315, 7
    %v4317 = vsub.s32 %v4314, %v4316
    %v4318 = vrot.slane %v4306, %v4317
    %v4319 = vcombine.high %v4318, %v4318
    %v4321 = vunpack.c.l.s4 1966171168
    %v4322 = vunpack.c.0.s8 %v4321
    %v4323 = vlaneseq
    %v4324 = vshrl.u32 %v4323, 7
    %v4325 = vsub.s32 %v4322, %v4324
    %v4326 = vrot.slane %v4318, %v4325
    %v4328 = vunpack.c.l.s4 1966171168
    %v4329 = vunpack.c.0.s8 %v4328
    %v4330 = vlaneseq
    %v4331 = vshrl.u32 %v4330, 7
    %v4332 = vsub.s32 %v4329, %v4331
    %v4333 = vrot.slane %v4319, %v4332
    %v4334 = vlaneseq
    %v4335 = vshrl.u32 %v4334, 7
    %v4336 = vsub.s32 0, %v4335
    %v4337 = vrot.slane %v4326, %v4336
    %v4338 = vlaneseq
    %v4339 = vshrl.u32 %v4338, 7
    %v4340 = vsub.s32 0, %v4339
    %v4341 = vrot.slane %v4333, %v4340
    %v4344 = vmul.f32 %v4337, %v43
    %v4345 = vmul.f32 %v4341, %v44
    %v4346 = vsel %vm151, %v4344, 0.0
    %4347 = vadd.xlane.f32.xlu0 %v4346
    %v4348 = vpop.xlane.xlu0 %4347
    %v4349 = vsel %vm151, %v4345, 0.0
    %4350 = vadd.xlane.f32.xlu0 %v4349
    %v4351 = vpop.xlane.xlu0 %4350
    %v4354 = vlaneseq
    %v4355 = vshrl.u32 %v4354, 7
    %v4356 = vsub.s32 %v79, %v4355
    %v4357 = vrot.slane %v4348, %v4356
    %v4358 = vlaneseq
    %v4359 = vshrl.u32 %v4358, 7
    %v4360 = vsub.s32 %v79, %v4359
    %v4361 = vrot.slane %v4351, %v4360
    %v4362 = vsel %vm543, %v4361, %v4357
    %v4364 = vsel %vm546, %v4362, -inf
    %4365 = vmax.xlane.f32.xlu0 %v4364
    %v4366 = vpop.xlane.xlu0 %4365
    %v4368 = vlaneseq
    %v4369 = vshrl.u32 %v4368, 7
    %v4370 = vsub.s32 0, %v4369
    %v4371 = vrot.slane %v4366, %v4370
    %v4372 = vlaneseq
    %v4373 = vshrl.u32 %v4372, 7
    %v4374 = vsub.s32 1, %v4373
    %v4375 = vrot.slane %v4366, %v4374
    %v4378 = vsub.f32 %v4348, %v4371
    %v4379 = vsub.f32 %v4351, %v4375
    %v4380 = vmul.f32 %v4378, 1.442695
    %v4381 = vpow.pop %v4380
    %v4382 = vmul.f32 %v4379, 1.442695
    %v4383 = vpow.pop %v4382
    %4386 = vset.pattern.permute.xlu0 0
    %4387 = vperm.xlu0 %4386, %v4381
    %v4388 = vpop.permute.xlu0 %4387
    %4389 = vset.pattern.permute.xlu0 0
    %4390 = vperm.xlu0 %4389, %v4383
    %v4391 = vpop.permute.xlu0 %4390
    %v4392 = vlaneseq
    %v4393 = vshrl.u32 %v4392, 7
    %v4394 = vsub.s32 %v79, %v4393
    %v4395 = vrot.slane %v4388, %v4394
    %v4396 = vlaneseq
    %v4397 = vshrl.u32 %v4396, 7
    %v4398 = vsub.s32 %v79, %v4397
    %v4399 = vrot.slane %v4391, %v4398
    %v4400 = vsel %vm543, %v4399, %v4395
    %v4402 = vsel %vm546, %v4400, 0.0
    %4403 = vadd.xlane.f32.xlu0 %v4402
    %v4404 = vpop.xlane.xlu0 %4403
    %v4406 = vlaneseq
    %v4407 = vshrl.u32 %v4406, 7
    %v4408 = vsub.s32 0, %v4407
    %v4409 = vrot.slane %v4404, %v4408
    %v4410 = vlaneseq
    %v4411 = vshrl.u32 %v4410, 7
    %v4412 = vsub.s32 1, %v4411
    %v4413 = vrot.slane %v4404, %v4412
    %v4416 = vrcp.pop %v4409
    %v4417 = vmul.f32 %v4381, %v4416
    %v4418 = vrcp.pop %v4413
    %v4419 = vmul.f32 %v4383, %v4418
    %v4420 = vpack.c.bf16 %v4417, %v4417
    %v4421 = vpack.c.bf16 %v4419, %v4419
    %v4423 = vunpack.c.l.b16 %v4420
    %4424 = vset.pattern.permute.xlu0 0
    %4425 = vperm.xlu0 %4424, %v4423
    %v4426 = vpop.permute.xlu0 %4425
    %v4427 = vlaneseq
    %v4428 = vshrl.u32 %v4427, 7
    %v4429 = vsub.s32 %v79, %v4428
    %v4430 = vrot.slane %v4426, %v4429
    %v4431 = vpack.c.b16 %v4430, %v4430
    %v4433 = vsel %vm615, %v4431, 0
    %4435 = vmatprep.subr.bf16.mxu0 0
    %4436 = vmatpush1.bf16.msra.mxu0 %v621
    %4437 = vmatprep.subr.bf16.mxu0 0
    %4438 = vmatpush1.bf16.msra.mxu0 0
    %4439 = vmatprep.subr.bf16.mxu0 0
    %4440 = vmatpush1.bf16.msra.mxu0 0
    %4441 = vmatprep.subr.bf16.mxu0 0
    %4442 = vmatpush1.bf16.msra.mxu0 0
    %4443 = vmatprep.subr.bf16.mxu0 0
    %4444 = vmatpush1.bf16.msra.mxu0 0
    %4445 = vmatprep.subr.bf16.mxu0 0
    %4446 = vmatpush1.bf16.msra.mxu0 0
    %4447 = vmatprep.subr.bf16.mxu0 0
    %4448 = vmatpush1.bf16.msra.mxu0 0
    %4449 = vmatprep.subr.bf16.mxu0 0
    %4450 = vmatpush1.bf16.msra.mxu0 0
    %4451 = vmatprep.subr.bf16.mxu0 0
    %4452 = vmatpush1.bf16.msra.mxu0 0
    %4453 = vmatprep.subr.bf16.mxu0 0
    %4454 = vmatpush1.bf16.msra.mxu0 0
    %4455 = vmatprep.subr.bf16.mxu0 0
    %4456 = vmatpush1.bf16.msra.mxu0 0
    %4457 = vmatprep.subr.bf16.mxu0 0
    %4458 = vmatpush1.bf16.msra.mxu0 0
    %4459 = vmatprep.subr.bf16.mxu0 0
    %4460 = vmatpush1.bf16.msra.mxu0 0
    %4461 = vmatprep.subr.bf16.mxu0 0
    %4462 = vmatpush1.bf16.msra.mxu0 0
    %4463 = vmatprep.subr.bf16.mxu0 0
    %4464 = vmatpush1.bf16.msra.mxu0 0
    %4465 = vmatprep.subr.bf16.mxu0 0
    %4466 = vmatpush1.bf16.msra.mxu0 0
    %4467 = vmatprep.mubr.bf16.mxu0 0
    %4468 = vmatmul.mubr.bf16.gmra.mrb[0].mxu0 %v4433
    %v4469 = vpop.f32.mrb[0].mxu0
    %v4470 = vadd.f32 0.0, %v4469
    %v4471 = vpop.f32.mrb[0].mxu0
    %v4472 = vpop.f32.mrb[0].mxu0
    %v4473 = vpop.f32.mrb[0].mxu0
    %4474 = vdwg.mxu0
    %v4476 = vunpack.c.l.b16 %v4421
    %4477 = vset.pattern.permute.xlu0 0
    %4478 = vperm.xlu0 %4477, %v4476
    %v4479 = vpop.permute.xlu0 %4478
    %v4480 = vlaneseq
    %v4481 = vshrl.u32 %v4480, 7
    %v4482 = vsub.s32 %v79, %v4481
    %v4483 = vrot.slane %v4479, %v4482
    %v4484 = vpack.c.b16 %v4483, %v4483
    %v4486 = vsel %vm615, %v4484, 0
    %4488 = vmatprep.subr.bf16.mxu0 0
    %4489 = vmatpush1.bf16.msra.mxu0 %v677
    %4490 = vmatprep.subr.bf16.mxu0 0
    %4491 = vmatpush1.bf16.msra.mxu0 0
    %4492 = vmatprep.subr.bf16.mxu0 0
    %4493 = vmatpush1.bf16.msra.mxu0 0
    %4494 = vmatprep.subr.bf16.mxu0 0
    %4495 = vmatpush1.bf16.msra.mxu0 0
    %4496 = vmatprep.subr.bf16.mxu0 0
    %4497 = vmatpush1.bf16.msra.mxu0 0
    %4498 = vmatprep.subr.bf16.mxu0 0
    %4499 = vmatpush1.bf16.msra.mxu0 0
    %4500 = vmatprep.subr.bf16.mxu0 0
    %4501 = vmatpush1.bf16.msra.mxu0 0
    %4502 = vmatprep.subr.bf16.mxu0 0
    %4503 = vmatpush1.bf16.msra.mxu0 0
    %4504 = vmatprep.subr.bf16.mxu0 0
    %4505 = vmatpush1.bf16.msra.mxu0 0
    %4506 = vmatprep.subr.bf16.mxu0 0
    %4507 = vmatpush1.bf16.msra.mxu0 0
    %4508 = vmatprep.subr.bf16.mxu0 0
    %4509 = vmatpush1.bf16.msra.mxu0 0
    %4510 = vmatprep.subr.bf16.mxu0 0
    %4511 = vmatpush1.bf16.msra.mxu0 0
    %4512 = vmatprep.subr.bf16.mxu0 0
    %4513 = vmatpush1.bf16.msra.mxu0 0
    %4514 = vmatprep.subr.bf16.mxu0 0
    %4515 = vmatpush1.bf16.msra.mxu0 0
    %4516 = vmatprep.subr.bf16.mxu0 0
    %4517 = vmatpush1.bf16.msra.mxu0 0
    %4518 = vmatprep.subr.bf16.mxu0 0
    %4519 = vmatpush1.bf16.msra.mxu0 0
    %4520 = vmatprep.mubr.bf16.mxu0 0
    %4521 = vmatmul.mubr.bf16.gmra.mrb[0].mxu0 %v4486
    %v4522 = vpop.f32.mrb[0].mxu0
    %v4523 = vadd.f32 0.0, %v4522
    %v4524 = vpop.f32.mrb[0].mxu0
    %v4525 = vpop.f32.mrb[0].mxu0
    %v4526 = vpop.f32.mrb[0].mxu0
    %4527 = vdwg.mxu0
    %v4528 = vpack.c.bf16 %v4470, %v4470
    %v4529 = vpack.c.bf16 %v4523, %v4523
    %v4530 = vpack.c.bf16 %v4306, %v4306
    %v4532 = vsel %vm151, %v4530, 0
    %4534 = vmatprep.subr.bf16.mxu0 0
    %4535 = vmatpush1.bf16.msra.mxu0 %v726
    %4536 = vmatprep.subr.bf16.mxu0 0
    %4537 = vmatpush1.bf16.msra.mxu0 0
    %4538 = vmatprep.subr.bf16.mxu0 0
    %4539 = vmatpush1.bf16.msra.mxu0 0
    %4540 = vmatprep.subr.bf16.mxu0 0
    %4541 = vmatpush1.bf16.msra.mxu0 0
    %4542 = vmatprep.subr.bf16.mxu0 0
    %4543 = vmatpush1.bf16.msra.mxu0 0
    %4544 = vmatprep.subr.bf16.mxu0 0
    %4545 = vmatpush1.bf16.msra.mxu0 0
    %4546 = vmatprep.subr.bf16.mxu0 0
    %4547 = vmatpush1.bf16.msra.mxu0 0
    %4548 = vmatprep.subr.bf16.mxu0 0
    %4549 = vmatpush1.bf16.msra.mxu0 0
    %4550 = vmatprep.subr.bf16.mxu0 0
    %4551 = vmatpush1.bf16.msra.mxu0 0
    %4552 = vmatprep.subr.bf16.mxu0 0
    %4553 = vmatpush1.bf16.msra.mxu0 0
    %4554 = vmatprep.subr.bf16.mxu0 0
    %4555 = vmatpush1.bf16.msra.mxu0 0
    %4556 = vmatprep.subr.bf16.mxu0 0
    %4557 = vmatpush1.bf16.msra.mxu0 0
    %4558 = vmatprep.subr.bf16.mxu0 0
    %4559 = vmatpush1.bf16.msra.mxu0 0
    %4560 = vmatprep.subr.bf16.mxu0 0
    %4561 = vmatpush1.bf16.msra.mxu0 0
    %4562 = vmatprep.subr.bf16.mxu0 0
    %4563 = vmatpush1.bf16.msra.mxu0 0
    %4564 = vmatprep.subr.bf16.mxu0 0
    %4565 = vmatpush1.bf16.msra.mxu0 0
    %4566 = vmatprep.mubr.bf16.mxu0 0
    %4567 = vmatmul.mubr.bf16.gmra.mrb[0].mxu0 %v4532
    %v4568 = vpop.f32.mrb[0].mxu0
    %v4569 = vadd.f32 0.0, %v4568
    %v4570 = vpop.f32.mrb[0].mxu0
    %v4571 = vpop.f32.mrb[0].mxu0
    %v4572 = vpop.f32.mrb[0].mxu0
    %4573 = vdwg.mxu0
    %v4576 = vunpack.c.l.b16 %v4528
    %v4577 = vunpack.c.l.b16 %v4529
    %v4578 = vrot.slane %v4577, 7
    %v4579 = vsel %vm543, %v4578, %v4576
    %v4580 = vpack.c.b16 %v4579, %v4579
    %v4582 = vsel %vm151, %v4580, 0
    %4584 = vmatprep.subr.bf16.mxu0 0
    %4585 = vmatpush1.bf16.msra.mxu0 %v782
    %4586 = vmatprep.subr.bf16.mxu0 0
    %4587 = vmatpush1.bf16.msra.mxu0 0
    %4588 = vmatprep.subr.bf16.mxu0 0
    %4589 = vmatpush1.bf16.msra.mxu0 0
    %4590 = vmatprep.subr.bf16.mxu0 0
    %4591 = vmatpush1.bf16.msra.mxu0 0
    %4592 = vmatprep.subr.bf16.mxu0 0
    %4593 = vmatpush1.bf16.msra.mxu0 0
    %4594 = vmatprep.subr.bf16.mxu0 0
    %4595 = vmatpush1.bf16.msra.mxu0 0
    %4596 = vmatprep.subr.bf16.mxu0 0
    %4597 = vmatpush1.bf16.msra.mxu0 0
    %4598 = vmatprep.subr.bf16.mxu0 0
    %4599 = vmatpush1.bf16.msra.mxu0 0
    %4600 = vmatprep.subr.bf16.mxu0 0
    %4601 = vmatpush1.bf16.msra.mxu0 0
    %4602 = vmatprep.subr.bf16.mxu0 0
    %4603 = vmatpush1.bf16.msra.mxu0 0
    %4604 = vmatprep.subr.bf16.mxu0 0
    %4605 = vmatpush1.bf16.msra.mxu0 0
    %4606 = vmatprep.subr.bf16.mxu0 0
    %4607 = vmatpush1.bf16.msra.mxu0 0
    %4608 = vmatprep.subr.bf16.mxu0 0
    %4609 = vmatpush1.bf16.msra.mxu0 0
    %4610 = vmatprep.subr.bf16.mxu0 0
    %4611 = vmatpush1.bf16.msra.mxu0 0
    %4612 = vmatprep.subr.bf16.mxu0 0
    %4613 = vmatpush1.bf16.msra.mxu0 0
    %4614 = vmatprep.subr.bf16.mxu0 0
    %4615 = vmatpush1.bf16.msra.mxu0 0
    %4616 = vmatprep.mubr.bf16.mxu0 0
    %4617 = vmatmul.mubr.bf16.gmra.mrb[0].mxu0 %v4582
    %v4618 = vpop.f32.mrb[0].mxu0
    %v4619 = vadd.f32 %v4569, %v4618
    %v4620 = vpop.f32.mrb[0].mxu0
    %v4621 = vpop.f32.mrb[0].mxu0
    %v4622 = vpop.f32.mrb[0].mxu0
    %4623 = vdwg.mxu0
    %v4624 = vtanh.pop %v4619
    %v4625 = vpack.c.bf16 %v4624, %v4624
    %v4627 = vsel %vm151, %v4625, 0
    %4629 = vmatprep.subr.bf16.mxu0 0
    %4630 = vmatpush1.bf16.xpose.msra.mxu0 %v843
    %4631 = vmatprep.subr.bf16.mxu0 0
    %4632 = vmatpush1.bf16.xpose.msra.mxu0 %v846
    %4633 = vmatprep.subr.bf16.mxu0 0
    %4634 = vmatpush1.bf16.xpose.msra.mxu0 0
    %4635 = vmatprep.subr.bf16.mxu0 0
    %4636 = vmatpush1.bf16.xpose.msra.mxu0 0
    %4637 = vmatprep.subr.bf16.mxu0 0
    %4638 = vmatpush1.bf16.xpose.msra.mxu0 0
    %4639 = vmatprep.subr.bf16.mxu0 0
    %4640 = vmatpush1.bf16.xpose.msra.mxu0 0
    %4641 = vmatprep.subr.bf16.mxu0 0
    %4642 = vmatpush1.bf16.xpose.msra.mxu0 0
    %4643 = vmatprep.subr.bf16.mxu0 0
    %4644 = vmatpush1.bf16.xpose.msra.mxu0 0
    %4645 = vmatprep.subr.bf16.mxu0 0
    %4646 = vmatpush1.bf16.xpose.msra.mxu0 0
    %4647 = vmatprep.subr.bf16.mxu0 0
    %4648 = vmatpush1.bf16.xpose.msra.mxu0 0
    %4649 = vmatprep.subr.bf16.mxu0 0
    %4650 = vmatpush1.bf16.xpose.msra.mxu0 0
    %4651 = vmatprep.subr.bf16.mxu0 0
    %4652 = vmatpush1.bf16.xpose.msra.mxu0 0
    %4653 = vmatprep.subr.bf16.mxu0 0
    %4654 = vmatpush1.bf16.xpose.msra.mxu0 0
    %4655 = vmatprep.subr.bf16.mxu0 0
    %4656 = vmatpush1.bf16.xpose.msra.mxu0 0
    %4657 = vmatprep.subr.bf16.mxu0 0
    %4658 = vmatpush1.bf16.xpose.msra.mxu0 0
    %4659 = vmatprep.subr.bf16.mxu0 0
    %4660 = vmatpush1.bf16.xpose.msra.mxu0 0
    %4661 = vmatprep.mubr.bf16.mxu0 0
    %4662 = vmatmul.mubr.bf16.gmra.mrb[0].mxu0 %v4627
    %v4663 = vpop.f32.mrb[0].mxu0
    %v4664 = vadd.f32 0.0, %v4663
    %v4665 = vpop.f32.mrb[0].mxu0
    %v4666 = vpop.f32.mrb[0].mxu0
    %v4667 = vpop.f32.mrb[0].mxu0
    %4668 = vdwg.mxu0
    %s4669 = scalar_lea.vmem [#allocation2], 10
    %4670 = vst.msk [vmem:[%s4669] sm:$0x3] %vm888, %v4664
    %4673 = vset.pattern.permute.xlu0 0
    %4674 = vperm.xlu0 %4673, %v4417
    %v4675 = vpop.permute.xlu0 %4674
    %4676 = vset.pattern.permute.xlu0 0
    %4677 = vperm.xlu0 %4676, %v4419
    %v4678 = vpop.permute.xlu0 %4677
    %v4679 = vlaneseq
    %v4680 = vshrl.u32 %v4679, 7
    %v4681 = vsub.s32 %v79, %v4680
    %v4682 = vrot.slane %v4675, %v4681
    %v4683 = vlaneseq
    %v4684 = vshrl.u32 %v4683, 7
    %v4685 = vsub.s32 %v79, %v4684
    %v4686 = vrot.slane %v4678, %v4685
    %v4687 = vsel %vm543, %v4686, %v4682
    %s4689 = scalar_lea.vmem [#allocation4], 10
    %4690 = vst.msk [vmem:[%s4689] sm:$0x3] %vm546, %v4687
    // Predicated region
    $region38: #{seq2seq_forward.3} parent=1 // pred_check
      _
    $region39: #{seq2seq_forward.3} parent=1 // pred_check_branch
      %4692 = sbr.rel (0) target = $region41
    $region40: #{seq2seq_forward.3} parent=1 // pred_region
      %s4694 = ssub.s32 192, 192
      %4695 = vsyncadd [#allocation3], %s4694
      %s4696 = sshll.u32 [#allocation2], 4
      %s4697 = int_to_ptr.vmem [resolvable:$true] %s4696
      %4702 = dma.vmem_to_hbm [thread:$0]  %s4697, 192, %s9, [#allocation3], 32, 32, 2
    $region41: #{seq2seq_forward.3} parent=1 // pred_fallthru
      _
    // Predicated region
    $region42: #{seq2seq_forward.3} parent=1 // pred_check
      _
    $region43: #{seq2seq_forward.3} parent=1 // pred_check_branch
      %4704 = sbr.rel (0) target = $region45
    $region44: #{seq2seq_forward.3} parent=1 // pred_region
      %s4706 = ssub.s32 192, 192
      %4707 = vsyncadd [#allocation5], %s4706
      %s4708 = sshll.u32 [#allocation4], 4
      %s4709 = int_to_ptr.vmem [resolvable:$true] %s4708
      %4714 = dma.vmem_to_hbm [thread:$0]  %s4709, 192, %s10, [#allocation5], 32, 32, 2
    $region45: #{seq2seq_forward.3} parent=1 // pred_fallthru
      _
    // Predicated region
    $region46: #{seq2seq_forward.3} parent=1 // pred_check
      _
    $region47: #{seq2seq_forward.3} parent=1 // pred_check_branch
      %4716 = sbr.rel (0) target = $region49
    $region48: #{seq2seq_forward.3} parent=1 // pred_region
      %4717 = dma.done [#allocation3], 192
    $region49: #{seq2seq_forward.3} parent=1 // pred_fallthru
      _
    // Predicated region
    $region50: #{seq2seq_forward.3} parent=1 // pred_check
      _
    $region51: #{seq2seq_forward.3} parent=1 // pred_check_branch
      %4719 = sbr.rel (0) target = $region53
    $region52: #{seq2seq_forward.3} parent=1 // pred_region
      %4720 = dma.done [#allocation5], 192
    $region53: #{seq2seq_forward.3} parent=1 // pred_fallthru
      _
    %4721 = vsyncpa [#allocation3], 1
    %4722 = vsyncpa [#allocation5], 1

// kernel: seq2seq_forward.2
$region0: #{seq2seq_forward.2}
  #allocation0 [shape = 'u32[]', space=smem, size = 0x4, offset = 0x4, fixed_abs, tag = 'smem constant byte address 0x4 - core index']
  #allocation1 [shape = 'u32[144,128]{1,0:T(1,128)}', space=vmem, size = 0x12000, scoped, tag = 'internal scratch']
  %s0 = inlined_call_operand.vmem [shape: f32[8,3,2,16], index: 0, kind: input, shape index: {}]
  %s1 = inlined_call_operand.vmem [shape: f32[8,3,2,16], index: 1, kind: input, shape index: {}]
  %s2 = inlined_call_operand.vmem [shape: bf16[3,16,16], index: 2, kind: input, shape index: {}]
  %s3 = inlined_call_operand.vmem [shape: bf16[3,16,16], index: 3, kind: input, shape index: {}]
  %s4 = inlined_call_operand.vmem [shape: f32[1,16], index: 4, kind: input, shape index: {}]
  %s5 = inlined_call_operand.vmem [shape: f32[1,16], index: 5, kind: input, shape index: {}]
  %s6 = inlined_call_operand.vmem [shape: bf16[16,16], index: 6, kind: input, shape index: {}]
  %s7 = inlined_call_operand.vmem [shape: bf16[16,16], index: 7, kind: input, shape index: {}]
  %s8 = inlined_call_operand.vmem [shape: bf16[16,16], index: 8, kind: input, shape index: {}]
  %s9 = inlined_call_operand.vmem [shape: bf16[16,16], index: 9, kind: input, shape index: {}]
  %s10 = inlined_call_operand.vmem [shape: f32[2,8,2,16], index: 10, kind: output, shape index: {0}]
  %s11 = inlined_call_operand.vmem [shape: f32[2,2,16], index: 11, kind: output, shape index: {1}]
  %s12 = inlined_call_operand.hbm [shape: f32[2,16], index: 12, kind: output, shape index: {2}]
  %13 = xla_tuple %s10, %s11, %s12
  %s14 = sld [smem:[#allocation0]]
  $region66: #{seq2seq_forward.2} parent=0
    _
  %s16 = ssub.s32 1, %s14
  %s17 = scalar_select 0, %s16, %s14
  $region1: #{seq2seq_forward.2} parent=0
    #allocation2 [shape = 'u8[1024]{0}', space=vmem, size = 0x400, scoped, tag = 'output window, operand 2, single buffered']
    #allocation3 [shape = 's32[1]{0}', space=sflag, size = 0x4, scoped, tag = 'scoped memory for seq2seq_forward.2']
    %18 = vsyncpa [#allocation3], 0
    // Predicated region
    $region2: #{seq2seq_forward.2} parent=1 // pred_check
      _
    $region3: #{seq2seq_forward.2} parent=1 // pred_check_branch
      %20 = sbr.rel (0) target = $region5
    $region4: #{seq2seq_forward.2} parent=1 // pred_region
      _
    $region5: #{seq2seq_forward.2} parent=1 // pred_fallthru
      _
    // Predicated region
    $region6: #{seq2seq_forward.2} parent=1 // pred_check
      _
    $region7: #{seq2seq_forward.2} parent=1 // pred_check_branch
      %22 = sbr.rel (0) target = $region9
    $region8: #{seq2seq_forward.2} parent=1 // pred_region
      _
    $region9: #{seq2seq_forward.2} parent=1 // pred_fallthru
      _
    // Predicated region
    $region10: #{seq2seq_forward.2} parent=1 // pred_check
      _
    $region11: #{seq2seq_forward.2} parent=1 // pred_check_branch
      %24 = sbr.rel (0) target = $region13
    $region12: #{seq2seq_forward.2} parent=1 // pred_region
      _
    $region13: #{seq2seq_forward.2} parent=1 // pred_fallthru
      _
    // Predicated region
    $region14: #{seq2seq_forward.2} parent=1 // pred_check
      _
    $region15: #{seq2seq_forward.2} parent=1 // pred_check_branch
      %26 = sbr.rel (0) target = $region17
    $region16: #{seq2seq_forward.2} parent=1 // pred_region
      _
    $region17: #{seq2seq_forward.2} parent=1 // pred_fallthru
      _
    // Predicated region
    $region18: #{seq2seq_forward.2} parent=1 // pred_check
      _
    $region19: #{seq2seq_forward.2} parent=1 // pred_check_branch
      %28 = sbr.rel (0) target = $region21
    $region20: #{seq2seq_forward.2} parent=1 // pred_region
      _
    $region21: #{seq2seq_forward.2} parent=1 // pred_fallthru
      _
    // Predicated region
    $region22: #{seq2seq_forward.2} parent=1 // pred_check
      _
    $region23: #{seq2seq_forward.2} parent=1 // pred_check_branch
      %30 = sbr.rel (0) target = $region25
    $region24: #{seq2seq_forward.2} parent=1 // pred_region
      _
    $region25: #{seq2seq_forward.2} parent=1 // pred_fallthru
      _
    // Predicated region
    $region26: #{seq2seq_forward.2} parent=1 // pred_check
      _
    $region27: #{seq2seq_forward.2} parent=1 // pred_check_branch
      %32 = sbr.rel (0) target = $region29
    $region28: #{seq2seq_forward.2} parent=1 // pred_region
      _
    $region29: #{seq2seq_forward.2} parent=1 // pred_fallthru
      _
    // Predicated region
    $region30: #{seq2seq_forward.2} parent=1 // pred_check
      _
    $region31: #{seq2seq_forward.2} parent=1 // pred_check_branch
      %34 = sbr.rel (0) target = $region33
    $region32: #{seq2seq_forward.2} parent=1 // pred_region
      _
    $region33: #{seq2seq_forward.2} parent=1 // pred_fallthru
      _
    // Predicated region
    $region34: #{seq2seq_forward.2} parent=1 // pred_check
      _
    $region35: #{seq2seq_forward.2} parent=1 // pred_check_branch
      %36 = sbr.rel (0) target = $region37
    $region36: #{seq2seq_forward.2} parent=1 // pred_region
      _
    $region37: #{seq2seq_forward.2} parent=1 // pred_fallthru
      _
    // Predicated region
    $region38: #{seq2seq_forward.2} parent=1 // pred_check
      _
    $region39: #{seq2seq_forward.2} parent=1 // pred_check_branch
      %38 = sbr.rel (0) target = $region41
    $region40: #{seq2seq_forward.2} parent=1 // pred_region
      _
    $region41: #{seq2seq_forward.2} parent=1 // pred_fallthru
      _
    %v40 = vld [vmem:[%s2] sm:$0xf]
    %v41 = vld [vmem:[%s2 + $0x4] sm:$0xf]
    %v42 = vld [vmem:[%s2 + $0x8] sm:$0xf]
    %v43 = vld [vmem:[%s2 + $0xc] sm:$0xf]
    %v44 = vld [vmem:[%s2 + $0x10] sm:$0xf]
    %v45 = vld [vmem:[%s2 + $0x14] sm:$0xf]
    %v46 = vld [vmem:[%s3] sm:$0xf]
    %v47 = vld [vmem:[%s3 + $0x4] sm:$0xf]
    %v48 = vld [vmem:[%s3 + $0x8] sm:$0xf]
    %v49 = vld [vmem:[%s3 + $0xc] sm:$0xf]
    %v50 = vld [vmem:[%s3 + $0x10] sm:$0xf]
    %v51 = vld [vmem:[%s3 + $0x14] sm:$0xf]
    %v52 = vld [vmem:[%s4] sm:$0x1]
    %v53 = vld [vmem:[%s5] sm:$0x1]
    %v54 = vld [vmem:[%s6] sm:$0xf]
    %v55 = vld [vmem:[%s6 + $0x4] sm:$0xf]
    %v56 = vld [vmem:[%s7] sm:$0xf]
    %v57 = vld [vmem:[%s7 + $0x4] sm:$0xf]
    %v58 = vld [vmem:[%s0] sm:$0x3]
    %v59 = vld [vmem:[%s0 + $0x2] sm:$0x3]
    %v60 = vld [vmem:[%s0 + $0x4] sm:$0x3]
    %v63 = vunpack.c.l.b16 %v40
    %v64 = vunpack.c.l.b16 %v41
    %v65 = vpack.c.b16 %v64, %v63
    %vm67 = vcmask 130048
    %v69 = vsel %vm67, 0, 0
    %71 = vmatprep.subr.bf16.mxu0 0
    %72 = vmatpush1.bf16.msra.mxu0 %v65
    %73 = vmatprep.subr.bf16.mxu0 0
    %74 = vmatpush1.bf16.msra.mxu0 0
    %75 = vmatprep.subr.bf16.mxu0 0
    %76 = vmatpush1.bf16.msra.mxu0 0
    %77 = vmatprep.subr.bf16.mxu0 0
    %78 = vmatpush1.bf16.msra.mxu0 0
    %79 = vmatprep.subr.bf16.mxu0 0
    %80 = vmatpush1.bf16.msra.mxu0 0
    %81 = vmatprep.subr.bf16.mxu0 0
    %82 = vmatpush1.bf16.msra.mxu0 0
    %83 = vmatprep.subr.bf16.mxu0 0
    %84 = vmatpush1.bf16.msra.mxu0 0
    %85 = vmatprep.subr.bf16.mxu0 0
    %86 = vmatpush1.bf16.msra.mxu0 0
    %87 = vmatprep.subr.bf16.mxu0 0
    %88 = vmatpush1.bf16.msra.mxu0 0
    %89 = vmatprep.subr.bf16.mxu0 0
    %90 = vmatpush1.bf16.msra.mxu0 0
    %91 = vmatprep.subr.bf16.mxu0 0
    %92 = vmatpush1.bf16.msra.mxu0 0
    %93 = vmatprep.subr.bf16.mxu0 0
    %94 = vmatpush1.bf16.msra.mxu0 0
    %95 = vmatprep.subr.bf16.mxu0 0
    %96 = vmatpush1.bf16.msra.mxu0 0
    %97 = vmatprep.subr.bf16.mxu0 0
    %98 = vmatpush1.bf16.msra.mxu0 0
    %99 = vmatprep.subr.bf16.mxu0 0
    %100 = vmatpush1.bf16.msra.mxu0 0
    %101 = vmatprep.subr.bf16.mxu0 0
    %102 = vmatpush1.bf16.msra.mxu0 0
    %103 = vmatprep.mubr.bf16.mxu0 0
    %104 = vmatmul.mubr.bf16.gmra.mrb[0].mxu0 %v69
    %v105 = vpop.f32.mrb[0].mxu0
    %v106 = vadd.f32 0.0, %v105
    %v107 = vpop.f32.mrb[0].mxu0
    %v108 = vpop.f32.mrb[0].mxu0
    %v109 = vpop.f32.mrb[0].mxu0
    %110 = vdwg.mxu0
    %v111 = vadd.f32 %v58, %v106
    %v112 = vxor.u32 %v111, 2147483648
    %v113 = vmul.f32 %v112, 1.442695
    %v114 = vpow.pop %v113
    %v115 = vadd.f32 %v114, 1.0
    %v116 = vrcp.pop %v115
    %v117 = vmul.f32 1.0, %v116
    %v120 = vunpack.c.l.b16 %v42
    %v121 = vunpack.c.l.b16 %v43
    %v122 = vpack.c.b16 %v121, %v120
    %124 = vmatprep.subr.bf16.mxu0 0
    %125 = vmatpush1.bf16.msra.mxu0 %v122
    %126 = vmatprep.subr.bf16.mxu0 0
    %127 = vmatpush1.bf16.msra.mxu0 0
    %128 = vmatprep.subr.bf16.mxu0 0
    %129 = vmatpush1.bf16.msra.mxu0 0
    %130 = vmatprep.subr.bf16.mxu0 0
    %131 = vmatpush1.bf16.msra.mxu0 0
    %132 = vmatprep.subr.bf16.mxu0 0
    %133 = vmatpush1.bf16.msra.mxu0 0
    %134 = vmatprep.subr.bf16.mxu0 0
    %135 = vmatpush1.bf16.msra.mxu0 0
    %136 = vmatprep.subr.bf16.mxu0 0
    %137 = vmatpush1.bf16.msra.mxu0 0
    %138 = vmatprep.subr.bf16.mxu0 0
    %139 = vmatpush1.bf16.msra.mxu0 0
    %140 = vmatprep.subr.bf16.mxu0 0
    %141 = vmatpush1.bf16.msra.mxu0 0
    %142 = vmatprep.subr.bf16.mxu0 0
    %143 = vmatpush1.bf16.msra.mxu0 0
    %144 = vmatprep.subr.bf16.mxu0 0
    %145 = vmatpush1.bf16.msra.mxu0 0
    %146 = vmatprep.subr.bf16.mxu0 0
    %147 = vmatpush1.bf16.msra.mxu0 0
    %148 = vmatprep.subr.bf16.mxu0 0
    %149 = vmatpush1.bf16.msra.mxu0 0
    %150 = vmatprep.subr.bf16.mxu0 0
    %151 = vmatpush1.bf16.msra.mxu0 0
    %152 = vmatprep.subr.bf16.mxu0 0
    %153 = vmatpush1.bf16.msra.mxu0 0
    %154 = vmatprep.subr.bf16.mxu0 0
    %155 = vmatpush1.bf16.msra.mxu0 0
    %156 = vmatprep.mubr.bf16.mxu0 0
    %157 = vmatmul.mubr.bf16.gmra.mrb[0].mxu0 %v69
    %v158 = vpop.f32.mrb[0].mxu0
    %v159 = vadd.f32 0.0, %v158
    %v160 = vpop.f32.mrb[0].mxu0
    %v161 = vpop.f32.mrb[0].mxu0
    %v162 = vpop.f32.mrb[0].mxu0
    %163 = vdwg.mxu0
    %v164 = vadd.f32 %v59, %v159
    %v165 = vxor.u32 %v164, 2147483648
    %v166 = vmul.f32 %v165, 1.442695
    %v167 = vpow.pop %v166
    %v168 = vadd.f32 %v167, 1.0
    %v169 = vrcp.pop %v168
    %v170 = vmul.f32 1.0, %v169
    %v172 = vlaneseq
    %v173 = vshrl.u32 %v172, 7
    %v174 = vsub.s32 0, %v173
    %v175 = vrot.slane %v52, %v174
    %v179 = vunpack.c.l.b16 %v44
    %v180 = vunpack.c.l.b16 %v45
    %v181 = vpack.c.b16 %v180, %v179
    %183 = vmatprep.subr.bf16.mxu0 0
    %184 = vmatpush1.bf16.msra.mxu0 %v181
    %185 = vmatprep.subr.bf16.mxu0 0
    %186 = vmatpush1.bf16.msra.mxu0 0
    %187 = vmatprep.subr.bf16.mxu0 0
    %188 = vmatpush1.bf16.msra.mxu0 0
    %189 = vmatprep.subr.bf16.mxu0 0
    %190 = vmatpush1.bf16.msra.mxu0 0
    %191 = vmatprep.subr.bf16.mxu0 0
    %192 = vmatpush1.bf16.msra.mxu0 0
    %193 = vmatprep.subr.bf16.mxu0 0
    %194 = vmatpush1.bf16.msra.mxu0 0
    %195 = vmatprep.subr.bf16.mxu0 0
    %196 = vmatpush1.bf16.msra.mxu0 0
    %197 = vmatprep.subr.bf16.mxu0 0
    %198 = vmatpush1.bf16.msra.mxu0 0
    %199 = vmatprep.subr.bf16.mxu0 0
    %200 = vmatpush1.bf16.msra.mxu0 0
    %201 = vmatprep.subr.bf16.mxu0 0
    %202 = vmatpush1.bf16.msra.mxu0 0
    %203 = vmatprep.subr.bf16.mxu0 0
    %204 = vmatpush1.bf16.msra.mxu0 0
    %205 = vmatprep.subr.bf16.mxu0 0
    %206 = vmatpush1.bf16.msra.mxu0 0
    %207 = vmatprep.subr.bf16.mxu0 0
    %208 = vmatpush1.bf16.msra.mxu0 0
    %209 = vmatprep.subr.bf16.mxu0 0
    %210 = vmatpush1.bf16.msra.mxu0 0
    %211 = vmatprep.subr.bf16.mxu0 0
    %212 = vmatpush1.bf16.msra.mxu0 0
    %213 = vmatprep.subr.bf16.mxu0 0
    %214 = vmatpush1.bf16.msra.mxu0 0
    %215 = vmatprep.mubr.bf16.mxu0 0
    %216 = vmatmul.mubr.bf16.gmra.mrb[0].mxu0 %v69
    %v217 = vpop.f32.mrb[0].mxu0
    %v218 = vadd.f32 %v175, %v217
    %v219 = vpop.f32.mrb[0].mxu0
    %v220 = vpop.f32.mrb[0].mxu0
    %v221 = vpop.f32.mrb[0].mxu0
    %222 = vdwg.mxu0
    %v223 = vmul.f32 %v117, %v218
    %v224 = vadd.f32 %v60, %v223
    %v225 = vtanh.pop %v224
    %v226 = vsub.f32 1.0, %v170
    %v227 = vmul.f32 %v226, %v225
    %v228 = vmul.f32 %v170, 0.0
    %v229 = vadd.f32 %v227, %v228
    %s230 = scalar_lea.vmem %s1, 42
    %v231 = vld [vmem:[%s230] sm:$0x3]
    %v232 = vld [vmem:[%s230 + $0x2] sm:$0x3]
    %v233 = vld [vmem:[%s230 + $0x4] sm:$0x3]
    %v236 = vunpack.c.l.b16 %v46
    %v237 = vunpack.c.l.b16 %v47
    %v238 = vpack.c.b16 %v237, %v236
    %240 = vmatprep.subr.bf16.mxu0 0
    %241 = vmatpush1.bf16.msra.mxu0 %v238
    %242 = vmatprep.subr.bf16.mxu0 0
    %243 = vmatpush1.bf16.msra.mxu0 0
    %244 = vmatprep.subr.bf16.mxu0 0
    %245 = vmatpush1.bf16.msra.mxu0 0
    %246 = vmatprep.subr.bf16.mxu0 0
    %247 = vmatpush1.bf16.msra.mxu0 0
    %248 = vmatprep.subr.bf16.mxu0 0
    %249 = vmatpush1.bf16.msra.mxu0 0
    %250 = vmatprep.subr.bf16.mxu0 0
    %251 = vmatpush1.bf16.msra.mxu0 0
    %252 = vmatprep.subr.bf16.mxu0 0
    %253 = vmatpush1.bf16.msra.mxu0 0
    %254 = vmatprep.subr.bf16.mxu0 0
    %255 = vmatpush1.bf16.msra.mxu0 0
    %256 = vmatprep.subr.bf16.mxu0 0
    %257 = vmatpush1.bf16.msra.mxu0 0
    %258 = vmatprep.subr.bf16.mxu0 0
    %259 = vmatpush1.bf16.msra.mxu0 0
    %260 = vmatprep.subr.bf16.mxu0 0
    %261 = vmatpush1.bf16.msra.mxu0 0
    %262 = vmatprep.subr.bf16.mxu0 0
    %263 = vmatpush1.bf16.msra.mxu0 0
    %264 = vmatprep.subr.bf16.mxu0 0
    %265 = vmatpush1.bf16.msra.mxu0 0
    %266 = vmatprep.subr.bf16.mxu0 0
    %267 = vmatpush1.bf16.msra.mxu0 0
    %268 = vmatprep.subr.bf16.mxu0 0
    %269 = vmatpush1.bf16.msra.mxu0 0
    %270 = vmatprep.subr.bf16.mxu0 0
    %271 = vmatpush1.bf16.msra.mxu0 0
    %272 = vmatprep.mubr.bf16.mxu0 0
    %273 = vmatmul.mubr.bf16.gmra.mrb[0].mxu0 %v69
    %v274 = vpop.f32.mrb[0].mxu0
    %v275 = vadd.f32 0.0, %v274
    %v276 = vpop.f32.mrb[0].mxu0
    %v277 = vpop.f32.mrb[0].mxu0
    %v278 = vpop.f32.mrb[0].mxu0
    %279 = vdwg.mxu0
    %v280 = vadd.f32 %v231, %v275
    %v281 = vxor.u32 %v280, 2147483648
    %v282 = vmul.f32 %v281, 1.442695
    %v283 = vpow.pop %v282
    %v284 = vadd.f32 %v283, 1.0
    %v285 = vrcp.pop %v284
    %v286 = vmul.f32 1.0, %v285
    %v289 = vunpack.c.l.b16 %v48
    %v290 = vunpack.c.l.b16 %v49
    %v291 = vpack.c.b16 %v290, %v289
    %293 = vmatprep.subr.bf16.mxu0 0
    %294 = vmatpush1.bf16.msra.mxu0 %v291
    %295 = vmatprep.subr.bf16.mxu0 0
    %296 = vmatpush1.bf16.msra.mxu0 0
    %297 = vmatprep.subr.bf16.mxu0 0
    %298 = vmatpush1.bf16.msra.mxu0 0
    %299 = vmatprep.subr.bf16.mxu0 0
    %300 = vmatpush1.bf16.msra.mxu0 0
    %301 = vmatprep.subr.bf16.mxu0 0
    %302 = vmatpush1.bf16.msra.mxu0 0
    %303 = vmatprep.subr.bf16.mxu0 0
    %304 = vmatpush1.bf16.msra.mxu0 0
    %305 = vmatprep.subr.bf16.mxu0 0
    %306 = vmatpush1.bf16.msra.mxu0 0
    %307 = vmatprep.subr.bf16.mxu0 0
    %308 = vmatpush1.bf16.msra.mxu0 0
    %309 = vmatprep.subr.bf16.mxu0 0
    %310 = vmatpush1.bf16.msra.mxu0 0
    %311 = vmatprep.subr.bf16.mxu0 0
    %312 = vmatpush1.bf16.msra.mxu0 0
    %313 = vmatprep.subr.bf16.mxu0 0
    %314 = vmatpush1.bf16.msra.mxu0 0
    %315 = vmatprep.subr.bf16.mxu0 0
    %316 = vmatpush1.bf16.msra.mxu0 0
    %317 = vmatprep.subr.bf16.mxu0 0
    %318 = vmatpush1.bf16.msra.mxu0 0
    %319 = vmatprep.subr.bf16.mxu0 0
    %320 = vmatpush1.bf16.msra.mxu0 0
    %321 = vmatprep.subr.bf16.mxu0 0
    %322 = vmatpush1.bf16.msra.mxu0 0
    %323 = vmatprep.subr.bf16.mxu0 0
    %324 = vmatpush1.bf16.msra.mxu0 0
    %325 = vmatprep.mubr.bf16.mxu0 0
    %326 = vmatmul.mubr.bf16.gmra.mrb[0].mxu0 %v69
    %v327 = vpop.f32.mrb[0].mxu0
    %v328 = vadd.f32 0.0, %v327
    %v329 = vpop.f32.mrb[0].mxu0
    %v330 = vpop.f32.mrb[0].mxu0
    %v331 = vpop.f32.mrb[0].mxu0
    %332 = vdwg.mxu0
    %v333 = vadd.f32 %v232, %v328
    %v334 = vxor.u32 %v333, 2147483648
    %v335 = vmul.f32 %v334, 1.442695
    %v336 = vpow.pop %v335
    %v337 = vadd.f32 %v336, 1.0
    %v338 = vrcp.pop %v337
    %v339 = vmul.f32 1.0, %v338
    %v341 = vlaneseq
    %v342 = vshrl.u32 %v341, 7
    %v343 = vsub.s32 0, %v342
    %v344 = vrot.slane %v53, %v343
    %v348 = vunpack.c.l.b16 %v50
    %v349 = vunpack.c.l.b16 %v51
    %v350 = vpack.c.b16 %v349, %v348
    %352 = vmatprep.subr.bf16.mxu0 0
    %353 = vmatpush1.bf16.msra.mxu0 %v350
    %354 = vmatprep.subr.bf16.mxu0 0
    %355 = vmatpush1.bf16.msra.mxu0 0
    %356 = vmatprep.subr.bf16.mxu0 0
    %357 = vmatpush1.bf16.msra.mxu0 0
    %358 = vmatprep.subr.bf16.mxu0 0
    %359 = vmatpush1.bf16.msra.mxu0 0
    %360 = vmatprep.subr.bf16.mxu0 0
    %361 = vmatpush1.bf16.msra.mxu0 0
    %362 = vmatprep.subr.bf16.mxu0 0
    %363 = vmatpush1.bf16.msra.mxu0 0
    %364 = vmatprep.subr.bf16.mxu0 0
    %365 = vmatpush1.bf16.msra.mxu0 0
    %366 = vmatprep.subr.bf16.mxu0 0
    %367 = vmatpush1.bf16.msra.mxu0 0
    %368 = vmatprep.subr.bf16.mxu0 0
    %369 = vmatpush1.bf16.msra.mxu0 0
    %370 = vmatprep.subr.bf16.mxu0 0
    %371 = vmatpush1.bf16.msra.mxu0 0
    %372 = vmatprep.subr.bf16.mxu0 0
    %373 = vmatpush1.bf16.msra.mxu0 0
    %374 = vmatprep.subr.bf16.mxu0 0
    %375 = vmatpush1.bf16.msra.mxu0 0
    %376 = vmatprep.subr.bf16.mxu0 0
    %377 = vmatpush1.bf16.msra.mxu0 0
    %378 = vmatprep.subr.bf16.mxu0 0
    %379 = vmatpush1.bf16.msra.mxu0 0
    %380 = vmatprep.subr.bf16.mxu0 0
    %381 = vmatpush1.bf16.msra.mxu0 0
    %382 = vmatprep.subr.bf16.mxu0 0
    %383 = vmatpush1.bf16.msra.mxu0 0
    %384 = vmatprep.mubr.bf16.mxu0 0
    %385 = vmatmul.mubr.bf16.gmra.mrb[0].mxu0 %v69
    %v386 = vpop.f32.mrb[0].mxu0
    %v387 = vadd.f32 %v344, %v386
    %v388 = vpop.f32.mrb[0].mxu0
    %v389 = vpop.f32.mrb[0].mxu0
    %v390 = vpop.f32.mrb[0].mxu0
    %391 = vdwg.mxu0
    %v392 = vmul.f32 %v286, %v387
    %v393 = vadd.f32 %v233, %v392
    %v394 = vtanh.pop %v393
    %v395 = vsub.f32 1.0, %v339
    %v396 = vmul.f32 %v395, %v394
    %v397 = vmul.f32 %v339, 0.0
    %v398 = vadd.f32 %v396, %v397
    %v399 = vpack.c.bf16 %v229, %v229
    %v402 = vunpack.c.l.b16 %v54
    %v403 = vunpack.c.l.b16 %v55
    %v404 = vpack.c.b16 %v403, %v402
    %v407 = vsel %vm67, %v399, 0
    %409 = vmatprep.subr.bf16.mxu0 0
    %410 = vmatpush1.bf16.msra.mxu0 %v404
    %411 = vmatprep.subr.bf16.mxu0 0
    %412 = vmatpush1.bf16.msra.mxu0 0
    %413 = vmatprep.subr.bf16.mxu0 0
    %414 = vmatpush1.bf16.msra.mxu0 0
    %415 = vmatprep.subr.bf16.mxu0 0
    %416 = vmatpush1.bf16.msra.mxu0 0
    %417 = vmatprep.subr.bf16.mxu0 0
    %418 = vmatpush1.bf16.msra.mxu0 0
    %419 = vmatprep.subr.bf16.mxu0 0
    %420 = vmatpush1.bf16.msra.mxu0 0
    %421 = vmatprep.subr.bf16.mxu0 0
    %422 = vmatpush1.bf16.msra.mxu0 0
    %423 = vmatprep.subr.bf16.mxu0 0
    %424 = vmatpush1.bf16.msra.mxu0 0
    %425 = vmatprep.subr.bf16.mxu0 0
    %426 = vmatpush1.bf16.msra.mxu0 0
    %427 = vmatprep.subr.bf16.mxu0 0
    %428 = vmatpush1.bf16.msra.mxu0 0
    %429 = vmatprep.subr.bf16.mxu0 0
    %430 = vmatpush1.bf16.msra.mxu0 0
    %431 = vmatprep.subr.bf16.mxu0 0
    %432 = vmatpush1.bf16.msra.mxu0 0
    %433 = vmatprep.subr.bf16.mxu0 0
    %434 = vmatpush1.bf16.msra.mxu0 0
    %435 = vmatprep.subr.bf16.mxu0 0
    %436 = vmatpush1.bf16.msra.mxu0 0
    %437 = vmatprep.subr.bf16.mxu0 0
    %438 = vmatpush1.bf16.msra.mxu0 0
    %439 = vmatprep.subr.bf16.mxu0 0
    %440 = vmatpush1.bf16.msra.mxu0 0
    %441 = vmatprep.mubr.bf16.mxu0 0
    %442 = vmatmul.mubr.bf16.gmra.mrb[0].mxu0 %v407
    %v443 = vpop.f32.mrb[0].mxu0
    %v444 = vadd.f32 0.0, %v443
    %v445 = vpop.f32.mrb[0].mxu0
    %v446 = vpop.f32.mrb[0].mxu0
    %v447 = vpop.f32.mrb[0].mxu0
    %448 = vdwg.mxu0
    %vm449 = vcmask 123904
    %450 = vst.msk [vmem:[%s10] sm:$0x3] %vm449, %v444
    %v451 = vpack.c.bf16 %v398, %v398
    %v454 = vunpack.c.l.b16 %v56
    %v455 = vunpack.c.l.b16 %v57
    %v456 = vpack.c.b16 %v455, %v454
    %v459 = vsel %vm67, %v451, 0
    %461 = vmatprep.subr.bf16.mxu0 0
    %462 = vmatpush1.bf16.msra.mxu0 %v456
    %463 = vmatprep.subr.bf16.mxu0 0
    %464 = vmatpush1.bf16.msra.mxu0 0
    %465 = vmatprep.subr.bf16.mxu0 0
    %466 = vmatpush1.bf16.msra.mxu0 0
    %467 = vmatprep.subr.bf16.mxu0 0
    %468 = vmatpush1.bf16.msra.mxu0 0
    %469 = vmatprep.subr.bf16.mxu0 0
    %470 = vmatpush1.bf16.msra.mxu0 0
    %471 = vmatprep.subr.bf16.mxu0 0
    %472 = vmatpush1.bf16.msra.mxu0 0
    %473 = vmatprep.subr.bf16.mxu0 0
    %474 = vmatpush1.bf16.msra.mxu0 0
    %475 = vmatprep.subr.bf16.mxu0 0
    %476 = vmatpush1.bf16.msra.mxu0 0
    %477 = vmatprep.subr.bf16.mxu0 0
    %478 = vmatpush1.bf16.msra.mxu0 0
    %479 = vmatprep.subr.bf16.mxu0 0
    %480 = vmatpush1.bf16.msra.mxu0 0
    %481 = vmatprep.subr.bf16.mxu0 0
    %482 = vmatpush1.bf16.msra.mxu0 0
    %483 = vmatprep.subr.bf16.mxu0 0
    %484 = vmatpush1.bf16.msra.mxu0 0
    %485 = vmatprep.subr.bf16.mxu0 0
    %486 = vmatpush1.bf16.msra.mxu0 0
    %487 = vmatprep.subr.bf16.mxu0 0
    %488 = vmatpush1.bf16.msra.mxu0 0
    %489 = vmatprep.subr.bf16.mxu0 0
    %490 = vmatpush1.bf16.msra.mxu0 0
    %491 = vmatprep.subr.bf16.mxu0 0
    %492 = vmatpush1.bf16.msra.mxu0 0
    %493 = vmatprep.mubr.bf16.mxu0 0
    %494 = vmatmul.mubr.bf16.gmra.mrb[0].mxu0 %v459
    %v495 = vpop.f32.mrb[0].mxu0
    %v496 = vadd.f32 0.0, %v495
    %v497 = vpop.f32.mrb[0].mxu0
    %v498 = vpop.f32.mrb[0].mxu0
    %v499 = vpop.f32.mrb[0].mxu0
    %500 = vdwg.mxu0
    %s501 = scalar_lea.vmem %s10, 30
    %502 = vst.msk [vmem:[%s501] sm:$0x3] %vm449, %v496
    %s503 = scalar_lea.vmem %s0, 6
    %v504 = vld [vmem:[%s503] sm:$0x3]
    %v505 = vld [vmem:[%s503 + $0x2] sm:$0x3]
    %v506 = vld [vmem:[%s503 + $0x4] sm:$0x3]
    %507 = vmatprep.subr.bf16.mxu0 0
    %508 = vmatpush1.bf16.msra.mxu0 %v65
    %509 = vmatprep.subr.bf16.mxu0 0
    %510 = vmatpush1.bf16.msra.mxu0 0
    %511 = vmatprep.subr.bf16.mxu0 0
    %512 = vmatpush1.bf16.msra.mxu0 0
    %513 = vmatprep.subr.bf16.mxu0 0
    %514 = vmatpush1.bf16.msra.mxu0 0
    %515 = vmatprep.subr.bf16.mxu0 0
    %516 = vmatpush1.bf16.msra.mxu0 0
    %517 = vmatprep.subr.bf16.mxu0 0
    %518 = vmatpush1.bf16.msra.mxu0 0
    %519 = vmatprep.subr.bf16.mxu0 0
    %520 = vmatpush1.bf16.msra.mxu0 0
    %521 = vmatprep.subr.bf16.mxu0 0
    %522 = vmatpush1.bf16.msra.mxu0 0
    %523 = vmatprep.subr.bf16.mxu0 0
    %524 = vmatpush1.bf16.msra.mxu0 0
    %525 = vmatprep.subr.bf16.mxu0 0
    %526 = vmatpush1.bf16.msra.mxu0 0
    %527 = vmatprep.subr.bf16.mxu0 0
    %528 = vmatpush1.bf16.msra.mxu0 0
    %529 = vmatprep.subr.bf16.mxu0 0
    %530 = vmatpush1.bf16.msra.mxu0 0
    %531 = vmatprep.subr.bf16.mxu0 0
    %532 = vmatpush1.bf16.msra.mxu0 0
    %533 = vmatprep.subr.bf16.mxu0 0
    %534 = vmatpush1.bf16.msra.mxu0 0
    %535 = vmatprep.subr.bf16.mxu0 0
    %536 = vmatpush1.bf16.msra.mxu0 0
    %537 = vmatprep.subr.bf16.mxu0 0
    %538 = vmatpush1.bf16.msra.mxu0 0
    %539 = vmatprep.mubr.bf16.mxu0 0
    %540 = vmatmul.mubr.bf16.gmra.mrb[0].mxu0 %v407
    %v541 = vpop.f32.mrb[0].mxu0
    %v542 = vadd.f32 0.0, %v541
    %v543 = vpop.f32.mrb[0].mxu0
    %v544 = vpop.f32.mrb[0].mxu0
    %v545 = vpop.f32.mrb[0].mxu0
    %546 = vdwg.mxu0
    %v547 = vadd.f32 %v504, %v542
    %v548 = vxor.u32 %v547, 2147483648
    %v549 = vmul.f32 %v548, 1.442695
    %v550 = vpow.pop %v549
    %v551 = vadd.f32 %v550, 1.0
    %v552 = vrcp.pop %v551
    %v553 = vmul.f32 1.0, %v552
    %554 = vmatprep.subr.bf16.mxu0 0
    %555 = vmatpush1.bf16.msra.mxu0 %v122
    %556 = vmatprep.subr.bf16.mxu0 0
    %557 = vmatpush1.bf16.msra.mxu0 0
    %558 = vmatprep.subr.bf16.mxu0 0
    %559 = vmatpush1.bf16.msra.mxu0 0
    %560 = vmatprep.subr.bf16.mxu0 0
    %561 = vmatpush1.bf16.msra.mxu0 0
    %562 = vmatprep.subr.bf16.mxu0 0
    %563 = vmatpush1.bf16.msra.mxu0 0
    %564 = vmatprep.subr.bf16.mxu0 0
    %565 = vmatpush1.bf16.msra.mxu0 0
    %566 = vmatprep.subr.bf16.mxu0 0
    %567 = vmatpush1.bf16.msra.mxu0 0
    %568 = vmatprep.subr.bf16.mxu0 0
    %569 = vmatpush1.bf16.msra.mxu0 0
    %570 = vmatprep.subr.bf16.mxu0 0
    %571 = vmatpush1.bf16.msra.mxu0 0
    %572 = vmatprep.subr.bf16.mxu0 0
    %573 = vmatpush1.bf16.msra.mxu0 0
    %574 = vmatprep.subr.bf16.mxu0 0
    %575 = vmatpush1.bf16.msra.mxu0 0
    %576 = vmatprep.subr.bf16.mxu0 0
    %577 = vmatpush1.bf16.msra.mxu0 0
    %578 = vmatprep.subr.bf16.mxu0 0
    %579 = vmatpush1.bf16.msra.mxu0 0
    %580 = vmatprep.subr.bf16.mxu0 0
    %581 = vmatpush1.bf16.msra.mxu0 0
    %582 = vmatprep.subr.bf16.mxu0 0
    %583 = vmatpush1.bf16.msra.mxu0 0
    %584 = vmatprep.subr.bf16.mxu0 0
    %585 = vmatpush1.bf16.msra.mxu0 0
    %586 = vmatprep.mubr.bf16.mxu0 0
    %587 = vmatmul.mubr.bf16.gmra.mrb[0].mxu0 %v407
    %v588 = vpop.f32.mrb[0].mxu0
    %v589 = vadd.f32 0.0, %v588
    %v590 = vpop.f32.mrb[0].mxu0
    %v591 = vpop.f32.mrb[0].mxu0
    %v592 = vpop.f32.mrb[0].mxu0
    %593 = vdwg.mxu0
    %v594 = vadd.f32 %v505, %v589
    %v595 = vxor.u32 %v594, 2147483648
    %v596 = vmul.f32 %v595, 1.442695
    %v597 = vpow.pop %v596
    %v598 = vadd.f32 %v597, 1.0
    %v599 = vrcp.pop %v598
    %v600 = vmul.f32 1.0, %v599
    %601 = vmatprep.subr.bf16.mxu0 0
    %602 = vmatpush1.bf16.msra.mxu0 %v181
    %603 = vmatprep.subr.bf16.mxu0 0
    %604 = vmatpush1.bf16.msra.mxu0 0
    %605 = vmatprep.subr.bf16.mxu0 0
    %606 = vmatpush1.bf16.msra.mxu0 0
    %607 = vmatprep.subr.bf16.mxu0 0
    %608 = vmatpush1.bf16.msra.mxu0 0
    %609 = vmatprep.subr.bf16.mxu0 0
    %610 = vmatpush1.bf16.msra.mxu0 0
    %611 = vmatprep.subr.bf16.mxu0 0
    %612 = vmatpush1.bf16.msra.mxu0 0
    %613 = vmatprep.subr.bf16.mxu0 0
    %614 = vmatpush1.bf16.msra.mxu0 0
    %615 = vmatprep.subr.bf16.mxu0 0
    %616 = vmatpush1.bf16.msra.mxu0 0
    %617 = vmatprep.subr.bf16.mxu0 0
    %618 = vmatpush1.bf16.msra.mxu0 0
    %619 = vmatprep.subr.bf16.mxu0 0
    %620 = vmatpush1.bf16.msra.mxu0 0
    %621 = vmatprep.subr.bf16.mxu0 0
    %622 = vmatpush1.bf16.msra.mxu0 0
    %623 = vmatprep.subr.bf16.mxu0 0
    %624 = vmatpush1.bf16.msra.mxu0 0
    %625 = vmatprep.subr.bf16.mxu0 0
    %626 = vmatpush1.bf16.msra.mxu0 0
    %627 = vmatprep.subr.bf16.mxu0 0
    %628 = vmatpush1.bf16.msra.mxu0 0
    %629 = vmatprep.subr.bf16.mxu0 0
    %630 = vmatpush1.bf16.msra.mxu0 0
    %631 = vmatprep.subr.bf16.mxu0 0
    %632 = vmatpush1.bf16.msra.mxu0 0
    %633 = vmatprep.mubr.bf16.mxu0 0
    %634 = vmatmul.mubr.bf16.gmra.mrb[0].mxu0 %v407
    %v635 = vpop.f32.mrb[0].mxu0
    %v636 = vadd.f32 %v175, %v635
    %v637 = vpop.f32.mrb[0].mxu0
    %v638 = vpop.f32.mrb[0].mxu0
    %v639 = vpop.f32.mrb[0].mxu0
    %640 = vdwg.mxu0
    %v641 = vmul.f32 %v553, %v636
    %v642 = vadd.f32 %v506, %v641
    %v643 = vtanh.pop %v642
    %v644 = vsub.f32 1.0, %v600
    %v645 = vmul.f32 %v644, %v643
    %v646 = vmul.f32 %v600, %v229
    %v647 = vadd.f32 %v645, %v646
    %s648 = scalar_lea.vmem %s1, 36
    %v649 = vld [vmem:[%s648] sm:$0x3]
    %v650 = vld [vmem:[%s648 + $0x2] sm:$0x3]
    %v651 = vld [vmem:[%s648 + $0x4] sm:$0x3]
    %652 = vmatprep.subr.bf16.mxu0 0
    %653 = vmatpush1.bf16.msra.mxu0 %v238
    %654 = vmatprep.subr.bf16.mxu0 0
    %655 = vmatpush1.bf16.msra.mxu0 0
    %656 = vmatprep.subr.bf16.mxu0 0
    %657 = vmatpush1.bf16.msra.mxu0 0
    %658 = vmatprep.subr.bf16.mxu0 0
    %659 = vmatpush1.bf16.msra.mxu0 0
    %660 = vmatprep.subr.bf16.mxu0 0
    %661 = vmatpush1.bf16.msra.mxu0 0
    %662 = vmatprep.subr.bf16.mxu0 0
    %663 = vmatpush1.bf16.msra.mxu0 0
    %664 = vmatprep.subr.bf16.mxu0 0
    %665 = vmatpush1.bf16.msra.mxu0 0
    %666 = vmatprep.subr.bf16.mxu0 0
    %667 = vmatpush1.bf16.msra.mxu0 0
    %668 = vmatprep.subr.bf16.mxu0 0
    %669 = vmatpush1.bf16.msra.mxu0 0
    %670 = vmatprep.subr.bf16.mxu0 0
    %671 = vmatpush1.bf16.msra.mxu0 0
    %672 = vmatprep.subr.bf16.mxu0 0
    %673 = vmatpush1.bf16.msra.mxu0 0
    %674 = vmatprep.subr.bf16.mxu0 0
    %675 = vmatpush1.bf16.msra.mxu0 0
    %676 = vmatprep.subr.bf16.mxu0 0
    %677 = vmatpush1.bf16.msra.mxu0 0
    %678 = vmatprep.subr.bf16.mxu0 0
    %679 = vmatpush1.bf16.msra.mxu0 0
    %680 = vmatprep.subr.bf16.mxu0 0
    %681 = vmatpush1.bf16.msra.mxu0 0
    %682 = vmatprep.subr.bf16.mxu0 0
    %683 = vmatpush1.bf16.msra.mxu0 0
    %684 = vmatprep.mubr.bf16.mxu0 0
    %685 = vmatmul.mubr.bf16.gmra.mrb[0].mxu0 %v459
    %v686 = vpop.f32.mrb[0].mxu0
    %v687 = vadd.f32 0.0, %v686
    %v688 = vpop.f32.mrb[0].mxu0
    %v689 = vpop.f32.mrb[0].mxu0
    %v690 = vpop.f32.mrb[0].mxu0
    %691 = vdwg.mxu0
    %v692 = vadd.f32 %v649, %v687
    %v693 = vxor.u32 %v692, 2147483648
    %v694 = vmul.f32 %v693, 1.442695
    %v695 = vpow.pop %v694
    %v696 = vadd.f32 %v695, 1.0
    %v697 = vrcp.pop %v696
    %v698 = vmul.f32 1.0, %v697
    %699 = vmatprep.subr.bf16.mxu0 0
    %700 = vmatpush1.bf16.msra.mxu0 %v291
    %701 = vmatprep.subr.bf16.mxu0 0
    %702 = vmatpush1.bf16.msra.mxu0 0
    %703 = vmatprep.subr.bf16.mxu0 0
    %704 = vmatpush1.bf16.msra.mxu0 0
    %705 = vmatprep.subr.bf16.mxu0 0
    %706 = vmatpush1.bf16.msra.mxu0 0
    %707 = vmatprep.subr.bf16.mxu0 0
    %708 = vmatpush1.bf16.msra.mxu0 0
    %709 = vmatprep.subr.bf16.mxu0 0
    %710 = vmatpush1.bf16.msra.mxu0 0
    %711 = vmatprep.subr.bf16.mxu0 0
    %712 = vmatpush1.bf16.msra.mxu0 0
    %713 = vmatprep.subr.bf16.mxu0 0
    %714 = vmatpush1.bf16.msra.mxu0 0
    %715 = vmatprep.subr.bf16.mxu0 0
    %716 = vmatpush1.bf16.msra.mxu0 0
    %717 = vmatprep.subr.bf16.mxu0 0
    %718 = vmatpush1.bf16.msra.mxu0 0
    %719 = vmatprep.subr.bf16.mxu0 0
    %720 = vmatpush1.bf16.msra.mxu0 0
    %721 = vmatprep.subr.bf16.mxu0 0
    %722 = vmatpush1.bf16.msra.mxu0 0
    %723 = vmatprep.subr.bf16.mxu0 0
    %724 = vmatpush1.bf16.msra.mxu0 0
    %725 = vmatprep.subr.bf16.mxu0 0
    %726 = vmatpush1.bf16.msra.mxu0 0
    %727 = vmatprep.subr.bf16.mxu0 0
    %728 = vmatpush1.bf16.msra.mxu0 0
    %729 = vmatprep.subr.bf16.mxu0 0
    %730 = vmatpush1.bf16.msra.mxu0 0
    %731 = vmatprep.mubr.bf16.mxu0 0
    %732 = vmatmul.mubr.bf16.gmra.mrb[0].mxu0 %v459
    %v733 = vpop.f32.mrb[0].mxu0
    %v734 = vadd.f32 0.0, %v733
    %v735 = vpop.f32.mrb[0].mxu0
    %v736 = vpop.f32.mrb[0].mxu0
    %v737 = vpop.f32.mrb[0].mxu0
    %738 = vdwg.mxu0
    %v739 = vadd.f32 %v650, %v734
    %v740 = vxor.u32 %v739, 2147483648
    %v741 = vmul.f32 %v740, 1.442695
    %v742 = vpow.pop %v741
    %v743 = vadd.f32 %v742, 1.0
    %v744 = vrcp.pop %v743
    %v745 = vmul.f32 1.0, %v744
    %746 = vmatprep.subr.bf16.mxu0 0
    %747 = vmatpush1.bf16.msra.mxu0 %v350
    %748 = vmatprep.subr.bf16.mxu0 0
    %749 = vmatpush1.bf16.msra.mxu0 0
    %750 = vmatprep.subr.bf16.mxu0 0
    %751 = vmatpush1.bf16.msra.mxu0 0
    %752 = vmatprep.subr.bf16.mxu0 0
    %753 = vmatpush1.bf16.msra.mxu0 0
    %754 = vmatprep.subr.bf16.mxu0 0
    %755 = vmatpush1.bf16.msra.mxu0 0
    %756 = vmatprep.subr.bf16.mxu0 0
    %757 = vmatpush1.bf16.msra.mxu0 0
    %758 = vmatprep.subr.bf16.mxu0 0
    %759 = vmatpush1.bf16.msra.mxu0 0
    %760 = vmatprep.subr.bf16.mxu0 0
    %761 = vmatpush1.bf16.msra.mxu0 0
    %762 = vmatprep.subr.bf16.mxu0 0
    %763 = vmatpush1.bf16.msra.mxu0 0
    %764 = vmatprep.subr.bf16.mxu0 0
    %765 = vmatpush1.bf16.msra.mxu0 0
    %766 = vmatprep.subr.bf16.mxu0 0
    %767 = vmatpush1.bf16.msra.mxu0 0
    %768 = vmatprep.subr.bf16.mxu0 0
    %769 = vmatpush1.bf16.msra.mxu0 0
    %770 = vmatprep.subr.bf16.mxu0 0
    %771 = vmatpush1.bf16.msra.mxu0 0
    %772 = vmatprep.subr.bf16.mxu0 0
    %773 = vmatpush1.bf16.msra.mxu0 0
    %774 = vmatprep.subr.bf16.mxu0 0
    %775 = vmatpush1.bf16.msra.mxu0 0
    %776 = vmatprep.subr.bf16.mxu0 0
    %777 = vmatpush1.bf16.msra.mxu0 0
    %778 = vmatprep.mubr.bf16.mxu0 0
    %779 = vmatmul.mubr.bf16.gmra.mrb[0].mxu0 %v459
    %v780 = vpop.f32.mrb[0].mxu0
    %v781 = vadd.f32 %v344, %v780
    %v782 = vpop.f32.mrb[0].mxu0
    %v783 = vpop.f32.mrb[0].mxu0
    %v784 = vpop.f32.mrb[0].mxu0
    %785 = vdwg.mxu0
    %v786 = vmul.f32 %v698, %v781
    %v787 = vadd.f32 %v651, %v786
    %v788 = vtanh.pop %v787
    %v789 = vsub.f32 1.0, %v745
    %v790 = vmul.f32 %v789, %v788
    %v791 = vmul.f32 %v745, %v398
    %v792 = vadd.f32 %v790, %v791
    %v793 = vpack.c.bf16 %v647, %v647
    %v795 = vsel %vm67, %v793, 0
    %797 = vmatprep.subr.bf16.mxu0 0
    %798 = vmatpush1.bf16.msra.mxu0 %v404
    %799 = vmatprep.subr.bf16.mxu0 0
    %800 = vmatpush1.bf16.msra.mxu0 0
    %801 = vmatprep.subr.bf16.mxu0 0
    %802 = vmatpush1.bf16.msra.mxu0 0
    %803 = vmatprep.subr.bf16.mxu0 0
    %804 = vmatpush1.bf16.msra.mxu0 0
    %805 = vmatprep.subr.bf16.mxu0 0
    %806 = vmatpush1.bf16.msra.mxu0 0
    %807 = vmatprep.subr.bf16.mxu0 0
    %808 = vmatpush1.bf16.msra.mxu0 0
    %809 = vmatprep.subr.bf16.mxu0 0
    %810 = vmatpush1.bf16.msra.mxu0 0
    %811 = vmatprep.subr.bf16.mxu0 0
    %812 = vmatpush1.bf16.msra.mxu0 0
    %813 = vmatprep.subr.bf16.mxu0 0
    %814 = vmatpush1.bf16.msra.mxu0 0
    %815 = vmatprep.subr.bf16.mxu0 0
    %816 = vmatpush1.bf16.msra.mxu0 0
    %817 = vmatprep.subr.bf16.mxu0 0
    %818 = vmatpush1.bf16.msra.mxu0 0
    %819 = vmatprep.subr.bf16.mxu0 0
    %820 = vmatpush1.bf16.msra.mxu0 0
    %821 = vmatprep.subr.bf16.mxu0 0
    %822 = vmatpush1.bf16.msra.mxu0 0
    %823 = vmatprep.subr.bf16.mxu0 0
    %824 = vmatpush1.bf16.msra.mxu0 0
    %825 = vmatprep.subr.bf16.mxu0 0
    %826 = vmatpush1.bf16.msra.mxu0 0
    %827 = vmatprep.subr.bf16.mxu0 0
    %828 = vmatpush1.bf16.msra.mxu0 0
    %829 = vmatprep.mubr.bf16.mxu0 0
    %830 = vmatmul.mubr.bf16.gmra.mrb[0].mxu0 %v795
    %v831 = vpop.f32.mrb[0].mxu0
    %v832 = vadd.f32 0.0, %v831
    %v833 = vpop.f32.mrb[0].mxu0
    %v834 = vpop.f32.mrb[0].mxu0
    %v835 = vpop.f32.mrb[0].mxu0
    %836 = vdwg.mxu0
    %s837 = scalar_lea.vmem %s10, 2
    %838 = vst.msk [vmem:[%s837] sm:$0x3] %vm449, %v832
    %v839 = vpack.c.bf16 %v792, %v792
    %v841 = vsel %vm67, %v839, 0
    %843 = vmatprep.subr.bf16.mxu0 0
    %844 = vmatpush1.bf16.msra.mxu0 %v456
    %845 = vmatprep.subr.bf16.mxu0 0
    %846 = vmatpush1.bf16.msra.mxu0 0
    %847 = vmatprep.subr.bf16.mxu0 0
    %848 = vmatpush1.bf16.msra.mxu0 0
    %849 = vmatprep.subr.bf16.mxu0 0
    %850 = vmatpush1.bf16.msra.mxu0 0
    %851 = vmatprep.subr.bf16.mxu0 0
    %852 = vmatpush1.bf16.msra.mxu0 0
    %853 = vmatprep.subr.bf16.mxu0 0
    %854 = vmatpush1.bf16.msra.mxu0 0
    %855 = vmatprep.subr.bf16.mxu0 0
    %856 = vmatpush1.bf16.msra.mxu0 0
    %857 = vmatprep.subr.bf16.mxu0 0
    %858 = vmatpush1.bf16.msra.mxu0 0
    %859 = vmatprep.subr.bf16.mxu0 0
    %860 = vmatpush1.bf16.msra.mxu0 0
    %861 = vmatprep.subr.bf16.mxu0 0
    %862 = vmatpush1.bf16.msra.mxu0 0
    %863 = vmatprep.subr.bf16.mxu0 0
    %864 = vmatpush1.bf16.msra.mxu0 0
    %865 = vmatprep.subr.bf16.mxu0 0
    %866 = vmatpush1.bf16.msra.mxu0 0
    %867 = vmatprep.subr.bf16.mxu0 0
    %868 = vmatpush1.bf16.msra.mxu0 0
    %869 = vmatprep.subr.bf16.mxu0 0
    %870 = vmatpush1.bf16.msra.mxu0 0
    %871 = vmatprep.subr.bf16.mxu0 0
    %872 = vmatpush1.bf16.msra.mxu0 0
    %873 = vmatprep.subr.bf16.mxu0 0
    %874 = vmatpush1.bf16.msra.mxu0 0
    %875 = vmatprep.mubr.bf16.mxu0 0
    %876 = vmatmul.mubr.bf16.gmra.mrb[0].mxu0 %v841
    %v877 = vpop.f32.mrb[0].mxu0
    %v878 = vadd.f32 0.0, %v877
    %v879 = vpop.f32.mrb[0].mxu0
    %v880 = vpop.f32.mrb[0].mxu0
    %v881 = vpop.f32.mrb[0].mxu0
    %882 = vdwg.mxu0
    %s883 = scalar_lea.vmem %s10, 28
    %884 = vst.msk [vmem:[%s883] sm:$0x3] %vm449, %v878
    %s885 = scalar_lea.vmem %s0, 12
    %v886 = vld [vmem:[%s885] sm:$0x3]
    %v887 = vld [vmem:[%s885 + $0x2] sm:$0x3]
    %v888 = vld [vmem:[%s885 + $0x4] sm:$0x3]
    %889 = vmatprep.subr.bf16.mxu0 0
    %890 = vmatpush1.bf16.msra.mxu0 %v65
    %891 = vmatprep.subr.bf16.mxu0 0
    %892 = vmatpush1.bf16.msra.mxu0 0
    %893 = vmatprep.subr.bf16.mxu0 0
    %894 = vmatpush1.bf16.msra.mxu0 0
    %895 = vmatprep.subr.bf16.mxu0 0
    %896 = vmatpush1.bf16.msra.mxu0 0
    %897 = vmatprep.subr.bf16.mxu0 0
    %898 = vmatpush1.bf16.msra.mxu0 0
    %899 = vmatprep.subr.bf16.mxu0 0
    %900 = vmatpush1.bf16.msra.mxu0 0
    %901 = vmatprep.subr.bf16.mxu0 0
    %902 = vmatpush1.bf16.msra.mxu0 0
    %903 = vmatprep.subr.bf16.mxu0 0
    %904 = vmatpush1.bf16.msra.mxu0 0
    %905 = vmatprep.subr.bf16.mxu0 0
    %906 = vmatpush1.bf16.msra.mxu0 0
    %907 = vmatprep.subr.bf16.mxu0 0
    %908 = vmatpush1.bf16.msra.mxu0 0
    %909 = vmatprep.subr.bf16.mxu0 0
    %910 = vmatpush1.bf16.msra.mxu0 0
    %911 = vmatprep.subr.bf16.mxu0 0
    %912 = vmatpush1.bf16.msra.mxu0 0
    %913 = vmatprep.subr.bf16.mxu0 0
    %914 = vmatpush1.bf16.msra.mxu0 0
    %915 = vmatprep.subr.bf16.mxu0 0
    %916 = vmatpush1.bf16.msra.mxu0 0
    %917 = vmatprep.subr.bf16.mxu0 0
    %918 = vmatpush1.bf16.msra.mxu0 0
    %919 = vmatprep.subr.bf16.mxu0 0
    %920 = vmatpush1.bf16.msra.mxu0 0
    %921 = vmatprep.mubr.bf16.mxu0 0
    %922 = vmatmul.mubr.bf16.gmra.mrb[0].mxu0 %v795
    %v923 = vpop.f32.mrb[0].mxu0
    %v924 = vadd.f32 0.0, %v923
    %v925 = vpop.f32.mrb[0].mxu0
    %v926 = vpop.f32.mrb[0].mxu0
    %v927 = vpop.f32.mrb[0].mxu0
    %928 = vdwg.mxu0
    %v929 = vadd.f32 %v886, %v924
    %v930 = vxor.u32 %v929, 2147483648
    %v931 = vmul.f32 %v930, 1.442695
    %v932 = vpow.pop %v931
    %v933 = vadd.f32 %v932, 1.0
    %v934 = vrcp.pop %v933
    %v935 = vmul.f32 1.0, %v934
    %936 = vmatprep.subr.bf16.mxu0 0
    %937 = vmatpush1.bf16.msra.mxu0 %v122
    %938 = vmatprep.subr.bf16.mxu0 0
    %939 = vmatpush1.bf16.msra.mxu0 0
    %940 = vmatprep.subr.bf16.mxu0 0
    %941 = vmatpush1.bf16.msra.mxu0 0
    %942 = vmatprep.subr.bf16.mxu0 0
    %943 = vmatpush1.bf16.msra.mxu0 0
    %944 = vmatprep.subr.bf16.mxu0 0
    %945 = vmatpush1.bf16.msra.mxu0 0
    %946 = vmatprep.subr.bf16.mxu0 0
    %947 = vmatpush1.bf16.msra.mxu0 0
    %948 = vmatprep.subr.bf16.mxu0 0
    %949 = vmatpush1.bf16.msra.mxu0 0
    %950 = vmatprep.subr.bf16.mxu0 0
    %951 = vmatpush1.bf16.msra.mxu0 0
    %952 = vmatprep.subr.bf16.mxu0 0
    %953 = vmatpush1.bf16.msra.mxu0 0
    %954 = vmatprep.subr.bf16.mxu0 0
    %955 = vmatpush1.bf16.msra.mxu0 0
    %956 = vmatprep.subr.bf16.mxu0 0
    %957 = vmatpush1.bf16.msra.mxu0 0
    %958 = vmatprep.subr.bf16.mxu0 0
    %959 = vmatpush1.bf16.msra.mxu0 0
    %960 = vmatprep.subr.bf16.mxu0 0
    %961 = vmatpush1.bf16.msra.mxu0 0
    %962 = vmatprep.subr.bf16.mxu0 0
    %963 = vmatpush1.bf16.msra.mxu0 0
    %964 = vmatprep.subr.bf16.mxu0 0
    %965 = vmatpush1.bf16.msra.mxu0 0
    %966 = vmatprep.subr.bf16.mxu0 0
    %967 = vmatpush1.bf16.msra.mxu0 0
    %968 = vmatprep.mubr.bf16.mxu0 0
    %969 = vmatmul.mubr.bf16.gmra.mrb[0].mxu0 %v795
    %v970 = vpop.f32.mrb[0].mxu0
    %v971 = vadd.f32 0.0, %v970
    %v972 = vpop.f32.mrb[0].mxu0
    %v973 = vpop.f32.mrb[0].mxu0
    %v974 = vpop.f32.mrb[0].mxu0
    %975 = vdwg.mxu0
    %v976 = vadd.f32 %v887, %v971
    %v977 = vxor.u32 %v976, 2147483648
    %v978 = vmul.f32 %v977, 1.442695
    %v979 = vpow.pop %v978
    %v980 = vadd.f32 %v979, 1.0
    %v981 = vrcp.pop %v980
    %v982 = vmul.f32 1.0, %v981
    %983 = vmatprep.subr.bf16.mxu0 0
    %984 = vmatpush1.bf16.msra.mxu0 %v181
    %985 = vmatprep.subr.bf16.mxu0 0
    %986 = vmatpush1.bf16.msra.mxu0 0
    %987 = vmatprep.subr.bf16.mxu0 0
    %988 = vmatpush1.bf16.msra.mxu0 0
    %989 = vmatprep.subr.bf16.mxu0 0
    %990 = vmatpush1.bf16.msra.mxu0 0
    %991 = vmatprep.subr.bf16.mxu0 0
    %992 = vmatpush1.bf16.msra.mxu0 0
    %993 = vmatprep.subr.bf16.mxu0 0
    %994 = vmatpush1.bf16.msra.mxu0 0
    %995 = vmatprep.subr.bf16.mxu0 0
    %996 = vmatpush1.bf16.msra.mxu0 0
    %997 = vmatprep.subr.bf16.mxu0 0
    %998 = vmatpush1.bf16.msra.mxu0 0
    %999 = vmatprep.subr.bf16.mxu0 0
    %1000 = vmatpush1.bf16.msra.mxu0 0
    %1001 = vmatprep.subr.bf16.mxu0 0
    %1002 = vmatpush1.bf16.msra.mxu0 0
    %1003 = vmatprep.subr.bf16.mxu0 0
    %1004 = vmatpush1.bf16.msra.mxu0 0
    %1005 = vmatprep.subr.bf16.mxu0 0
    %1006 = vmatpush1.bf16.msra.mxu0 0
    %1007 = vmatprep.subr.bf16.mxu0 0
    %1008 = vmatpush1.bf16.msra.mxu0 0
    %1009 = vmatprep.subr.bf16.mxu0 0
    %1010 = vmatpush1.bf16.msra.mxu0 0
    %1011 = vmatprep.subr.bf16.mxu0 0
    %1012 = vmatpush1.bf16.msra.mxu0 0
    %1013 = vmatprep.subr.bf16.mxu0 0
    %1014 = vmatpush1.bf16.msra.mxu0 0
    %1015 = vmatprep.mubr.bf16.mxu0 0
    %1016 = vmatmul.mubr.bf16.gmra.mrb[0].mxu0 %v795
    %v1017 = vpop.f32.mrb[0].mxu0
    %v1018 = vadd.f32 %v175, %v1017
    %v1019 = vpop.f32.mrb[0].mxu0
    %v1020 = vpop.f32.mrb[0].mxu0
    %v1021 = vpop.f32.mrb[0].mxu0
    %1022 = vdwg.mxu0
    %v1023 = vmul.f32 %v935, %v1018
    %v1024 = vadd.f32 %v888, %v1023
    %v1025 = vtanh.pop %v1024
    %v1026 = vsub.f32 1.0, %v982
    %v1027 = vmul.f32 %v1026, %v1025
    %v1028 = vmul.f32 %v982, %v647
    %v1029 = vadd.f32 %v1027, %v1028
    %s1030 = scalar_lea.vmem %s1, 30
    %v1031 = vld [vmem:[%s1030] sm:$0x3]
    %v1032 = vld [vmem:[%s1030 + $0x2] sm:$0x3]
    %v1033 = vld [vmem:[%s1030 + $0x4] sm:$0x3]
    %1034 = vmatprep.subr.bf16.mxu0 0
    %1035 = vmatpush1.bf16.msra.mxu0 %v238
    %1036 = vmatprep.subr.bf16.mxu0 0
    %1037 = vmatpush1.bf16.msra.mxu0 0
    %1038 = vmatprep.subr.bf16.mxu0 0
    %1039 = vmatpush1.bf16.msra.mxu0 0
    %1040 = vmatprep.subr.bf16.mxu0 0
    %1041 = vmatpush1.bf16.msra.mxu0 0
    %1042 = vmatprep.subr.bf16.mxu0 0
    %1043 = vmatpush1.bf16.msra.mxu0 0
    %1044 = vmatprep.subr.bf16.mxu0 0
    %1045 = vmatpush1.bf16.msra.mxu0 0
    %1046 = vmatprep.subr.bf16.mxu0 0
    %1047 = vmatpush1.bf16.msra.mxu0 0
    %1048 = vmatprep.subr.bf16.mxu0 0
    %1049 = vmatpush1.bf16.msra.mxu0 0
    %1050 = vmatprep.subr.bf16.mxu0 0
    %1051 = vmatpush1.bf16.msra.mxu0 0
    %1052 = vmatprep.subr.bf16.mxu0 0
    %1053 = vmatpush1.bf16.msra.mxu0 0
    %1054 = vmatprep.subr.bf16.mxu0 0
    %1055 = vmatpush1.bf16.msra.mxu0 0
    %1056 = vmatprep.subr.bf16.mxu0 0
    %1057 = vmatpush1.bf16.msra.mxu0 0
    %1058 = vmatprep.subr.bf16.mxu0 0
    %1059 = vmatpush1.bf16.msra.mxu0 0
    %1060 = vmatprep.subr.bf16.mxu0 0
    %1061 = vmatpush1.bf16.msra.mxu0 0
    %1062 = vmatprep.subr.bf16.mxu0 0
    %1063 = vmatpush1.bf16.msra.mxu0 0
    %1064 = vmatprep.subr.bf16.mxu0 0
    %1065 = vmatpush1.bf16.msra.mxu0 0
    %1066 = vmatprep.mubr.bf16.mxu0 0
    %1067 = vmatmul.mubr.bf16.gmra.mrb[0].mxu0 %v841
    %v1068 = vpop.f32.mrb[0].mxu0
    %v1069 = vadd.f32 0.0, %v1068
    %v1070 = vpop.f32.mrb[0].mxu0
    %v1071 = vpop.f32.mrb[0].mxu0
    %v1072 = vpop.f32.mrb[0].mxu0
    %1073 = vdwg.mxu0
    %v1074 = vadd.f32 %v1031, %v1069
    %v1075 = vxor.u32 %v1074, 2147483648
    %v1076 = vmul.f32 %v1075, 1.442695
    %v1077 = vpow.pop %v1076
    %v1078 = vadd.f32 %v1077, 1.0
    %v1079 = vrcp.pop %v1078
    %v1080 = vmul.f32 1.0, %v1079
    %1081 = vmatprep.subr.bf16.mxu0 0
    %1082 = vmatpush1.bf16.msra.mxu0 %v291
    %1083 = vmatprep.subr.bf16.mxu0 0
    %1084 = vmatpush1.bf16.msra.mxu0 0
    %1085 = vmatprep.subr.bf16.mxu0 0
    %1086 = vmatpush1.bf16.msra.mxu0 0
    %1087 = vmatprep.subr.bf16.mxu0 0
    %1088 = vmatpush1.bf16.msra.mxu0 0
    %1089 = vmatprep.subr.bf16.mxu0 0
    %1090 = vmatpush1.bf16.msra.mxu0 0
    %1091 = vmatprep.subr.bf16.mxu0 0
    %1092 = vmatpush1.bf16.msra.mxu0 0
    %1093 = vmatprep.subr.bf16.mxu0 0
    %1094 = vmatpush1.bf16.msra.mxu0 0
    %1095 = vmatprep.subr.bf16.mxu0 0
    %1096 = vmatpush1.bf16.msra.mxu0 0
    %1097 = vmatprep.subr.bf16.mxu0 0
    %1098 = vmatpush1.bf16.msra.mxu0 0
    %1099 = vmatprep.subr.bf16.mxu0 0
    %1100 = vmatpush1.bf16.msra.mxu0 0
    %1101 = vmatprep.subr.bf16.mxu0 0
    %1102 = vmatpush1.bf16.msra.mxu0 0
    %1103 = vmatprep.subr.bf16.mxu0 0
    %1104 = vmatpush1.bf16.msra.mxu0 0
    %1105 = vmatprep.subr.bf16.mxu0 0
    %1106 = vmatpush1.bf16.msra.mxu0 0
    %1107 = vmatprep.subr.bf16.mxu0 0
    %1108 = vmatpush1.bf16.msra.mxu0 0
    %1109 = vmatprep.subr.bf16.mxu0 0
    %1110 = vmatpush1.bf16.msra.mxu0 0
    %1111 = vmatprep.subr.bf16.mxu0 0
    %1112 = vmatpush1.bf16.msra.mxu0 0
    %1113 = vmatprep.mubr.bf16.mxu0 0
    %1114 = vmatmul.mubr.bf16.gmra.mrb[0].mxu0 %v841
    %v1115 = vpop.f32.mrb[0].mxu0
    %v1116 = vadd.f32 0.0, %v1115
    %v1117 = vpop.f32.mrb[0].mxu0
    %v1118 = vpop.f32.mrb[0].mxu0
    %v1119 = vpop.f32.mrb[0].mxu0
    %1120 = vdwg.mxu0
    %v1121 = vadd.f32 %v1032, %v1116
    %v1122 = vxor.u32 %v1121, 2147483648
    %v1123 = vmul.f32 %v1122, 1.442695
    %v1124 = vpow.pop %v1123
    %v1125 = vadd.f32 %v1124, 1.0
    %v1126 = vrcp.pop %v1125
    %v1127 = vmul.f32 1.0, %v1126
    %1128 = vmatprep.subr.bf16.mxu0 0
    %1129 = vmatpush1.bf16.msra.mxu0 %v350
    %1130 = vmatprep.subr.bf16.mxu0 0
    %1131 = vmatpush1.bf16.msra.mxu0 0
    %1132 = vmatprep.subr.bf16.mxu0 0
    %1133 = vmatpush1.bf16.msra.mxu0 0
    %1134 = vmatprep.subr.bf16.mxu0 0
    %1135 = vmatpush1.bf16.msra.mxu0 0
    %1136 = vmatprep.subr.bf16.mxu0 0
    %1137 = vmatpush1.bf16.msra.mxu0 0
    %1138 = vmatprep.subr.bf16.mxu0 0
    %1139 = vmatpush1.bf16.msra.mxu0 0
    %1140 = vmatprep.subr.bf16.mxu0 0
    %1141 = vmatpush1.bf16.msra.mxu0 0
    %1142 = vmatprep.subr.bf16.mxu0 0
    %1143 = vmatpush1.bf16.msra.mxu0 0
    %1144 = vmatprep.subr.bf16.mxu0 0
    %1145 = vmatpush1.bf16.msra.mxu0 0
    %1146 = vmatprep.subr.bf16.mxu0 0
    %1147 = vmatpush1.bf16.msra.mxu0 0
    %1148 = vmatprep.subr.bf16.mxu0 0
    %1149 = vmatpush1.bf16.msra.mxu0 0
    %1150 = vmatprep.subr.bf16.mxu0 0
    %1151 = vmatpush1.bf16.msra.mxu0 0
    %1152 = vmatprep.subr.bf16.mxu0 0
    %1153 = vmatpush1.bf16.msra.mxu0 0
    %1154 = vmatprep.subr.bf16.mxu0 0
    %1155 = vmatpush1.bf16.msra.mxu0 0
    %1156 = vmatprep.subr.bf16.mxu0 0
    %1157 = vmatpush1.bf16.msra.mxu0 0
    %1158 = vmatprep.subr.bf16.mxu0 0
    %1159 = vmatpush1.bf16.msra.mxu0 0
    %1160 = vmatprep.mubr.bf16.mxu0 0
    %1161 = vmatmul.mubr.bf16.gmra.mrb[0].mxu0 %v841
    %v1162 = vpop.f32.mrb[0].mxu0
    %v1163 = vadd.f32 %v344, %v1162
    %v1164 = vpop.f32.mrb[0].mxu0
    %v1165 = vpop.f32.mrb[0].mxu0
    %v1166 = vpop.f32.mrb[0].mxu0
    %1167 = vdwg.mxu0
    %v1168 = vmul.f32 %v1080, %v1163
    %v1169 = vadd.f32 %v1033, %v1168
    %v1170 = vtanh.pop %v1169
    %v1171 = vsub.f32 1.0, %v1127
    %v1172 = vmul.f32 %v1171, %v1170
    %v1173 = vmul.f32 %v1127, %v792
    %v1174 = vadd.f32 %v1172, %v1173
    %v1175 = vpack.c.bf16 %v1029, %v1029
    %v1177 = vsel %vm67, %v1175, 0
    %1179 = vmatprep.subr.bf16.mxu0 0
    %1180 = vmatpush1.bf16.msra.mxu0 %v404
    %1181 = vmatprep.subr.bf16.mxu0 0
    %1182 = vmatpush1.bf16.msra.mxu0 0
    %1183 = vmatprep.subr.bf16.mxu0 0
    %1184 = vmatpush1.bf16.msra.mxu0 0
    %1185 = vmatprep.subr.bf16.mxu0 0
    %1186 = vmatpush1.bf16.msra.mxu0 0
    %1187 = vmatprep.subr.bf16.mxu0 0
    %1188 = vmatpush1.bf16.msra.mxu0 0
    %1189 = vmatprep.subr.bf16.mxu0 0
    %1190 = vmatpush1.bf16.msra.mxu0 0
    %1191 = vmatprep.subr.bf16.mxu0 0
    %1192 = vmatpush1.bf16.msra.mxu0 0
    %1193 = vmatprep.subr.bf16.mxu0 0
    %1194 = vmatpush1.bf16.msra.mxu0 0
    %1195 = vmatprep.subr.bf16.mxu0 0
    %1196 = vmatpush1.bf16.msra.mxu0 0
    %1197 = vmatprep.subr.bf16.mxu0 0
    %1198 = vmatpush1.bf16.msra.mxu0 0
    %1199 = vmatprep.subr.bf16.mxu0 0
    %1200 = vmatpush1.bf16.msra.mxu0 0
    %1201 = vmatprep.subr.bf16.mxu0 0
    %1202 = vmatpush1.bf16.msra.mxu0 0
    %1203 = vmatprep.subr.bf16.mxu0 0
    %1204 = vmatpush1.bf16.msra.mxu0 0
    %1205 = vmatprep.subr.bf16.mxu0 0
    %1206 = vmatpush1.bf16.msra.mxu0 0
    %1207 = vmatprep.subr.bf16.mxu0 0
    %1208 = vmatpush1.bf16.msra.mxu0 0
    %1209 = vmatprep.subr.bf16.mxu0 0
    %1210 = vmatpush1.bf16.msra.mxu0 0
    %1211 = vmatprep.mubr.bf16.mxu0 0
    %1212 = vmatmul.mubr.bf16.gmra.mrb[0].mxu0 %v1177
    %v1213 = vpop.f32.mrb[0].mxu0
    %v1214 = vadd.f32 0.0, %v1213
    %v1215 = vpop.f32.mrb[0].mxu0
    %v1216 = vpop.f32.mrb[0].mxu0
    %v1217 = vpop.f32.mrb[0].mxu0
    %1218 = vdwg.mxu0
    %s1219 = scalar_lea.vmem %s10, 4
    %1220 = vst.msk [vmem:[%s1219] sm:$0x3] %vm449, %v1214
    %v1221 = vpack.c.bf16 %v1174, %v1174
    %v1223 = vsel %vm67, %v1221, 0
    %1225 = vmatprep.subr.bf16.mxu0 0
    %1226 = vmatpush1.bf16.msra.mxu0 %v456
    %1227 = vmatprep.subr.bf16.mxu0 0
    %1228 = vmatpush1.bf16.msra.mxu0 0
    %1229 = vmatprep.subr.bf16.mxu0 0
    %1230 = vmatpush1.bf16.msra.mxu0 0
    %1231 = vmatprep.subr.bf16.mxu0 0
    %1232 = vmatpush1.bf16.msra.mxu0 0
    %1233 = vmatprep.subr.bf16.mxu0 0
    %1234 = vmatpush1.bf16.msra.mxu0 0
    %1235 = vmatprep.subr.bf16.mxu0 0
    %1236 = vmatpush1.bf16.msra.mxu0 0
    %1237 = vmatprep.subr.bf16.mxu0 0
    %1238 = vmatpush1.bf16.msra.mxu0 0
    %1239 = vmatprep.subr.bf16.mxu0 0
    %1240 = vmatpush1.bf16.msra.mxu0 0
    %1241 = vmatprep.subr.bf16.mxu0 0
    %1242 = vmatpush1.bf16.msra.mxu0 0
    %1243 = vmatprep.subr.bf16.mxu0 0
    %1244 = vmatpush1.bf16.msra.mxu0 0
    %1245 = vmatprep.subr.bf16.mxu0 0
    %1246 = vmatpush1.bf16.msra.mxu0 0
    %1247 = vmatprep.subr.bf16.mxu0 0
    %1248 = vmatpush1.bf16.msra.mxu0 0
    %1249 = vmatprep.subr.bf16.mxu0 0
    %1250 = vmatpush1.bf16.msra.mxu0 0
    %1251 = vmatprep.subr.bf16.mxu0 0
    %1252 = vmatpush1.bf16.msra.mxu0 0
    %1253 = vmatprep.subr.bf16.mxu0 0
    %1254 = vmatpush1.bf16.msra.mxu0 0
    %1255 = vmatprep.subr.bf16.mxu0 0
    %1256 = vmatpush1.bf16.msra.mxu0 0
    %1257 = vmatprep.mubr.bf16.mxu0 0
    %1258 = vmatmul.mubr.bf16.gmra.mrb[0].mxu0 %v1223
    %v1259 = vpop.f32.mrb[0].mxu0
    %v1260 = vadd.f32 0.0, %v1259
    %v1261 = vpop.f32.mrb[0].mxu0
    %v1262 = vpop.f32.mrb[0].mxu0
    %v1263 = vpop.f32.mrb[0].mxu0
    %1264 = vdwg.mxu0
    %s1265 = scalar_lea.vmem %s10, 26
    %1266 = vst.msk [vmem:[%s1265] sm:$0x3] %vm449, %v1260
    %s1267 = scalar_lea.vmem %s0, 18
    %v1268 = vld [vmem:[%s1267] sm:$0x3]
    %v1269 = vld [vmem:[%s1267 + $0x2] sm:$0x3]
    %v1270 = vld [vmem:[%s1267 + $0x4] sm:$0x3]
    %1271 = vmatprep.subr.bf16.mxu0 0
    %1272 = vmatpush1.bf16.msra.mxu0 %v65
    %1273 = vmatprep.subr.bf16.mxu0 0
    %1274 = vmatpush1.bf16.msra.mxu0 0
    %1275 = vmatprep.subr.bf16.mxu0 0
    %1276 = vmatpush1.bf16.msra.mxu0 0
    %1277 = vmatprep.subr.bf16.mxu0 0
    %1278 = vmatpush1.bf16.msra.mxu0 0
    %1279 = vmatprep.subr.bf16.mxu0 0
    %1280 = vmatpush1.bf16.msra.mxu0 0
    %1281 = vmatprep.subr.bf16.mxu0 0
    %1282 = vmatpush1.bf16.msra.mxu0 0
    %1283 = vmatprep.subr.bf16.mxu0 0
    %1284 = vmatpush1.bf16.msra.mxu0 0
    %1285 = vmatprep.subr.bf16.mxu0 0
    %1286 = vmatpush1.bf16.msra.mxu0 0
    %1287 = vmatprep.subr.bf16.mxu0 0
    %1288 = vmatpush1.bf16.msra.mxu0 0
    %1289 = vmatprep.subr.bf16.mxu0 0
    %1290 = vmatpush1.bf16.msra.mxu0 0
    %1291 = vmatprep.subr.bf16.mxu0 0
    %1292 = vmatpush1.bf16.msra.mxu0 0
    %1293 = vmatprep.subr.bf16.mxu0 0
    %1294 = vmatpush1.bf16.msra.mxu0 0
    %1295 = vmatprep.subr.bf16.mxu0 0
    %1296 = vmatpush1.bf16.msra.mxu0 0
    %1297 = vmatprep.subr.bf16.mxu0 0
    %1298 = vmatpush1.bf16.msra.mxu0 0
    %1299 = vmatprep.subr.bf16.mxu0 0
    %1300 = vmatpush1.bf16.msra.mxu0 0
    %1301 = vmatprep.subr.bf16.mxu0 0
    %1302 = vmatpush1.bf16.msra.mxu0 0
    %1303 = vmatprep.mubr.bf16.mxu0 0
    %1304 = vmatmul.mubr.bf16.gmra.mrb[0].mxu0 %v1177
    %v1305 = vpop.f32.mrb[0].mxu0
    %v1306 = vadd.f32 0.0, %v1305
    %v1307 = vpop.f32.mrb[0].mxu0
    %v1308 = vpop.f32.mrb[0].mxu0
    %v1309 = vpop.f32.mrb[0].mxu0
    %1310 = vdwg.mxu0
    %v1311 = vadd.f32 %v1268, %v1306
    %v1312 = vxor.u32 %v1311, 2147483648
    %v1313 = vmul.f32 %v1312, 1.442695
    %v1314 = vpow.pop %v1313
    %v1315 = vadd.f32 %v1314, 1.0
    %v1316 = vrcp.pop %v1315
    %v1317 = vmul.f32 1.0, %v1316
    %1318 = vmatprep.subr.bf16.mxu0 0
    %1319 = vmatpush1.bf16.msra.mxu0 %v122
    %1320 = vmatprep.subr.bf16.mxu0 0
    %1321 = vmatpush1.bf16.msra.mxu0 0
    %1322 = vmatprep.subr.bf16.mxu0 0
    %1323 = vmatpush1.bf16.msra.mxu0 0
    %1324 = vmatprep.subr.bf16.mxu0 0
    %1325 = vmatpush1.bf16.msra.mxu0 0
    %1326 = vmatprep.subr.bf16.mxu0 0
    %1327 = vmatpush1.bf16.msra.mxu0 0
    %1328 = vmatprep.subr.bf16.mxu0 0
    %1329 = vmatpush1.bf16.msra.mxu0 0
    %1330 = vmatprep.subr.bf16.mxu0 0
    %1331 = vmatpush1.bf16.msra.mxu0 0
    %1332 = vmatprep.subr.bf16.mxu0 0
    %1333 = vmatpush1.bf16.msra.mxu0 0
    %1334 = vmatprep.subr.bf16.mxu0 0
    %1335 = vmatpush1.bf16.msra.mxu0 0
    %1336 = vmatprep.subr.bf16.mxu0 0
    %1337 = vmatpush1.bf16.msra.mxu0 0
    %1338 = vmatprep.subr.bf16.mxu0 0
    %1339 = vmatpush1.bf16.msra.mxu0 0
    %1340 = vmatprep.subr.bf16.mxu0 0
    %1341 = vmatpush1.bf16.msra.mxu0 0
    %1342 = vmatprep.subr.bf16.mxu0 0
    %1343 = vmatpush1.bf16.msra.mxu0 0
    %1344 = vmatprep.subr.bf16.mxu0 0
    %1345 = vmatpush1.bf16.msra.mxu0 0
    %1346 = vmatprep.subr.bf16.mxu0 0
    %1347 = vmatpush1.bf16.msra.mxu0 0
    %1348 = vmatprep.subr.bf16.mxu0 0
    %1349 = vmatpush1.bf16.msra.mxu0 0
    %1350 = vmatprep.mubr.bf16.mxu0 0
    %1351 = vmatmul.mubr.bf16.gmra.mrb[0].mxu0 %v1177
    %v1352 = vpop.f32.mrb[0].mxu0
    %v1353 = vadd.f32 0.0, %v1352
    %v1354 = vpop.f32.mrb[0].mxu0
    %v1355 = vpop.f32.mrb[0].mxu0
    %v1356 = vpop.f32.mrb[0].mxu0
    %1357 = vdwg.mxu0
    %v1358 = vadd.f32 %v1269, %v1353
    %v1359 = vxor.u32 %v1358, 2147483648
    %v1360 = vmul.f32 %v1359, 1.442695
    %v1361 = vpow.pop %v1360
    %v1362 = vadd.f32 %v1361, 1.0
    %v1363 = vrcp.pop %v1362
    %v1364 = vmul.f32 1.0, %v1363
    %1365 = vmatprep.subr.bf16.mxu0 0
    %1366 = vmatpush1.bf16.msra.mxu0 %v181
    %1367 = vmatprep.subr.bf16.mxu0 0
    %1368 = vmatpush1.bf16.msra.mxu0 0
    %1369 = vmatprep.subr.bf16.mxu0 0
    %1370 = vmatpush1.bf16.msra.mxu0 0
    %1371 = vmatprep.subr.bf16.mxu0 0
    %1372 = vmatpush1.bf16.msra.mxu0 0
    %1373 = vmatprep.subr.bf16.mxu0 0
    %1374 = vmatpush1.bf16.msra.mxu0 0
    %1375 = vmatprep.subr.bf16.mxu0 0
    %1376 = vmatpush1.bf16.msra.mxu0 0
    %1377 = vmatprep.subr.bf16.mxu0 0
    %1378 = vmatpush1.bf16.msra.mxu0 0
    %1379 = vmatprep.subr.bf16.mxu0 0
    %1380 = vmatpush1.bf16.msra.mxu0 0
    %1381 = vmatprep.subr.bf16.mxu0 0
    %1382 = vmatpush1.bf16.msra.mxu0 0
    %1383 = vmatprep.subr.bf16.mxu0 0
    %1384 = vmatpush1.bf16.msra.mxu0 0
    %1385 = vmatprep.subr.bf16.mxu0 0
    %1386 = vmatpush1.bf16.msra.mxu0 0
    %1387 = vmatprep.subr.bf16.mxu0 0
    %1388 = vmatpush1.bf16.msra.mxu0 0
    %1389 = vmatprep.subr.bf16.mxu0 0
    %1390 = vmatpush1.bf16.msra.mxu0 0
    %1391 = vmatprep.subr.bf16.mxu0 0
    %1392 = vmatpush1.bf16.msra.mxu0 0
    %1393 = vmatprep.subr.bf16.mxu0 0
    %1394 = vmatpush1.bf16.msra.mxu0 0
    %1395 = vmatprep.subr.bf16.mxu0 0
    %1396 = vmatpush1.bf16.msra.mxu0 0
    %1397 = vmatprep.mubr.bf16.mxu0 0
    %1398 = vmatmul.mubr.bf16.gmra.mrb[0].mxu0 %v1177
    %v1399 = vpop.f32.mrb[0].mxu0
    %v1400 = vadd.f32 %v175, %v1399
    %v1401 = vpop.f32.mrb[0].mxu0
    %v1402 = vpop.f32.mrb[0].mxu0
    %v1403 = vpop.f32.mrb[0].mxu0
    %1404 = vdwg.mxu0
    %v1405 = vmul.f32 %v1317, %v1400
    %v1406 = vadd.f32 %v1270, %v1405
    %v1407 = vtanh.pop %v1406
    %v1408 = vsub.f32 1.0, %v1364
    %v1409 = vmul.f32 %v1408, %v1407
    %v1410 = vmul.f32 %v1364, %v1029
    %v1411 = vadd.f32 %v1409, %v1410
    %s1412 = scalar_lea.vmem %s1, 24
    %v1413 = vld [vmem:[%s1412] sm:$0x3]
    %v1414 = vld [vmem:[%s1412 + $0x2] sm:$0x3]
    %v1415 = vld [vmem:[%s1412 + $0x4] sm:$0x3]
    %1416 = vmatprep.subr.bf16.mxu0 0
    %1417 = vmatpush1.bf16.msra.mxu0 %v238
    %1418 = vmatprep.subr.bf16.mxu0 0
    %1419 = vmatpush1.bf16.msra.mxu0 0
    %1420 = vmatprep.subr.bf16.mxu0 0
    %1421 = vmatpush1.bf16.msra.mxu0 0
    %1422 = vmatprep.subr.bf16.mxu0 0
    %1423 = vmatpush1.bf16.msra.mxu0 0
    %1424 = vmatprep.subr.bf16.mxu0 0
    %1425 = vmatpush1.bf16.msra.mxu0 0
    %1426 = vmatprep.subr.bf16.mxu0 0
    %1427 = vmatpush1.bf16.msra.mxu0 0
    %1428 = vmatprep.subr.bf16.mxu0 0
    %1429 = vmatpush1.bf16.msra.mxu0 0
    %1430 = vmatprep.subr.bf16.mxu0 0
    %1431 = vmatpush1.bf16.msra.mxu0 0
    %1432 = vmatprep.subr.bf16.mxu0 0
    %1433 = vmatpush1.bf16.msra.mxu0 0
    %1434 = vmatprep.subr.bf16.mxu0 0
    %1435 = vmatpush1.bf16.msra.mxu0 0
    %1436 = vmatprep.subr.bf16.mxu0 0
    %1437 = vmatpush1.bf16.msra.mxu0 0
    %1438 = vmatprep.subr.bf16.mxu0 0
    %1439 = vmatpush1.bf16.msra.mxu0 0
    %1440 = vmatprep.subr.bf16.mxu0 0
    %1441 = vmatpush1.bf16.msra.mxu0 0
    %1442 = vmatprep.subr.bf16.mxu0 0
    %1443 = vmatpush1.bf16.msra.mxu0 0
    %1444 = vmatprep.subr.bf16.mxu0 0
    %1445 = vmatpush1.bf16.msra.mxu0 0
    %1446 = vmatprep.subr.bf16.mxu0 0
    %1447 = vmatpush1.bf16.msra.mxu0 0
    %1448 = vmatprep.mubr.bf16.mxu0 0
    %1449 = vmatmul.mubr.bf16.gmra.mrb[0].mxu0 %v1223
    %v1450 = vpop.f32.mrb[0].mxu0
    %v1451 = vadd.f32 0.0, %v1450
    %v1452 = vpop.f32.mrb[0].mxu0
    %v1453 = vpop.f32.mrb[0].mxu0
    %v1454 = vpop.f32.mrb[0].mxu0
    %1455 = vdwg.mxu0
    %v1456 = vadd.f32 %v1413, %v1451
    %v1457 = vxor.u32 %v1456, 2147483648
    %v1458 = vmul.f32 %v1457, 1.442695
    %v1459 = vpow.pop %v1458
    %v1460 = vadd.f32 %v1459, 1.0
    %v1461 = vrcp.pop %v1460
    %v1462 = vmul.f32 1.0, %v1461
    %1463 = vmatprep.subr.bf16.mxu0 0
    %1464 = vmatpush1.bf16.msra.mxu0 %v291
    %1465 = vmatprep.subr.bf16.mxu0 0
    %1466 = vmatpush1.bf16.msra.mxu0 0
    %1467 = vmatprep.subr.bf16.mxu0 0
    %1468 = vmatpush1.bf16.msra.mxu0 0
    %1469 = vmatprep.subr.bf16.mxu0 0
    %1470 = vmatpush1.bf16.msra.mxu0 0
    %1471 = vmatprep.subr.bf16.mxu0 0
    %1472 = vmatpush1.bf16.msra.mxu0 0
    %1473 = vmatprep.subr.bf16.mxu0 0
    %1474 = vmatpush1.bf16.msra.mxu0 0
    %1475 = vmatprep.subr.bf16.mxu0 0
    %1476 = vmatpush1.bf16.msra.mxu0 0
    %1477 = vmatprep.subr.bf16.mxu0 0
    %1478 = vmatpush1.bf16.msra.mxu0 0
    %1479 = vmatprep.subr.bf16.mxu0 0
    %1480 = vmatpush1.bf16.msra.mxu0 0
    %1481 = vmatprep.subr.bf16.mxu0 0
    %1482 = vmatpush1.bf16.msra.mxu0 0
    %1483 = vmatprep.subr.bf16.mxu0 0
    %1484 = vmatpush1.bf16.msra.mxu0 0
    %1485 = vmatprep.subr.bf16.mxu0 0
    %1486 = vmatpush1.bf16.msra.mxu0 0
    %1487 = vmatprep.subr.bf16.mxu0 0
    %1488 = vmatpush1.bf16.msra.mxu0 0
    %1489 = vmatprep.subr.bf16.mxu0 0
    %1490 = vmatpush1.bf16.msra.mxu0 0
    %1491 = vmatprep.subr.bf16.mxu0 0
    %1492 = vmatpush1.bf16.msra.mxu0 0
    %1493 = vmatprep.subr.bf16.mxu0 0
    %1494 = vmatpush1.bf16.msra.mxu0 0
    %1495 = vmatprep.mubr.bf16.mxu0 0
    %1496 = vmatmul.mubr.bf16.gmra.mrb[0].mxu0 %v1223
    %v1497 = vpop.f32.mrb[0].mxu0
    %v1498 = vadd.f32 0.0, %v1497
    %v1499 = vpop.f32.mrb[0].mxu0
    %v1500 = vpop.f32.mrb[0].mxu0
    %v1501 = vpop.f32.mrb[0].mxu0
    %1502 = vdwg.mxu0
    %v1503 = vadd.f32 %v1414, %v1498
    %v1504 = vxor.u32 %v1503, 2147483648
    %v1505 = vmul.f32 %v1504, 1.442695
    %v1506 = vpow.pop %v1505
    %v1507 = vadd.f32 %v1506, 1.0
    %v1508 = vrcp.pop %v1507
    %v1509 = vmul.f32 1.0, %v1508
    %1510 = vmatprep.subr.bf16.mxu0 0
    %1511 = vmatpush1.bf16.msra.mxu0 %v350
    %1512 = vmatprep.subr.bf16.mxu0 0
    %1513 = vmatpush1.bf16.msra.mxu0 0
    %1514 = vmatprep.subr.bf16.mxu0 0
    %1515 = vmatpush1.bf16.msra.mxu0 0
    %1516 = vmatprep.subr.bf16.mxu0 0
    %1517 = vmatpush1.bf16.msra.mxu0 0
    %1518 = vmatprep.subr.bf16.mxu0 0
    %1519 = vmatpush1.bf16.msra.mxu0 0
    %1520 = vmatprep.subr.bf16.mxu0 0
    %1521 = vmatpush1.bf16.msra.mxu0 0
    %1522 = vmatprep.subr.bf16.mxu0 0
    %1523 = vmatpush1.bf16.msra.mxu0 0
    %1524 = vmatprep.subr.bf16.mxu0 0
    %1525 = vmatpush1.bf16.msra.mxu0 0
    %1526 = vmatprep.subr.bf16.mxu0 0
    %1527 = vmatpush1.bf16.msra.mxu0 0
    %1528 = vmatprep.subr.bf16.mxu0 0
    %1529 = vmatpush1.bf16.msra.mxu0 0
    %1530 = vmatprep.subr.bf16.mxu0 0
    %1531 = vmatpush1.bf16.msra.mxu0 0
    %1532 = vmatprep.subr.bf16.mxu0 0
    %1533 = vmatpush1.bf16.msra.mxu0 0
    %1534 = vmatprep.subr.bf16.mxu0 0
    %1535 = vmatpush1.bf16.msra.mxu0 0
    %1536 = vmatprep.subr.bf16.mxu0 0
    %1537 = vmatpush1.bf16.msra.mxu0 0
    %1538 = vmatprep.subr.bf16.mxu0 0
    %1539 = vmatpush1.bf16.msra.mxu0 0
    %1540 = vmatprep.subr.bf16.mxu0 0
    %1541 = vmatpush1.bf16.msra.mxu0 0
    %1542 = vmatprep.mubr.bf16.mxu0 0
    %1543 = vmatmul.mubr.bf16.gmra.mrb[0].mxu0 %v1223
    %v1544 = vpop.f32.mrb[0].mxu0
    %v1545 = vadd.f32 %v344, %v1544
    %v1546 = vpop.f32.mrb[0].mxu0
    %v1547 = vpop.f32.mrb[0].mxu0
    %v1548 = vpop.f32.mrb[0].mxu0
    %1549 = vdwg.mxu0
    %v1550 = vmul.f32 %v1462, %v1545
    %v1551 = vadd.f32 %v1415, %v1550
    %v1552 = vtanh.pop %v1551
    %v1553 = vsub.f32 1.0, %v1509
    %v1554 = vmul.f32 %v1553, %v1552
    %v1555 = vmul.f32 %v1509, %v1174
    %v1556 = vadd.f32 %v1554, %v1555
    %v1557 = vpack.c.bf16 %v1411, %v1411
    %v1559 = vsel %vm67, %v1557, 0
    %1561 = vmatprep.subr.bf16.mxu0 0
    %1562 = vmatpush1.bf16.msra.mxu0 %v404
    %1563 = vmatprep.subr.bf16.mxu0 0
    %1564 = vmatpush1.bf16.msra.mxu0 0
    %1565 = vmatprep.subr.bf16.mxu0 0
    %1566 = vmatpush1.bf16.msra.mxu0 0
    %1567 = vmatprep.subr.bf16.mxu0 0
    %1568 = vmatpush1.bf16.msra.mxu0 0
    %1569 = vmatprep.subr.bf16.mxu0 0
    %1570 = vmatpush1.bf16.msra.mxu0 0
    %1571 = vmatprep.subr.bf16.mxu0 0
    %1572 = vmatpush1.bf16.msra.mxu0 0
    %1573 = vmatprep.subr.bf16.mxu0 0
    %1574 = vmatpush1.bf16.msra.mxu0 0
    %1575 = vmatprep.subr.bf16.mxu0 0
    %1576 = vmatpush1.bf16.msra.mxu0 0
    %1577 = vmatprep.subr.bf16.mxu0 0
    %1578 = vmatpush1.bf16.msra.mxu0 0
    %1579 = vmatprep.subr.bf16.mxu0 0
    %1580 = vmatpush1.bf16.msra.mxu0 0
    %1581 = vmatprep.subr.bf16.mxu0 0
    %1582 = vmatpush1.bf16.msra.mxu0 0
    %1583 = vmatprep.subr.bf16.mxu0 0
    %1584 = vmatpush1.bf16.msra.mxu0 0
    %1585 = vmatprep.subr.bf16.mxu0 0
    %1586 = vmatpush1.bf16.msra.mxu0 0
    %1587 = vmatprep.subr.bf16.mxu0 0
    %1588 = vmatpush1.bf16.msra.mxu0 0
    %1589 = vmatprep.subr.bf16.mxu0 0
    %1590 = vmatpush1.bf16.msra.mxu0 0
    %1591 = vmatprep.subr.bf16.mxu0 0
    %1592 = vmatpush1.bf16.msra.mxu0 0
    %1593 = vmatprep.mubr.bf16.mxu0 0
    %1594 = vmatmul.mubr.bf16.gmra.mrb[0].mxu0 %v1559
    %v1595 = vpop.f32.mrb[0].mxu0
    %v1596 = vadd.f32 0.0, %v1595
    %v1597 = vpop.f32.mrb[0].mxu0
    %v1598 = vpop.f32.mrb[0].mxu0
    %v1599 = vpop.f32.mrb[0].mxu0
    %1600 = vdwg.mxu0
    %s1601 = scalar_lea.vmem %s10, 6
    %1602 = vst.msk [vmem:[%s1601] sm:$0x3] %vm449, %v1596
    %v1603 = vpack.c.bf16 %v1556, %v1556
    %v1605 = vsel %vm67, %v1603, 0
    %1607 = vmatprep.subr.bf16.mxu0 0
    %1608 = vmatpush1.bf16.msra.mxu0 %v456
    %1609 = vmatprep.subr.bf16.mxu0 0
    %1610 = vmatpush1.bf16.msra.mxu0 0
    %1611 = vmatprep.subr.bf16.mxu0 0
    %1612 = vmatpush1.bf16.msra.mxu0 0
    %1613 = vmatprep.subr.bf16.mxu0 0
    %1614 = vmatpush1.bf16.msra.mxu0 0
    %1615 = vmatprep.subr.bf16.mxu0 0
    %1616 = vmatpush1.bf16.msra.mxu0 0
    %1617 = vmatprep.subr.bf16.mxu0 0
    %1618 = vmatpush1.bf16.msra.mxu0 0
    %1619 = vmatprep.subr.bf16.mxu0 0
    %1620 = vmatpush1.bf16.msra.mxu0 0
    %1621 = vmatprep.subr.bf16.mxu0 0
    %1622 = vmatpush1.bf16.msra.mxu0 0
    %1623 = vmatprep.subr.bf16.mxu0 0
    %1624 = vmatpush1.bf16.msra.mxu0 0
    %1625 = vmatprep.subr.bf16.mxu0 0
    %1626 = vmatpush1.bf16.msra.mxu0 0
    %1627 = vmatprep.subr.bf16.mxu0 0
    %1628 = vmatpush1.bf16.msra.mxu0 0
    %1629 = vmatprep.subr.bf16.mxu0 0
    %1630 = vmatpush1.bf16.msra.mxu0 0
    %1631 = vmatprep.subr.bf16.mxu0 0
    %1632 = vmatpush1.bf16.msra.mxu0 0
    %1633 = vmatprep.subr.bf16.mxu0 0
    %1634 = vmatpush1.bf16.msra.mxu0 0
    %1635 = vmatprep.subr.bf16.mxu0 0
    %1636 = vmatpush1.bf16.msra.mxu0 0
    %1637 = vmatprep.subr.bf16.mxu0 0
    %1638 = vmatpush1.bf16.msra.mxu0 0
    %1639 = vmatprep.mubr.bf16.mxu0 0
    %1640 = vmatmul.mubr.bf16.gmra.mrb[0].mxu0 %v1605
    %v1641 = vpop.f32.mrb[0].mxu0
    %v1642 = vadd.f32 0.0, %v1641
    %v1643 = vpop.f32.mrb[0].mxu0
    %v1644 = vpop.f32.mrb[0].mxu0
    %v1645 = vpop.f32.mrb[0].mxu0
    %1646 = vdwg.mxu0
    %s1647 = scalar_lea.vmem %s10, 24
    %1648 = vst.msk [vmem:[%s1647] sm:$0x3] %vm449, %v1642
    %s1649 = scalar_lea.vmem %s0, 24
    %v1650 = vld [vmem:[%s1649] sm:$0x3]
    %v1651 = vld [vmem:[%s1649 + $0x2] sm:$0x3]
    %v1652 = vld [vmem:[%s1649 + $0x4] sm:$0x3]
    %1653 = vmatprep.subr.bf16.mxu0 0
    %1654 = vmatpush1.bf16.msra.mxu0 %v65
    %1655 = vmatprep.subr.bf16.mxu0 0
    %1656 = vmatpush1.bf16.msra.mxu0 0
    %1657 = vmatprep.subr.bf16.mxu0 0
    %1658 = vmatpush1.bf16.msra.mxu0 0
    %1659 = vmatprep.subr.bf16.mxu0 0
    %1660 = vmatpush1.bf16.msra.mxu0 0
    %1661 = vmatprep.subr.bf16.mxu0 0
    %1662 = vmatpush1.bf16.msra.mxu0 0
    %1663 = vmatprep.subr.bf16.mxu0 0
    %1664 = vmatpush1.bf16.msra.mxu0 0
    %1665 = vmatprep.subr.bf16.mxu0 0
    %1666 = vmatpush1.bf16.msra.mxu0 0
    %1667 = vmatprep.subr.bf16.mxu0 0
    %1668 = vmatpush1.bf16.msra.mxu0 0
    %1669 = vmatprep.subr.bf16.mxu0 0
    %1670 = vmatpush1.bf16.msra.mxu0 0
    %1671 = vmatprep.subr.bf16.mxu0 0
    %1672 = vmatpush1.bf16.msra.mxu0 0
    %1673 = vmatprep.subr.bf16.mxu0 0
    %1674 = vmatpush1.bf16.msra.mxu0 0
    %1675 = vmatprep.subr.bf16.mxu0 0
    %1676 = vmatpush1.bf16.msra.mxu0 0
    %1677 = vmatprep.subr.bf16.mxu0 0
    %1678 = vmatpush1.bf16.msra.mxu0 0
    %1679 = vmatprep.subr.bf16.mxu0 0
    %1680 = vmatpush1.bf16.msra.mxu0 0
    %1681 = vmatprep.subr.bf16.mxu0 0
    %1682 = vmatpush1.bf16.msra.mxu0 0
    %1683 = vmatprep.subr.bf16.mxu0 0
    %1684 = vmatpush1.bf16.msra.mxu0 0
    %1685 = vmatprep.mubr.bf16.mxu0 0
    %1686 = vmatmul.mubr.bf16.gmra.mrb[0].mxu0 %v1559
    %v1687 = vpop.f32.mrb[0].mxu0
    %v1688 = vadd.f32 0.0, %v1687
    %v1689 = vpop.f32.mrb[0].mxu0
    %v1690 = vpop.f32.mrb[0].mxu0
    %v1691 = vpop.f32.mrb[0].mxu0
    %1692 = vdwg.mxu0
    %v1693 = vadd.f32 %v1650, %v1688
    %v1694 = vxor.u32 %v1693, 2147483648
    %v1695 = vmul.f32 %v1694, 1.442695
    %v1696 = vpow.pop %v1695
    %v1697 = vadd.f32 %v1696, 1.0
    %v1698 = vrcp.pop %v1697
    %v1699 = vmul.f32 1.0, %v1698
    %1700 = vmatprep.subr.bf16.mxu0 0
    %1701 = vmatpush1.bf16.msra.mxu0 %v122
    %1702 = vmatprep.subr.bf16.mxu0 0
    %1703 = vmatpush1.bf16.msra.mxu0 0
    %1704 = vmatprep.subr.bf16.mxu0 0
    %1705 = vmatpush1.bf16.msra.mxu0 0
    %1706 = vmatprep.subr.bf16.mxu0 0
    %1707 = vmatpush1.bf16.msra.mxu0 0
    %1708 = vmatprep.subr.bf16.mxu0 0
    %1709 = vmatpush1.bf16.msra.mxu0 0
    %1710 = vmatprep.subr.bf16.mxu0 0
    %1711 = vmatpush1.bf16.msra.mxu0 0
    %1712 = vmatprep.subr.bf16.mxu0 0
    %1713 = vmatpush1.bf16.msra.mxu0 0
    %1714 = vmatprep.subr.bf16.mxu0 0
    %1715 = vmatpush1.bf16.msra.mxu0 0
    %1716 = vmatprep.subr.bf16.mxu0 0
    %1717 = vmatpush1.bf16.msra.mxu0 0
    %1718 = vmatprep.subr.bf16.mxu0 0
    %1719 = vmatpush1.bf16.msra.mxu0 0
    %1720 = vmatprep.subr.bf16.mxu0 0
    %1721 = vmatpush1.bf16.msra.mxu0 0
    %1722 = vmatprep.subr.bf16.mxu0 0
    %1723 = vmatpush1.bf16.msra.mxu0 0
    %1724 = vmatprep.subr.bf16.mxu0 0
    %1725 = vmatpush1.bf16.msra.mxu0 0
    %1726 = vmatprep.subr.bf16.mxu0 0
    %1727 = vmatpush1.bf16.msra.mxu0 0
    %1728 = vmatprep.subr.bf16.mxu0 0
    %1729 = vmatpush1.bf16.msra.mxu0 0
    %1730 = vmatprep.subr.bf16.mxu0 0
    %1731 = vmatpush1.bf16.msra.mxu0 0
    %1732 = vmatprep.mubr.bf16.mxu0 0
    %1733 = vmatmul.mubr.bf16.gmra.mrb[0].mxu0 %v1559
    %v1734 = vpop.f32.mrb[0].mxu0
    %v1735 = vadd.f32 0.0, %v1734
    %v1736 = vpop.f32.mrb[0].mxu0
    %v1737 = vpop.f32.mrb[0].mxu0
    %v1738 = vpop.f32.mrb[0].mxu0
    %1739 = vdwg.mxu0
    %v1740 = vadd.f32 %v1651, %v1735
    %v1741 = vxor.u32 %v1740, 2147483648
    %v1742 = vmul.f32 %v1741, 1.442695
    %v1743 = vpow.pop %v1742
    %v1744 = vadd.f32 %v1743, 1.0
    %v1745 = vrcp.pop %v1744
    %v1746 = vmul.f32 1.0, %v1745
    %1747 = vmatprep.subr.bf16.mxu0 0
    %1748 = vmatpush1.bf16.msra.mxu0 %v181
    %1749 = vmatprep.subr.bf16.mxu0 0
    %1750 = vmatpush1.bf16.msra.mxu0 0
    %1751 = vmatprep.subr.bf16.mxu0 0
    %1752 = vmatpush1.bf16.msra.mxu0 0
    %1753 = vmatprep.subr.bf16.mxu0 0
    %1754 = vmatpush1.bf16.msra.mxu0 0
    %1755 = vmatprep.subr.bf16.mxu0 0
    %1756 = vmatpush1.bf16.msra.mxu0 0
    %1757 = vmatprep.subr.bf16.mxu0 0
    %1758 = vmatpush1.bf16.msra.mxu0 0
    %1759 = vmatprep.subr.bf16.mxu0 0
    %1760 = vmatpush1.bf16.msra.mxu0 0
    %1761 = vmatprep.subr.bf16.mxu0 0
    %1762 = vmatpush1.bf16.msra.mxu0 0
    %1763 = vmatprep.subr.bf16.mxu0 0
    %1764 = vmatpush1.bf16.msra.mxu0 0
    %1765 = vmatprep.subr.bf16.mxu0 0
    %1766 = vmatpush1.bf16.msra.mxu0 0
    %1767 = vmatprep.subr.bf16.mxu0 0
    %1768 = vmatpush1.bf16.msra.mxu0 0
    %1769 = vmatprep.subr.bf16.mxu0 0
    %1770 = vmatpush1.bf16.msra.mxu0 0
    %1771 = vmatprep.subr.bf16.mxu0 0
    %1772 = vmatpush1.bf16.msra.mxu0 0
    %1773 = vmatprep.subr.bf16.mxu0 0
    %1774 = vmatpush1.bf16.msra.mxu0 0
    %1775 = vmatprep.subr.bf16.mxu0 0
    %1776 = vmatpush1.bf16.msra.mxu0 0
    %1777 = vmatprep.subr.bf16.mxu0 0
    %1778 = vmatpush1.bf16.msra.mxu0 0
    %1779 = vmatprep.mubr.bf16.mxu0 0
    %1780 = vmatmul.mubr.bf16.gmra.mrb[0].mxu0 %v1559
    %v1781 = vpop.f32.mrb[0].mxu0
    %v1782 = vadd.f32 %v175, %v1781
    %v1783 = vpop.f32.mrb[0].mxu0
    %v1784 = vpop.f32.mrb[0].mxu0
    %v1785 = vpop.f32.mrb[0].mxu0
    %1786 = vdwg.mxu0
    %v1787 = vmul.f32 %v1699, %v1782
    %v1788 = vadd.f32 %v1652, %v1787
    %v1789 = vtanh.pop %v1788
    %v1790 = vsub.f32 1.0, %v1746
    %v1791 = vmul.f32 %v1790, %v1789
    %v1792 = vmul.f32 %v1746, %v1411
    %v1793 = vadd.f32 %v1791, %v1792
    %s1794 = scalar_lea.vmem %s1, 18
    %v1795 = vld [vmem:[%s1794] sm:$0x3]
    %v1796 = vld [vmem:[%s1794 + $0x2] sm:$0x3]
    %v1797 = vld [vmem:[%s1794 + $0x4] sm:$0x3]
    %1798 = vmatprep.subr.bf16.mxu0 0
    %1799 = vmatpush1.bf16.msra.mxu0 %v238
    %1800 = vmatprep.subr.bf16.mxu0 0
    %1801 = vmatpush1.bf16.msra.mxu0 0
    %1802 = vmatprep.subr.bf16.mxu0 0
    %1803 = vmatpush1.bf16.msra.mxu0 0
    %1804 = vmatprep.subr.bf16.mxu0 0
    %1805 = vmatpush1.bf16.msra.mxu0 0
    %1806 = vmatprep.subr.bf16.mxu0 0
    %1807 = vmatpush1.bf16.msra.mxu0 0
    %1808 = vmatprep.subr.bf16.mxu0 0
    %1809 = vmatpush1.bf16.msra.mxu0 0
    %1810 = vmatprep.subr.bf16.mxu0 0
    %1811 = vmatpush1.bf16.msra.mxu0 0
    %1812 = vmatprep.subr.bf16.mxu0 0
    %1813 = vmatpush1.bf16.msra.mxu0 0
    %1814 = vmatprep.subr.bf16.mxu0 0
    %1815 = vmatpush1.bf16.msra.mxu0 0
    %1816 = vmatprep.subr.bf16.mxu0 0
    %1817 = vmatpush1.bf16.msra.mxu0 0
    %1818 = vmatprep.subr.bf16.mxu0 0
    %1819 = vmatpush1.bf16.msra.mxu0 0
    %1820 = vmatprep.subr.bf16.mxu0 0
    %1821 = vmatpush1.bf16.msra.mxu0 0
    %1822 = vmatprep.subr.bf16.mxu0 0
    %1823 = vmatpush1.bf16.msra.mxu0 0
    %1824 = vmatprep.subr.bf16.mxu0 0
    %1825 = vmatpush1.bf16.msra.mxu0 0
    %1826 = vmatprep.subr.bf16.mxu0 0
    %1827 = vmatpush1.bf16.msra.mxu0 0
    %1828 = vmatprep.subr.bf16.mxu0 0
    %1829 = vmatpush1.bf16.msra.mxu0 0
    %1830 = vmatprep.mubr.bf16.mxu0 0
    %1831 = vmatmul.mubr.bf16.gmra.mrb[0].mxu0 %v1605
    %v1832 = vpop.f32.mrb[0].mxu0
    %v1833 = vadd.f32 0.0, %v1832
    %v1834 = vpop.f32.mrb[0].mxu0
    %v1835 = vpop.f32.mrb[0].mxu0
    %v1836 = vpop.f32.mrb[0].mxu0
    %1837 = vdwg.mxu0
    %v1838 = vadd.f32 %v1795, %v1833
    %v1839 = vxor.u32 %v1838, 2147483648
    %v1840 = vmul.f32 %v1839, 1.442695
    %v1841 = vpow.pop %v1840
    %v1842 = vadd.f32 %v1841, 1.0
    %v1843 = vrcp.pop %v1842
    %v1844 = vmul.f32 1.0, %v1843
    %1845 = vmatprep.subr.bf16.mxu0 0
    %1846 = vmatpush1.bf16.msra.mxu0 %v291
    %1847 = vmatprep.subr.bf16.mxu0 0
    %1848 = vmatpush1.bf16.msra.mxu0 0
    %1849 = vmatprep.subr.bf16.mxu0 0
    %1850 = vmatpush1.bf16.msra.mxu0 0
    %1851 = vmatprep.subr.bf16.mxu0 0
    %1852 = vmatpush1.bf16.msra.mxu0 0
    %1853 = vmatprep.subr.bf16.mxu0 0
    %1854 = vmatpush1.bf16.msra.mxu0 0
    %1855 = vmatprep.subr.bf16.mxu0 0
    %1856 = vmatpush1.bf16.msra.mxu0 0
    %1857 = vmatprep.subr.bf16.mxu0 0
    %1858 = vmatpush1.bf16.msra.mxu0 0
    %1859 = vmatprep.subr.bf16.mxu0 0
    %1860 = vmatpush1.bf16.msra.mxu0 0
    %1861 = vmatprep.subr.bf16.mxu0 0
    %1862 = vmatpush1.bf16.msra.mxu0 0
    %1863 = vmatprep.subr.bf16.mxu0 0
    %1864 = vmatpush1.bf16.msra.mxu0 0
    %1865 = vmatprep.subr.bf16.mxu0 0
    %1866 = vmatpush1.bf16.msra.mxu0 0
    %1867 = vmatprep.subr.bf16.mxu0 0
    %1868 = vmatpush1.bf16.msra.mxu0 0
    %1869 = vmatprep.subr.bf16.mxu0 0
    %1870 = vmatpush1.bf16.msra.mxu0 0
    %1871 = vmatprep.subr.bf16.mxu0 0
    %1872 = vmatpush1.bf16.msra.mxu0 0
    %1873 = vmatprep.subr.bf16.mxu0 0
    %1874 = vmatpush1.bf16.msra.mxu0 0
    %1875 = vmatprep.subr.bf16.mxu0 0
    %1876 = vmatpush1.bf16.msra.mxu0 0
    %1877 = vmatprep.mubr.bf16.mxu0 0
    %1878 = vmatmul.mubr.bf16.gmra.mrb[0].mxu0 %v1605
    %v1879 = vpop.f32.mrb[0].mxu0
    %v1880 = vadd.f32 0.0, %v1879
    %v1881 = vpop.f32.mrb[0].mxu0
    %v1882 = vpop.f32.mrb[0].mxu0
    %v1883 = vpop.f32.mrb[0].mxu0
    %1884 = vdwg.mxu0
    %v1885 = vadd.f32 %v1796, %v1880
    %v1886 = vxor.u32 %v1885, 2147483648
    %v1887 = vmul.f32 %v1886, 1.442695
    %v1888 = vpow.pop %v1887
    %v1889 = vadd.f32 %v1888, 1.0
    %v1890 = vrcp.pop %v1889
    %v1891 = vmul.f32 1.0, %v1890
    %1892 = vmatprep.subr.bf16.mxu0 0
    %1893 = vmatpush1.bf16.msra.mxu0 %v350
    %1894 = vmatprep.subr.bf16.mxu0 0
    %1895 = vmatpush1.bf16.msra.mxu0 0
    %1896 = vmatprep.subr.bf16.mxu0 0
    %1897 = vmatpush1.bf16.msra.mxu0 0
    %1898 = vmatprep.subr.bf16.mxu0 0
    %1899 = vmatpush1.bf16.msra.mxu0 0
    %1900 = vmatprep.subr.bf16.mxu0 0
    %1901 = vmatpush1.bf16.msra.mxu0 0
    %1902 = vmatprep.subr.bf16.mxu0 0
    %1903 = vmatpush1.bf16.msra.mxu0 0
    %1904 = vmatprep.subr.bf16.mxu0 0
    %1905 = vmatpush1.bf16.msra.mxu0 0
    %1906 = vmatprep.subr.bf16.mxu0 0
    %1907 = vmatpush1.bf16.msra.mxu0 0
    %1908 = vmatprep.subr.bf16.mxu0 0
    %1909 = vmatpush1.bf16.msra.mxu0 0
    %1910 = vmatprep.subr.bf16.mxu0 0
    %1911 = vmatpush1.bf16.msra.mxu0 0
    %1912 = vmatprep.subr.bf16.mxu0 0
    %1913 = vmatpush1.bf16.msra.mxu0 0
    %1914 = vmatprep.subr.bf16.mxu0 0
    %1915 = vmatpush1.bf16.msra.mxu0 0
    %1916 = vmatprep.subr.bf16.mxu0 0
    %1917 = vmatpush1.bf16.msra.mxu0 0
    %1918 = vmatprep.subr.bf16.mxu0 0
    %1919 = vmatpush1.bf16.msra.mxu0 0
    %1920 = vmatprep.subr.bf16.mxu0 0
    %1921 = vmatpush1.bf16.msra.mxu0 0
    %1922 = vmatprep.subr.bf16.mxu0 0
    %1923 = vmatpush1.bf16.msra.mxu0 0
    %1924 = vmatprep.mubr.bf16.mxu0 0
    %1925 = vmatmul.mubr.bf16.gmra.mrb[0].mxu0 %v1605
    %v1926 = vpop.f32.mrb[0].mxu0
    %v1927 = vadd.f32 %v344, %v1926
    %v1928 = vpop.f32.mrb[0].mxu0
    %v1929 = vpop.f32.mrb[0].mxu0
    %v1930 = vpop.f32.mrb[0].mxu0
    %1931 = vdwg.mxu0
    %v1932 = vmul.f32 %v1844, %v1927
    %v1933 = vadd.f32 %v1797, %v1932
    %v1934 = vtanh.pop %v1933
    %v1935 = vsub.f32 1.0, %v1891
    %v1936 = vmul.f32 %v1935, %v1934
    %v1937 = vmul.f32 %v1891, %v1556
    %v1938 = vadd.f32 %v1936, %v1937
    %v1939 = vpack.c.bf16 %v1793, %v1793
    %v1941 = vsel %vm67, %v1939, 0
    %1943 = vmatprep.subr.bf16.mxu0 0
    %1944 = vmatpush1.bf16.msra.mxu0 %v404
    %1945 = vmatprep.subr.bf16.mxu0 0
    %1946 = vmatpush1.bf16.msra.mxu0 0
    %1947 = vmatprep.subr.bf16.mxu0 0
    %1948 = vmatpush1.bf16.msra.mxu0 0
    %1949 = vmatprep.subr.bf16.mxu0 0
    %1950 = vmatpush1.bf16.msra.mxu0 0
    %1951 = vmatprep.subr.bf16.mxu0 0
    %1952 = vmatpush1.bf16.msra.mxu0 0
    %1953 = vmatprep.subr.bf16.mxu0 0
    %1954 = vmatpush1.bf16.msra.mxu0 0
    %1955 = vmatprep.subr.bf16.mxu0 0
    %1956 = vmatpush1.bf16.msra.mxu0 0
    %1957 = vmatprep.subr.bf16.mxu0 0
    %1958 = vmatpush1.bf16.msra.mxu0 0
    %1959 = vmatprep.subr.bf16.mxu0 0
    %1960 = vmatpush1.bf16.msra.mxu0 0
    %1961 = vmatprep.subr.bf16.mxu0 0
    %1962 = vmatpush1.bf16.msra.mxu0 0
    %1963 = vmatprep.subr.bf16.mxu0 0
    %1964 = vmatpush1.bf16.msra.mxu0 0
    %1965 = vmatprep.subr.bf16.mxu0 0
    %1966 = vmatpush1.bf16.msra.mxu0 0
    %1967 = vmatprep.subr.bf16.mxu0 0
    %1968 = vmatpush1.bf16.msra.mxu0 0
    %1969 = vmatprep.subr.bf16.mxu0 0
    %1970 = vmatpush1.bf16.msra.mxu0 0
    %1971 = vmatprep.subr.bf16.mxu0 0
    %1972 = vmatpush1.bf16.msra.mxu0 0
    %1973 = vmatprep.subr.bf16.mxu0 0
    %1974 = vmatpush1.bf16.msra.mxu0 0
    %1975 = vmatprep.mubr.bf16.mxu0 0
    %1976 = vmatmul.mubr.bf16.gmra.mrb[0].mxu0 %v1941
    %v1977 = vpop.f32.mrb[0].mxu0
    %v1978 = vadd.f32 0.0, %v1977
    %v1979 = vpop.f32.mrb[0].mxu0
    %v1980 = vpop.f32.mrb[0].mxu0
    %v1981 = vpop.f32.mrb[0].mxu0
    %1982 = vdwg.mxu0
    %s1983 = scalar_lea.vmem %s10, 8
    %1984 = vst.msk [vmem:[%s1983] sm:$0x3] %vm449, %v1978
    %v1985 = vpack.c.bf16 %v1938, %v1938
    %v1987 = vsel %vm67, %v1985, 0
    %1989 = vmatprep.subr.bf16.mxu0 0
    %1990 = vmatpush1.bf16.msra.mxu0 %v456
    %1991 = vmatprep.subr.bf16.mxu0 0
    %1992 = vmatpush1.bf16.msra.mxu0 0
    %1993 = vmatprep.subr.bf16.mxu0 0
    %1994 = vmatpush1.bf16.msra.mxu0 0
    %1995 = vmatprep.subr.bf16.mxu0 0
    %1996 = vmatpush1.bf16.msra.mxu0 0
    %1997 = vmatprep.subr.bf16.mxu0 0
    %1998 = vmatpush1.bf16.msra.mxu0 0
    %1999 = vmatprep.subr.bf16.mxu0 0
    %2000 = vmatpush1.bf16.msra.mxu0 0
    %2001 = vmatprep.subr.bf16.mxu0 0
    %2002 = vmatpush1.bf16.msra.mxu0 0
    %2003 = vmatprep.subr.bf16.mxu0 0
    %2004 = vmatpush1.bf16.msra.mxu0 0
    %2005 = vmatprep.subr.bf16.mxu0 0
    %2006 = vmatpush1.bf16.msra.mxu0 0
    %2007 = vmatprep.subr.bf16.mxu0 0
    %2008 = vmatpush1.bf16.msra.mxu0 0
    %2009 = vmatprep.subr.bf16.mxu0 0
    %2010 = vmatpush1.bf16.msra.mxu0 0
    %2011 = vmatprep.subr.bf16.mxu0 0
    %2012 = vmatpush1.bf16.msra.mxu0 0
    %2013 = vmatprep.subr.bf16.mxu0 0
    %2014 = vmatpush1.bf16.msra.mxu0 0
    %2015 = vmatprep.subr.bf16.mxu0 0
    %2016 = vmatpush1.bf16.msra.mxu0 0
    %2017 = vmatprep.subr.bf16.mxu0 0
    %2018 = vmatpush1.bf16.msra.mxu0 0
    %2019 = vmatprep.subr.bf16.mxu0 0
    %2020 = vmatpush1.bf16.msra.mxu0 0
    %2021 = vmatprep.mubr.bf16.mxu0 0
    %2022 = vmatmul.mubr.bf16.gmra.mrb[0].mxu0 %v1987
    %v2023 = vpop.f32.mrb[0].mxu0
    %v2024 = vadd.f32 0.0, %v2023
    %v2025 = vpop.f32.mrb[0].mxu0
    %v2026 = vpop.f32.mrb[0].mxu0
    %v2027 = vpop.f32.mrb[0].mxu0
    %2028 = vdwg.mxu0
    %s2029 = scalar_lea.vmem %s10, 22
    %2030 = vst.msk [vmem:[%s2029] sm:$0x3] %vm449, %v2024
    %s2031 = scalar_lea.vmem %s0, 30
    %v2032 = vld [vmem:[%s2031] sm:$0x3]
    %v2033 = vld [vmem:[%s2031 + $0x2] sm:$0x3]
    %v2034 = vld [vmem:[%s2031 + $0x4] sm:$0x3]
    %2035 = vmatprep.subr.bf16.mxu0 0
    %2036 = vmatpush1.bf16.msra.mxu0 %v65
    %2037 = vmatprep.subr.bf16.mxu0 0
    %2038 = vmatpush1.bf16.msra.mxu0 0
    %2039 = vmatprep.subr.bf16.mxu0 0
    %2040 = vmatpush1.bf16.msra.mxu0 0
    %2041 = vmatprep.subr.bf16.mxu0 0
    %2042 = vmatpush1.bf16.msra.mxu0 0
    %2043 = vmatprep.subr.bf16.mxu0 0
    %2044 = vmatpush1.bf16.msra.mxu0 0
    %2045 = vmatprep.subr.bf16.mxu0 0
    %2046 = vmatpush1.bf16.msra.mxu0 0
    %2047 = vmatprep.subr.bf16.mxu0 0
    %2048 = vmatpush1.bf16.msra.mxu0 0
    %2049 = vmatprep.subr.bf16.mxu0 0
    %2050 = vmatpush1.bf16.msra.mxu0 0
    %2051 = vmatprep.subr.bf16.mxu0 0
    %2052 = vmatpush1.bf16.msra.mxu0 0
    %2053 = vmatprep.subr.bf16.mxu0 0
    %2054 = vmatpush1.bf16.msra.mxu0 0
    %2055 = vmatprep.subr.bf16.mxu0 0
    %2056 = vmatpush1.bf16.msra.mxu0 0
    %2057 = vmatprep.subr.bf16.mxu0 0
    %2058 = vmatpush1.bf16.msra.mxu0 0
    %2059 = vmatprep.subr.bf16.mxu0 0
    %2060 = vmatpush1.bf16.msra.mxu0 0
    %2061 = vmatprep.subr.bf16.mxu0 0
    %2062 = vmatpush1.bf16.msra.mxu0 0
    %2063 = vmatprep.subr.bf16.mxu0 0
    %2064 = vmatpush1.bf16.msra.mxu0 0
    %2065 = vmatprep.subr.bf16.mxu0 0
    %2066 = vmatpush1.bf16.msra.mxu0 0
    %2067 = vmatprep.mubr.bf16.mxu0 0
    %2068 = vmatmul.mubr.bf16.gmra.mrb[0].mxu0 %v1941
    %v2069 = vpop.f32.mrb[0].mxu0
    %v2070 = vadd.f32 0.0, %v2069
    %v2071 = vpop.f32.mrb[0].mxu0
    %v2072 = vpop.f32.mrb[0].mxu0
    %v2073 = vpop.f32.mrb[0].mxu0
    %2074 = vdwg.mxu0
    %v2075 = vadd.f32 %v2032, %v2070
    %v2076 = vxor.u32 %v2075, 2147483648
    %v2077 = vmul.f32 %v2076, 1.442695
    %v2078 = vpow.pop %v2077
    %v2079 = vadd.f32 %v2078, 1.0
    %v2080 = vrcp.pop %v2079
    %v2081 = vmul.f32 1.0, %v2080
    %2082 = vmatprep.subr.bf16.mxu0 0
    %2083 = vmatpush1.bf16.msra.mxu0 %v122
    %2084 = vmatprep.subr.bf16.mxu0 0
    %2085 = vmatpush1.bf16.msra.mxu0 0
    %2086 = vmatprep.subr.bf16.mxu0 0
    %2087 = vmatpush1.bf16.msra.mxu0 0
    %2088 = vmatprep.subr.bf16.mxu0 0
    %2089 = vmatpush1.bf16.msra.mxu0 0
    %2090 = vmatprep.subr.bf16.mxu0 0
    %2091 = vmatpush1.bf16.msra.mxu0 0
    %2092 = vmatprep.subr.bf16.mxu0 0
    %2093 = vmatpush1.bf16.msra.mxu0 0
    %2094 = vmatprep.subr.bf16.mxu0 0
    %2095 = vmatpush1.bf16.msra.mxu0 0
    %2096 = vmatprep.subr.bf16.mxu0 0
    %2097 = vmatpush1.bf16.msra.mxu0 0
    %2098 = vmatprep.subr.bf16.mxu0 0
    %2099 = vmatpush1.bf16.msra.mxu0 0
    %2100 = vmatprep.subr.bf16.mxu0 0
    %2101 = vmatpush1.bf16.msra.mxu0 0
    %2102 = vmatprep.subr.bf16.mxu0 0
    %2103 = vmatpush1.bf16.msra.mxu0 0
    %2104 = vmatprep.subr.bf16.mxu0 0
    %2105 = vmatpush1.bf16.msra.mxu0 0
    %2106 = vmatprep.subr.bf16.mxu0 0
    %2107 = vmatpush1.bf16.msra.mxu0 0
    %2108 = vmatprep.subr.bf16.mxu0 0
    %2109 = vmatpush1.bf16.msra.mxu0 0
    %2110 = vmatprep.subr.bf16.mxu0 0
    %2111 = vmatpush1.bf16.msra.mxu0 0
    %2112 = vmatprep.subr.bf16.mxu0 0
    %2113 = vmatpush1.bf16.msra.mxu0 0
    %2114 = vmatprep.mubr.bf16.mxu0 0
    %2115 = vmatmul.mubr.bf16.gmra.mrb[0].mxu0 %v1941
    %v2116 = vpop.f32.mrb[0].mxu0
    %v2117 = vadd.f32 0.0, %v2116
    %v2118 = vpop.f32.mrb[0].mxu0
    %v2119 = vpop.f32.mrb[0].mxu0
    %v2120 = vpop.f32.mrb[0].mxu0
    %2121 = vdwg.mxu0
    %v2122 = vadd.f32 %v2033, %v2117
    %v2123 = vxor.u32 %v2122, 2147483648
    %v2124 = vmul.f32 %v2123, 1.442695
    %v2125 = vpow.pop %v2124
    %v2126 = vadd.f32 %v2125, 1.0
    %v2127 = vrcp.pop %v2126
    %v2128 = vmul.f32 1.0, %v2127
    %2129 = vmatprep.subr.bf16.mxu0 0
    %2130 = vmatpush1.bf16.msra.mxu0 %v181
    %2131 = vmatprep.subr.bf16.mxu0 0
    %2132 = vmatpush1.bf16.msra.mxu0 0
    %2133 = vmatprep.subr.bf16.mxu0 0
    %2134 = vmatpush1.bf16.msra.mxu0 0
    %2135 = vmatprep.subr.bf16.mxu0 0
    %2136 = vmatpush1.bf16.msra.mxu0 0
    %2137 = vmatprep.subr.bf16.mxu0 0
    %2138 = vmatpush1.bf16.msra.mxu0 0
    %2139 = vmatprep.subr.bf16.mxu0 0
    %2140 = vmatpush1.bf16.msra.mxu0 0
    %2141 = vmatprep.subr.bf16.mxu0 0
    %2142 = vmatpush1.bf16.msra.mxu0 0
    %2143 = vmatprep.subr.bf16.mxu0 0
    %2144 = vmatpush1.bf16.msra.mxu0 0
    %2145 = vmatprep.subr.bf16.mxu0 0
    %2146 = vmatpush1.bf16.msra.mxu0 0
    %2147 = vmatprep.subr.bf16.mxu0 0
    %2148 = vmatpush1.bf16.msra.mxu0 0
    %2149 = vmatprep.subr.bf16.mxu0 0
    %2150 = vmatpush1.bf16.msra.mxu0 0
    %2151 = vmatprep.subr.bf16.mxu0 0
    %2152 = vmatpush1.bf16.msra.mxu0 0
    %2153 = vmatprep.subr.bf16.mxu0 0
    %2154 = vmatpush1.bf16.msra.mxu0 0
    %2155 = vmatprep.subr.bf16.mxu0 0
    %2156 = vmatpush1.bf16.msra.mxu0 0
    %2157 = vmatprep.subr.bf16.mxu0 0
    %2158 = vmatpush1.bf16.msra.mxu0 0
    %2159 = vmatprep.subr.bf16.mxu0 0
    %2160 = vmatpush1.bf16.msra.mxu0 0
    %2161 = vmatprep.mubr.bf16.mxu0 0
    %2162 = vmatmul.mubr.bf16.gmra.mrb[0].mxu0 %v1941
    %v2163 = vpop.f32.mrb[0].mxu0
    %v2164 = vadd.f32 %v175, %v2163
    %v2165 = vpop.f32.mrb[0].mxu0
    %v2166 = vpop.f32.mrb[0].mxu0
    %v2167 = vpop.f32.mrb[0].mxu0
    %2168 = vdwg.mxu0
    %v2169 = vmul.f32 %v2081, %v2164
    %v2170 = vadd.f32 %v2034, %v2169
    %v2171 = vtanh.pop %v2170
    %v2172 = vsub.f32 1.0, %v2128
    %v2173 = vmul.f32 %v2172, %v2171
    %v2174 = vmul.f32 %v2128, %v1793
    %v2175 = vadd.f32 %v2173, %v2174
    %s2176 = scalar_lea.vmem %s1, 12
    %v2177 = vld [vmem:[%s2176] sm:$0x3]
    %v2178 = vld [vmem:[%s2176 + $0x2] sm:$0x3]
    %v2179 = vld [vmem:[%s2176 + $0x4] sm:$0x3]
    %2180 = vmatprep.subr.bf16.mxu0 0
    %2181 = vmatpush1.bf16.msra.mxu0 %v238
    %2182 = vmatprep.subr.bf16.mxu0 0
    %2183 = vmatpush1.bf16.msra.mxu0 0
    %2184 = vmatprep.subr.bf16.mxu0 0
    %2185 = vmatpush1.bf16.msra.mxu0 0
    %2186 = vmatprep.subr.bf16.mxu0 0
    %2187 = vmatpush1.bf16.msra.mxu0 0
    %2188 = vmatprep.subr.bf16.mxu0 0
    %2189 = vmatpush1.bf16.msra.mxu0 0
    %2190 = vmatprep.subr.bf16.mxu0 0
    %2191 = vmatpush1.bf16.msra.mxu0 0
    %2192 = vmatprep.subr.bf16.mxu0 0
    %2193 = vmatpush1.bf16.msra.mxu0 0
    %2194 = vmatprep.subr.bf16.mxu0 0
    %2195 = vmatpush1.bf16.msra.mxu0 0
    %2196 = vmatprep.subr.bf16.mxu0 0
    %2197 = vmatpush1.bf16.msra.mxu0 0
    %2198 = vmatprep.subr.bf16.mxu0 0
    %2199 = vmatpush1.bf16.msra.mxu0 0
    %2200 = vmatprep.subr.bf16.mxu0 0
    %2201 = vmatpush1.bf16.msra.mxu0 0
    %2202 = vmatprep.subr.bf16.mxu0 0
    %2203 = vmatpush1.bf16.msra.mxu0 0
    %2204 = vmatprep.subr.bf16.mxu0 0
    %2205 = vmatpush1.bf16.msra.mxu0 0
    %2206 = vmatprep.subr.bf16.mxu0 0
    %2207 = vmatpush1.bf16.msra.mxu0 0
    %2208 = vmatprep.subr.bf16.mxu0 0
    %2209 = vmatpush1.bf16.msra.mxu0 0
    %2210 = vmatprep.subr.bf16.mxu0 0
    %2211 = vmatpush1.bf16.msra.mxu0 0
    %2212 = vmatprep.mubr.bf16.mxu0 0
    %2213 = vmatmul.mubr.bf16.gmra.mrb[0].mxu0 %v1987
    %v2214 = vpop.f32.mrb[0].mxu0
    %v2215 = vadd.f32 0.0, %v2214
    %v2216 = vpop.f32.mrb[0].mxu0
    %v2217 = vpop.f32.mrb[0].mxu0
    %v2218 = vpop.f32.mrb[0].mxu0
    %2219 = vdwg.mxu0
    %v2220 = vadd.f32 %v2177, %v2215
    %v2221 = vxor.u32 %v2220, 2147483648
    %v2222 = vmul.f32 %v2221, 1.442695
    %v2223 = vpow.pop %v2222
    %v2224 = vadd.f32 %v2223, 1.0
    %v2225 = vrcp.pop %v2224
    %v2226 = vmul.f32 1.0, %v2225
    %2227 = vmatprep.subr.bf16.mxu0 0
    %2228 = vmatpush1.bf16.msra.mxu0 %v291
    %2229 = vmatprep.subr.bf16.mxu0 0
    %2230 = vmatpush1.bf16.msra.mxu0 0
    %2231 = vmatprep.subr.bf16.mxu0 0
    %2232 = vmatpush1.bf16.msra.mxu0 0
    %2233 = vmatprep.subr.bf16.mxu0 0
    %2234 = vmatpush1.bf16.msra.mxu0 0
    %2235 = vmatprep.subr.bf16.mxu0 0
    %2236 = vmatpush1.bf16.msra.mxu0 0
    %2237 = vmatprep.subr.bf16.mxu0 0
    %2238 = vmatpush1.bf16.msra.mxu0 0
    %2239 = vmatprep.subr.bf16.mxu0 0
    %2240 = vmatpush1.bf16.msra.mxu0 0
    %2241 = vmatprep.subr.bf16.mxu0 0
    %2242 = vmatpush1.bf16.msra.mxu0 0
    %2243 = vmatprep.subr.bf16.mxu0 0
    %2244 = vmatpush1.bf16.msra.mxu0 0
    %2245 = vmatprep.subr.bf16.mxu0 0
    %2246 = vmatpush1.bf16.msra.mxu0 0
    %2247 = vmatprep.subr.bf16.mxu0 0
    %2248 = vmatpush1.bf16.msra.mxu0 0
    %2249 = vmatprep.subr.bf16.mxu0 0
    %2250 = vmatpush1.bf16.msra.mxu0 0
    %2251 = vmatprep.subr.bf16.mxu0 0
    %2252 = vmatpush1.bf16.msra.mxu0 0
    %2253 = vmatprep.subr.bf16.mxu0 0
    %2254 = vmatpush1.bf16.msra.mxu0 0
    %2255 = vmatprep.subr.bf16.mxu0 0
    %2256 = vmatpush1.bf16.msra.mxu0 0
    %2257 = vmatprep.subr.bf16.mxu0 0
    %2258 = vmatpush1.bf16.msra.mxu0 0
    %2259 = vmatprep.mubr.bf16.mxu0 0
    %2260 = vmatmul.mubr.bf16.gmra.mrb[0].mxu0 %v1987
    %v2261 = vpop.f32.mrb[0].mxu0
    %v2262 = vadd.f32 0.0, %v2261
    %v2263 = vpop.f32.mrb[0].mxu0
    %v2264 = vpop.f32.mrb[0].mxu0
    %v2265 = vpop.f32.mrb[0].mxu0
    %2266 = vdwg.mxu0
    %v2267 = vadd.f32 %v2178, %v2262
    %v2268 = vxor.u32 %v2267, 2147483648
    %v2269 = vmul.f32 %v2268, 1.442695
    %v2270 = vpow.pop %v2269
    %v2271 = vadd.f32 %v2270, 1.0
    %v2272 = vrcp.pop %v2271
    %v2273 = vmul.f32 1.0, %v2272
    %2274 = vmatprep.subr.bf16.mxu0 0
    %2275 = vmatpush1.bf16.msra.mxu0 %v350
    %2276 = vmatprep.subr.bf16.mxu0 0
    %2277 = vmatpush1.bf16.msra.mxu0 0
    %2278 = vmatprep.subr.bf16.mxu0 0
    %2279 = vmatpush1.bf16.msra.mxu0 0
    %2280 = vmatprep.subr.bf16.mxu0 0
    %2281 = vmatpush1.bf16.msra.mxu0 0
    %2282 = vmatprep.subr.bf16.mxu0 0
    %2283 = vmatpush1.bf16.msra.mxu0 0
    %2284 = vmatprep.subr.bf16.mxu0 0
    %2285 = vmatpush1.bf16.msra.mxu0 0
    %2286 = vmatprep.subr.bf16.mxu0 0
    %2287 = vmatpush1.bf16.msra.mxu0 0
    %2288 = vmatprep.subr.bf16.mxu0 0
    %2289 = vmatpush1.bf16.msra.mxu0 0
    %2290 = vmatprep.subr.bf16.mxu0 0
    %2291 = vmatpush1.bf16.msra.mxu0 0
    %2292 = vmatprep.subr.bf16.mxu0 0
    %2293 = vmatpush1.bf16.msra.mxu0 0
    %2294 = vmatprep.subr.bf16.mxu0 0
    %2295 = vmatpush1.bf16.msra.mxu0 0
    %2296 = vmatprep.subr.bf16.mxu0 0
    %2297 = vmatpush1.bf16.msra.mxu0 0
    %2298 = vmatprep.subr.bf16.mxu0 0
    %2299 = vmatpush1.bf16.msra.mxu0 0
    %2300 = vmatprep.subr.bf16.mxu0 0
    %2301 = vmatpush1.bf16.msra.mxu0 0
    %2302 = vmatprep.subr.bf16.mxu0 0
    %2303 = vmatpush1.bf16.msra.mxu0 0
    %2304 = vmatprep.subr.bf16.mxu0 0
    %2305 = vmatpush1.bf16.msra.mxu0 0
    %2306 = vmatprep.mubr.bf16.mxu0 0
    %2307 = vmatmul.mubr.bf16.gmra.mrb[0].mxu0 %v1987
    %v2308 = vpop.f32.mrb[0].mxu0
    %v2309 = vadd.f32 %v344, %v2308
    %v2310 = vpop.f32.mrb[0].mxu0
    %v2311 = vpop.f32.mrb[0].mxu0
    %v2312 = vpop.f32.mrb[0].mxu0
    %2313 = vdwg.mxu0
    %v2314 = vmul.f32 %v2226, %v2309
    %v2315 = vadd.f32 %v2179, %v2314
    %v2316 = vtanh.pop %v2315
    %v2317 = vsub.f32 1.0, %v2273
    %v2318 = vmul.f32 %v2317, %v2316
    %v2319 = vmul.f32 %v2273, %v1938
    %v2320 = vadd.f32 %v2318, %v2319
    %v2321 = vpack.c.bf16 %v2175, %v2175
    %v2323 = vsel %vm67, %v2321, 0
    %2325 = vmatprep.subr.bf16.mxu0 0
    %2326 = vmatpush1.bf16.msra.mxu0 %v404
    %2327 = vmatprep.subr.bf16.mxu0 0
    %2328 = vmatpush1.bf16.msra.mxu0 0
    %2329 = vmatprep.subr.bf16.mxu0 0
    %2330 = vmatpush1.bf16.msra.mxu0 0
    %2331 = vmatprep.subr.bf16.mxu0 0
    %2332 = vmatpush1.bf16.msra.mxu0 0
    %2333 = vmatprep.subr.bf16.mxu0 0
    %2334 = vmatpush1.bf16.msra.mxu0 0
    %2335 = vmatprep.subr.bf16.mxu0 0
    %2336 = vmatpush1.bf16.msra.mxu0 0
    %2337 = vmatprep.subr.bf16.mxu0 0
    %2338 = vmatpush1.bf16.msra.mxu0 0
    %2339 = vmatprep.subr.bf16.mxu0 0
    %2340 = vmatpush1.bf16.msra.mxu0 0
    %2341 = vmatprep.subr.bf16.mxu0 0
    %2342 = vmatpush1.bf16.msra.mxu0 0
    %2343 = vmatprep.subr.bf16.mxu0 0
    %2344 = vmatpush1.bf16.msra.mxu0 0
    %2345 = vmatprep.subr.bf16.mxu0 0
    %2346 = vmatpush1.bf16.msra.mxu0 0
    %2347 = vmatprep.subr.bf16.mxu0 0
    %2348 = vmatpush1.bf16.msra.mxu0 0
    %2349 = vmatprep.subr.bf16.mxu0 0
    %2350 = vmatpush1.bf16.msra.mxu0 0
    %2351 = vmatprep.subr.bf16.mxu0 0
    %2352 = vmatpush1.bf16.msra.mxu0 0
    %2353 = vmatprep.subr.bf16.mxu0 0
    %2354 = vmatpush1.bf16.msra.mxu0 0
    %2355 = vmatprep.subr.bf16.mxu0 0
    %2356 = vmatpush1.bf16.msra.mxu0 0
    %2357 = vmatprep.mubr.bf16.mxu0 0
    %2358 = vmatmul.mubr.bf16.gmra.mrb[0].mxu0 %v2323
    %v2359 = vpop.f32.mrb[0].mxu0
    %v2360 = vadd.f32 0.0, %v2359
    %v2361 = vpop.f32.mrb[0].mxu0
    %v2362 = vpop.f32.mrb[0].mxu0
    %v2363 = vpop.f32.mrb[0].mxu0
    %2364 = vdwg.mxu0
    %s2365 = scalar_lea.vmem %s10, 10
    %2366 = vst.msk [vmem:[%s2365] sm:$0x3] %vm449, %v2360
    %v2367 = vpack.c.bf16 %v2320, %v2320
    %v2369 = vsel %vm67, %v2367, 0
    %2371 = vmatprep.subr.bf16.mxu0 0
    %2372 = vmatpush1.bf16.msra.mxu0 %v456
    %2373 = vmatprep.subr.bf16.mxu0 0
    %2374 = vmatpush1.bf16.msra.mxu0 0
    %2375 = vmatprep.subr.bf16.mxu0 0
    %2376 = vmatpush1.bf16.msra.mxu0 0
    %2377 = vmatprep.subr.bf16.mxu0 0
    %2378 = vmatpush1.bf16.msra.mxu0 0
    %2379 = vmatprep.subr.bf16.mxu0 0
    %2380 = vmatpush1.bf16.msra.mxu0 0
    %2381 = vmatprep.subr.bf16.mxu0 0
    %2382 = vmatpush1.bf16.msra.mxu0 0
    %2383 = vmatprep.subr.bf16.mxu0 0
    %2384 = vmatpush1.bf16.msra.mxu0 0
    %2385 = vmatprep.subr.bf16.mxu0 0
    %2386 = vmatpush1.bf16.msra.mxu0 0
    %2387 = vmatprep.subr.bf16.mxu0 0
    %2388 = vmatpush1.bf16.msra.mxu0 0
    %2389 = vmatprep.subr.bf16.mxu0 0
    %2390 = vmatpush1.bf16.msra.mxu0 0
    %2391 = vmatprep.subr.bf16.mxu0 0
    %2392 = vmatpush1.bf16.msra.mxu0 0
    %2393 = vmatprep.subr.bf16.mxu0 0
    %2394 = vmatpush1.bf16.msra.mxu0 0
    %2395 = vmatprep.subr.bf16.mxu0 0
    %2396 = vmatpush1.bf16.msra.mxu0 0
    %2397 = vmatprep.subr.bf16.mxu0 0
    %2398 = vmatpush1.bf16.msra.mxu0 0
    %2399 = vmatprep.subr.bf16.mxu0 0
    %2400 = vmatpush1.bf16.msra.mxu0 0
    %2401 = vmatprep.subr.bf16.mxu0 0
    %2402 = vmatpush1.bf16.msra.mxu0 0
    %2403 = vmatprep.mubr.bf16.mxu0 0
    %2404 = vmatmul.mubr.bf16.gmra.mrb[0].mxu0 %v2369
    %v2405 = vpop.f32.mrb[0].mxu0
    %v2406 = vadd.f32 0.0, %v2405
    %v2407 = vpop.f32.mrb[0].mxu0
    %v2408 = vpop.f32.mrb[0].mxu0
    %v2409 = vpop.f32.mrb[0].mxu0
    %2410 = vdwg.mxu0
    %s2411 = scalar_lea.vmem %s10, 20
    %2412 = vst.msk [vmem:[%s2411] sm:$0x3] %vm449, %v2406
    %s2413 = scalar_lea.vmem %s0, 36
    %v2414 = vld [vmem:[%s2413] sm:$0x3]
    %v2415 = vld [vmem:[%s2413 + $0x2] sm:$0x3]
    %v2416 = vld [vmem:[%s2413 + $0x4] sm:$0x3]
    %2417 = vmatprep.subr.bf16.mxu0 0
    %2418 = vmatpush1.bf16.msra.mxu0 %v65
    %2419 = vmatprep.subr.bf16.mxu0 0
    %2420 = vmatpush1.bf16.msra.mxu0 0
    %2421 = vmatprep.subr.bf16.mxu0 0
    %2422 = vmatpush1.bf16.msra.mxu0 0
    %2423 = vmatprep.subr.bf16.mxu0 0
    %2424 = vmatpush1.bf16.msra.mxu0 0
    %2425 = vmatprep.subr.bf16.mxu0 0
    %2426 = vmatpush1.bf16.msra.mxu0 0
    %2427 = vmatprep.subr.bf16.mxu0 0
    %2428 = vmatpush1.bf16.msra.mxu0 0
    %2429 = vmatprep.subr.bf16.mxu0 0
    %2430 = vmatpush1.bf16.msra.mxu0 0
    %2431 = vmatprep.subr.bf16.mxu0 0
    %2432 = vmatpush1.bf16.msra.mxu0 0
    %2433 = vmatprep.subr.bf16.mxu0 0
    %2434 = vmatpush1.bf16.msra.mxu0 0
    %2435 = vmatprep.subr.bf16.mxu0 0
    %2436 = vmatpush1.bf16.msra.mxu0 0
    %2437 = vmatprep.subr.bf16.mxu0 0
    %2438 = vmatpush1.bf16.msra.mxu0 0
    %2439 = vmatprep.subr.bf16.mxu0 0
    %2440 = vmatpush1.bf16.msra.mxu0 0
    %2441 = vmatprep.subr.bf16.mxu0 0
    %2442 = vmatpush1.bf16.msra.mxu0 0
    %2443 = vmatprep.subr.bf16.mxu0 0
    %2444 = vmatpush1.bf16.msra.mxu0 0
    %2445 = vmatprep.subr.bf16.mxu0 0
    %2446 = vmatpush1.bf16.msra.mxu0 0
    %2447 = vmatprep.subr.bf16.mxu0 0
    %2448 = vmatpush1.bf16.msra.mxu0 0
    %2449 = vmatprep.mubr.bf16.mxu0 0
    %2450 = vmatmul.mubr.bf16.gmra.mrb[0].mxu0 %v2323
    %v2451 = vpop.f32.mrb[0].mxu0
    %v2452 = vadd.f32 0.0, %v2451
    %v2453 = vpop.f32.mrb[0].mxu0
    %v2454 = vpop.f32.mrb[0].mxu0
    %v2455 = vpop.f32.mrb[0].mxu0
    %2456 = vdwg.mxu0
    %v2457 = vadd.f32 %v2414, %v2452
    %v2458 = vxor.u32 %v2457, 2147483648
    %v2459 = vmul.f32 %v2458, 1.442695
    %v2460 = vpow.pop %v2459
    %v2461 = vadd.f32 %v2460, 1.0
    %v2462 = vrcp.pop %v2461
    %v2463 = vmul.f32 1.0, %v2462
    %2464 = vmatprep.subr.bf16.mxu0 0
    %2465 = vmatpush1.bf16.msra.mxu0 %v122
    %2466 = vmatprep.subr.bf16.mxu0 0
    %2467 = vmatpush1.bf16.msra.mxu0 0
    %2468 = vmatprep.subr.bf16.mxu0 0
    %2469 = vmatpush1.bf16.msra.mxu0 0
    %2470 = vmatprep.subr.bf16.mxu0 0
    %2471 = vmatpush1.bf16.msra.mxu0 0
    %2472 = vmatprep.subr.bf16.mxu0 0
    %2473 = vmatpush1.bf16.msra.mxu0 0
    %2474 = vmatprep.subr.bf16.mxu0 0
    %2475 = vmatpush1.bf16.msra.mxu0 0
    %2476 = vmatprep.subr.bf16.mxu0 0
    %2477 = vmatpush1.bf16.msra.mxu0 0
    %2478 = vmatprep.subr.bf16.mxu0 0
    %2479 = vmatpush1.bf16.msra.mxu0 0
    %2480 = vmatprep.subr.bf16.mxu0 0
    %2481 = vmatpush1.bf16.msra.mxu0 0
    %2482 = vmatprep.subr.bf16.mxu0 0
    %2483 = vmatpush1.bf16.msra.mxu0 0
    %2484 = vmatprep.subr.bf16.mxu0 0
    %2485 = vmatpush1.bf16.msra.mxu0 0
    %2486 = vmatprep.subr.bf16.mxu0 0
    %2487 = vmatpush1.bf16.msra.mxu0 0
    %2488 = vmatprep.subr.bf16.mxu0 0
    %2489 = vmatpush1.bf16.msra.mxu0 0
    %2490 = vmatprep.subr.bf16.mxu0 0
    %2491 = vmatpush1.bf16.msra.mxu0 0
    %2492 = vmatprep.subr.bf16.mxu0 0
    %2493 = vmatpush1.bf16.msra.mxu0 0
    %2494 = vmatprep.subr.bf16.mxu0 0
    %2495 = vmatpush1.bf16.msra.mxu0 0
    %2496 = vmatprep.mubr.bf16.mxu0 0
    %2497 = vmatmul.mubr.bf16.gmra.mrb[0].mxu0 %v2323
    %v2498 = vpop.f32.mrb[0].mxu0
    %v2499 = vadd.f32 0.0, %v2498
    %v2500 = vpop.f32.mrb[0].mxu0
    %v2501 = vpop.f32.mrb[0].mxu0
    %v2502 = vpop.f32.mrb[0].mxu0
    %2503 = vdwg.mxu0
    %v2504 = vadd.f32 %v2415, %v2499
    %v2505 = vxor.u32 %v2504, 2147483648
    %v2506 = vmul.f32 %v2505, 1.442695
    %v2507 = vpow.pop %v2506
    %v2508 = vadd.f32 %v2507, 1.0
    %v2509 = vrcp.pop %v2508
    %v2510 = vmul.f32 1.0, %v2509
    %2511 = vmatprep.subr.bf16.mxu0 0
    %2512 = vmatpush1.bf16.msra.mxu0 %v181
    %2513 = vmatprep.subr.bf16.mxu0 0
    %2514 = vmatpush1.bf16.msra.mxu0 0
    %2515 = vmatprep.subr.bf16.mxu0 0
    %2516 = vmatpush1.bf16.msra.mxu0 0
    %2517 = vmatprep.subr.bf16.mxu0 0
    %2518 = vmatpush1.bf16.msra.mxu0 0
    %2519 = vmatprep.subr.bf16.mxu0 0
    %2520 = vmatpush1.bf16.msra.mxu0 0
    %2521 = vmatprep.subr.bf16.mxu0 0
    %2522 = vmatpush1.bf16.msra.mxu0 0
    %2523 = vmatprep.subr.bf16.mxu0 0
    %2524 = vmatpush1.bf16.msra.mxu0 0
    %2525 = vmatprep.subr.bf16.mxu0 0
    %2526 = vmatpush1.bf16.msra.mxu0 0
    %2527 = vmatprep.subr.bf16.mxu0 0
    %2528 = vmatpush1.bf16.msra.mxu0 0
    %2529 = vmatprep.subr.bf16.mxu0 0
    %2530 = vmatpush1.bf16.msra.mxu0 0
    %2531 = vmatprep.subr.bf16.mxu0 0
    %2532 = vmatpush1.bf16.msra.mxu0 0
    %2533 = vmatprep.subr.bf16.mxu0 0
    %2534 = vmatpush1.bf16.msra.mxu0 0
    %2535 = vmatprep.subr.bf16.mxu0 0
    %2536 = vmatpush1.bf16.msra.mxu0 0
    %2537 = vmatprep.subr.bf16.mxu0 0
    %2538 = vmatpush1.bf16.msra.mxu0 0
    %2539 = vmatprep.subr.bf16.mxu0 0
    %2540 = vmatpush1.bf16.msra.mxu0 0
    %2541 = vmatprep.subr.bf16.mxu0 0
    %2542 = vmatpush1.bf16.msra.mxu0 0
    %2543 = vmatprep.mubr.bf16.mxu0 0
    %2544 = vmatmul.mubr.bf16.gmra.mrb[0].mxu0 %v2323
    %v2545 = vpop.f32.mrb[0].mxu0
    %v2546 = vadd.f32 %v175, %v2545
    %v2547 = vpop.f32.mrb[0].mxu0
    %v2548 = vpop.f32.mrb[0].mxu0
    %v2549 = vpop.f32.mrb[0].mxu0
    %2550 = vdwg.mxu0
    %v2551 = vmul.f32 %v2463, %v2546
    %v2552 = vadd.f32 %v2416, %v2551
    %v2553 = vtanh.pop %v2552
    %v2554 = vsub.f32 1.0, %v2510
    %v2555 = vmul.f32 %v2554, %v2553
    %v2556 = vmul.f32 %v2510, %v2175
    %v2557 = vadd.f32 %v2555, %v2556
    %s2558 = scalar_lea.vmem %s1, 6
    %v2559 = vld [vmem:[%s2558] sm:$0x3]
    %v2560 = vld [vmem:[%s2558 + $0x2] sm:$0x3]
    %v2561 = vld [vmem:[%s2558 + $0x4] sm:$0x3]
    %2562 = vmatprep.subr.bf16.mxu0 0
    %2563 = vmatpush1.bf16.msra.mxu0 %v238
    %2564 = vmatprep.subr.bf16.mxu0 0
    %2565 = vmatpush1.bf16.msra.mxu0 0
    %2566 = vmatprep.subr.bf16.mxu0 0
    %2567 = vmatpush1.bf16.msra.mxu0 0
    %2568 = vmatprep.subr.bf16.mxu0 0
    %2569 = vmatpush1.bf16.msra.mxu0 0
    %2570 = vmatprep.subr.bf16.mxu0 0
    %2571 = vmatpush1.bf16.msra.mxu0 0
    %2572 = vmatprep.subr.bf16.mxu0 0
    %2573 = vmatpush1.bf16.msra.mxu0 0
    %2574 = vmatprep.subr.bf16.mxu0 0
    %2575 = vmatpush1.bf16.msra.mxu0 0
    %2576 = vmatprep.subr.bf16.mxu0 0
    %2577 = vmatpush1.bf16.msra.mxu0 0
    %2578 = vmatprep.subr.bf16.mxu0 0
    %2579 = vmatpush1.bf16.msra.mxu0 0
    %2580 = vmatprep.subr.bf16.mxu0 0
    %2581 = vmatpush1.bf16.msra.mxu0 0
    %2582 = vmatprep.subr.bf16.mxu0 0
    %2583 = vmatpush1.bf16.msra.mxu0 0
    %2584 = vmatprep.subr.bf16.mxu0 0
    %2585 = vmatpush1.bf16.msra.mxu0 0
    %2586 = vmatprep.subr.bf16.mxu0 0
    %2587 = vmatpush1.bf16.msra.mxu0 0
    %2588 = vmatprep.subr.bf16.mxu0 0
    %2589 = vmatpush1.bf16.msra.mxu0 0
    %2590 = vmatprep.subr.bf16.mxu0 0
    %2591 = vmatpush1.bf16.msra.mxu0 0
    %2592 = vmatprep.subr.bf16.mxu0 0
    %2593 = vmatpush1.bf16.msra.mxu0 0
    %2594 = vmatprep.mubr.bf16.mxu0 0
    %2595 = vmatmul.mubr.bf16.gmra.mrb[0].mxu0 %v2369
    %v2596 = vpop.f32.mrb[0].mxu0
    %v2597 = vadd.f32 0.0, %v2596
    %v2598 = vpop.f32.mrb[0].mxu0
    %v2599 = vpop.f32.mrb[0].mxu0
    %v2600 = vpop.f32.mrb[0].mxu0
    %2601 = vdwg.mxu0
    %v2602 = vadd.f32 %v2559, %v2597
    %v2603 = vxor.u32 %v2602, 2147483648
    %v2604 = vmul.f32 %v2603, 1.442695
    %v2605 = vpow.pop %v2604
    %v2606 = vadd.f32 %v2605, 1.0
    %v2607 = vrcp.pop %v2606
    %v2608 = vmul.f32 1.0, %v2607
    %2609 = vmatprep.subr.bf16.mxu0 0
    %2610 = vmatpush1.bf16.msra.mxu0 %v291
    %2611 = vmatprep.subr.bf16.mxu0 0
    %2612 = vmatpush1.bf16.msra.mxu0 0
    %2613 = vmatprep.subr.bf16.mxu0 0
    %2614 = vmatpush1.bf16.msra.mxu0 0
    %2615 = vmatprep.subr.bf16.mxu0 0
    %2616 = vmatpush1.bf16.msra.mxu0 0
    %2617 = vmatprep.subr.bf16.mxu0 0
    %2618 = vmatpush1.bf16.msra.mxu0 0
    %2619 = vmatprep.subr.bf16.mxu0 0
    %2620 = vmatpush1.bf16.msra.mxu0 0
    %2621 = vmatprep.subr.bf16.mxu0 0
    %2622 = vmatpush1.bf16.msra.mxu0 0
    %2623 = vmatprep.subr.bf16.mxu0 0
    %2624 = vmatpush1.bf16.msra.mxu0 0
    %2625 = vmatprep.subr.bf16.mxu0 0
    %2626 = vmatpush1.bf16.msra.mxu0 0
    %2627 = vmatprep.subr.bf16.mxu0 0
    %2628 = vmatpush1.bf16.msra.mxu0 0
    %2629 = vmatprep.subr.bf16.mxu0 0
    %2630 = vmatpush1.bf16.msra.mxu0 0
    %2631 = vmatprep.subr.bf16.mxu0 0
    %2632 = vmatpush1.bf16.msra.mxu0 0
    %2633 = vmatprep.subr.bf16.mxu0 0
    %2634 = vmatpush1.bf16.msra.mxu0 0
    %2635 = vmatprep.subr.bf16.mxu0 0
    %2636 = vmatpush1.bf16.msra.mxu0 0
    %2637 = vmatprep.subr.bf16.mxu0 0
    %2638 = vmatpush1.bf16.msra.mxu0 0
    %2639 = vmatprep.subr.bf16.mxu0 0
    %2640 = vmatpush1.bf16.msra.mxu0 0
    %2641 = vmatprep.mubr.bf16.mxu0 0
    %2642 = vmatmul.mubr.bf16.gmra.mrb[0].mxu0 %v2369
    %v2643 = vpop.f32.mrb[0].mxu0
    %v2644 = vadd.f32 0.0, %v2643
    %v2645 = vpop.f32.mrb[0].mxu0
    %v2646 = vpop.f32.mrb[0].mxu0
    %v2647 = vpop.f32.mrb[0].mxu0
    %2648 = vdwg.mxu0
    %v2649 = vadd.f32 %v2560, %v2644
    %v2650 = vxor.u32 %v2649, 2147483648
    %v2651 = vmul.f32 %v2650, 1.442695
    %v2652 = vpow.pop %v2651
    %v2653 = vadd.f32 %v2652, 1.0
    %v2654 = vrcp.pop %v2653
    %v2655 = vmul.f32 1.0, %v2654
    %2656 = vmatprep.subr.bf16.mxu0 0
    %2657 = vmatpush1.bf16.msra.mxu0 %v350
    %2658 = vmatprep.subr.bf16.mxu0 0
    %2659 = vmatpush1.bf16.msra.mxu0 0
    %2660 = vmatprep.subr.bf16.mxu0 0
    %2661 = vmatpush1.bf16.msra.mxu0 0
    %2662 = vmatprep.subr.bf16.mxu0 0
    %2663 = vmatpush1.bf16.msra.mxu0 0
    %2664 = vmatprep.subr.bf16.mxu0 0
    %2665 = vmatpush1.bf16.msra.mxu0 0
    %2666 = vmatprep.subr.bf16.mxu0 0
    %2667 = vmatpush1.bf16.msra.mxu0 0
    %2668 = vmatprep.subr.bf16.mxu0 0
    %2669 = vmatpush1.bf16.msra.mxu0 0
    %2670 = vmatprep.subr.bf16.mxu0 0
    %2671 = vmatpush1.bf16.msra.mxu0 0
    %2672 = vmatprep.subr.bf16.mxu0 0
    %2673 = vmatpush1.bf16.msra.mxu0 0
    %2674 = vmatprep.subr.bf16.mxu0 0
    %2675 = vmatpush1.bf16.msra.mxu0 0
    %2676 = vmatprep.subr.bf16.mxu0 0
    %2677 = vmatpush1.bf16.msra.mxu0 0
    %2678 = vmatprep.subr.bf16.mxu0 0
    %2679 = vmatpush1.bf16.msra.mxu0 0
    %2680 = vmatprep.subr.bf16.mxu0 0
    %2681 = vmatpush1.bf16.msra.mxu0 0
    %2682 = vmatprep.subr.bf16.mxu0 0
    %2683 = vmatpush1.bf16.msra.mxu0 0
    %2684 = vmatprep.subr.bf16.mxu0 0
    %2685 = vmatpush1.bf16.msra.mxu0 0
    %2686 = vmatprep.subr.bf16.mxu0 0
    %2687 = vmatpush1.bf16.msra.mxu0 0
    %2688 = vmatprep.mubr.bf16.mxu0 0
    %2689 = vmatmul.mubr.bf16.gmra.mrb[0].mxu0 %v2369
    %v2690 = vpop.f32.mrb[0].mxu0
    %v2691 = vadd.f32 %v344, %v2690
    %v2692 = vpop.f32.mrb[0].mxu0
    %v2693 = vpop.f32.mrb[0].mxu0
    %v2694 = vpop.f32.mrb[0].mxu0
    %2695 = vdwg.mxu0
    %v2696 = vmul.f32 %v2608, %v2691
    %v2697 = vadd.f32 %v2561, %v2696
    %v2698 = vtanh.pop %v2697
    %v2699 = vsub.f32 1.0, %v2655
    %v2700 = vmul.f32 %v2699, %v2698
    %v2701 = vmul.f32 %v2655, %v2320
    %v2702 = vadd.f32 %v2700, %v2701
    %v2703 = vpack.c.bf16 %v2557, %v2557
    %v2705 = vsel %vm67, %v2703, 0
    %2707 = vmatprep.subr.bf16.mxu0 0
    %2708 = vmatpush1.bf16.msra.mxu0 %v404
    %2709 = vmatprep.subr.bf16.mxu0 0
    %2710 = vmatpush1.bf16.msra.mxu0 0
    %2711 = vmatprep.subr.bf16.mxu0 0
    %2712 = vmatpush1.bf16.msra.mxu0 0
    %2713 = vmatprep.subr.bf16.mxu0 0
    %2714 = vmatpush1.bf16.msra.mxu0 0
    %2715 = vmatprep.subr.bf16.mxu0 0
    %2716 = vmatpush1.bf16.msra.mxu0 0
    %2717 = vmatprep.subr.bf16.mxu0 0
    %2718 = vmatpush1.bf16.msra.mxu0 0
    %2719 = vmatprep.subr.bf16.mxu0 0
    %2720 = vmatpush1.bf16.msra.mxu0 0
    %2721 = vmatprep.subr.bf16.mxu0 0
    %2722 = vmatpush1.bf16.msra.mxu0 0
    %2723 = vmatprep.subr.bf16.mxu0 0
    %2724 = vmatpush1.bf16.msra.mxu0 0
    %2725 = vmatprep.subr.bf16.mxu0 0
    %2726 = vmatpush1.bf16.msra.mxu0 0
    %2727 = vmatprep.subr.bf16.mxu0 0
    %2728 = vmatpush1.bf16.msra.mxu0 0
    %2729 = vmatprep.subr.bf16.mxu0 0
    %2730 = vmatpush1.bf16.msra.mxu0 0
    %2731 = vmatprep.subr.bf16.mxu0 0
    %2732 = vmatpush1.bf16.msra.mxu0 0
    %2733 = vmatprep.subr.bf16.mxu0 0
    %2734 = vmatpush1.bf16.msra.mxu0 0
    %2735 = vmatprep.subr.bf16.mxu0 0
    %2736 = vmatpush1.bf16.msra.mxu0 0
    %2737 = vmatprep.subr.bf16.mxu0 0
    %2738 = vmatpush1.bf16.msra.mxu0 0
    %2739 = vmatprep.mubr.bf16.mxu0 0
    %2740 = vmatmul.mubr.bf16.gmra.mrb[0].mxu0 %v2705
    %v2741 = vpop.f32.mrb[0].mxu0
    %v2742 = vadd.f32 0.0, %v2741
    %v2743 = vpop.f32.mrb[0].mxu0
    %v2744 = vpop.f32.mrb[0].mxu0
    %v2745 = vpop.f32.mrb[0].mxu0
    %2746 = vdwg.mxu0
    %s2747 = scalar_lea.vmem %s10, 12
    %2748 = vst.msk [vmem:[%s2747] sm:$0x3] %vm449, %v2742
    %v2749 = vpack.c.bf16 %v2702, %v2702
    %v2751 = vsel %vm67, %v2749, 0
    %2753 = vmatprep.subr.bf16.mxu0 0
    %2754 = vmatpush1.bf16.msra.mxu0 %v456
    %2755 = vmatprep.subr.bf16.mxu0 0
    %2756 = vmatpush1.bf16.msra.mxu0 0
    %2757 = vmatprep.subr.bf16.mxu0 0
    %2758 = vmatpush1.bf16.msra.mxu0 0
    %2759 = vmatprep.subr.bf16.mxu0 0
    %2760 = vmatpush1.bf16.msra.mxu0 0
    %2761 = vmatprep.subr.bf16.mxu0 0
    %2762 = vmatpush1.bf16.msra.mxu0 0
    %2763 = vmatprep.subr.bf16.mxu0 0
    %2764 = vmatpush1.bf16.msra.mxu0 0
    %2765 = vmatprep.subr.bf16.mxu0 0
    %2766 = vmatpush1.bf16.msra.mxu0 0
    %2767 = vmatprep.subr.bf16.mxu0 0
    %2768 = vmatpush1.bf16.msra.mxu0 0
    %2769 = vmatprep.subr.bf16.mxu0 0
    %2770 = vmatpush1.bf16.msra.mxu0 0
    %2771 = vmatprep.subr.bf16.mxu0 0
    %2772 = vmatpush1.bf16.msra.mxu0 0
    %2773 = vmatprep.subr.bf16.mxu0 0
    %2774 = vmatpush1.bf16.msra.mxu0 0
    %2775 = vmatprep.subr.bf16.mxu0 0
    %2776 = vmatpush1.bf16.msra.mxu0 0
    %2777 = vmatprep.subr.bf16.mxu0 0
    %2778 = vmatpush1.bf16.msra.mxu0 0
    %2779 = vmatprep.subr.bf16.mxu0 0
    %2780 = vmatpush1.bf16.msra.mxu0 0
    %2781 = vmatprep.subr.bf16.mxu0 0
    %2782 = vmatpush1.bf16.msra.mxu0 0
    %2783 = vmatprep.subr.bf16.mxu0 0
    %2784 = vmatpush1.bf16.msra.mxu0 0
    %2785 = vmatprep.mubr.bf16.mxu0 0
    %2786 = vmatmul.mubr.bf16.gmra.mrb[0].mxu0 %v2751
    %v2787 = vpop.f32.mrb[0].mxu0
    %v2788 = vadd.f32 0.0, %v2787
    %v2789 = vpop.f32.mrb[0].mxu0
    %v2790 = vpop.f32.mrb[0].mxu0
    %v2791 = vpop.f32.mrb[0].mxu0
    %2792 = vdwg.mxu0
    %s2793 = scalar_lea.vmem %s10, 18
    %2794 = vst.msk [vmem:[%s2793] sm:$0x3] %vm449, %v2788
    %s2795 = scalar_lea.vmem %s0, 42
    %v2796 = vld [vmem:[%s2795] sm:$0x3]
    %v2797 = vld [vmem:[%s2795 + $0x2] sm:$0x3]
    %v2798 = vld [vmem:[%s2795 + $0x4] sm:$0x3]
    %2799 = vmatprep.subr.bf16.mxu0 0
    %2800 = vmatpush1.bf16.msra.mxu0 %v65
    %2801 = vmatprep.subr.bf16.mxu0 0
    %2802 = vmatpush1.bf16.msra.mxu0 0
    %2803 = vmatprep.subr.bf16.mxu0 0
    %2804 = vmatpush1.bf16.msra.mxu0 0
    %2805 = vmatprep.subr.bf16.mxu0 0
    %2806 = vmatpush1.bf16.msra.mxu0 0
    %2807 = vmatprep.subr.bf16.mxu0 0
    %2808 = vmatpush1.bf16.msra.mxu0 0
    %2809 = vmatprep.subr.bf16.mxu0 0
    %2810 = vmatpush1.bf16.msra.mxu0 0
    %2811 = vmatprep.subr.bf16.mxu0 0
    %2812 = vmatpush1.bf16.msra.mxu0 0
    %2813 = vmatprep.subr.bf16.mxu0 0
    %2814 = vmatpush1.bf16.msra.mxu0 0
    %2815 = vmatprep.subr.bf16.mxu0 0
    %2816 = vmatpush1.bf16.msra.mxu0 0
    %2817 = vmatprep.subr.bf16.mxu0 0
    %2818 = vmatpush1.bf16.msra.mxu0 0
    %2819 = vmatprep.subr.bf16.mxu0 0
    %2820 = vmatpush1.bf16.msra.mxu0 0
    %2821 = vmatprep.subr.bf16.mxu0 0
    %2822 = vmatpush1.bf16.msra.mxu0 0
    %2823 = vmatprep.subr.bf16.mxu0 0
    %2824 = vmatpush1.bf16.msra.mxu0 0
    %2825 = vmatprep.subr.bf16.mxu0 0
    %2826 = vmatpush1.bf16.msra.mxu0 0
    %2827 = vmatprep.subr.bf16.mxu0 0
    %2828 = vmatpush1.bf16.msra.mxu0 0
    %2829 = vmatprep.subr.bf16.mxu0 0
    %2830 = vmatpush1.bf16.msra.mxu0 0
    %2831 = vmatprep.mubr.bf16.mxu0 0
    %2832 = vmatmul.mubr.bf16.gmra.mrb[0].mxu0 %v2705
    %v2833 = vpop.f32.mrb[0].mxu0
    %v2834 = vadd.f32 0.0, %v2833
    %v2835 = vpop.f32.mrb[0].mxu0
    %v2836 = vpop.f32.mrb[0].mxu0
    %v2837 = vpop.f32.mrb[0].mxu0
    %2838 = vdwg.mxu0
    %v2839 = vadd.f32 %v2796, %v2834
    %v2840 = vxor.u32 %v2839, 2147483648
    %v2841 = vmul.f32 %v2840, 1.442695
    %v2842 = vpow.pop %v2841
    %v2843 = vadd.f32 %v2842, 1.0
    %v2844 = vrcp.pop %v2843
    %v2845 = vmul.f32 1.0, %v2844
    %2846 = vmatprep.subr.bf16.mxu0 0
    %2847 = vmatpush1.bf16.msra.mxu0 %v122
    %2848 = vmatprep.subr.bf16.mxu0 0
    %2849 = vmatpush1.bf16.msra.mxu0 0
    %2850 = vmatprep.subr.bf16.mxu0 0
    %2851 = vmatpush1.bf16.msra.mxu0 0
    %2852 = vmatprep.subr.bf16.mxu0 0
    %2853 = vmatpush1.bf16.msra.mxu0 0
    %2854 = vmatprep.subr.bf16.mxu0 0
    %2855 = vmatpush1.bf16.msra.mxu0 0
    %2856 = vmatprep.subr.bf16.mxu0 0
    %2857 = vmatpush1.bf16.msra.mxu0 0
    %2858 = vmatprep.subr.bf16.mxu0 0
    %2859 = vmatpush1.bf16.msra.mxu0 0
    %2860 = vmatprep.subr.bf16.mxu0 0
    %2861 = vmatpush1.bf16.msra.mxu0 0
    %2862 = vmatprep.subr.bf16.mxu0 0
    %2863 = vmatpush1.bf16.msra.mxu0 0
    %2864 = vmatprep.subr.bf16.mxu0 0
    %2865 = vmatpush1.bf16.msra.mxu0 0
    %2866 = vmatprep.subr.bf16.mxu0 0
    %2867 = vmatpush1.bf16.msra.mxu0 0
    %2868 = vmatprep.subr.bf16.mxu0 0
    %2869 = vmatpush1.bf16.msra.mxu0 0
    %2870 = vmatprep.subr.bf16.mxu0 0
    %2871 = vmatpush1.bf16.msra.mxu0 0
    %2872 = vmatprep.subr.bf16.mxu0 0
    %2873 = vmatpush1.bf16.msra.mxu0 0
    %2874 = vmatprep.subr.bf16.mxu0 0
    %2875 = vmatpush1.bf16.msra.mxu0 0
    %2876 = vmatprep.subr.bf16.mxu0 0
    %2877 = vmatpush1.bf16.msra.mxu0 0
    %2878 = vmatprep.mubr.bf16.mxu0 0
    %2879 = vmatmul.mubr.bf16.gmra.mrb[0].mxu0 %v2705
    %v2880 = vpop.f32.mrb[0].mxu0
    %v2881 = vadd.f32 0.0, %v2880
    %v2882 = vpop.f32.mrb[0].mxu0
    %v2883 = vpop.f32.mrb[0].mxu0
    %v2884 = vpop.f32.mrb[0].mxu0
    %2885 = vdwg.mxu0
    %v2886 = vadd.f32 %v2797, %v2881
    %v2887 = vxor.u32 %v2886, 2147483648
    %v2888 = vmul.f32 %v2887, 1.442695
    %v2889 = vpow.pop %v2888
    %v2890 = vadd.f32 %v2889, 1.0
    %v2891 = vrcp.pop %v2890
    %v2892 = vmul.f32 1.0, %v2891
    %2893 = vmatprep.subr.bf16.mxu0 0
    %2894 = vmatpush1.bf16.msra.mxu0 %v181
    %2895 = vmatprep.subr.bf16.mxu0 0
    %2896 = vmatpush1.bf16.msra.mxu0 0
    %2897 = vmatprep.subr.bf16.mxu0 0
    %2898 = vmatpush1.bf16.msra.mxu0 0
    %2899 = vmatprep.subr.bf16.mxu0 0
    %2900 = vmatpush1.bf16.msra.mxu0 0
    %2901 = vmatprep.subr.bf16.mxu0 0
    %2902 = vmatpush1.bf16.msra.mxu0 0
    %2903 = vmatprep.subr.bf16.mxu0 0
    %2904 = vmatpush1.bf16.msra.mxu0 0
    %2905 = vmatprep.subr.bf16.mxu0 0
    %2906 = vmatpush1.bf16.msra.mxu0 0
    %2907 = vmatprep.subr.bf16.mxu0 0
    %2908 = vmatpush1.bf16.msra.mxu0 0
    %2909 = vmatprep.subr.bf16.mxu0 0
    %2910 = vmatpush1.bf16.msra.mxu0 0
    %2911 = vmatprep.subr.bf16.mxu0 0
    %2912 = vmatpush1.bf16.msra.mxu0 0
    %2913 = vmatprep.subr.bf16.mxu0 0
    %2914 = vmatpush1.bf16.msra.mxu0 0
    %2915 = vmatprep.subr.bf16.mxu0 0
    %2916 = vmatpush1.bf16.msra.mxu0 0
    %2917 = vmatprep.subr.bf16.mxu0 0
    %2918 = vmatpush1.bf16.msra.mxu0 0
    %2919 = vmatprep.subr.bf16.mxu0 0
    %2920 = vmatpush1.bf16.msra.mxu0 0
    %2921 = vmatprep.subr.bf16.mxu0 0
    %2922 = vmatpush1.bf16.msra.mxu0 0
    %2923 = vmatprep.subr.bf16.mxu0 0
    %2924 = vmatpush1.bf16.msra.mxu0 0
    %2925 = vmatprep.mubr.bf16.mxu0 0
    %2926 = vmatmul.mubr.bf16.gmra.mrb[0].mxu0 %v2705
    %v2927 = vpop.f32.mrb[0].mxu0
    %v2928 = vadd.f32 %v175, %v2927
    %v2929 = vpop.f32.mrb[0].mxu0
    %v2930 = vpop.f32.mrb[0].mxu0
    %v2931 = vpop.f32.mrb[0].mxu0
    %2932 = vdwg.mxu0
    %v2933 = vmul.f32 %v2845, %v2928
    %v2934 = vadd.f32 %v2798, %v2933
    %v2935 = vtanh.pop %v2934
    %v2936 = vsub.f32 1.0, %v2892
    %v2937 = vmul.f32 %v2936, %v2935
    %v2938 = vmul.f32 %v2892, %v2557
    %v2939 = vadd.f32 %v2937, %v2938
    %v2940 = vld [vmem:[%s1] sm:$0x3]
    %v2941 = vld [vmem:[%s1 + $0x2] sm:$0x3]
    %v2942 = vld [vmem:[%s1 + $0x4] sm:$0x3]
    %2943 = vmatprep.subr.bf16.mxu0 0
    %2944 = vmatpush1.bf16.msra.mxu0 %v238
    %2945 = vmatprep.subr.bf16.mxu0 0
    %2946 = vmatpush1.bf16.msra.mxu0 0
    %2947 = vmatprep.subr.bf16.mxu0 0
    %2948 = vmatpush1.bf16.msra.mxu0 0
    %2949 = vmatprep.subr.bf16.mxu0 0
    %2950 = vmatpush1.bf16.msra.mxu0 0
    %2951 = vmatprep.subr.bf16.mxu0 0
    %2952 = vmatpush1.bf16.msra.mxu0 0
    %2953 = vmatprep.subr.bf16.mxu0 0
    %2954 = vmatpush1.bf16.msra.mxu0 0
    %2955 = vmatprep.subr.bf16.mxu0 0
    %2956 = vmatpush1.bf16.msra.mxu0 0
    %2957 = vmatprep.subr.bf16.mxu0 0
    %2958 = vmatpush1.bf16.msra.mxu0 0
    %2959 = vmatprep.subr.bf16.mxu0 0
    %2960 = vmatpush1.bf16.msra.mxu0 0
    %2961 = vmatprep.subr.bf16.mxu0 0
    %2962 = vmatpush1.bf16.msra.mxu0 0
    %2963 = vmatprep.subr.bf16.mxu0 0
    %2964 = vmatpush1.bf16.msra.mxu0 0
    %2965 = vmatprep.subr.bf16.mxu0 0
    %2966 = vmatpush1.bf16.msra.mxu0 0
    %2967 = vmatprep.subr.bf16.mxu0 0
    %2968 = vmatpush1.bf16.msra.mxu0 0
    %2969 = vmatprep.subr.bf16.mxu0 0
    %2970 = vmatpush1.bf16.msra.mxu0 0
    %2971 = vmatprep.subr.bf16.mxu0 0
    %2972 = vmatpush1.bf16.msra.mxu0 0
    %2973 = vmatprep.subr.bf16.mxu0 0
    %2974 = vmatpush1.bf16.msra.mxu0 0
    %2975 = vmatprep.mubr.bf16.mxu0 0
    %2976 = vmatmul.mubr.bf16.gmra.mrb[0].mxu0 %v2751
    %v2977 = vpop.f32.mrb[0].mxu0
    %v2978 = vadd.f32 0.0, %v2977
    %v2979 = vpop.f32.mrb[0].mxu0
    %v2980 = vpop.f32.mrb[0].mxu0
    %v2981 = vpop.f32.mrb[0].mxu0
    %2982 = vdwg.mxu0
    %v2983 = vadd.f32 %v2940, %v2978
    %v2984 = vxor.u32 %v2983, 2147483648
    %v2985 = vmul.f32 %v2984, 1.442695
    %v2986 = vpow.pop %v2985
    %v2987 = vadd.f32 %v2986, 1.0
    %v2988 = vrcp.pop %v2987
    %v2989 = vmul.f32 1.0, %v2988
    %2990 = vmatprep.subr.bf16.mxu0 0
    %2991 = vmatpush1.bf16.msra.mxu0 %v291
    %2992 = vmatprep.subr.bf16.mxu0 0
    %2993 = vmatpush1.bf16.msra.mxu0 0
    %2994 = vmatprep.subr.bf16.mxu0 0
    %2995 = vmatpush1.bf16.msra.mxu0 0
    %2996 = vmatprep.subr.bf16.mxu0 0
    %2997 = vmatpush1.bf16.msra.mxu0 0
    %2998 = vmatprep.subr.bf16.mxu0 0
    %2999 = vmatpush1.bf16.msra.mxu0 0
    %3000 = vmatprep.subr.bf16.mxu0 0
    %3001 = vmatpush1.bf16.msra.mxu0 0
    %3002 = vmatprep.subr.bf16.mxu0 0
    %3003 = vmatpush1.bf16.msra.mxu0 0
    %3004 = vmatprep.subr.bf16.mxu0 0
    %3005 = vmatpush1.bf16.msra.mxu0 0
    %3006 = vmatprep.subr.bf16.mxu0 0
    %3007 = vmatpush1.bf16.msra.mxu0 0
    %3008 = vmatprep.subr.bf16.mxu0 0
    %3009 = vmatpush1.bf16.msra.mxu0 0
    %3010 = vmatprep.subr.bf16.mxu0 0
    %3011 = vmatpush1.bf16.msra.mxu0 0
    %3012 = vmatprep.subr.bf16.mxu0 0
    %3013 = vmatpush1.bf16.msra.mxu0 0
    %3014 = vmatprep.subr.bf16.mxu0 0
    %3015 = vmatpush1.bf16.msra.mxu0 0
    %3016 = vmatprep.subr.bf16.mxu0 0
    %3017 = vmatpush1.bf16.msra.mxu0 0
    %3018 = vmatprep.subr.bf16.mxu0 0
    %3019 = vmatpush1.bf16.msra.mxu0 0
    %3020 = vmatprep.subr.bf16.mxu0 0
    %3021 = vmatpush1.bf16.msra.mxu0 0
    %3022 = vmatprep.mubr.bf16.mxu0 0
    %3023 = vmatmul.mubr.bf16.gmra.mrb[0].mxu0 %v2751
    %v3024 = vpop.f32.mrb[0].mxu0
    %v3025 = vadd.f32 0.0, %v3024
    %v3026 = vpop.f32.mrb[0].mxu0
    %v3027 = vpop.f32.mrb[0].mxu0
    %v3028 = vpop.f32.mrb[0].mxu0
    %3029 = vdwg.mxu0
    %v3030 = vadd.f32 %v2941, %v3025
    %v3031 = vxor.u32 %v3030, 2147483648
    %v3032 = vmul.f32 %v3031, 1.442695
    %v3033 = vpow.pop %v3032
    %v3034 = vadd.f32 %v3033, 1.0
    %v3035 = vrcp.pop %v3034
    %v3036 = vmul.f32 1.0, %v3035
    %3037 = vmatprep.subr.bf16.mxu0 0
    %3038 = vmatpush1.bf16.msra.mxu0 %v350
    %3039 = vmatprep.subr.bf16.mxu0 0
    %3040 = vmatpush1.bf16.msra.mxu0 0
    %3041 = vmatprep.subr.bf16.mxu0 0
    %3042 = vmatpush1.bf16.msra.mxu0 0
    %3043 = vmatprep.subr.bf16.mxu0 0
    %3044 = vmatpush1.bf16.msra.mxu0 0
    %3045 = vmatprep.subr.bf16.mxu0 0
    %3046 = vmatpush1.bf16.msra.mxu0 0
    %3047 = vmatprep.subr.bf16.mxu0 0
    %3048 = vmatpush1.bf16.msra.mxu0 0
    %3049 = vmatprep.subr.bf16.mxu0 0
    %3050 = vmatpush1.bf16.msra.mxu0 0
    %3051 = vmatprep.subr.bf16.mxu0 0
    %3052 = vmatpush1.bf16.msra.mxu0 0
    %3053 = vmatprep.subr.bf16.mxu0 0
    %3054 = vmatpush1.bf16.msra.mxu0 0
    %3055 = vmatprep.subr.bf16.mxu0 0
    %3056 = vmatpush1.bf16.msra.mxu0 0
    %3057 = vmatprep.subr.bf16.mxu0 0
    %3058 = vmatpush1.bf16.msra.mxu0 0
    %3059 = vmatprep.subr.bf16.mxu0 0
    %3060 = vmatpush1.bf16.msra.mxu0 0
    %3061 = vmatprep.subr.bf16.mxu0 0
    %3062 = vmatpush1.bf16.msra.mxu0 0
    %3063 = vmatprep.subr.bf16.mxu0 0
    %3064 = vmatpush1.bf16.msra.mxu0 0
    %3065 = vmatprep.subr.bf16.mxu0 0
    %3066 = vmatpush1.bf16.msra.mxu0 0
    %3067 = vmatprep.subr.bf16.mxu0 0
    %3068 = vmatpush1.bf16.msra.mxu0 0
    %3069 = vmatprep.mubr.bf16.mxu0 0
    %3070 = vmatmul.mubr.bf16.gmra.mrb[0].mxu0 %v2751
    %v3071 = vpop.f32.mrb[0].mxu0
    %v3072 = vadd.f32 %v344, %v3071
    %v3073 = vpop.f32.mrb[0].mxu0
    %v3074 = vpop.f32.mrb[0].mxu0
    %v3075 = vpop.f32.mrb[0].mxu0
    %3076 = vdwg.mxu0
    %v3077 = vmul.f32 %v2989, %v3072
    %v3078 = vadd.f32 %v2942, %v3077
    %v3079 = vtanh.pop %v3078
    %v3080 = vsub.f32 1.0, %v3036
    %v3081 = vmul.f32 %v3080, %v3079
    %v3082 = vmul.f32 %v3036, %v2702
    %v3083 = vadd.f32 %v3081, %v3082
    %v3084 = vpack.c.bf16 %v2939, %v2939
    %v3086 = vsel %vm67, %v3084, 0
    %3088 = vmatprep.subr.bf16.mxu0 0
    %3089 = vmatpush1.bf16.msra.mxu0 %v404
    %3090 = vmatprep.subr.bf16.mxu0 0
    %3091 = vmatpush1.bf16.msra.mxu0 0
    %3092 = vmatprep.subr.bf16.mxu0 0
    %3093 = vmatpush1.bf16.msra.mxu0 0
    %3094 = vmatprep.subr.bf16.mxu0 0
    %3095 = vmatpush1.bf16.msra.mxu0 0
    %3096 = vmatprep.subr.bf16.mxu0 0
    %3097 = vmatpush1.bf16.msra.mxu0 0
    %3098 = vmatprep.subr.bf16.mxu0 0
    %3099 = vmatpush1.bf16.msra.mxu0 0
    %3100 = vmatprep.subr.bf16.mxu0 0
    %3101 = vmatpush1.bf16.msra.mxu0 0
    %3102 = vmatprep.subr.bf16.mxu0 0
    %3103 = vmatpush1.bf16.msra.mxu0 0
    %3104 = vmatprep.subr.bf16.mxu0 0
    %3105 = vmatpush1.bf16.msra.mxu0 0
    %3106 = vmatprep.subr.bf16.mxu0 0
    %3107 = vmatpush1.bf16.msra.mxu0 0
    %3108 = vmatprep.subr.bf16.mxu0 0
    %3109 = vmatpush1.bf16.msra.mxu0 0
    %3110 = vmatprep.subr.bf16.mxu0 0
    %3111 = vmatpush1.bf16.msra.mxu0 0
    %3112 = vmatprep.subr.bf16.mxu0 0
    %3113 = vmatpush1.bf16.msra.mxu0 0
    %3114 = vmatprep.subr.bf16.mxu0 0
    %3115 = vmatpush1.bf16.msra.mxu0 0
    %3116 = vmatprep.subr.bf16.mxu0 0
    %3117 = vmatpush1.bf16.msra.mxu0 0
    %3118 = vmatprep.subr.bf16.mxu0 0
    %3119 = vmatpush1.bf16.msra.mxu0 0
    %3120 = vmatprep.mubr.bf16.mxu0 0
    %3121 = vmatmul.mubr.bf16.gmra.mrb[0].mxu0 %v3086
    %v3122 = vpop.f32.mrb[0].mxu0
    %v3123 = vadd.f32 0.0, %v3122
    %v3124 = vpop.f32.mrb[0].mxu0
    %v3125 = vpop.f32.mrb[0].mxu0
    %v3126 = vpop.f32.mrb[0].mxu0
    %3127 = vdwg.mxu0
    %s3128 = scalar_lea.vmem %s10, 14
    %3129 = vst.msk [vmem:[%s3128] sm:$0x3] %vm449, %v3123
    %v3130 = vpack.c.bf16 %v3083, %v3083
    %v3132 = vsel %vm67, %v3130, 0
    %3134 = vmatprep.subr.bf16.mxu0 0
    %3135 = vmatpush1.bf16.msra.mxu0 %v456
    %3136 = vmatprep.subr.bf16.mxu0 0
    %3137 = vmatpush1.bf16.msra.mxu0 0
    %3138 = vmatprep.subr.bf16.mxu0 0
    %3139 = vmatpush1.bf16.msra.mxu0 0
    %3140 = vmatprep.subr.bf16.mxu0 0
    %3141 = vmatpush1.bf16.msra.mxu0 0
    %3142 = vmatprep.subr.bf16.mxu0 0
    %3143 = vmatpush1.bf16.msra.mxu0 0
    %3144 = vmatprep.subr.bf16.mxu0 0
    %3145 = vmatpush1.bf16.msra.mxu0 0
    %3146 = vmatprep.subr.bf16.mxu0 0
    %3147 = vmatpush1.bf16.msra.mxu0 0
    %3148 = vmatprep.subr.bf16.mxu0 0
    %3149 = vmatpush1.bf16.msra.mxu0 0
    %3150 = vmatprep.subr.bf16.mxu0 0
    %3151 = vmatpush1.bf16.msra.mxu0 0
    %3152 = vmatprep.subr.bf16.mxu0 0
    %3153 = vmatpush1.bf16.msra.mxu0 0
    %3154 = vmatprep.subr.bf16.mxu0 0
    %3155 = vmatpush1.bf16.msra.mxu0 0
    %3156 = vmatprep.subr.bf16.mxu0 0
    %3157 = vmatpush1.bf16.msra.mxu0 0
    %3158 = vmatprep.subr.bf16.mxu0 0
    %3159 = vmatpush1.bf16.msra.mxu0 0
    %3160 = vmatprep.subr.bf16.mxu0 0
    %3161 = vmatpush1.bf16.msra.mxu0 0
    %3162 = vmatprep.subr.bf16.mxu0 0
    %3163 = vmatpush1.bf16.msra.mxu0 0
    %3164 = vmatprep.subr.bf16.mxu0 0
    %3165 = vmatpush1.bf16.msra.mxu0 0
    %3166 = vmatprep.mubr.bf16.mxu0 0
    %3167 = vmatmul.mubr.bf16.gmra.mrb[0].mxu0 %v3132
    %v3168 = vpop.f32.mrb[0].mxu0
    %v3169 = vadd.f32 0.0, %v3168
    %v3170 = vpop.f32.mrb[0].mxu0
    %v3171 = vpop.f32.mrb[0].mxu0
    %v3172 = vpop.f32.mrb[0].mxu0
    %3173 = vdwg.mxu0
    %s3174 = scalar_lea.vmem %s10, 16
    %3175 = vst.msk [vmem:[%s3174] sm:$0x3] %vm449, %v3169
    %3176 = vst.msk [vmem:[%s11] sm:$0x3] %vm449, %v2939
    %s3177 = scalar_lea.vmem %s11, 2
    %3178 = vst.msk [vmem:[%s3177] sm:$0x3] %vm449, %v3083
    %v3179 = vld [vmem:[%s8] sm:$0xf]
    %v3180 = vld [vmem:[%s8 + $0x4] sm:$0xf]
    %v3181 = vld [vmem:[%s9] sm:$0xf]
    %v3182 = vld [vmem:[%s9 + $0x4] sm:$0xf]
    %v3185 = vunpack.c.l.b16 %v3181
    %v3186 = vunpack.c.l.b16 %v3182
    %v3187 = vpack.c.b16 %v3186, %v3185
    %3189 = vmatprep.subr.bf16.mxu0 0
    %3190 = vmatpush1.bf16.msra.mxu0 %v3187
    %3191 = vmatprep.subr.bf16.mxu0 0
    %3192 = vmatpush1.bf16.msra.mxu0 0
    %3193 = vmatprep.subr.bf16.mxu0 0
    %3194 = vmatpush1.bf16.msra.mxu0 0
    %3195 = vmatprep.subr.bf16.mxu0 0
    %3196 = vmatpush1.bf16.msra.mxu0 0
    %3197 = vmatprep.subr.bf16.mxu0 0
    %3198 = vmatpush1.bf16.msra.mxu0 0
    %3199 = vmatprep.subr.bf16.mxu0 0
    %3200 = vmatpush1.bf16.msra.mxu0 0
    %3201 = vmatprep.subr.bf16.mxu0 0
    %3202 = vmatpush1.bf16.msra.mxu0 0
    %3203 = vmatprep.subr.bf16.mxu0 0
    %3204 = vmatpush1.bf16.msra.mxu0 0
    %3205 = vmatprep.subr.bf16.mxu0 0
    %3206 = vmatpush1.bf16.msra.mxu0 0
    %3207 = vmatprep.subr.bf16.mxu0 0
    %3208 = vmatpush1.bf16.msra.mxu0 0
    %3209 = vmatprep.subr.bf16.mxu0 0
    %3210 = vmatpush1.bf16.msra.mxu0 0
    %3211 = vmatprep.subr.bf16.mxu0 0
    %3212 = vmatpush1.bf16.msra.mxu0 0
    %3213 = vmatprep.subr.bf16.mxu0 0
    %3214 = vmatpush1.bf16.msra.mxu0 0
    %3215 = vmatprep.subr.bf16.mxu0 0
    %3216 = vmatpush1.bf16.msra.mxu0 0
    %3217 = vmatprep.subr.bf16.mxu0 0
    %3218 = vmatpush1.bf16.msra.mxu0 0
    %3219 = vmatprep.subr.bf16.mxu0 0
    %3220 = vmatpush1.bf16.msra.mxu0 0
    %3221 = vmatprep.mubr.bf16.mxu0 0
    %3222 = vmatmul.mubr.bf16.gmra.mrb[0].mxu0 %v3132
    %v3223 = vpop.f32.mrb[0].mxu0
    %v3224 = vadd.f32 0.0, %v3223
    %v3225 = vpop.f32.mrb[0].mxu0
    %v3226 = vpop.f32.mrb[0].mxu0
    %v3227 = vpop.f32.mrb[0].mxu0
    %3228 = vdwg.mxu0
    %v3231 = vunpack.c.l.b16 %v3179
    %v3232 = vunpack.c.l.b16 %v3180
    %v3233 = vpack.c.b16 %v3232, %v3231
    %3235 = vmatprep.subr.bf16.mxu0 0
    %3236 = vmatpush1.bf16.msra.mxu0 %v3233
    %3237 = vmatprep.subr.bf16.mxu0 0
    %3238 = vmatpush1.bf16.msra.mxu0 0
    %3239 = vmatprep.subr.bf16.mxu0 0
    %3240 = vmatpush1.bf16.msra.mxu0 0
    %3241 = vmatprep.subr.bf16.mxu0 0
    %3242 = vmatpush1.bf16.msra.mxu0 0
    %3243 = vmatprep.subr.bf16.mxu0 0
    %3244 = vmatpush1.bf16.msra.mxu0 0
    %3245 = vmatprep.subr.bf16.mxu0 0
    %3246 = vmatpush1.bf16.msra.mxu0 0
    %3247 = vmatprep.subr.bf16.mxu0 0
    %3248 = vmatpush1.bf16.msra.mxu0 0
    %3249 = vmatprep.subr.bf16.mxu0 0
    %3250 = vmatpush1.bf16.msra.mxu0 0
    %3251 = vmatprep.subr.bf16.mxu0 0
    %3252 = vmatpush1.bf16.msra.mxu0 0
    %3253 = vmatprep.subr.bf16.mxu0 0
    %3254 = vmatpush1.bf16.msra.mxu0 0
    %3255 = vmatprep.subr.bf16.mxu0 0
    %3256 = vmatpush1.bf16.msra.mxu0 0
    %3257 = vmatprep.subr.bf16.mxu0 0
    %3258 = vmatpush1.bf16.msra.mxu0 0
    %3259 = vmatprep.subr.bf16.mxu0 0
    %3260 = vmatpush1.bf16.msra.mxu0 0
    %3261 = vmatprep.subr.bf16.mxu0 0
    %3262 = vmatpush1.bf16.msra.mxu0 0
    %3263 = vmatprep.subr.bf16.mxu0 0
    %3264 = vmatpush1.bf16.msra.mxu0 0
    %3265 = vmatprep.subr.bf16.mxu0 0
    %3266 = vmatpush1.bf16.msra.mxu0 0
    %3267 = vmatprep.mubr.bf16.mxu0 0
    %3268 = vmatmul.mubr.bf16.gmra.mrb[0].mxu0 %v3086
    %v3269 = vpop.f32.mrb[0].mxu0
    %v3270 = vadd.f32 %v3224, %v3269
    %v3271 = vpop.f32.mrb[0].mxu0
    %v3272 = vpop.f32.mrb[0].mxu0
    %v3273 = vpop.f32.mrb[0].mxu0
    %3274 = vdwg.mxu0
    %3275 = vst.msk [vmem:[#allocation2] sm:$0x3] %vm449, %v3270
    // Predicated region
    $region42: #{seq2seq_forward.2} parent=1 // pred_check
      _
    $region43: #{seq2seq_forward.2} parent=1 // pred_check_branch
      %3277 = sbr.rel (0) target = $region45
    $region44: #{seq2seq_forward.2} parent=1 // pred_region
      _
    $region45: #{seq2seq_forward.2} parent=1 // pred_fallthru
      _
    // Predicated region
    $region46: #{seq2seq_forward.2} parent=1 // pred_check
      _
    $region47: #{seq2seq_forward.2} parent=1 // pred_check_branch
      %3279 = sbr.rel (0) target = $region49
    $region48: #{seq2seq_forward.2} parent=1 // pred_region
      _
    $region49: #{seq2seq_forward.2} parent=1 // pred_fallthru
      _
    // Predicated region
    $region50: #{seq2seq_forward.2} parent=1 // pred_check
      _
    $region51: #{seq2seq_forward.2} parent=1 // pred_check_branch
      %3281 = sbr.rel (0) target = $region53
    $region52: #{seq2seq_forward.2} parent=1 // pred_region
      %s3283 = ssub.s32 32, 32
      %3284 = vsyncadd [#allocation3], %s3283
      %s3286 = sshll.u32 [#allocation2], 4
      %s3287 = int_to_ptr.vmem [resolvable:$true] %s3286
      %3289 = dma.vmem_to_hbm [thread:$0]  %s3287, 32, %s12, [#allocation3]
    $region53: #{seq2seq_forward.2} parent=1 // pred_fallthru
      _
    // Predicated region
    $region54: #{seq2seq_forward.2} parent=1 // pred_check
      _
    $region55: #{seq2seq_forward.2} parent=1 // pred_check_branch
      %3291 = sbr.rel (0) target = $region57
    $region56: #{seq2seq_forward.2} parent=1 // pred_region
      _
    $region57: #{seq2seq_forward.2} parent=1 // pred_fallthru
      _
    // Predicated region
    $region58: #{seq2seq_forward.2} parent=1 // pred_check
      _
    $region59: #{seq2seq_forward.2} parent=1 // pred_check_branch
      %3293 = sbr.rel (0) target = $region61
    $region60: #{seq2seq_forward.2} parent=1 // pred_region
      _
    $region61: #{seq2seq_forward.2} parent=1 // pred_fallthru
      _
    // Predicated region
    $region62: #{seq2seq_forward.2} parent=1 // pred_check
      _
    $region63: #{seq2seq_forward.2} parent=1 // pred_check_branch
      %3295 = sbr.rel (0) target = $region65
    $region64: #{seq2seq_forward.2} parent=1 // pred_region
      %3296 = dma.done [#allocation3], 32
    $region65: #{seq2seq_forward.2} parent=1 // pred_fallthru
      _
    %3297 = vsyncpa [#allocation3], 1

</llo_original>
